<compile_context>
chip_gen: v7x
topology: tpu7x:2x2x1
jax: 0.10.0
libtpu: 0.0.40
codegen_flags: <defaults>
</compile_context>

<pallas_src>
import functools
import math

import jax
import jax.numpy as jnp
from jax.experimental import pallas as pl
from jax.experimental.pallas import tpu as pltpu


def _conv3x3_taps(src_ref, get_w, bias_row, H, W, cin, cout):
    """3x3 SAME conv on a padded (H+2, W+2, cin) VMEM ref -> (H*W, cout) f32.

    src_ref : padded activation scratch (f32, zero halo ring)
    get_w   : (dy, dx) -> (cin, cout) bf16 weight tap
    bias_row: (1, cout) f32 bias (used to initialize the accumulator)
    """
    acc = jnp.broadcast_to(bias_row, (H * W, cout)).astype(jnp.float32)
    for dy in range(3):
        for dx in range(3):
            patch = src_ref[dy:dy + H, dx:dx + W, :].reshape(H * W, cin)
            acc = acc + jnp.dot(patch.astype(jnp.bfloat16), get_w(dy, dx),
                                preferred_element_type=jnp.float32)
    return acc


def _fused_subnet_kernel(x_ref, wb_ref, bb_ref, wo_ref, bo_ref, o_ref,
                         buf0, buf1, *, H, W, depth):
    """Fused SubNet forward for one batch element.

    x_ref : (1, H, W, Cin)            input activation (f32)
    wb_ref: (depth, 3, 3, Cin, Cin)   base conv weights (bf16)
    bb_ref: (depth, 1, Cin)           base conv biases (f32)
    wo_ref: (3, 3, Cin, CoutPad)      output conv weights (bf16, zero-padded)
    bo_ref: (1, CoutPad)              output conv bias (f32, zero-padded)
    o_ref : (1, H, W, CoutPad)        output (f32, lane-dense)
    buf0/buf1: (H+2, W+2, Cin) f32 VMEM ping-pong activation buffers
    """
    cin = x_ref.shape[-1]
    cout = o_ref.shape[-1]

    # Zero both padded buffers (establishes the zero halo ring for SAME pad).
    buf0[...] = jnp.zeros_like(buf0)
    buf1[...] = jnp.zeros_like(buf1)

    # Load this batch element into the interior of buf0.
    buf0[1:H + 1, 1:W + 1, :] = x_ref[0]

    bufs = (buf0, buf1)
    cur = 0
    for l in range(depth):
        src, dst = bufs[cur], bufs[1 - cur]
        acc = _conv3x3_taps(
            src, lambda dy, dx, l=l: wb_ref[l, dy, dx], bb_ref[l], H, W, cin, cin)
        acc = jnp.maximum(acc, 0.0)                      # base_activation = ReLU
        dst[1:H + 1, 1:W + 1, :] = acc.reshape(H, W, cin)
        cur = 1 - cur

    # Output conv (no output_activation in forward()).
    acc = _conv3x3_taps(
        bufs[cur], lambda dy, dx: wo_ref[dy, dx], bo_ref[...], H, W, cin, cout)
    o_ref[0] = acc.reshape(H, W, cout).astype(o_ref.dtype)


def subnet_forward(x_nchw, params):
    """SubNet.forward: depth x (conv3x3 + relu) then output conv3x3. NCHW in/out."""
    x = jnp.transpose(x_nchw, (0, 2, 3, 1))  # NCHW -> NHWC (once for whole head)
    N, H, W, cin = x.shape
    depth = len(params["base"])

    # Pack parameters: bf16 MXU operands, f32 biases.
    wb = jnp.stack([w for (w, _) in params["base"]]).astype(jnp.bfloat16)
    bb = jnp.stack([b for (_, b) in params["base"]]).reshape(depth, 1, cin)
    wo, bo = params["output"]
    out_ch = wo.shape[-1]
    cout_pad = max(128, ((out_ch + 127) // 128) * 128)   # lane-dense output
    wo_p = (jnp.zeros((3, 3, cin, cout_pad), jnp.float32)
            .at[..., :out_ch].set(wo).astype(jnp.bfloat16))
    bo_p = jnp.zeros((1, cout_pad), jnp.float32).at[0, :out_ch].set(bo)

    kernel = functools.partial(_fused_subnet_kernel, H=H, W=W, depth=depth)
    y = pl.pallas_call(
        kernel,
        out_shape=jax.ShapeDtypeStruct((N, H, W, cout_pad), x.dtype),
        grid=(N,),
        in_specs=[
            pl.BlockSpec((1, H, W, cin), lambda n: (n, 0, 0, 0)),
            pl.BlockSpec((depth, 3, 3, cin, cin), lambda n: (0, 0, 0, 0, 0)),
            pl.BlockSpec((depth, 1, cin), lambda n: (0, 0, 0)),
            pl.BlockSpec((3, 3, cin, cout_pad), lambda n: (0, 0, 0, 0)),
            pl.BlockSpec((1, cout_pad), lambda n: (0, 0)),
        ],
        out_specs=pl.BlockSpec((1, H, W, cout_pad), lambda n: (n, 0, 0, 0)),
        scratch_shapes=[
            pltpu.VMEM((H + 2, W + 2, cin), jnp.float32),
            pltpu.VMEM((H + 2, W + 2, cin), jnp.float32),
        ],
        compiler_params=pltpu.CompilerParams(
            dimension_semantics=("parallel",)),
    )(x, wb, bb, wo_p, bo_p)

    y = y[..., :out_ch]                       # drop the zero-padded channels
    return jnp.transpose(y, (0, 3, 1, 2))     # NHWC -> NCHW


def init_subnet_params(key, mode, anchors, classes, depth, in_ch=256):
    """Deterministic synthetic parameter init (shapes match the PyTorch module)."""
    params = {"base": []}
    for _ in range(depth):
        key, kw, kb = jax.random.split(key, 3)
        w = jax.random.normal(kw, (3, 3, in_ch, in_ch), jnp.float32) * 0.02
        b = jax.random.normal(kb, (in_ch,), jnp.float32) * 0.02
        params["base"].append((w, b))
    if mode == "boxes":
        out_ch = 4 * anchors
        key, kw, kb = jax.random.split(key, 3)
        wo = jax.random.normal(kw, (3, 3, in_ch, out_ch), jnp.float32) * 0.02
        bo = jax.random.normal(kb, (out_ch,), jnp.float32) * 0.02
    elif mode == "classes":
        out_ch = (1 + classes) * anchors
        key, kw = jax.random.split(key)
        wo = jax.random.normal(kw, (3, 3, in_ch, out_ch), jnp.float32) * 0.02
        pi = 0.01
        bo = jnp.full((out_ch,), -math.log((1 - pi) / pi), jnp.float32)
    else:
        raise ValueError(f"Invalid mode {mode}")
    params["output"] = (wo, bo)
    return params


def _reference_forward(x_nchw, params):
    """Pure-JAX reference (lax.conv), matched to the kernel's bf16 MXU operands."""
    def conv(x, w, b):
        y = jax.lax.conv_general_dilated(
            x.astype(jnp.bfloat16), w.astype(jnp.bfloat16),
            window_strides=(1, 1), padding="SAME",
            dimension_numbers=("NCHW", "HWIO", "NCHW"),
            preferred_element_type=jnp.float32)
        return y + b.reshape(1, -1, 1, 1)
    x = x_nchw
    for (w, b) in params["base"]:
        x = jax.nn.relu(conv(x, w, b))
    wo, bo = params["output"]
    return conv(x, wo, bo)


if __name__ == "__main__":
    # Module fixes in-channels at 256; keep batch/spatial/depth small.
    N, C, H, W = 2, 256, 8, 8
    depth, anchors, classes = 2, 2, 3
    mode = "classes"

    key = jax.random.PRNGKey(0)
    key, kx = jax.random.split(key)
    x = jax.random.normal(kx, (N, C, H, W), jnp.float32)
    params = init_subnet_params(key, mode, anchors, classes, depth, in_ch=C)

    out = jax.block_until_ready(subnet_forward(x, params))
    ref = jax.block_until_ready(_reference_forward(x, params))

    assert out.shape == (N, (1 + classes) * anchors, H, W), out.shape
    assert jnp.allclose(out, ref, atol=1e-3, rtol=1e-3), (
        "mismatch vs reference, max abs diff "
        f"{float(jnp.max(jnp.abs(out - ref)))}")

    print("KERNEL_OK")
</pallas_src>

<mosaic_0001>
module attributes {stable_mosaic.version = 11 : i64} {
  func.func @_fused_subnet_kernel(%arg0: i32, %arg1: memref<1x8x8x256xf32, #tpu.memory_space<vmem>>, %arg2: memref<2x3x3x256x256xbf16, #tpu.memory_space<vmem>>, %arg3: memref<2x1x256xf32, #tpu.memory_space<vmem>>, %arg4: memref<3x3x256x128xbf16, #tpu.memory_space<vmem>>, %arg5: memref<1x128xf32, #tpu.memory_space<vmem>>, %arg6: memref<1x8x8x128xf32, #tpu.memory_space<vmem>>, %arg7: memref<10x10x256xf32, #tpu.memory_space<vmem>>, %arg8: memref<10x10x256xf32, #tpu.memory_space<vmem>>) attributes {dimension_semantics = [#tpu.dimension_semantics<parallel>], iteration_bounds = array<i64: 2>, scalar_prefetch = 0 : i64, scratch_operands = 2 : i64, tpu.core_type = #tpu.core_type<tc>, window_params = [{transform_indices = @transform_0, window_bounds = array<i64: 1, 8, 8, 256>}, {pipeline_mode = #tpu.pipeline_mode<synchronous>, transform_indices = @transform_1, window_bounds = array<i64: 2, 3, 3, 256, 256>}, {pipeline_mode = #tpu.pipeline_mode<synchronous>, transform_indices = @transform_2, window_bounds = array<i64: 2, 1, 256>}, {pipeline_mode = #tpu.pipeline_mode<synchronous>, transform_indices = @transform_3, window_bounds = array<i64: 3, 3, 256, 128>}, {pipeline_mode = #tpu.pipeline_mode<synchronous>, transform_indices = @transform_4, window_bounds = array<i64: 1, 128>}, {transform_indices = @transform_5, window_bounds = array<i64: 1, 8, 8, 128>}]} {
    %cst = arith.constant 0.000000e+00 : f32
    %0 = vector.broadcast %cst : f32 to vector<10x10x256xf32>
    %c0 = arith.constant 0 : index
    %c0_0 = arith.constant 0 : index
    %c0_1 = arith.constant 0 : index
    %1 = vector.load %arg7[%c0, %c0_0, %c0_1] : memref<10x10x256xf32, #tpu.memory_space<vmem>>, vector<10x10x256xf32>
    tpu.vector_store %arg7[%c0, %c0_0, %c0_1], %0 {strides = array<i32>} : memref<10x10x256xf32, #tpu.memory_space<vmem>>, vector<10x10x256xf32>,
    %cst_2 = arith.constant 0.000000e+00 : f32
    %2 = vector.broadcast %cst_2 : f32 to vector<10x10x256xf32>
    %c0_3 = arith.constant 0 : index
    %c0_4 = arith.constant 0 : index
    %c0_5 = arith.constant 0 : index
    %3 = vector.load %arg8[%c0_3, %c0_4, %c0_5] : memref<10x10x256xf32, #tpu.memory_space<vmem>>, vector<10x10x256xf32>
    tpu.vector_store %arg8[%c0_3, %c0_4, %c0_5], %2 {strides = array<i32>} : memref<10x10x256xf32, #tpu.memory_space<vmem>>, vector<10x10x256xf32>,
    %c0_6 = arith.constant 0 : index
    %c0_7 = arith.constant 0 : index
    %c0_8 = arith.constant 0 : index
    %c0_9 = arith.constant 0 : index
    %4 = vector.load %arg1[%c0_6, %c0_7, %c0_8, %c0_9] : memref<1x8x8x256xf32, #tpu.memory_space<vmem>>, vector<1x8x8x256xf32>
    %5 = vector.shape_cast %4 : vector<1x8x8x256xf32> to vector<8x8x256xf32>
    %c1 = arith.constant 1 : index
    %c1_10 = arith.constant 1 : index
    %c0_11 = arith.constant 0 : index
    %6 = vector.load %arg7[%c1, %c1_10, %c0_11] : memref<10x10x256xf32, #tpu.memory_space<vmem>>, vector<8x8x256xf32>
    tpu.vector_store %arg7[%c1, %c1_10, %c0_11], %5 {strides = array<i32>} : memref<10x10x256xf32, #tpu.memory_space<vmem>>, vector<8x8x256xf32>,
    %c0_12 = arith.constant 0 : index
    %c0_13 = arith.constant 0 : index
    %c0_14 = arith.constant 0 : index
    %7 = vector.load %arg3[%c0_12, %c0_13, %c0_14] : memref<2x1x256xf32, #tpu.memory_space<vmem>>, vector<1x1x256xf32>
    %8 = vector.shape_cast %7 : vector<1x1x256xf32> to vector<1x256xf32>
    %9 = vector.shape_cast %8 : vector<1x256xf32> to vector<1x256xf32>
    %10 = vector.broadcast %9 : vector<1x256xf32> to vector<64x256xf32>
    %c0_15 = arith.constant 0 : index
    %c0_16 = arith.constant 0 : index
    %c0_17 = arith.constant 0 : index
    %11 = vector.load %arg7[%c0_15, %c0_16, %c0_17] : memref<10x10x256xf32, #tpu.memory_space<vmem>>, vector<8x8x256xf32>
    %12 = vector.shape_cast %11 : vector<8x8x256xf32> to vector<64x256xf32>
    %13 = arith.truncf %12 : vector<64x256xf32> to vector<64x256xbf16>
    %c0_18 = arith.constant 0 : index
    %c0_19 = arith.constant 0 : index
    %c0_20 = arith.constant 0 : index
    %c0_21 = arith.constant 0 : index
    %c0_22 = arith.constant 0 : index
    %14 = vector.load %arg2[%c0_18, %c0_19, %c0_20, %c0_21, %c0_22] : memref<2x3x3x256x256xbf16, #tpu.memory_space<vmem>>, vector<1x1x1x256x256xbf16>
    %15 = vector.shape_cast %14 : vector<1x1x1x256x256xbf16> to vector<256x256xbf16>
    %cst_23 = arith.constant dense<0.000000e+00> : vector<64x256xf32>
    %16 = tpu.matmul %13, %15, %cst_23 {dimension_numbers = #tpu.dot_dimension_numbers<[1], [0], [0], [1], [0, 0, 1, 1], [], []>} : vector<64x256xbf16>, vector<256x256xbf16>, vector<64x256xf32> -> vector<64x256xf32>
    %17 = arith.addf %10, %16 : vector<64x256xf32>
    %c0_24 = arith.constant 0 : index
    %c1_25 = arith.constant 1 : index
    %c0_26 = arith.constant 0 : index
    %18 = vector.load %arg7[%c0_24, %c1_25, %c0_26] : memref<10x10x256xf32, #tpu.memory_space<vmem>>, vector<8x8x256xf32>
    %19 = vector.shape_cast %18 : vector<8x8x256xf32> to vector<64x256xf32>
    %20 = arith.truncf %19 : vector<64x256xf32> to vector<64x256xbf16>
    %c0_27 = arith.constant 0 : index
    %c0_28 = arith.constant 0 : index
    %c1_29 = arith.constant 1 : index
    %c0_30 = arith.constant 0 : index
    %c0_31 = arith.constant 0 : index
    %21 = vector.load %arg2[%c0_27, %c0_28, %c1_29, %c0_30, %c0_31] : memref<2x3x3x256x256xbf16, #tpu.memory_space<vmem>>, vector<1x1x1x256x256xbf16>
    %22 = vector.shape_cast %21 : vector<1x1x1x256x256xbf16> to vector<256x256xbf16>
    %cst_32 = arith.constant dense<0.000000e+00> : vector<64x256xf32>
    %23 = tpu.matmul %20, %22, %cst_32 {dimension_numbers = #tpu.dot_dimension_numbers<[1], [0], [0], [1], [0, 0, 1, 1], [], []>} : vector<64x256xbf16>, vector<256x256xbf16>, vector<64x256xf32> -> vector<64x256xf32>
    %24 = arith.addf %17, %23 : vector<64x256xf32>
    %c0_33 = arith.constant 0 : index
    %c2 = arith.constant 2 : index
    %c0_34 = arith.constant 0 : index
    %25 = vector.load %arg7[%c0_33, %c2, %c0_34] : memref<10x10x256xf32, #tpu.memory_space<vmem>>, vector<8x8x256xf32>
    %26 = vector.shape_cast %25 : vector<8x8x256xf32> to vector<64x256xf32>
    %27 = arith.truncf %26 : vector<64x256xf32> to vector<64x256xbf16>
    %c0_35 = arith.constant 0 : index
    %c0_36 = arith.constant 0 : index
    %c2_37 = arith.constant 2 : index
    %c0_38 = arith.constant 0 : index
    %c0_39 = arith.constant 0 : index
    %28 = vector.load %arg2[%c0_35, %c0_36, %c2_37, %c0_38, %c0_39] : memref<2x3x3x256x256xbf16, #tpu.memory_space<vmem>>, vector<1x1x1x256x256xbf16>
    %29 = vector.shape_cast %28 : vector<1x1x1x256x256xbf16> to vector<256x256xbf16>
    %cst_40 = arith.constant dense<0.000000e+00> : vector<64x256xf32>
    %30 = tpu.matmul %27, %29, %cst_40 {dimension_numbers = #tpu.dot_dimension_numbers<[1], [0], [0], [1], [0, 0, 1, 1], [], []>} : vector<64x256xbf16>, vector<256x256xbf16>, vector<64x256xf32> -> vector<64x256xf32>
    %31 = arith.addf %24, %30 : vector<64x256xf32>
    %c1_41 = arith.constant 1 : index
    %c0_42 = arith.constant 0 : index
    %c0_43 = arith.constant 0 : index
    %32 = vector.load %arg7[%c1_41, %c0_42, %c0_43] : memref<10x10x256xf32, #tpu.memory_space<vmem>>, vector<8x8x256xf32>
    %33 = vector.shape_cast %32 : vector<8x8x256xf32> to vector<64x256xf32>
    %34 = arith.truncf %33 : vector<64x256xf32> to vector<64x256xbf16>
    %c0_44 = arith.constant 0 : index
    %c1_45 = arith.constant 1 : index
    %c0_46 = arith.constant 0 : index
    %c0_47 = arith.constant 0 : index
    %c0_48 = arith.constant 0 : index
    %35 = vector.load %arg2[%c0_44, %c1_45, %c0_46, %c0_47, %c0_48] : memref<2x3x3x256x256xbf16, #tpu.memory_space<vmem>>, vector<1x1x1x256x256xbf16>
    %36 = vector.shape_cast %35 : vector<1x1x1x256x256xbf16> to vector<256x256xbf16>
    %cst_49 = arith.constant dense<0.000000e+00> : vector<64x256xf32>
    %37 = tpu.matmul %34, %36, %cst_49 {dimension_numbers = #tpu.dot_dimension_numbers<[1], [0], [0], [1], [0, 0, 1, 1], [], []>} : vector<64x256xbf16>, vector<256x256xbf16>, vector<64x256xf32> -> vector<64x256xf32>
    %38 = arith.addf %31, %37 : vector<64x256xf32>
    %c1_50 = arith.constant 1 : index
    %c1_51 = arith.constant 1 : index
    %c0_52 = arith.constant 0 : index
    %39 = vector.load %arg7[%c1_50, %c1_51, %c0_52] : memref<10x10x256xf32, #tpu.memory_space<vmem>>, vector<8x8x256xf32>
    %40 = vector.shape_cast %39 : vector<8x8x256xf32> to vector<64x256xf32>
    %41 = arith.truncf %40 : vector<64x256xf32> to vector<64x256xbf16>
    %c0_53 = arith.constant 0 : index
    %c1_54 = arith.constant 1 : index
    %c1_55 = arith.constant 1 : index
    %c0_56 = arith.constant 0 : index
    %c0_57 = arith.constant 0 : index
    %42 = vector.load %arg2[%c0_53, %c1_54, %c1_55, %c0_56, %c0_57] : memref<2x3x3x256x256xbf16, #tpu.memory_space<vmem>>, vector<1x1x1x256x256xbf16>
    %43 = vector.shape_cast %42 : vector<1x1x1x256x256xbf16> to vector<256x256xbf16>
    %cst_58 = arith.constant dense<0.000000e+00> : vector<64x256xf32>
    %44 = tpu.matmul %41, %43, %cst_58 {dimension_numbers = #tpu.dot_dimension_numbers<[1], [0], [0], [1], [0, 0, 1, 1], [], []>} : vector<64x256xbf16>, vector<256x256xbf16>, vector<64x256xf32> -> vector<64x256xf32>
    %45 = arith.addf %38, %44 : vector<64x256xf32>
    %c1_59 = arith.constant 1 : index
    %c2_60 = arith.constant 2 : index
    %c0_61 = arith.constant 0 : index
    %46 = vector.load %arg7[%c1_59, %c2_60, %c0_61] : memref<10x10x256xf32, #tpu.memory_space<vmem>>, vector<8x8x256xf32>
    %47 = vector.shape_cast %46 : vector<8x8x256xf32> to vector<64x256xf32>
    %48 = arith.truncf %47 : vector<64x256xf32> to vector<64x256xbf16>
    %c0_62 = arith.constant 0 : index
    %c1_63 = arith.constant 1 : index
    %c2_64 = arith.constant 2 : index
    %c0_65 = arith.constant 0 : index
    %c0_66 = arith.constant 0 : index
    %49 = vector.load %arg2[%c0_62, %c1_63, %c2_64, %c0_65, %c0_66] : memref<2x3x3x256x256xbf16, #tpu.memory_space<vmem>>, vector<1x1x1x256x256xbf16>
    %50 = vector.shape_cast %49 : vector<1x1x1x256x256xbf16> to vector<256x256xbf16>
    %cst_67 = arith.constant dense<0.000000e+00> : vector<64x256xf32>
    %51 = tpu.matmul %48, %50, %cst_67 {dimension_numbers = #tpu.dot_dimension_numbers<[1], [0], [0], [1], [0, 0, 1, 1], [], []>} : vector<64x256xbf16>, vector<256x256xbf16>, vector<64x256xf32> -> vector<64x256xf32>
    %52 = arith.addf %45, %51 : vector<64x256xf32>
    %c2_68 = arith.constant 2 : index
    %c0_69 = arith.constant 0 : index
    %c0_70 = arith.constant 0 : index
    %53 = vector.load %arg7[%c2_68, %c0_69, %c0_70] : memref<10x10x256xf32, #tpu.memory_space<vmem>>, vector<8x8x256xf32>
    %54 = vector.shape_cast %53 : vector<8x8x256xf32> to vector<64x256xf32>
    %55 = arith.truncf %54 : vector<64x256xf32> to vector<64x256xbf16>
    %c0_71 = arith.constant 0 : index
    %c2_72 = arith.constant 2 : index
    %c0_73 = arith.constant 0 : index
    %c0_74 = arith.constant 0 : index
    %c0_75 = arith.constant 0 : index
    %56 = vector.load %arg2[%c0_71, %c2_72, %c0_73, %c0_74, %c0_75] : memref<2x3x3x256x256xbf16, #tpu.memory_space<vmem>>, vector<1x1x1x256x256xbf16>
    %57 = vector.shape_cast %56 : vector<1x1x1x256x256xbf16> to vector<256x256xbf16>
    %cst_76 = arith.constant dense<0.000000e+00> : vector<64x256xf32>
    %58 = tpu.matmul %55, %57, %cst_76 {dimension_numbers = #tpu.dot_dimension_numbers<[1], [0], [0], [1], [0, 0, 1, 1], [], []>} : vector<64x256xbf16>, vector<256x256xbf16>, vector<64x256xf32> -> vector<64x256xf32>
    %59 = arith.addf %52, %58 : vector<64x256xf32>
    %c2_77 = arith.constant 2 : index
    %c1_78 = arith.constant 1 : index
    %c0_79 = arith.constant 0 : index
    %60 = vector.load %arg7[%c2_77, %c1_78, %c0_79] : memref<10x10x256xf32, #tpu.memory_space<vmem>>, vector<8x8x256xf32>
    %61 = vector.shape_cast %60 : vector<8x8x256xf32> to vector<64x256xf32>
    %62 = arith.truncf %61 : vector<64x256xf32> to vector<64x256xbf16>
    %c0_80 = arith.constant 0 : index
    %c2_81 = arith.constant 2 : index
    %c1_82 = arith.constant 1 : index
    %c0_83 = arith.constant 0 : index
    %c0_84 = arith.constant 0 : index
    %63 = vector.load %arg2[%c0_80, %c2_81, %c1_82, %c0_83, %c0_84] : memref<2x3x3x256x256xbf16, #tpu.memory_space<vmem>>, vector<1x1x1x256x256xbf16>
    %64 = vector.shape_cast %63 : vector<1x1x1x256x256xbf16> to vector<256x256xbf16>
    %cst_85 = arith.constant dense<0.000000e+00> : vector<64x256xf32>
    %65 = tpu.matmul %62, %64, %cst_85 {dimension_numbers = #tpu.dot_dimension_numbers<[1], [0], [0], [1], [0, 0, 1, 1], [], []>} : vector<64x256xbf16>, vector<256x256xbf16>, vector<64x256xf32> -> vector<64x256xf32>
    %66 = arith.addf %59, %65 : vector<64x256xf32>
    %c2_86 = arith.constant 2 : index
    %c2_87 = arith.constant 2 : index
    %c0_88 = arith.constant 0 : index
    %67 = vector.load %arg7[%c2_86, %c2_87, %c0_88] : memref<10x10x256xf32, #tpu.memory_space<vmem>>, vector<8x8x256xf32>
    %68 = vector.shape_cast %67 : vector<8x8x256xf32> to vector<64x256xf32>
    %69 = arith.truncf %68 : vector<64x256xf32> to vector<64x256xbf16>
    %c0_89 = arith.constant 0 : index
    %c2_90 = arith.constant 2 : index
    %c2_91 = arith.constant 2 : index
    %c0_92 = arith.constant 0 : index
    %c0_93 = arith.constant 0 : index
    %70 = vector.load %arg2[%c0_89, %c2_90, %c2_91, %c0_92, %c0_93] : memref<2x3x3x256x256xbf16, #tpu.memory_space<vmem>>, vector<1x1x1x256x256xbf16>
    %71 = vector.shape_cast %70 : vector<1x1x1x256x256xbf16> to vector<256x256xbf16>
    %cst_94 = arith.constant dense<0.000000e+00> : vector<64x256xf32>
    %72 = tpu.matmul %69, %71, %cst_94 {dimension_numbers = #tpu.dot_dimension_numbers<[1], [0], [0], [1], [0, 0, 1, 1], [], []>} : vector<64x256xbf16>, vector<256x256xbf16>, vector<64x256xf32> -> vector<64x256xf32>
    %73 = arith.addf %66, %72 : vector<64x256xf32>
    %cst_95 = arith.constant 0.000000e+00 : f32
    %74 = vector.broadcast %cst_95 : f32 to vector<64x256xf32>
    %75 = arith.maximumf %73, %74 : vector<64x256xf32>
    %76 = vector.shape_cast %75 : vector<64x256xf32> to vector<8x8x256xf32>
    %c1_96 = arith.constant 1 : index
    %c1_97 = arith.constant 1 : index
    %c0_98 = arith.constant 0 : index
    %77 = vector.load %arg8[%c1_96, %c1_97, %c0_98] : memref<10x10x256xf32, #tpu.memory_space<vmem>>, vector<8x8x256xf32>
    tpu.vector_store %arg8[%c1_96, %c1_97, %c0_98], %76 {strides = array<i32>} : memref<10x10x256xf32, #tpu.memory_space<vmem>>, vector<8x8x256xf32>,
    %c1_99 = arith.constant 1 : index
    %c0_100 = arith.constant 0 : index
    %c0_101 = arith.constant 0 : index
    %78 = vector.load %arg3[%c1_99, %c0_100, %c0_101] : memref<2x1x256xf32, #tpu.memory_space<vmem>>, vector<1x1x256xf32>
    %79 = vector.shape_cast %78 : vector<1x1x256xf32> to vector<1x256xf32>
    %80 = vector.shape_cast %79 : vector<1x256xf32> to vector<1x256xf32>
    %81 = vector.broadcast %80 : vector<1x256xf32> to vector<64x256xf32>
    %c0_102 = arith.constant 0 : index
    %c0_103 = arith.constant 0 : index
    %c0_104 = arith.constant 0 : index
    %82 = vector.load %arg8[%c0_102, %c0_103, %c0_104] : memref<10x10x256xf32, #tpu.memory_space<vmem>>, vector<8x8x256xf32>
    %83 = vector.shape_cast %82 : vector<8x8x256xf32> to vector<64x256xf32>
    %84 = arith.truncf %83 : vector<64x256xf32> to vector<64x256xbf16>
    %c1_105 = arith.constant 1 : index
    %c0_106 = arith.constant 0 : index
    %c0_107 = arith.constant 0 : index
    %c0_108 = arith.constant 0 : index
    %c0_109 = arith.constant 0 : index
    %85 = vector.load %arg2[%c1_105, %c0_106, %c0_107, %c0_108, %c0_109] : memref<2x3x3x256x256xbf16, #tpu.memory_space<vmem>>, vector<1x1x1x256x256xbf16>
    %86 = vector.shape_cast %85 : vector<1x1x1x256x256xbf16> to vector<256x256xbf16>
    %cst_110 = arith.constant dense<0.000000e+00> : vector<64x256xf32>
    %87 = tpu.matmul %84, %86, %cst_110 {dimension_numbers = #tpu.dot_dimension_numbers<[1], [0], [0], [1], [0, 0, 1, 1], [], []>} : vector<64x256xbf16>, vector<256x256xbf16>, vector<64x256xf32> -> vector<64x256xf32>
    %88 = arith.addf %81, %87 : vector<64x256xf32>
    %c0_111 = arith.constant 0 : index
    %c1_112 = arith.constant 1 : index
    %c0_113 = arith.constant 0 : index
    %89 = vector.load %arg8[%c0_111, %c1_112, %c0_113] : memref<10x10x256xf32, #tpu.memory_space<vmem>>, vector<8x8x256xf32>
    %90 = vector.shape_cast %89 : vector<8x8x256xf32> to vector<64x256xf32>
    %91 = arith.truncf %90 : vector<64x256xf32> to vector<64x256xbf16>
    %c1_114 = arith.constant 1 : index
    %c0_115 = arith.constant 0 : index
    %c1_116 = arith.constant 1 : index
    %c0_117 = arith.constant 0 : index
    %c0_118 = arith.constant 0 : index
    %92 = vector.load %arg2[%c1_114, %c0_115, %c1_116, %c0_117, %c0_118] : memref<2x3x3x256x256xbf16, #tpu.memory_space<vmem>>, vector<1x1x1x256x256xbf16>
    %93 = vector.shape_cast %92 : vector<1x1x1x256x256xbf16> to vector<256x256xbf16>
    %cst_119 = arith.constant dense<0.000000e+00> : vector<64x256xf32>
    %94 = tpu.matmul %91, %93, %cst_119 {dimension_numbers = #tpu.dot_dimension_numbers<[1], [0], [0], [1], [0, 0, 1, 1], [], []>} : vector<64x256xbf16>, vector<256x256xbf16>, vector<64x256xf32> -> vector<64x256xf32>
    %95 = arith.addf %88, %94 : vector<64x256xf32>
    %c0_120 = arith.constant 0 : index
    %c2_121 = arith.constant 2 : index
    %c0_122 = arith.constant 0 : index
    %96 = vector.load %arg8[%c0_120, %c2_121, %c0_122] : memref<10x10x256xf32, #tpu.memory_space<vmem>>, vector<8x8x256xf32>
    %97 = vector.shape_cast %96 : vector<8x8x256xf32> to vector<64x256xf32>
    %98 = arith.truncf %97 : vector<64x256xf32> to vector<64x256xbf16>
    %c1_123 = arith.constant 1 : index
    %c0_124 = arith.constant 0 : index
    %c2_125 = arith.constant 2 : index
    %c0_126 = arith.constant 0 : index
    %c0_127 = arith.constant 0 : index
    %99 = vector.load %arg2[%c1_123, %c0_124, %c2_125, %c0_126, %c0_127] : memref<2x3x3x256x256xbf16, #tpu.memory_space<vmem>>, vector<1x1x1x256x256xbf16>
    %100 = vector.shape_cast %99 : vector<1x1x1x256x256xbf16> to vector<256x256xbf16>
    %cst_128 = arith.constant dense<0.000000e+00> : vector<64x256xf32>
    %101 = tpu.matmul %98, %100, %cst_128 {dimension_numbers = #tpu.dot_dimension_numbers<[1], [0], [0], [1], [0, 0, 1, 1], [], []>} : vector<64x256xbf16>, vector<256x256xbf16>, vector<64x256xf32> -> vector<64x256xf32>
    %102 = arith.addf %95, %101 : vector<64x256xf32>
    %c1_129 = arith.constant 1 : index
    %c0_130 = arith.constant 0 : index
    %c0_131 = arith.constant 0 : index
    %103 = vector.load %arg8[%c1_129, %c0_130, %c0_131] : memref<10x10x256xf32, #tpu.memory_space<vmem>>, vector<8x8x256xf32>
    %104 = vector.shape_cast %103 : vector<8x8x256xf32> to vector<64x256xf32>
    %105 = arith.truncf %104 : vector<64x256xf32> to vector<64x256xbf16>
    %c1_132 = arith.constant 1 : index
    %c1_133 = arith.constant 1 : index
    %c0_134 = arith.constant 0 : index
    %c0_135 = arith.constant 0 : index
    %c0_136 = arith.constant 0 : index
    %106 = vector.load %arg2[%c1_132, %c1_133, %c0_134, %c0_135, %c0_136] : memref<2x3x3x256x256xbf16, #tpu.memory_space<vmem>>, vector<1x1x1x256x256xbf16>
    %107 = vector.shape_cast %106 : vector<1x1x1x256x256xbf16> to vector<256x256xbf16>
    %cst_137 = arith.constant dense<0.000000e+00> : vector<64x256xf32>
    %108 = tpu.matmul %105, %107, %cst_137 {dimension_numbers = #tpu.dot_dimension_numbers<[1], [0], [0], [1], [0, 0, 1, 1], [], []>} : vector<64x256xbf16>, vector<256x256xbf16>, vector<64x256xf32> -> vector<64x256xf32>
    %109 = arith.addf %102, %108 : vector<64x256xf32>
    %c1_138 = arith.constant 1 : index
    %c1_139 = arith.constant 1 : index
    %c0_140 = arith.constant 0 : index
    %110 = vector.load %arg8[%c1_138, %c1_139, %c0_140] : memref<10x10x256xf32, #tpu.memory_space<vmem>>, vector<8x8x256xf32>
    %111 = vector.shape_cast %110 : vector<8x8x256xf32> to vector<64x256xf32>
    %112 = arith.truncf %111 : vector<64x256xf32> to vector<64x256xbf16>
    %c1_141 = arith.constant 1 : index
    %c1_142 = arith.constant 1 : index
    %c1_143 = arith.constant 1 : index
    %c0_144 = arith.constant 0 : index
    %c0_145 = arith.constant 0 : index
    %113 = vector.load %arg2[%c1_141, %c1_142, %c1_143, %c0_144, %c0_145] : memref<2x3x3x256x256xbf16, #tpu.memory_space<vmem>>, vector<1x1x1x256x256xbf16>
    %114 = vector.shape_cast %113 : vector<1x1x1x256x256xbf16> to vector<256x256xbf16>
    %cst_146 = arith.constant dense<0.000000e+00> : vector<64x256xf32>
    %115 = tpu.matmul %112, %114, %cst_146 {dimension_numbers = #tpu.dot_dimension_numbers<[1], [0], [0], [1], [0, 0, 1, 1], [], []>} : vector<64x256xbf16>, vector<256x256xbf16>, vector<64x256xf32> -> vector<64x256xf32>
    %116 = arith.addf %109, %115 : vector<64x256xf32>
    %c1_147 = arith.constant 1 : index
    %c2_148 = arith.constant 2 : index
    %c0_149 = arith.constant 0 : index
    %117 = vector.load %arg8[%c1_147, %c2_148, %c0_149] : memref<10x10x256xf32, #tpu.memory_space<vmem>>, vector<8x8x256xf32>
    %118 = vector.shape_cast %117 : vector<8x8x256xf32> to vector<64x256xf32>
    %119 = arith.truncf %118 : vector<64x256xf32> to vector<64x256xbf16>
    %c1_150 = arith.constant 1 : index
    %c1_151 = arith.constant 1 : index
    %c2_152 = arith.constant 2 : index
    %c0_153 = arith.constant 0 : index
    %c0_154 = arith.constant 0 : index
    %120 = vector.load %arg2[%c1_150, %c1_151, %c2_152, %c0_153, %c0_154] : memref<2x3x3x256x256xbf16, #tpu.memory_space<vmem>>, vector<1x1x1x256x256xbf16>
    %121 = vector.shape_cast %120 : vector<1x1x1x256x256xbf16> to vector<256x256xbf16>
    %cst_155 = arith.constant dense<0.000000e+00> : vector<64x256xf32>
    %122 = tpu.matmul %119, %121, %cst_155 {dimension_numbers = #tpu.dot_dimension_numbers<[1], [0], [0], [1], [0, 0, 1, 1], [], []>} : vector<64x256xbf16>, vector<256x256xbf16>, vector<64x256xf32> -> vector<64x256xf32>
    %123 = arith.addf %116, %122 : vector<64x256xf32>
    %c2_156 = arith.constant 2 : index
    %c0_157 = arith.constant 0 : index
    %c0_158 = arith.constant 0 : index
    %124 = vector.load %arg8[%c2_156, %c0_157, %c0_158] : memref<10x10x256xf32, #tpu.memory_space<vmem>>, vector<8x8x256xf32>
    %125 = vector.shape_cast %124 : vector<8x8x256xf32> to vector<64x256xf32>
    %126 = arith.truncf %125 : vector<64x256xf32> to vector<64x256xbf16>
    %c1_159 = arith.constant 1 : index
    %c2_160 = arith.constant 2 : index
    %c0_161 = arith.constant 0 : index
    %c0_162 = arith.constant 0 : index
    %c0_163 = arith.constant 0 : index
    %127 = vector.load %arg2[%c1_159, %c2_160, %c0_161, %c0_162, %c0_163] : memref<2x3x3x256x256xbf16, #tpu.memory_space<vmem>>, vector<1x1x1x256x256xbf16>
    %128 = vector.shape_cast %127 : vector<1x1x1x256x256xbf16> to vector<256x256xbf16>
    %cst_164 = arith.constant dense<0.000000e+00> : vector<64x256xf32>
    %129 = tpu.matmul %126, %128, %cst_164 {dimension_numbers = #tpu.dot_dimension_numbers<[1], [0], [0], [1], [0, 0, 1, 1], [], []>} : vector<64x256xbf16>, vector<256x256xbf16>, vector<64x256xf32> -> vector<64x256xf32>
    %130 = arith.addf %123, %129 : vector<64x256xf32>
    %c2_165 = arith.constant 2 : index
    %c1_166 = arith.constant 1 : index
    %c0_167 = arith.constant 0 : index
    %131 = vector.load %arg8[%c2_165, %c1_166, %c0_167] : memref<10x10x256xf32, #tpu.memory_space<vmem>>, vector<8x8x256xf32>
    %132 = vector.shape_cast %131 : vector<8x8x256xf32> to vector<64x256xf32>
    %133 = arith.truncf %132 : vector<64x256xf32> to vector<64x256xbf16>
    %c1_168 = arith.constant 1 : index
    %c2_169 = arith.constant 2 : index
    %c1_170 = arith.constant 1 : index
    %c0_171 = arith.constant 0 : index
    %c0_172 = arith.constant 0 : index
    %134 = vector.load %arg2[%c1_168, %c2_169, %c1_170, %c0_171, %c0_172] : memref<2x3x3x256x256xbf16, #tpu.memory_space<vmem>>, vector<1x1x1x256x256xbf16>
    %135 = vector.shape_cast %134 : vector<1x1x1x256x256xbf16> to vector<256x256xbf16>
    %cst_173 = arith.constant dense<0.000000e+00> : vector<64x256xf32>
    %136 = tpu.matmul %133, %135, %cst_173 {dimension_numbers = #tpu.dot_dimension_numbers<[1], [0], [0], [1], [0, 0, 1, 1], [], []>} : vector<64x256xbf16>, vector<256x256xbf16>, vector<64x256xf32> -> vector<64x256xf32>
    %137 = arith.addf %130, %136 : vector<64x256xf32>
    %c2_174 = arith.constant 2 : index
    %c2_175 = arith.constant 2 : index
    %c0_176 = arith.constant 0 : index
    %138 = vector.load %arg8[%c2_174, %c2_175, %c0_176] : memref<10x10x256xf32, #tpu.memory_space<vmem>>, vector<8x8x256xf32>
    %139 = vector.shape_cast %138 : vector<8x8x256xf32> to vector<64x256xf32>
    %140 = arith.truncf %139 : vector<64x256xf32> to vector<64x256xbf16>
    %c1_177 = arith.constant 1 : index
    %c2_178 = arith.constant 2 : index
    %c2_179 = arith.constant 2 : index
    %c0_180 = arith.constant 0 : index
    %c0_181 = arith.constant 0 : index
    %141 = vector.load %arg2[%c1_177, %c2_178, %c2_179, %c0_180, %c0_181] : memref<2x3x3x256x256xbf16, #tpu.memory_space<vmem>>, vector<1x1x1x256x256xbf16>
    %142 = vector.shape_cast %141 : vector<1x1x1x256x256xbf16> to vector<256x256xbf16>
    %cst_182 = arith.constant dense<0.000000e+00> : vector<64x256xf32>
    %143 = tpu.matmul %140, %142, %cst_182 {dimension_numbers = #tpu.dot_dimension_numbers<[1], [0], [0], [1], [0, 0, 1, 1], [], []>} : vector<64x256xbf16>, vector<256x256xbf16>, vector<64x256xf32> -> vector<64x256xf32>
    %144 = arith.addf %137, %143 : vector<64x256xf32>
    %cst_183 = arith.constant 0.000000e+00 : f32
    %145 = vector.broadcast %cst_183 : f32 to vector<64x256xf32>
    %146 = arith.maximumf %144, %145 : vector<64x256xf32>
    %147 = vector.shape_cast %146 : vector<64x256xf32> to vector<8x8x256xf32>
    %c1_184 = arith.constant 1 : index
    %c1_185 = arith.constant 1 : index
    %c0_186 = arith.constant 0 : index
    %148 = vector.load %arg7[%c1_184, %c1_185, %c0_186] : memref<10x10x256xf32, #tpu.memory_space<vmem>>, vector<8x8x256xf32>
    tpu.vector_store %arg7[%c1_184, %c1_185, %c0_186], %147 {strides = array<i32>} : memref<10x10x256xf32, #tpu.memory_space<vmem>>, vector<8x8x256xf32>,
    %c0_187 = arith.constant 0 : index
    %c0_188 = arith.constant 0 : index
    %149 = vector.load %arg5[%c0_187, %c0_188] : memref<1x128xf32, #tpu.memory_space<vmem>>, vector<1x128xf32>
    %150 = vector.shape_cast %149 : vector<1x128xf32> to vector<1x128xf32>
    %151 = vector.broadcast %150 : vector<1x128xf32> to vector<64x128xf32>
    %c0_189 = arith.constant 0 : index
    %c0_190 = arith.constant 0 : index
    %c0_191 = arith.constant 0 : index
    %152 = vector.load %arg7[%c0_189, %c0_190, %c0_191] : memref<10x10x256xf32, #tpu.memory_space<vmem>>, vector<8x8x256xf32>
    %153 = vector.shape_cast %152 : vector<8x8x256xf32> to vector<64x256xf32>
    %154 = arith.truncf %153 : vector<64x256xf32> to vector<64x256xbf16>
    %c0_192 = arith.constant 0 : index
    %c0_193 = arith.constant 0 : index
    %c0_194 = arith.constant 0 : index
    %c0_195 = arith.constant 0 : index
    %155 = vector.load %arg4[%c0_192, %c0_193, %c0_194, %c0_195] : memref<3x3x256x128xbf16, #tpu.memory_space<vmem>>, vector<1x1x256x128xbf16>
    %156 = vector.shape_cast %155 : vector<1x1x256x128xbf16> to vector<256x128xbf16>
    %cst_196 = arith.constant dense<0.000000e+00> : vector<64x128xf32>
    %157 = tpu.matmul %154, %156, %cst_196 {dimension_numbers = #tpu.dot_dimension_numbers<[1], [0], [0], [1], [0, 0, 1, 1], [], []>} : vector<64x256xbf16>, vector<256x128xbf16>, vector<64x128xf32> -> vector<64x128xf32>
    %158 = arith.addf %151, %157 : vector<64x128xf32>
    %c0_197 = arith.constant 0 : index
    %c1_198 = arith.constant 1 : index
    %c0_199 = arith.constant 0 : index
    %159 = vector.load %arg7[%c0_197, %c1_198, %c0_199] : memref<10x10x256xf32, #tpu.memory_space<vmem>>, vector<8x8x256xf32>
    %160 = vector.shape_cast %159 : vector<8x8x256xf32> to vector<64x256xf32>
    %161 = arith.truncf %160 : vector<64x256xf32> to vector<64x256xbf16>
    %c0_200 = arith.constant 0 : index
    %c1_201 = arith.constant 1 : index
    %c0_202 = arith.constant 0 : index
    %c0_203 = arith.constant 0 : index
    %162 = vector.load %arg4[%c0_200, %c1_201, %c0_202, %c0_203] : memref<3x3x256x128xbf16, #tpu.memory_space<vmem>>, vector<1x1x256x128xbf16>
    %163 = vector.shape_cast %162 : vector<1x1x256x128xbf16> to vector<256x128xbf16>
    %cst_204 = arith.constant dense<0.000000e+00> : vector<64x128xf32>
    %164 = tpu.matmul %161, %163, %cst_204 {dimension_numbers = #tpu.dot_dimension_numbers<[1], [0], [0], [1], [0, 0, 1, 1], [], []>} : vector<64x256xbf16>, vector<256x128xbf16>, vector<64x128xf32> -> vector<64x128xf32>
    %165 = arith.addf %158, %164 : vector<64x128xf32>
    %c0_205 = arith.constant 0 : index
    %c2_206 = arith.constant 2 : index
    %c0_207 = arith.constant 0 : index
    %166 = vector.load %arg7[%c0_205, %c2_206, %c0_207] : memref<10x10x256xf32, #tpu.memory_space<vmem>>, vector<8x8x256xf32>
    %167 = vector.shape_cast %166 : vector<8x8x256xf32> to vector<64x256xf32>
    %168 = arith.truncf %167 : vector<64x256xf32> to vector<64x256xbf16>
    %c0_208 = arith.constant 0 : index
    %c2_209 = arith.constant 2 : index
    %c0_210 = arith.constant 0 : index
    %c0_211 = arith.constant 0 : index
    %169 = vector.load %arg4[%c0_208, %c2_209, %c0_210, %c0_211] : memref<3x3x256x128xbf16, #tpu.memory_space<vmem>>, vector<1x1x256x128xbf16>
    %170 = vector.shape_cast %169 : vector<1x1x256x128xbf16> to vector<256x128xbf16>
    %cst_212 = arith.constant dense<0.000000e+00> : vector<64x128xf32>
    %171 = tpu.matmul %168, %170, %cst_212 {dimension_numbers = #tpu.dot_dimension_numbers<[1], [0], [0], [1], [0, 0, 1, 1], [], []>} : vector<64x256xbf16>, vector<256x128xbf16>, vector<64x128xf32> -> vector<64x128xf32>
    %172 = arith.addf %165, %171 : vector<64x128xf32>
    %c1_213 = arith.constant 1 : index
    %c0_214 = arith.constant 0 : index
    %c0_215 = arith.constant 0 : index
    %173 = vector.load %arg7[%c1_213, %c0_214, %c0_215] : memref<10x10x256xf32, #tpu.memory_space<vmem>>, vector<8x8x256xf32>
    %174 = vector.shape_cast %173 : vector<8x8x256xf32> to vector<64x256xf32>
    %175 = arith.truncf %174 : vector<64x256xf32> to vector<64x256xbf16>
    %c1_216 = arith.constant 1 : index
    %c0_217 = arith.constant 0 : index
    %c0_218 = arith.constant 0 : index
    %c0_219 = arith.constant 0 : index
    %176 = vector.load %arg4[%c1_216, %c0_217, %c0_218, %c0_219] : memref<3x3x256x128xbf16, #tpu.memory_space<vmem>>, vector<1x1x256x128xbf16>
    %177 = vector.shape_cast %176 : vector<1x1x256x128xbf16> to vector<256x128xbf16>
    %cst_220 = arith.constant dense<0.000000e+00> : vector<64x128xf32>
    %178 = tpu.matmul %175, %177, %cst_220 {dimension_numbers = #tpu.dot_dimension_numbers<[1], [0], [0], [1], [0, 0, 1, 1], [], []>} : vector<64x256xbf16>, vector<256x128xbf16>, vector<64x128xf32> -> vector<64x128xf32>
    %179 = arith.addf %172, %178 : vector<64x128xf32>
    %c1_221 = arith.constant 1 : index
    %c1_222 = arith.constant 1 : index
    %c0_223 = arith.constant 0 : index
    %180 = vector.load %arg7[%c1_221, %c1_222, %c0_223] : memref<10x10x256xf32, #tpu.memory_space<vmem>>, vector<8x8x256xf32>
    %181 = vector.shape_cast %180 : vector<8x8x256xf32> to vector<64x256xf32>
    %182 = arith.truncf %181 : vector<64x256xf32> to vector<64x256xbf16>
    %c1_224 = arith.constant 1 : index
    %c1_225 = arith.constant 1 : index
    %c0_226 = arith.constant 0 : index
    %c0_227 = arith.constant 0 : index
    %183 = vector.load %arg4[%c1_224, %c1_225, %c0_226, %c0_227] : memref<3x3x256x128xbf16, #tpu.memory_space<vmem>>, vector<1x1x256x128xbf16>
    %184 = vector.shape_cast %183 : vector<1x1x256x128xbf16> to vector<256x128xbf16>
    %cst_228 = arith.constant dense<0.000000e+00> : vector<64x128xf32>
    %185 = tpu.matmul %182, %184, %cst_228 {dimension_numbers = #tpu.dot_dimension_numbers<[1], [0], [0], [1], [0, 0, 1, 1], [], []>} : vector<64x256xbf16>, vector<256x128xbf16>, vector<64x128xf32> -> vector<64x128xf32>
    %186 = arith.addf %179, %185 : vector<64x128xf32>
    %c1_229 = arith.constant 1 : index
    %c2_230 = arith.constant 2 : index
    %c0_231 = arith.constant 0 : index
    %187 = vector.load %arg7[%c1_229, %c2_230, %c0_231] : memref<10x10x256xf32, #tpu.memory_space<vmem>>, vector<8x8x256xf32>
    %188 = vector.shape_cast %187 : vector<8x8x256xf32> to vector<64x256xf32>
    %189 = arith.truncf %188 : vector<64x256xf32> to vector<64x256xbf16>
    %c1_232 = arith.constant 1 : index
    %c2_233 = arith.constant 2 : index
    %c0_234 = arith.constant 0 : index
    %c0_235 = arith.constant 0 : index
    %190 = vector.load %arg4[%c1_232, %c2_233, %c0_234, %c0_235] : memref<3x3x256x128xbf16, #tpu.memory_space<vmem>>, vector<1x1x256x128xbf16>
    %191 = vector.shape_cast %190 : vector<1x1x256x128xbf16> to vector<256x128xbf16>
    %cst_236 = arith.constant dense<0.000000e+00> : vector<64x128xf32>
    %192 = tpu.matmul %189, %191, %cst_236 {dimension_numbers = #tpu.dot_dimension_numbers<[1], [0], [0], [1], [0, 0, 1, 1], [], []>} : vector<64x256xbf16>, vector<256x128xbf16>, vector<64x128xf32> -> vector<64x128xf32>
    %193 = arith.addf %186, %192 : vector<64x128xf32>
    %c2_237 = arith.constant 2 : index
    %c0_238 = arith.constant 0 : index
    %c0_239 = arith.constant 0 : index
    %194 = vector.load %arg7[%c2_237, %c0_238, %c0_239] : memref<10x10x256xf32, #tpu.memory_space<vmem>>, vector<8x8x256xf32>
    %195 = vector.shape_cast %194 : vector<8x8x256xf32> to vector<64x256xf32>
    %196 = arith.truncf %195 : vector<64x256xf32> to vector<64x256xbf16>
    %c2_240 = arith.constant 2 : index
    %c0_241 = arith.constant 0 : index
    %c0_242 = arith.constant 0 : index
    %c0_243 = arith.constant 0 : index
    %197 = vector.load %arg4[%c2_240, %c0_241, %c0_242, %c0_243] : memref<3x3x256x128xbf16, #tpu.memory_space<vmem>>, vector<1x1x256x128xbf16>
    %198 = vector.shape_cast %197 : vector<1x1x256x128xbf16> to vector<256x128xbf16>
    %cst_244 = arith.constant dense<0.000000e+00> : vector<64x128xf32>
    %199 = tpu.matmul %196, %198, %cst_244 {dimension_numbers = #tpu.dot_dimension_numbers<[1], [0], [0], [1], [0, 0, 1, 1], [], []>} : vector<64x256xbf16>, vector<256x128xbf16>, vector<64x128xf32> -> vector<64x128xf32>
    %200 = arith.addf %193, %199 : vector<64x128xf32>
    %c2_245 = arith.constant 2 : index
    %c1_246 = arith.constant 1 : index
    %c0_247 = arith.constant 0 : index
    %201 = vector.load %arg7[%c2_245, %c1_246, %c0_247] : memref<10x10x256xf32, #tpu.memory_space<vmem>>, vector<8x8x256xf32>
    %202 = vector.shape_cast %201 : vector<8x8x256xf32> to vector<64x256xf32>
    %203 = arith.truncf %202 : vector<64x256xf32> to vector<64x256xbf16>
    %c2_248 = arith.constant 2 : index
    %c1_249 = arith.constant 1 : index
    %c0_250 = arith.constant 0 : index
    %c0_251 = arith.constant 0 : index
    %204 = vector.load %arg4[%c2_248, %c1_249, %c0_250, %c0_251] : memref<3x3x256x128xbf16, #tpu.memory_space<vmem>>, vector<1x1x256x128xbf16>
    %205 = vector.shape_cast %204 : vector<1x1x256x128xbf16> to vector<256x128xbf16>
    %cst_252 = arith.constant dense<0.000000e+00> : vector<64x128xf32>
    %206 = tpu.matmul %203, %205, %cst_252 {dimension_numbers = #tpu.dot_dimension_numbers<[1], [0], [0], [1], [0, 0, 1, 1], [], []>} : vector<64x256xbf16>, vector<256x128xbf16>, vector<64x128xf32> -> vector<64x128xf32>
    %207 = arith.addf %200, %206 : vector<64x128xf32>
    %c2_253 = arith.constant 2 : index
    %c2_254 = arith.constant 2 : index
    %c0_255 = arith.constant 0 : index
    %208 = vector.load %arg7[%c2_253, %c2_254, %c0_255] : memref<10x10x256xf32, #tpu.memory_space<vmem>>, vector<8x8x256xf32>
    %209 = vector.shape_cast %208 : vector<8x8x256xf32> to vector<64x256xf32>
    %210 = arith.truncf %209 : vector<64x256xf32> to vector<64x256xbf16>
    %c2_256 = arith.constant 2 : index
    %c2_257 = arith.constant 2 : index
    %c0_258 = arith.constant 0 : index
    %c0_259 = arith.constant 0 : index
    %211 = vector.load %arg4[%c2_256, %c2_257, %c0_258, %c0_259] : memref<3x3x256x128xbf16, #tpu.memory_space<vmem>>, vector<1x1x256x128xbf16>
    %212 = vector.shape_cast %211 : vector<1x1x256x128xbf16> to vector<256x128xbf16>
    %cst_260 = arith.constant dense<0.000000e+00> : vector<64x128xf32>
    %213 = tpu.matmul %210, %212, %cst_260 {dimension_numbers = #tpu.dot_dimension_numbers<[1], [0], [0], [1], [0, 0, 1, 1], [], []>} : vector<64x256xbf16>, vector<256x128xbf16>, vector<64x128xf32> -> vector<64x128xf32>
    %214 = arith.addf %207, %213 : vector<64x128xf32>
    %215 = vector.shape_cast %214 : vector<64x128xf32> to vector<8x8x128xf32>
    %c0_261 = arith.constant 0 : index
    %c0_262 = arith.constant 0 : index
    %c0_263 = arith.constant 0 : index
    %c0_264 = arith.constant 0 : index
    %216 = vector.load %arg6[%c0_261, %c0_262, %c0_263, %c0_264] : memref<1x8x8x128xf32, #tpu.memory_space<vmem>>, vector<1x8x8x128xf32>
    %217 = vector.shape_cast %216 : vector<1x8x8x128xf32> to vector<8x8x128xf32>
    %218 = vector.shape_cast %215 : vector<8x8x128xf32> to vector<1x8x8x128xf32>
    tpu.vector_store %arg6[%c0_261, %c0_262, %c0_263, %c0_264], %218 {strides = array<i32>} : memref<1x8x8x128xf32, #tpu.memory_space<vmem>>, vector<1x8x8x128xf32>,
    return
  }
  func.func @transform_0(%arg0: i32) -> (i32, i32, i32, i32) {
    %c0_i32 = arith.constant 0 : i32
    %c0_i32_0 = arith.constant 0 : i32
    %c0_i32_1 = arith.constant 0 : i32
    %c0_i32_2 = arith.constant 0 : i32
    return %arg0, %c0_i32, %c0_i32_0, %c0_i32_1 : i32, i32, i32, i32
  }
  func.func @transform_1(%arg0: i32) -> (i32, i32, i32, i32, i32) {
    %c0_i32 = arith.constant 0 : i32
    %c0_i32_0 = arith.constant 0 : i32
    %c0_i32_1 = arith.constant 0 : i32
    %c0_i32_2 = arith.constant 0 : i32
    %c0_i32_3 = arith.constant 0 : i32
    %c0_i32_4 = arith.constant 0 : i32
    return %c0_i32, %c0_i32_0, %c0_i32_1, %c0_i32_2, %c0_i32_3 : i32, i32, i32, i32, i32
  }
  func.func @transform_2(%arg0: i32) -> (i32, i32, i32) {
    %c0_i32 = arith.constant 0 : i32
    %c0_i32_0 = arith.constant 0 : i32
    %c0_i32_1 = arith.constant 0 : i32
    %c0_i32_2 = arith.constant 0 : i32
    return %c0_i32, %c0_i32_0, %c0_i32_1 : i32, i32, i32
  }
  func.func @transform_3(%arg0: i32) -> (i32, i32, i32, i32) {
    %c0_i32 = arith.constant 0 : i32
    %c0_i32_0 = arith.constant 0 : i32
    %c0_i32_1 = arith.constant 0 : i32
    %c0_i32_2 = arith.constant 0 : i32
    %c0_i32_3 = arith.constant 0 : i32
    return %c0_i32, %c0_i32_0, %c0_i32_1, %c0_i32_2 : i32, i32, i32, i32
  }
  func.func @transform_4(%arg0: i32) -> (i32, i32) {
    %c0_i32 = arith.constant 0 : i32
    %c0_i32_0 = arith.constant 0 : i32
    %c0_i32_1 = arith.constant 0 : i32
    return %c0_i32, %c0_i32_0 : i32, i32
  }
  func.func @transform_5(%arg0: i32) -> (i32, i32, i32, i32) {
    %c0_i32 = arith.constant 0 : i32
    %c0_i32_0 = arith.constant 0 : i32
    %c0_i32_1 = arith.constant 0 : i32
    %c0_i32_2 = arith.constant 0 : i32
    return %arg0, %c0_i32, %c0_i32_0, %c0_i32_1 : i32, i32, i32, i32
  }
}

</mosaic_0001>

<llo_original>
// kernel: tpu_custom_call.1
$region0: #{tpu_custom_call.1}
  #allocation0 [shape = 'u32[]', space=smem, size = 0x4, offset = 0x4, fixed_abs, tag = 'smem constant byte address 0x4 - core index']
  #allocation1 [shape = 'u32[144,128]{1,0:T(1,128)}', space=vmem, size = 0x12000, scoped, tag = 'internal scratch']
  #allocation2 [shape = 'f32[10,10,256]{2,1,0:T(8,128)}', space=vmem, size = 0x28000, scoped, tag = 'scratch operand']
  #allocation3 [shape = 'f32[10,10,256]{2,1,0:T(8,128)}', space=vmem, size = 0x28000, scoped, tag = 'scratch operand']
  %s0 = inlined_call_operand.hbm [shape: f32[2,8,8,256], index: 0, kind: input, shape index: {}]
  %s1 = inlined_call_operand.hbm [shape: bf16[2,3,3,256,256], index: 1, kind: input, shape index: {}]
  %s2 = inlined_call_operand.hbm [shape: f32[2,1,256], index: 2, kind: input, shape index: {}]
  %s3 = inlined_call_operand.hbm [shape: bf16[3,3,256,128], index: 3, kind: input, shape index: {}]
  %s4 = inlined_call_operand.hbm [shape: f32[1,128], index: 4, kind: input, shape index: {}]
  %s5 = inlined_call_operand.hbm [shape: f32[2,8,8,128], index: 5, kind: output, shape index: {}]
  %s6 = sld [smem:[#allocation0]]
  $region73: #{tpu_custom_call.1} parent=0
    _
  %s8 = ssub.s32 1, %s6
  %s9 = scalar_select 0, %s8, %s6
  $region1: #{tpu_custom_call.1} parent=0
    #allocation4 [shape = 'u8[131072]{0}', space=vmem, size = 0x20000, scoped, tag = 'input window, operand 0']
    #allocation5 [shape = 's32[2]{0}', space=sflag, size = 0x8, scoped, tag = 'scoped memory for tpu_custom_call.1']
    #allocation6 [shape = 's32[2]{0}', space=sflag, size = 0x8, scoped, tag = 'scoped memory for tpu_custom_call.1']
    #allocation7 [shape = 'u8[2359296]{0}', space=vmem, size = 0x240000, scoped, tag = 'input window, operand 1, single buffered']
    #allocation8 [shape = 's32[1]{0}', space=sflag, size = 0x4, scoped, tag = 'scoped memory for tpu_custom_call.1']
    #allocation9 [shape = 'u8[2048]{0}', space=vmem, size = 0x800, scoped, tag = 'input window, operand 2, single buffered']
    #allocation10 [shape = 'u8[589824]{0}', space=vmem, size = 0x90000, scoped, tag = 'input window, operand 3, single buffered']
    #allocation11 [shape = 's32[1]{0}', space=sflag, size = 0x4, scoped, tag = 'scoped memory for tpu_custom_call.1']
    #allocation12 [shape = 'u8[512]{0}', space=vmem, size = 0x400, scoped, tag = 'input window, operand 4, single buffered']
    #allocation13 [shape = 'u8[65536]{0}', space=vmem, size = 0x10000, scoped, tag = 'output window, operand 0']
    %10 = vsyncpa [#allocation5], 0
    %s11 = scalar_lea.sflag [#allocation5], 1
    %12 = vsyncpa %s11, 0
    %13 = vsyncpa [#allocation8], 0
    %14 = vsyncpa [#allocation11], 0
    %15 = vsyncpa [#allocation6], 0
    %s16 = scalar_lea.sflag [#allocation6], 1
    %17 = vsyncpa %s16, 0
    loop: start=0, step=1, limit=4
    $region2: #{tpu_custom_call.1} parent=1 // loop_pre_header
      _
    $region3: #{tpu_custom_call.1} parent=1 // loop_header
      %s19 = sphi 0, %s23
      %p20 = scmp.ge.s32.totalorder %s19, 4
      %s29 = sphi 0, %s31
      %s32 = sphi 0, %s29
      %s33 = sphi 0, %s32
      %s49 = sphi 0, %s33
      %s53 = sphi 0, %s53
      %s55 = sphi 0, %s53
      %s56 = sphi 0, %s55
      %s70 = sphi 0, %s56
      %s74 = sphi 0, %s74
      %s76 = sphi 0, %s74
      %s77 = sphi 0, %s76
      %s91 = sphi 0, %s77
      %s95 = sphi 0, %s95
      %s97 = sphi 0, %s95
      %s98 = sphi 0, %s97
      %s112 = sphi 0, %s98
      %s116 = sphi 0, %s116
      %s118 = sphi 0, %s116
      %s119 = sphi 0, %s118
      %s133 = sphi 0, %s119
      %s139 = sphi 0, %s141
      %s142 = sphi 0, %s139
      %s143 = sphi 0, %s142
      %s159 = sphi 0, %s143
    $region4: #{tpu_custom_call.1} parent=1 // loop_header_branch
      %22 = sbr.rel (%p20) target = $region8
    $region5: #{tpu_custom_call.1} parent=1 // loop_body
      %s24 = ssub.s32 %s19, 1
      %s25 = ssub.s32 %s19, 2
      %s26 = sadd.s32 %s19, 1
      %s27 = ssub.s32 %s19, %s26
      %p28 = scmp.eq.s32.totalorder %s27, 0
      %s30 = sadd.s32 %s29, 1
      %s31 = scalar_select %p28, %s29, %s30
      %p34 = pneg %p28
      %p35 = scmp.eq.s32.totalorder %s19, 1
      %p36 = por %p34, %p35
      %p37 = scmp.ne.s32.totalorder %s29, %s32
      %p38 = scmp.eq.s32.totalorder %s19, 0
      %p39 = por %p37, %p38
      %p40 = scmp.ne.s32.totalorder %s29, %s32
      %p41 = scmp.eq.s32.totalorder %s24, 1
      %p42 = por %p40, %p41
      %p43 = scmp.ne.s32.totalorder %s32, %s33
      %p44 = scmp.eq.s32.totalorder %s24, 0
      %p45 = por %p43, %p44
      %p46 = scmp.ne.s32.totalorder %s32, %s33
      %p47 = scmp.eq.s32.totalorder %s25, 1
      %p48 = por %p46, %p47
      %p50 = scmp.ne.s32.totalorder %s33, %s49
      %p51 = scmp.eq.s32.totalorder %s25, 0
      %p52 = por %p50, %p51
      %s54 = sadd.s32 %s53, 1
      %p57 = scmp.eq.s32.totalorder %s19, 1
      %p58 = scmp.ne.s32.totalorder %s53, %s55
      %p59 = scmp.eq.s32.totalorder %s19, 0
      %p60 = por %p58, %p59
      %p61 = scmp.ne.s32.totalorder %s53, %s55
      %p62 = scmp.eq.s32.totalorder %s24, 1
      %p63 = por %p61, %p62
      %p64 = scmp.ne.s32.totalorder %s55, %s56
      %p65 = scmp.eq.s32.totalorder %s24, 0
      %p66 = por %p64, %p65
      %p67 = scmp.ne.s32.totalorder %s55, %s56
      %p68 = scmp.eq.s32.totalorder %s25, 1
      %p69 = por %p67, %p68
      %p71 = scmp.ne.s32.totalorder %s56, %s70
      %p72 = scmp.eq.s32.totalorder %s25, 0
      %p73 = por %p71, %p72
      %s75 = sadd.s32 %s74, 1
      %p78 = scmp.eq.s32.totalorder %s19, 1
      %p79 = scmp.ne.s32.totalorder %s74, %s76
      %p80 = scmp.eq.s32.totalorder %s19, 0
      %p81 = por %p79, %p80
      %p82 = scmp.ne.s32.totalorder %s74, %s76
      %p83 = scmp.eq.s32.totalorder %s24, 1
      %p84 = por %p82, %p83
      %p85 = scmp.ne.s32.totalorder %s76, %s77
      %p86 = scmp.eq.s32.totalorder %s24, 0
      %p87 = por %p85, %p86
      %p88 = scmp.ne.s32.totalorder %s76, %s77
      %p89 = scmp.eq.s32.totalorder %s25, 1
      %p90 = por %p88, %p89
      %p92 = scmp.ne.s32.totalorder %s77, %s91
      %p93 = scmp.eq.s32.totalorder %s25, 0
      %p94 = por %p92, %p93
      %s96 = sadd.s32 %s95, 1
      %p99 = scmp.eq.s32.totalorder %s19, 1
      %p100 = scmp.ne.s32.totalorder %s95, %s97
      %p101 = scmp.eq.s32.totalorder %s19, 0
      %p102 = por %p100, %p101
      %p103 = scmp.ne.s32.totalorder %s95, %s97
      %p104 = scmp.eq.s32.totalorder %s24, 1
      %p105 = por %p103, %p104
      %p106 = scmp.ne.s32.totalorder %s97, %s98
      %p107 = scmp.eq.s32.totalorder %s24, 0
      %p108 = por %p106, %p107
      %p109 = scmp.ne.s32.totalorder %s97, %s98
      %p110 = scmp.eq.s32.totalorder %s25, 1
      %p111 = por %p109, %p110
      %p113 = scmp.ne.s32.totalorder %s98, %s112
      %p114 = scmp.eq.s32.totalorder %s25, 0
      %p115 = por %p113, %p114
      %s117 = sadd.s32 %s116, 1
      %p120 = scmp.eq.s32.totalorder %s19, 1
      %p121 = scmp.ne.s32.totalorder %s116, %s118
      %p122 = scmp.eq.s32.totalorder %s19, 0
      %p123 = por %p121, %p122
      %p124 = scmp.ne.s32.totalorder %s116, %s118
      %p125 = scmp.eq.s32.totalorder %s24, 1
      %p126 = por %p124, %p125
      %p127 = scmp.ne.s32.totalorder %s118, %s119
      %p128 = scmp.eq.s32.totalorder %s24, 0
      %p129 = por %p127, %p128
      %p130 = scmp.ne.s32.totalorder %s118, %s119
      %p131 = scmp.eq.s32.totalorder %s25, 1
      %p132 = por %p130, %p131
      %p134 = scmp.ne.s32.totalorder %s119, %s133
      %p135 = scmp.eq.s32.totalorder %s25, 0
      %p136 = por %p134, %p135
      %s137 = ssub.s32 %s19, %s26
      %p138 = scmp.eq.s32.totalorder %s137, 0
      %s140 = sadd.s32 %s139, 1
      %s141 = scalar_select %p138, %s139, %s140
      %p144 = pneg %p138
      %p145 = scmp.eq.s32.totalorder %s19, 1
      %p146 = por %p144, %p145
      %p147 = scmp.ne.s32.totalorder %s139, %s142
      %p148 = scmp.eq.s32.totalorder %s19, 0
      %p149 = por %p147, %p148
      %p150 = scmp.ne.s32.totalorder %s139, %s142
      %p151 = scmp.eq.s32.totalorder %s24, 1
      %p152 = por %p150, %p151
      %p153 = scmp.ne.s32.totalorder %s142, %s143
      %p154 = scmp.eq.s32.totalorder %s24, 0
      %p155 = por %p153, %p154
      %p156 = scmp.ne.s32.totalorder %s142, %s143
      %p157 = scmp.eq.s32.totalorder %s25, 1
      %p158 = por %p156, %p157
      %p160 = scmp.ne.s32.totalorder %s143, %s159
      %p161 = scmp.eq.s32.totalorder %s25, 0
      %p162 = por %p160, %p161
      %p163 = scmp.le.s32.totalorder 1, %s19
      %p164 = scmp.lt.s32.totalorder %s19, 3
      %p165 = pnand %p163, %p164
      %p166 = pneg %p165
      // Predicated region
      $region9: #{tpu_custom_call.1} parent=5 // pred_check
        _
      $region10: #{tpu_custom_call.1} parent=5 // pred_check_branch
        %168 = sbr.rel (%p165) target = $region12
      $region11: #{tpu_custom_call.1} parent=5 // pred_region
        %s169 = ssub.s32 %s19, 1
        // Predicated region
        $region13: #{tpu_custom_call.1} parent=11 // pred_check
          %p170 = pneg %p66
        $region14: #{tpu_custom_call.1} parent=11 // pred_check_branch
          %172 = sbr.rel (%p170) target = $region16
        $region15: #{tpu_custom_call.1} parent=11 // pred_region
          %s174 = ssub.s32 73728, 73728
          %175 = vsyncadd [#allocation8], %s174
          %s176 = sshll.u32 [#allocation7], 4
          %s177 = int_to_ptr.vmem [resolvable:$true] %s176
          %182 = dma.hbm_to_vmem [thread:$0]  %s1, 73728, %s177, [#allocation8], 128, 128, 8
        $region16: #{tpu_custom_call.1} parent=11 // pred_fallthru
          _
        // Predicated region
        $region17: #{tpu_custom_call.1} parent=11 // pred_check
          %p183 = pneg %p87
        $region18: #{tpu_custom_call.1} parent=11 // pred_check_branch
          %185 = sbr.rel (%p183) target = $region20
        $region19: #{tpu_custom_call.1} parent=11 // pred_region
          %s187 = ssub.s32 64, 64
          %188 = vsyncadd [#allocation8], %s187
          %s189 = sshll.u32 [#allocation9], 4
          %s190 = int_to_ptr.vmem [resolvable:$true] %s189
          %195 = dma.hbm_to_vmem [thread:$0]  %s2, 64, %s190, [#allocation8], 32, 32, 2
        $region20: #{tpu_custom_call.1} parent=11 // pred_fallthru
          _
        // Predicated region
        $region21: #{tpu_custom_call.1} parent=11 // pred_check
          %p196 = pneg %p108
        $region22: #{tpu_custom_call.1} parent=11 // pred_check_branch
          %198 = sbr.rel (%p196) target = $region24
        $region23: #{tpu_custom_call.1} parent=11 // pred_region
          %s200 = ssub.s32 18432, 18432
          %201 = vsyncadd [#allocation11], %s200
          %s202 = sshll.u32 [#allocation10], 4
          %s203 = int_to_ptr.vmem [resolvable:$true] %s202
          %208 = dma.hbm_to_vmem [thread:$0]  %s3, 18432, %s203, [#allocation11], 64, 64, 4
        $region24: #{tpu_custom_call.1} parent=11 // pred_fallthru
          _
        // Predicated region
        $region25: #{tpu_custom_call.1} parent=11 // pred_check
          %p209 = pneg %p129
        $region26: #{tpu_custom_call.1} parent=11 // pred_check_branch
          %211 = sbr.rel (%p209) target = $region28
        $region27: #{tpu_custom_call.1} parent=11 // pred_region
          %s213 = ssub.s32 16, 16
          %214 = vsyncadd [#allocation11], %s213
          %s216 = sshll.u32 [#allocation12], 4
          %s217 = int_to_ptr.vmem [resolvable:$true] %s216
          %219 = dma.hbm_to_vmem [thread:$0]  %s4, 16, %s217, [#allocation11]
        $region28: #{tpu_custom_call.1} parent=11 // pred_fallthru
          _
      $region12: #{tpu_custom_call.1} parent=5 // pred_fallthru
        _
      %p220 = scmp.lt.s32.totalorder %s19, 2
      // Predicated region
      $region29: #{tpu_custom_call.1} parent=5 // pred_check
        %p221 = pneg %p220
      $region30: #{tpu_custom_call.1} parent=5 // pred_check_branch
        %223 = sbr.rel (%p221) target = $region32
      $region31: #{tpu_custom_call.1} parent=5 // pred_region
        // Predicated region
        $region33: #{tpu_custom_call.1} parent=31 // pred_check
          %p224 = pneg %p39
        $region34: #{tpu_custom_call.1} parent=31 // pred_check_branch
          %226 = sbr.rel (%p224) target = $region36
        $region35: #{tpu_custom_call.1} parent=31 // pred_region
          %s227 = sand.u32 %s29, 1
          %s228 = scalar_lea.sflag [#allocation5], %s227
          %s229 = sand.u32 %s29, 1
          %s230 = smul.addr %s229, 128
          %s231 = scalar_lea.vmem [#allocation4], %s230
          %s233 = ssub.s32 2048, 2048
          %234 = vsyncadd %s228, %s233
          %s235 = smul.addr %s19, 16
          %s236 = smul.addr %s235, 128
          %s237 = scalar_lea.hbm %s0, %s236
          %s238 = sshll.u32 %s231, 4
          %s239 = int_to_ptr.vmem [resolvable:$true] %s238
          %244 = dma.hbm_to_vmem [thread:$0]  %s237, 2048, %s239, %s228, 256, 256, 16
        $region36: #{tpu_custom_call.1} parent=31 // pred_fallthru
          _
      $region32: #{tpu_custom_call.1} parent=5 // pred_fallthru
        _
      %p245 = scmp.le.s32.totalorder 1, %s19
      %p246 = scmp.lt.s32.totalorder %s19, 3
      %p247 = pnand %p245, %p246
      %p248 = pneg %p247
      // Predicated region
      $region37: #{tpu_custom_call.1} parent=5 // pred_check
        _
      $region38: #{tpu_custom_call.1} parent=5 // pred_check_branch
        %250 = sbr.rel (%p247) target = $region40
      $region39: #{tpu_custom_call.1} parent=5 // pred_region
        %s251 = ssub.s32 %s19, 1
        %s252 = sand.u32 %s32, 1
        %s253 = scalar_lea.sflag [#allocation5], %s252
        %s254 = sand.u32 %s32, 1
        %s255 = smul.addr %s254, 128
        %s256 = scalar_lea.vmem [#allocation4], %s255
        // Predicated region
        $region41: #{tpu_custom_call.1} parent=39 // pred_check
          %p257 = pneg %p45
        $region42: #{tpu_custom_call.1} parent=39 // pred_check_branch
          %259 = sbr.rel (%p257) target = $region44
        $region43: #{tpu_custom_call.1} parent=39 // pred_region
          %260 = dma.done %s253, 2048
        $region44: #{tpu_custom_call.1} parent=39 // pred_fallthru
          _
        // Predicated region
        $region45: #{tpu_custom_call.1} parent=39 // pred_check
          %p261 = pneg %p66
        $region46: #{tpu_custom_call.1} parent=39 // pred_check_branch
          %263 = sbr.rel (%p261) target = $region48
        $region47: #{tpu_custom_call.1} parent=39 // pred_region
          %264 = dma.done [#allocation8], 73728
        $region48: #{tpu_custom_call.1} parent=39 // pred_fallthru
          _
        // Predicated region
        $region49: #{tpu_custom_call.1} parent=39 // pred_check
          %p265 = pneg %p87
        $region50: #{tpu_custom_call.1} parent=39 // pred_check_branch
          %267 = sbr.rel (%p265) target = $region52
        $region51: #{tpu_custom_call.1} parent=39 // pred_region
          %268 = dma.done [#allocation8], 64
        $region52: #{tpu_custom_call.1} parent=39 // pred_fallthru
          _
        // Predicated region
        $region53: #{tpu_custom_call.1} parent=39 // pred_check
          %p269 = pneg %p108
        $region54: #{tpu_custom_call.1} parent=39 // pred_check_branch
          %271 = sbr.rel (%p269) target = $region56
        $region55: #{tpu_custom_call.1} parent=39 // pred_region
          %272 = dma.done [#allocation11], 18432
        $region56: #{tpu_custom_call.1} parent=39 // pred_fallthru
          _
        // Predicated region
        $region57: #{tpu_custom_call.1} parent=39 // pred_check
          %p273 = pneg %p129
        $region58: #{tpu_custom_call.1} parent=39 // pred_check_branch
          %275 = sbr.rel (%p273) target = $region60
        $region59: #{tpu_custom_call.1} parent=39 // pred_region
          %276 = dma.done [#allocation11], 16
        $region60: #{tpu_custom_call.1} parent=39 // pred_fallthru
          _
        %s277 = sand.u32 %s32, 1
        %s278 = scalar_lea.sflag [#allocation5], %s277
        %s279 = sand.u32 %s32, 1
        %s280 = smul.addr %s279, 128
        %s281 = scalar_lea.vmem [#allocation4], %s280
        %p282 = pneg %p45
        %p283 = pneg %p42
        %p284 = pneg %p66
        %p285 = pneg %p63
        %p286 = pneg %p87
        %p287 = pneg %p84
        %p288 = pneg %p108
        %p289 = pneg %p105
        %p290 = pneg %p129
        %p291 = pneg %p126
        %p292 = pneg %p155
        %p293 = pneg %p152
        %s294 = sand.u32 %s142, 1
        %s295 = scalar_lea.sflag [#allocation6], %s294
        %s296 = sand.u32 %s142, 1
        %s297 = smul.addr %s296, 64
        %s298 = scalar_lea.vmem [#allocation13], %s297
        %300 = vst [vmem:[#allocation2] sm:$0xff] 0.0
        %301 = vst [vmem:[#allocation2 + $0x8] sm:$0xff] 0.0
        %302 = vst [vmem:[#allocation2 + $0x10] sm:$0x3] 0.0
        %303 = vst [vmem:[#allocation2 + $0x18] sm:$0x3] 0.0
        %304 = vst [vmem:[#allocation2 + $0x20] sm:$0xff] 0.0
        %305 = vst [vmem:[#allocation2 + $0x28] sm:$0xff] 0.0
        %306 = vst [vmem:[#allocation2 + $0x30] sm:$0x3] 0.0
        %307 = vst [vmem:[#allocation2 + $0x38] sm:$0x3] 0.0
        %308 = vst [vmem:[#allocation2 + $0x40] sm:$0xff] 0.0
        %309 = vst [vmem:[#allocation2 + $0x48] sm:$0xff] 0.0
        %310 = vst [vmem:[#allocation2 + $0x50] sm:$0x3] 0.0
        %311 = vst [vmem:[#allocation2 + $0x58] sm:$0x3] 0.0
        %312 = vst [vmem:[#allocation2 + $0x60] sm:$0xff] 0.0
        %313 = vst [vmem:[#allocation2 + $0x68] sm:$0xff] 0.0
        %314 = vst [vmem:[#allocation2 + $0x70] sm:$0x3] 0.0
        %315 = vst [vmem:[#allocation2 + $0x78] sm:$0x3] 0.0
        %316 = vst [vmem:[#allocation2 + $0x80] sm:$0xff] 0.0
        %317 = vst [vmem:[#allocation2 + $0x88] sm:$0xff] 0.0
        %318 = vst [vmem:[#allocation2 + $0x90] sm:$0x3] 0.0
        %319 = vst [vmem:[#allocation2 + $0x98] sm:$0x3] 0.0
        %320 = vst [vmem:[#allocation2 + $0xa0] sm:$0xff] 0.0
        %321 = vst [vmem:[#allocation2 + $0xa8] sm:$0xff] 0.0
        %322 = vst [vmem:[#allocation2 + $0xb0] sm:$0x3] 0.0
        %323 = vst [vmem:[#allocation2 + $0xb8] sm:$0x3] 0.0
        %324 = vst [vmem:[#allocation2 + $0xc0] sm:$0xff] 0.0
        %325 = vst [vmem:[#allocation2 + $0xc8] sm:$0xff] 0.0
        %326 = vst [vmem:[#allocation2 + $0xd0] sm:$0x3] 0.0
        %327 = vst [vmem:[#allocation2 + $0xd8] sm:$0x3] 0.0
        %328 = vst [vmem:[#allocation2 + $0xe0] sm:$0xff] 0.0
        %329 = vst [vmem:[#allocation2 + $0xe8] sm:$0xff] 0.0
        %330 = vst [vmem:[#allocation2 + $0xf0] sm:$0x3] 0.0
        %331 = vst [vmem:[#allocation2 + $0xf8] sm:$0x3] 0.0
        %332 = vst [vmem:[#allocation2 + $0x100] sm:$0xff] 0.0
        %333 = vst [vmem:[#allocation2 + $0x108] sm:$0xff] 0.0
        %334 = vst [vmem:[#allocation2 + $0x110] sm:$0x3] 0.0
        %335 = vst [vmem:[#allocation2 + $0x118] sm:$0x3] 0.0
        %336 = vst [vmem:[#allocation2 + $0x120] sm:$0xff] 0.0
        %337 = vst [vmem:[#allocation2 + $0x128] sm:$0xff] 0.0
        %338 = vst [vmem:[#allocation2 + $0x130] sm:$0x3] 0.0
        %339 = vst [vmem:[#allocation2 + $0x138] sm:$0x3] 0.0
        %340 = vst [vmem:[#allocation3] sm:$0xff] 0.0
        %341 = vst [vmem:[#allocation3 + $0x8] sm:$0xff] 0.0
        %342 = vst [vmem:[#allocation3 + $0x10] sm:$0x3] 0.0
        %343 = vst [vmem:[#allocation3 + $0x18] sm:$0x3] 0.0
        %344 = vst [vmem:[#allocation3 + $0x20] sm:$0xff] 0.0
        %345 = vst [vmem:[#allocation3 + $0x28] sm:$0xff] 0.0
        %346 = vst [vmem:[#allocation3 + $0x30] sm:$0x3] 0.0
        %347 = vst [vmem:[#allocation3 + $0x38] sm:$0x3] 0.0
        %348 = vst [vmem:[#allocation3 + $0x40] sm:$0xff] 0.0
        %349 = vst [vmem:[#allocation3 + $0x48] sm:$0xff] 0.0
        %350 = vst [vmem:[#allocation3 + $0x50] sm:$0x3] 0.0
        %351 = vst [vmem:[#allocation3 + $0x58] sm:$0x3] 0.0
        %352 = vst [vmem:[#allocation3 + $0x60] sm:$0xff] 0.0
        %353 = vst [vmem:[#allocation3 + $0x68] sm:$0xff] 0.0
        %354 = vst [vmem:[#allocation3 + $0x70] sm:$0x3] 0.0
        %355 = vst [vmem:[#allocation3 + $0x78] sm:$0x3] 0.0
        %356 = vst [vmem:[#allocation3 + $0x80] sm:$0xff] 0.0
        %357 = vst [vmem:[#allocation3 + $0x88] sm:$0xff] 0.0
        %358 = vst [vmem:[#allocation3 + $0x90] sm:$0x3] 0.0
        %359 = vst [vmem:[#allocation3 + $0x98] sm:$0x3] 0.0
        %360 = vst [vmem:[#allocation3 + $0xa0] sm:$0xff] 0.0
        %361 = vst [vmem:[#allocation3 + $0xa8] sm:$0xff] 0.0
        %362 = vst [vmem:[#allocation3 + $0xb0] sm:$0x3] 0.0
        %363 = vst [vmem:[#allocation3 + $0xb8] sm:$0x3] 0.0
        %364 = vst [vmem:[#allocation3 + $0xc0] sm:$0xff] 0.0
        %365 = vst [vmem:[#allocation3 + $0xc8] sm:$0xff] 0.0
        %366 = vst [vmem:[#allocation3 + $0xd0] sm:$0x3] 0.0
        %367 = vst [vmem:[#allocation3 + $0xd8] sm:$0x3] 0.0
        %368 = vst [vmem:[#allocation3 + $0xe0] sm:$0xff] 0.0
        %369 = vst [vmem:[#allocation3 + $0xe8] sm:$0xff] 0.0
        %370 = vst [vmem:[#allocation3 + $0xf0] sm:$0x3] 0.0
        %371 = vst [vmem:[#allocation3 + $0xf8] sm:$0x3] 0.0
        %372 = vst [vmem:[#allocation3 + $0x100] sm:$0xff] 0.0
        %373 = vst [vmem:[#allocation3 + $0x108] sm:$0xff] 0.0
        %374 = vst [vmem:[#allocation3 + $0x110] sm:$0x3] 0.0
        %375 = vst [vmem:[#allocation3 + $0x118] sm:$0x3] 0.0
        %376 = vst [vmem:[#allocation3 + $0x120] sm:$0xff] 0.0
        %377 = vst [vmem:[#allocation3 + $0x128] sm:$0xff] 0.0
        %378 = vst [vmem:[#allocation3 + $0x130] sm:$0x3] 0.0
        %379 = vst [vmem:[#allocation3 + $0x138] sm:$0x3] 0.0
        %v380 = vld [vmem:[%s256] sm:$0xff]
        %v381 = vld [vmem:[%s256 + $0x8] sm:$0xff]
        %v382 = vld [vmem:[%s256 + $0x10] sm:$0xff]
        %v383 = vld [vmem:[%s256 + $0x18] sm:$0xff]
        %v384 = vld [vmem:[%s256 + $0x20] sm:$0xff]
        %v385 = vld [vmem:[%s256 + $0x28] sm:$0xff]
        %v386 = vld [vmem:[%s256 + $0x30] sm:$0xff]
        %v387 = vld [vmem:[%s256 + $0x38] sm:$0xff]
        %v388 = vld [vmem:[%s256 + $0x40] sm:$0xff]
        %v389 = vld [vmem:[%s256 + $0x48] sm:$0xff]
        %v390 = vld [vmem:[%s256 + $0x50] sm:$0xff]
        %v391 = vld [vmem:[%s256 + $0x58] sm:$0xff]
        %v392 = vld [vmem:[%s256 + $0x60] sm:$0xff]
        %v393 = vld [vmem:[%s256 + $0x68] sm:$0xff]
        %v394 = vld [vmem:[%s256 + $0x70] sm:$0xff]
        %v395 = vld [vmem:[%s256 + $0x78] sm:$0xff]
        %v412 = vrot.slane %v380, 7
        %v413 = vrot.slane %v381, 7
        %v414 = vrot.slane %v382, 7
        %v415 = vrot.slane %v383, 7
        %v416 = vrot.slane %v384, 7
        %v417 = vrot.slane %v385, 7
        %v418 = vrot.slane %v386, 7
        %v419 = vrot.slane %v387, 7
        %v420 = vrot.slane %v388, 7
        %v421 = vrot.slane %v389, 7
        %v422 = vrot.slane %v390, 7
        %v423 = vrot.slane %v391, 7
        %v424 = vrot.slane %v392, 7
        %v425 = vrot.slane %v393, 7
        %v426 = vrot.slane %v394, 7
        %v427 = vrot.slane %v395, 7
        %s444 = scalar_lea.vmem [#allocation2], 32
        %445 = vst [vmem:[%s444] sm:$0xfe] %v412
        %446 = vst [vmem:[%s444 + $0x8] sm:$0xfe] %v413
        %447 = vst [vmem:[%s444 + $0x10] sm:$0x1] %v412
        %448 = vst [vmem:[%s444 + $0x18] sm:$0x1] %v413
        %449 = vst [vmem:[%s444 + $0x20] sm:$0xfe] %v414
        %450 = vst [vmem:[%s444 + $0x28] sm:$0xfe] %v415
        %451 = vst [vmem:[%s444 + $0x30] sm:$0x1] %v414
        %452 = vst [vmem:[%s444 + $0x38] sm:$0x1] %v415
        %453 = vst [vmem:[%s444 + $0x40] sm:$0xfe] %v416
        %454 = vst [vmem:[%s444 + $0x48] sm:$0xfe] %v417
        %455 = vst [vmem:[%s444 + $0x50] sm:$0x1] %v416
        %456 = vst [vmem:[%s444 + $0x58] sm:$0x1] %v417
        %457 = vst [vmem:[%s444 + $0x60] sm:$0xfe] %v418
        %458 = vst [vmem:[%s444 + $0x68] sm:$0xfe] %v419
        %459 = vst [vmem:[%s444 + $0x70] sm:$0x1] %v418
        %460 = vst [vmem:[%s444 + $0x78] sm:$0x1] %v419
        %461 = vst [vmem:[%s444 + $0x80] sm:$0xfe] %v420
        %462 = vst [vmem:[%s444 + $0x88] sm:$0xfe] %v421
        %463 = vst [vmem:[%s444 + $0x90] sm:$0x1] %v420
        %464 = vst [vmem:[%s444 + $0x98] sm:$0x1] %v421
        %465 = vst [vmem:[%s444 + $0xa0] sm:$0xfe] %v422
        %466 = vst [vmem:[%s444 + $0xa8] sm:$0xfe] %v423
        %467 = vst [vmem:[%s444 + $0xb0] sm:$0x1] %v422
        %468 = vst [vmem:[%s444 + $0xb8] sm:$0x1] %v423
        %469 = vst [vmem:[%s444 + $0xc0] sm:$0xfe] %v424
        %470 = vst [vmem:[%s444 + $0xc8] sm:$0xfe] %v425
        %471 = vst [vmem:[%s444 + $0xd0] sm:$0x1] %v424
        %472 = vst [vmem:[%s444 + $0xd8] sm:$0x1] %v425
        %473 = vst [vmem:[%s444 + $0xe0] sm:$0xfe] %v426
        %474 = vst [vmem:[%s444 + $0xe8] sm:$0xfe] %v427
        %475 = vst [vmem:[%s444 + $0xf0] sm:$0x1] %v426
        %476 = vst [vmem:[%s444 + $0xf8] sm:$0x1] %v427
        %v477 = vld [vmem:[#allocation9] sm:$0x3]
        %v479 = vlaneseq
        %v480 = vshrl.u32 %v479, 7
        %v481 = vsub.s32 0, %v480
        %v482 = vrot.slane %v477, %v481
        %v483 = vlaneseq
        %v484 = vshrl.u32 %v483, 7
        %v485 = vsub.s32 1, %v484
        %v486 = vrot.slane %v477, %v485
        %v489 = vld [vmem:[#allocation2] sm:$0xff]
        %v490 = vld [vmem:[#allocation2 + $0x8] sm:$0xff]
        %v491 = vld [vmem:[#allocation2 + $0x20] sm:$0xff]
        %v492 = vld [vmem:[#allocation2 + $0x28] sm:$0xff]
        %v493 = vld [vmem:[#allocation2 + $0x40] sm:$0xff]
        %v494 = vld [vmem:[#allocation2 + $0x48] sm:$0xff]
        %v495 = vld [vmem:[#allocation2 + $0x60] sm:$0xff]
        %v496 = vld [vmem:[#allocation2 + $0x68] sm:$0xff]
        %v497 = vld [vmem:[#allocation2 + $0x80] sm:$0xff]
        %v498 = vld [vmem:[#allocation2 + $0x88] sm:$0xff]
        %v499 = vld [vmem:[#allocation2 + $0xa0] sm:$0xff]
        %v500 = vld [vmem:[#allocation2 + $0xa8] sm:$0xff]
        %v501 = vld [vmem:[#allocation2 + $0xc0] sm:$0xff]
        %v502 = vld [vmem:[#allocation2 + $0xc8] sm:$0xff]
        %v503 = vld [vmem:[#allocation2 + $0xe0] sm:$0xff]
        %v504 = vld [vmem:[#allocation2 + $0xe8] sm:$0xff]
        %v505 = vpack.c.bf16 %v491, %v489
        %v506 = vpack.c.bf16 %v492, %v490
        %v507 = vpack.c.bf16 %v495, %v493
        %v508 = vpack.c.bf16 %v496, %v494
        %v509 = vpack.c.bf16 %v499, %v497
        %v510 = vpack.c.bf16 %v500, %v498
        %v511 = vpack.c.bf16 %v503, %v501
        %v512 = vpack.c.bf16 %v504, %v502
        %v513 = vld [vmem:[#allocation7] sm:$0xff]
        %v514 = vld [vmem:[#allocation7 + $0x8] sm:$0xff]
        %v515 = vld [vmem:[#allocation7 + $0x10] sm:$0xff]
        %v516 = vld [vmem:[#allocation7 + $0x18] sm:$0xff]
        %v517 = vld [vmem:[#allocation7 + $0x20] sm:$0xff]
        %v518 = vld [vmem:[#allocation7 + $0x28] sm:$0xff]
        %v519 = vld [vmem:[#allocation7 + $0x30] sm:$0xff]
        %v520 = vld [vmem:[#allocation7 + $0x38] sm:$0xff]
        %v521 = vld [vmem:[#allocation7 + $0x40] sm:$0xff]
        %v522 = vld [vmem:[#allocation7 + $0x48] sm:$0xff]
        %v523 = vld [vmem:[#allocation7 + $0x50] sm:$0xff]
        %v524 = vld [vmem:[#allocation7 + $0x58] sm:$0xff]
        %v525 = vld [vmem:[#allocation7 + $0x60] sm:$0xff]
        %v526 = vld [vmem:[#allocation7 + $0x68] sm:$0xff]
        %v527 = vld [vmem:[#allocation7 + $0x70] sm:$0xff]
        %v528 = vld [vmem:[#allocation7 + $0x78] sm:$0xff]
        %v529 = vld [vmem:[#allocation7 + $0x80] sm:$0xff]
        %v530 = vld [vmem:[#allocation7 + $0x88] sm:$0xff]
        %v531 = vld [vmem:[#allocation7 + $0x90] sm:$0xff]
        %v532 = vld [vmem:[#allocation7 + $0x98] sm:$0xff]
        %v533 = vld [vmem:[#allocation7 + $0xa0] sm:$0xff]
        %v534 = vld [vmem:[#allocation7 + $0xa8] sm:$0xff]
        %v535 = vld [vmem:[#allocation7 + $0xb0] sm:$0xff]
        %v536 = vld [vmem:[#allocation7 + $0xb8] sm:$0xff]
        %v537 = vld [vmem:[#allocation7 + $0xc0] sm:$0xff]
        %v538 = vld [vmem:[#allocation7 + $0xc8] sm:$0xff]
        %v539 = vld [vmem:[#allocation7 + $0xd0] sm:$0xff]
        %v540 = vld [vmem:[#allocation7 + $0xd8] sm:$0xff]
        %v541 = vld [vmem:[#allocation7 + $0xe0] sm:$0xff]
        %v542 = vld [vmem:[#allocation7 + $0xe8] sm:$0xff]
        %v543 = vld [vmem:[#allocation7 + $0xf0] sm:$0xff]
        %v544 = vld [vmem:[#allocation7 + $0xf8] sm:$0xff]
        %v577 = vunpack.c.l.b16 %v513
        %v578 = vunpack.c.h.b16 %v513
        %v579 = vunpack.c.l.b16 %v514
        %v580 = vunpack.c.h.b16 %v514
        %v581 = vunpack.c.l.b16 %v515
        %v582 = vunpack.c.h.b16 %v515
        %v583 = vunpack.c.l.b16 %v516
        %v584 = vunpack.c.h.b16 %v516
        %v585 = vunpack.c.l.b16 %v517
        %v586 = vunpack.c.h.b16 %v517
        %v587 = vunpack.c.l.b16 %v518
        %v588 = vunpack.c.h.b16 %v518
        %v589 = vunpack.c.l.b16 %v519
        %v590 = vunpack.c.h.b16 %v519
        %v591 = vunpack.c.l.b16 %v520
        %v592 = vunpack.c.h.b16 %v520
        %v593 = vunpack.c.l.b16 %v521
        %v594 = vunpack.c.h.b16 %v521
        %v595 = vunpack.c.l.b16 %v522
        %v596 = vunpack.c.h.b16 %v522
        %v597 = vunpack.c.l.b16 %v523
        %v598 = vunpack.c.h.b16 %v523
        %v599 = vunpack.c.l.b16 %v524
        %v600 = vunpack.c.h.b16 %v524
        %v601 = vunpack.c.l.b16 %v525
        %v602 = vunpack.c.h.b16 %v525
        %v603 = vunpack.c.l.b16 %v526
        %v604 = vunpack.c.h.b16 %v526
        %v605 = vunpack.c.l.b16 %v527
        %v606 = vunpack.c.h.b16 %v527
        %v607 = vunpack.c.l.b16 %v528
        %v608 = vunpack.c.h.b16 %v528
        %v609 = vunpack.c.l.b16 %v529
        %v610 = vunpack.c.h.b16 %v529
        %v611 = vunpack.c.l.b16 %v530
        %v612 = vunpack.c.h.b16 %v530
        %v613 = vunpack.c.l.b16 %v531
        %v614 = vunpack.c.h.b16 %v531
        %v615 = vunpack.c.l.b16 %v532
        %v616 = vunpack.c.h.b16 %v532
        %v617 = vunpack.c.l.b16 %v533
        %v618 = vunpack.c.h.b16 %v533
        %v619 = vunpack.c.l.b16 %v534
        %v620 = vunpack.c.h.b16 %v534
        %v621 = vunpack.c.l.b16 %v535
        %v622 = vunpack.c.h.b16 %v535
        %v623 = vunpack.c.l.b16 %v536
        %v624 = vunpack.c.h.b16 %v536
        %v625 = vunpack.c.l.b16 %v537
        %v626 = vunpack.c.h.b16 %v537
        %v627 = vunpack.c.l.b16 %v538
        %v628 = vunpack.c.h.b16 %v538
        %v629 = vunpack.c.l.b16 %v539
        %v630 = vunpack.c.h.b16 %v539
        %v631 = vunpack.c.l.b16 %v540
        %v632 = vunpack.c.h.b16 %v540
        %v633 = vunpack.c.l.b16 %v541
        %v634 = vunpack.c.h.b16 %v541
        %v635 = vunpack.c.l.b16 %v542
        %v636 = vunpack.c.h.b16 %v542
        %v637 = vunpack.c.l.b16 %v543
        %v638 = vunpack.c.h.b16 %v543
        %v639 = vunpack.c.l.b16 %v544
        %v640 = vunpack.c.h.b16 %v544
        %v641 = vpack.c.b16 %v579, %v577
        %v642 = vpack.c.b16 %v580, %v578
        %v643 = vpack.c.b16 %v583, %v581
        %v644 = vpack.c.b16 %v584, %v582
        %v645 = vpack.c.b16 %v587, %v585
        %v646 = vpack.c.b16 %v588, %v586
        %v647 = vpack.c.b16 %v591, %v589
        %v648 = vpack.c.b16 %v592, %v590
        %v649 = vpack.c.b16 %v595, %v593
        %v650 = vpack.c.b16 %v596, %v594
        %v651 = vpack.c.b16 %v599, %v597
        %v652 = vpack.c.b16 %v600, %v598
        %v653 = vpack.c.b16 %v603, %v601
        %v654 = vpack.c.b16 %v604, %v602
        %v655 = vpack.c.b16 %v607, %v605
        %v656 = vpack.c.b16 %v608, %v606
        %v657 = vpack.c.b16 %v611, %v609
        %v658 = vpack.c.b16 %v612, %v610
        %v659 = vpack.c.b16 %v615, %v613
        %v660 = vpack.c.b16 %v616, %v614
        %v661 = vpack.c.b16 %v619, %v617
        %v662 = vpack.c.b16 %v620, %v618
        %v663 = vpack.c.b16 %v623, %v621
        %v664 = vpack.c.b16 %v624, %v622
        %v665 = vpack.c.b16 %v627, %v625
        %v666 = vpack.c.b16 %v628, %v626
        %v667 = vpack.c.b16 %v631, %v629
        %v668 = vpack.c.b16 %v632, %v630
        %v669 = vpack.c.b16 %v635, %v633
        %v670 = vpack.c.b16 %v636, %v634
        %v671 = vpack.c.b16 %v639, %v637
        %v672 = vpack.c.b16 %v640, %v638
        %705 = vmatprep.subr.bf16.mxu0 %v642
        %706 = vmatpush1.bf16.msra.mxu0 %v641
        %707 = vmatprep.subr.bf16.mxu0 %v644
        %708 = vmatpush1.bf16.msra.mxu0 %v643
        %709 = vmatprep.subr.bf16.mxu0 %v646
        %710 = vmatpush1.bf16.msra.mxu0 %v645
        %711 = vmatprep.subr.bf16.mxu0 %v648
        %712 = vmatpush1.bf16.msra.mxu0 %v647
        %713 = vmatprep.subr.bf16.mxu0 %v650
        %714 = vmatpush1.bf16.msra.mxu0 %v649
        %715 = vmatprep.subr.bf16.mxu0 %v652
        %716 = vmatpush1.bf16.msra.mxu0 %v651
        %717 = vmatprep.subr.bf16.mxu0 %v654
        %718 = vmatpush1.bf16.msra.mxu0 %v653
        %719 = vmatprep.subr.bf16.mxu0 %v656
        %720 = vmatpush1.bf16.msra.mxu0 %v655
        %721 = vmatprep.subr.bf16.mxu0 %v658
        %722 = vmatpush1.bf16.msra.mxu0 %v657
        %723 = vmatprep.subr.bf16.mxu0 %v660
        %724 = vmatpush1.bf16.msra.mxu0 %v659
        %725 = vmatprep.subr.bf16.mxu0 %v662
        %726 = vmatpush1.bf16.msra.mxu0 %v661
        %727 = vmatprep.subr.bf16.mxu0 %v664
        %728 = vmatpush1.bf16.msra.mxu0 %v663
        %729 = vmatprep.subr.bf16.mxu0 %v666
        %730 = vmatpush1.bf16.msra.mxu0 %v665
        %731 = vmatprep.subr.bf16.mxu0 %v668
        %732 = vmatpush1.bf16.msra.mxu0 %v667
        %733 = vmatprep.subr.bf16.mxu0 %v670
        %734 = vmatpush1.bf16.msra.mxu0 %v669
        %735 = vmatprep.subr.bf16.mxu0 %v672
        %736 = vmatpush1.bf16.msra.mxu0 %v671
        %737 = vmatprep.mubr.bf16.mxu0 %v506
        %738 = vmatmul.mubr.bf16.gmra.mrb[0].mxu0 %v505
        %v739 = vpop.f32.mrb[0].mxu0
        %v740 = vadd.f32 0.0, %v739
        %v741 = vpop.f32.mrb[0].mxu0
        %v742 = vadd.f32 0.0, %v741
        %v743 = vpop.f32.mrb[0].mxu0
        %v744 = vadd.f32 0.0, %v743
        %v745 = vpop.f32.mrb[0].mxu0
        %v746 = vadd.f32 0.0, %v745
        %747 = vmatprep.mubr.bf16.mxu0 %v508
        %748 = vmatmul.mubr.bf16.gmra.mrb[0].mxu0 %v507
        %v749 = vpop.f32.mrb[0].mxu0
        %v750 = vadd.f32 0.0, %v749
        %v751 = vpop.f32.mrb[0].mxu0
        %v752 = vadd.f32 0.0, %v751
        %v753 = vpop.f32.mrb[0].mxu0
        %v754 = vadd.f32 0.0, %v753
        %v755 = vpop.f32.mrb[0].mxu0
        %v756 = vadd.f32 0.0, %v755
        %757 = vmatprep.mubr.bf16.mxu0 %v510
        %758 = vmatmul.mubr.bf16.gmra.mrb[0].mxu0 %v509
        %v759 = vpop.f32.mrb[0].mxu0
        %v760 = vadd.f32 0.0, %v759
        %v761 = vpop.f32.mrb[0].mxu0
        %v762 = vadd.f32 0.0, %v761
        %v763 = vpop.f32.mrb[0].mxu0
        %v764 = vadd.f32 0.0, %v763
        %v765 = vpop.f32.mrb[0].mxu0
        %v766 = vadd.f32 0.0, %v765
        %767 = vmatprep.mubr.bf16.mxu0 %v512
        %768 = vmatmul.mubr.bf16.gmra.mrb[0].mxu0 %v511
        %v769 = vpop.f32.mrb[0].mxu0
        %v770 = vadd.f32 0.0, %v769
        %v771 = vpop.f32.mrb[0].mxu0
        %v772 = vadd.f32 0.0, %v771
        %v773 = vpop.f32.mrb[0].mxu0
        %v774 = vadd.f32 0.0, %v773
        %v775 = vpop.f32.mrb[0].mxu0
        %v776 = vadd.f32 0.0, %v775
        %777 = vdwg.mxu0
        %v778 = vadd.f32 %v482, %v740
        %v779 = vadd.f32 %v486, %v742
        %v780 = vadd.f32 %v482, %v744
        %v781 = vadd.f32 %v486, %v746
        %v782 = vadd.f32 %v482, %v750
        %v783 = vadd.f32 %v486, %v752
        %v784 = vadd.f32 %v482, %v754
        %v785 = vadd.f32 %v486, %v756
        %v786 = vadd.f32 %v482, %v760
        %v787 = vadd.f32 %v486, %v762
        %v788 = vadd.f32 %v482, %v764
        %v789 = vadd.f32 %v486, %v766
        %v790 = vadd.f32 %v482, %v770
        %v791 = vadd.f32 %v486, %v772
        %v792 = vadd.f32 %v482, %v774
        %v793 = vadd.f32 %v486, %v776
        %v794 = vld [vmem:[#allocation2] sm:$0xfe]
        %v795 = vld [vmem:[#allocation2 + $0x8] sm:$0xfe]
        %v796 = vld [vmem:[#allocation2 + $0x10] sm:$0x1]
        %v797 = vld [vmem:[#allocation2 + $0x18] sm:$0x1]
        %v798 = vld [vmem:[#allocation2 + $0x20] sm:$0xfe]
        %v799 = vld [vmem:[#allocation2 + $0x28] sm:$0xfe]
        %v800 = vld [vmem:[#allocation2 + $0x30] sm:$0x1]
        %v801 = vld [vmem:[#allocation2 + $0x38] sm:$0x1]
        %v802 = vld [vmem:[#allocation2 + $0x40] sm:$0xfe]
        %v803 = vld [vmem:[#allocation2 + $0x48] sm:$0xfe]
        %v804 = vld [vmem:[#allocation2 + $0x50] sm:$0x1]
        %v805 = vld [vmem:[#allocation2 + $0x58] sm:$0x1]
        %v806 = vld [vmem:[#allocation2 + $0x60] sm:$0xfe]
        %v807 = vld [vmem:[#allocation2 + $0x68] sm:$0xfe]
        %v808 = vld [vmem:[#allocation2 + $0x70] sm:$0x1]
        %v809 = vld [vmem:[#allocation2 + $0x78] sm:$0x1]
        %v810 = vld [vmem:[#allocation2 + $0x80] sm:$0xfe]
        %v811 = vld [vmem:[#allocation2 + $0x88] sm:$0xfe]
        %v812 = vld [vmem:[#allocation2 + $0x90] sm:$0x1]
        %v813 = vld [vmem:[#allocation2 + $0x98] sm:$0x1]
        %v814 = vld [vmem:[#allocation2 + $0xa0] sm:$0xfe]
        %v815 = vld [vmem:[#allocation2 + $0xa8] sm:$0xfe]
        %v816 = vld [vmem:[#allocation2 + $0xb0] sm:$0x1]
        %v817 = vld [vmem:[#allocation2 + $0xb8] sm:$0x1]
        %v818 = vld [vmem:[#allocation2 + $0xc0] sm:$0xfe]
        %v819 = vld [vmem:[#allocation2 + $0xc8] sm:$0xfe]
        %v820 = vld [vmem:[#allocation2 + $0xd0] sm:$0x1]
        %v821 = vld [vmem:[#allocation2 + $0xd8] sm:$0x1]
        %v822 = vld [vmem:[#allocation2 + $0xe0] sm:$0xfe]
        %v823 = vld [vmem:[#allocation2 + $0xe8] sm:$0xfe]
        %v824 = vld [vmem:[#allocation2 + $0xf0] sm:$0x1]
        %v825 = vld [vmem:[#allocation2 + $0xf8] sm:$0x1]
        %vm858 = vcmask 1046528
        %v859 = vrot.slane %v794, 1
        %v860 = vrot.slane %v796, 1
        %v861 = vsel %vm858, %v859, %v860
        %v862 = vrot.slane %v795, 1
        %v863 = vrot.slane %v797, 1
        %v864 = vsel %vm858, %v862, %v863
        %v865 = vrot.slane %v798, 1
        %v866 = vrot.slane %v800, 1
        %v867 = vsel %vm858, %v865, %v866
        %v868 = vrot.slane %v799, 1
        %v869 = vrot.slane %v801, 1
        %v870 = vsel %vm858, %v868, %v869
        %v871 = vrot.slane %v802, 1
        %v872 = vrot.slane %v804, 1
        %v873 = vsel %vm858, %v871, %v872
        %v874 = vrot.slane %v803, 1
        %v875 = vrot.slane %v805, 1
        %v876 = vsel %vm858, %v874, %v875
        %v877 = vrot.slane %v806, 1
        %v878 = vrot.slane %v808, 1
        %v879 = vsel %vm858, %v877, %v878
        %v880 = vrot.slane %v807, 1
        %v881 = vrot.slane %v809, 1
        %v882 = vsel %vm858, %v880, %v881
        %v883 = vrot.slane %v810, 1
        %v884 = vrot.slane %v812, 1
        %v885 = vsel %vm858, %v883, %v884
        %v886 = vrot.slane %v811, 1
        %v887 = vrot.slane %v813, 1
        %v888 = vsel %vm858, %v886, %v887
        %v889 = vrot.slane %v814, 1
        %v890 = vrot.slane %v816, 1
        %v891 = vsel %vm858, %v889, %v890
        %v892 = vrot.slane %v815, 1
        %v893 = vrot.slane %v817, 1
        %v894 = vsel %vm858, %v892, %v893
        %v895 = vrot.slane %v818, 1
        %v896 = vrot.slane %v820, 1
        %v897 = vsel %vm858, %v895, %v896
        %v898 = vrot.slane %v819, 1
        %v899 = vrot.slane %v821, 1
        %v900 = vsel %vm858, %v898, %v899
        %v901 = vrot.slane %v822, 1
        %v902 = vrot.slane %v824, 1
        %v903 = vsel %vm858, %v901, %v902
        %v904 = vrot.slane %v823, 1
        %v905 = vrot.slane %v825, 1
        %v906 = vsel %vm858, %v904, %v905
        %v923 = vpack.c.bf16 %v867, %v861
        %v924 = vpack.c.bf16 %v870, %v864
        %v925 = vpack.c.bf16 %v879, %v873
        %v926 = vpack.c.bf16 %v882, %v876
        %v927 = vpack.c.bf16 %v891, %v885
        %v928 = vpack.c.bf16 %v894, %v888
        %v929 = vpack.c.bf16 %v903, %v897
        %v930 = vpack.c.bf16 %v906, %v900
        %s931 = scalar_lea.vmem [#allocation7], 256
        %v932 = vld [vmem:[%s931] sm:$0xff]
        %v933 = vld [vmem:[%s931 + $0x8] sm:$0xff]
        %v934 = vld [vmem:[%s931 + $0x10] sm:$0xff]
        %v935 = vld [vmem:[%s931 + $0x18] sm:$0xff]
        %v936 = vld [vmem:[%s931 + $0x20] sm:$0xff]
        %v937 = vld [vmem:[%s931 + $0x28] sm:$0xff]
        %v938 = vld [vmem:[%s931 + $0x30] sm:$0xff]
        %v939 = vld [vmem:[%s931 + $0x38] sm:$0xff]
        %v940 = vld [vmem:[%s931 + $0x40] sm:$0xff]
        %v941 = vld [vmem:[%s931 + $0x48] sm:$0xff]
        %v942 = vld [vmem:[%s931 + $0x50] sm:$0xff]
        %v943 = vld [vmem:[%s931 + $0x58] sm:$0xff]
        %v944 = vld [vmem:[%s931 + $0x60] sm:$0xff]
        %v945 = vld [vmem:[%s931 + $0x68] sm:$0xff]
        %v946 = vld [vmem:[%s931 + $0x70] sm:$0xff]
        %v947 = vld [vmem:[%s931 + $0x78] sm:$0xff]
        %v948 = vld [vmem:[%s931 + $0x80] sm:$0xff]
        %v949 = vld [vmem:[%s931 + $0x88] sm:$0xff]
        %v950 = vld [vmem:[%s931 + $0x90] sm:$0xff]
        %v951 = vld [vmem:[%s931 + $0x98] sm:$0xff]
        %v952 = vld [vmem:[%s931 + $0xa0] sm:$0xff]
        %v953 = vld [vmem:[%s931 + $0xa8] sm:$0xff]
        %v954 = vld [vmem:[%s931 + $0xb0] sm:$0xff]
        %v955 = vld [vmem:[%s931 + $0xb8] sm:$0xff]
        %v956 = vld [vmem:[%s931 + $0xc0] sm:$0xff]
        %v957 = vld [vmem:[%s931 + $0xc8] sm:$0xff]
        %v958 = vld [vmem:[%s931 + $0xd0] sm:$0xff]
        %v959 = vld [vmem:[%s931 + $0xd8] sm:$0xff]
        %v960 = vld [vmem:[%s931 + $0xe0] sm:$0xff]
        %v961 = vld [vmem:[%s931 + $0xe8] sm:$0xff]
        %v962 = vld [vmem:[%s931 + $0xf0] sm:$0xff]
        %v963 = vld [vmem:[%s931 + $0xf8] sm:$0xff]
        %v996 = vunpack.c.l.b16 %v932
        %v997 = vunpack.c.h.b16 %v932
        %v998 = vunpack.c.l.b16 %v933
        %v999 = vunpack.c.h.b16 %v933
        %v1000 = vunpack.c.l.b16 %v934
        %v1001 = vunpack.c.h.b16 %v934
        %v1002 = vunpack.c.l.b16 %v935
        %v1003 = vunpack.c.h.b16 %v935
        %v1004 = vunpack.c.l.b16 %v936
        %v1005 = vunpack.c.h.b16 %v936
        %v1006 = vunpack.c.l.b16 %v937
        %v1007 = vunpack.c.h.b16 %v937
        %v1008 = vunpack.c.l.b16 %v938
        %v1009 = vunpack.c.h.b16 %v938
        %v1010 = vunpack.c.l.b16 %v939
        %v1011 = vunpack.c.h.b16 %v939
        %v1012 = vunpack.c.l.b16 %v940
        %v1013 = vunpack.c.h.b16 %v940
        %v1014 = vunpack.c.l.b16 %v941
        %v1015 = vunpack.c.h.b16 %v941
        %v1016 = vunpack.c.l.b16 %v942
        %v1017 = vunpack.c.h.b16 %v942
        %v1018 = vunpack.c.l.b16 %v943
        %v1019 = vunpack.c.h.b16 %v943
        %v1020 = vunpack.c.l.b16 %v944
        %v1021 = vunpack.c.h.b16 %v944
        %v1022 = vunpack.c.l.b16 %v945
        %v1023 = vunpack.c.h.b16 %v945
        %v1024 = vunpack.c.l.b16 %v946
        %v1025 = vunpack.c.h.b16 %v946
        %v1026 = vunpack.c.l.b16 %v947
        %v1027 = vunpack.c.h.b16 %v947
        %v1028 = vunpack.c.l.b16 %v948
        %v1029 = vunpack.c.h.b16 %v948
        %v1030 = vunpack.c.l.b16 %v949
        %v1031 = vunpack.c.h.b16 %v949
        %v1032 = vunpack.c.l.b16 %v950
        %v1033 = vunpack.c.h.b16 %v950
        %v1034 = vunpack.c.l.b16 %v951
        %v1035 = vunpack.c.h.b16 %v951
        %v1036 = vunpack.c.l.b16 %v952
        %v1037 = vunpack.c.h.b16 %v952
        %v1038 = vunpack.c.l.b16 %v953
        %v1039 = vunpack.c.h.b16 %v953
        %v1040 = vunpack.c.l.b16 %v954
        %v1041 = vunpack.c.h.b16 %v954
        %v1042 = vunpack.c.l.b16 %v955
        %v1043 = vunpack.c.h.b16 %v955
        %v1044 = vunpack.c.l.b16 %v956
        %v1045 = vunpack.c.h.b16 %v956
        %v1046 = vunpack.c.l.b16 %v957
        %v1047 = vunpack.c.h.b16 %v957
        %v1048 = vunpack.c.l.b16 %v958
        %v1049 = vunpack.c.h.b16 %v958
        %v1050 = vunpack.c.l.b16 %v959
        %v1051 = vunpack.c.h.b16 %v959
        %v1052 = vunpack.c.l.b16 %v960
        %v1053 = vunpack.c.h.b16 %v960
        %v1054 = vunpack.c.l.b16 %v961
        %v1055 = vunpack.c.h.b16 %v961
        %v1056 = vunpack.c.l.b16 %v962
        %v1057 = vunpack.c.h.b16 %v962
        %v1058 = vunpack.c.l.b16 %v963
        %v1059 = vunpack.c.h.b16 %v963
        %v1060 = vpack.c.b16 %v998, %v996
        %v1061 = vpack.c.b16 %v999, %v997
        %v1062 = vpack.c.b16 %v1002, %v1000
        %v1063 = vpack.c.b16 %v1003, %v1001
        %v1064 = vpack.c.b16 %v1006, %v1004
        %v1065 = vpack.c.b16 %v1007, %v1005
        %v1066 = vpack.c.b16 %v1010, %v1008
        %v1067 = vpack.c.b16 %v1011, %v1009
        %v1068 = vpack.c.b16 %v1014, %v1012
        %v1069 = vpack.c.b16 %v1015, %v1013
        %v1070 = vpack.c.b16 %v1018, %v1016
        %v1071 = vpack.c.b16 %v1019, %v1017
        %v1072 = vpack.c.b16 %v1022, %v1020
        %v1073 = vpack.c.b16 %v1023, %v1021
        %v1074 = vpack.c.b16 %v1026, %v1024
        %v1075 = vpack.c.b16 %v1027, %v1025
        %v1076 = vpack.c.b16 %v1030, %v1028
        %v1077 = vpack.c.b16 %v1031, %v1029
        %v1078 = vpack.c.b16 %v1034, %v1032
        %v1079 = vpack.c.b16 %v1035, %v1033
        %v1080 = vpack.c.b16 %v1038, %v1036
        %v1081 = vpack.c.b16 %v1039, %v1037
        %v1082 = vpack.c.b16 %v1042, %v1040
        %v1083 = vpack.c.b16 %v1043, %v1041
        %v1084 = vpack.c.b16 %v1046, %v1044
        %v1085 = vpack.c.b16 %v1047, %v1045
        %v1086 = vpack.c.b16 %v1050, %v1048
        %v1087 = vpack.c.b16 %v1051, %v1049
        %v1088 = vpack.c.b16 %v1054, %v1052
        %v1089 = vpack.c.b16 %v1055, %v1053
        %v1090 = vpack.c.b16 %v1058, %v1056
        %v1091 = vpack.c.b16 %v1059, %v1057
        %1124 = vmatprep.subr.bf16.mxu0 %v1061
        %1125 = vmatpush1.bf16.msra.mxu0 %v1060
        %1126 = vmatprep.subr.bf16.mxu0 %v1063
        %1127 = vmatpush1.bf16.msra.mxu0 %v1062
        %1128 = vmatprep.subr.bf16.mxu0 %v1065
        %1129 = vmatpush1.bf16.msra.mxu0 %v1064
        %1130 = vmatprep.subr.bf16.mxu0 %v1067
        %1131 = vmatpush1.bf16.msra.mxu0 %v1066
        %1132 = vmatprep.subr.bf16.mxu0 %v1069
        %1133 = vmatpush1.bf16.msra.mxu0 %v1068
        %1134 = vmatprep.subr.bf16.mxu0 %v1071
        %1135 = vmatpush1.bf16.msra.mxu0 %v1070
        %1136 = vmatprep.subr.bf16.mxu0 %v1073
        %1137 = vmatpush1.bf16.msra.mxu0 %v1072
        %1138 = vmatprep.subr.bf16.mxu0 %v1075
        %1139 = vmatpush1.bf16.msra.mxu0 %v1074
        %1140 = vmatprep.subr.bf16.mxu0 %v1077
        %1141 = vmatpush1.bf16.msra.mxu0 %v1076
        %1142 = vmatprep.subr.bf16.mxu0 %v1079
        %1143 = vmatpush1.bf16.msra.mxu0 %v1078
        %1144 = vmatprep.subr.bf16.mxu0 %v1081
        %1145 = vmatpush1.bf16.msra.mxu0 %v1080
        %1146 = vmatprep.subr.bf16.mxu0 %v1083
        %1147 = vmatpush1.bf16.msra.mxu0 %v1082
        %1148 = vmatprep.subr.bf16.mxu0 %v1085
        %1149 = vmatpush1.bf16.msra.mxu0 %v1084
        %1150 = vmatprep.subr.bf16.mxu0 %v1087
        %1151 = vmatpush1.bf16.msra.mxu0 %v1086
        %1152 = vmatprep.subr.bf16.mxu0 %v1089
        %1153 = vmatpush1.bf16.msra.mxu0 %v1088
        %1154 = vmatprep.subr.bf16.mxu0 %v1091
        %1155 = vmatpush1.bf16.msra.mxu0 %v1090
        %1156 = vmatprep.mubr.bf16.mxu0 %v924
        %1157 = vmatmul.mubr.bf16.gmra.mrb[0].mxu0 %v923
        %v1158 = vpop.f32.mrb[0].mxu0
        %v1159 = vadd.f32 0.0, %v1158
        %v1160 = vpop.f32.mrb[0].mxu0
        %v1161 = vadd.f32 0.0, %v1160
        %v1162 = vpop.f32.mrb[0].mxu0
        %v1163 = vadd.f32 0.0, %v1162
        %v1164 = vpop.f32.mrb[0].mxu0
        %v1165 = vadd.f32 0.0, %v1164
        %1166 = vmatprep.mubr.bf16.mxu0 %v926
        %1167 = vmatmul.mubr.bf16.gmra.mrb[0].mxu0 %v925
        %v1168 = vpop.f32.mrb[0].mxu0
        %v1169 = vadd.f32 0.0, %v1168
        %v1170 = vpop.f32.mrb[0].mxu0
        %v1171 = vadd.f32 0.0, %v1170
        %v1172 = vpop.f32.mrb[0].mxu0
        %v1173 = vadd.f32 0.0, %v1172
        %v1174 = vpop.f32.mrb[0].mxu0
        %v1175 = vadd.f32 0.0, %v1174
        %1176 = vmatprep.mubr.bf16.mxu0 %v928
        %1177 = vmatmul.mubr.bf16.gmra.mrb[0].mxu0 %v927
        %v1178 = vpop.f32.mrb[0].mxu0
        %v1179 = vadd.f32 0.0, %v1178
        %v1180 = vpop.f32.mrb[0].mxu0
        %v1181 = vadd.f32 0.0, %v1180
        %v1182 = vpop.f32.mrb[0].mxu0
        %v1183 = vadd.f32 0.0, %v1182
        %v1184 = vpop.f32.mrb[0].mxu0
        %v1185 = vadd.f32 0.0, %v1184
        %1186 = vmatprep.mubr.bf16.mxu0 %v930
        %1187 = vmatmul.mubr.bf16.gmra.mrb[0].mxu0 %v929
        %v1188 = vpop.f32.mrb[0].mxu0
        %v1189 = vadd.f32 0.0, %v1188
        %v1190 = vpop.f32.mrb[0].mxu0
        %v1191 = vadd.f32 0.0, %v1190
        %v1192 = vpop.f32.mrb[0].mxu0
        %v1193 = vadd.f32 0.0, %v1192
        %v1194 = vpop.f32.mrb[0].mxu0
        %v1195 = vadd.f32 0.0, %v1194
        %1196 = vdwg.mxu0
        %v1197 = vadd.f32 %v778, %v1159
        %v1198 = vadd.f32 %v779, %v1161
        %v1199 = vadd.f32 %v780, %v1163
        %v1200 = vadd.f32 %v781, %v1165
        %v1201 = vadd.f32 %v782, %v1169
        %v1202 = vadd.f32 %v783, %v1171
        %v1203 = vadd.f32 %v784, %v1173
        %v1204 = vadd.f32 %v785, %v1175
        %v1205 = vadd.f32 %v786, %v1179
        %v1206 = vadd.f32 %v787, %v1181
        %v1207 = vadd.f32 %v788, %v1183
        %v1208 = vadd.f32 %v789, %v1185
        %v1209 = vadd.f32 %v790, %v1189
        %v1210 = vadd.f32 %v791, %v1191
        %v1211 = vadd.f32 %v792, %v1193
        %v1212 = vadd.f32 %v793, %v1195
        %v1213 = vld [vmem:[#allocation2] sm:$0xfc]
        %v1214 = vld [vmem:[#allocation2 + $0x8] sm:$0xfc]
        %v1215 = vld [vmem:[#allocation2 + $0x10] sm:$0x3]
        %v1216 = vld [vmem:[#allocation2 + $0x18] sm:$0x3]
        %v1217 = vld [vmem:[#allocation2 + $0x20] sm:$0xfc]
        %v1218 = vld [vmem:[#allocation2 + $0x28] sm:$0xfc]
        %v1219 = vld [vmem:[#allocation2 + $0x30] sm:$0x3]
        %v1220 = vld [vmem:[#allocation2 + $0x38] sm:$0x3]
        %v1221 = vld [vmem:[#allocation2 + $0x40] sm:$0xfc]
        %v1222 = vld [vmem:[#allocation2 + $0x48] sm:$0xfc]
        %v1223 = vld [vmem:[#allocation2 + $0x50] sm:$0x3]
        %v1224 = vld [vmem:[#allocation2 + $0x58] sm:$0x3]
        %v1225 = vld [vmem:[#allocation2 + $0x60] sm:$0xfc]
        %v1226 = vld [vmem:[#allocation2 + $0x68] sm:$0xfc]
        %v1227 = vld [vmem:[#allocation2 + $0x70] sm:$0x3]
        %v1228 = vld [vmem:[#allocation2 + $0x78] sm:$0x3]
        %v1229 = vld [vmem:[#allocation2 + $0x80] sm:$0xfc]
        %v1230 = vld [vmem:[#allocation2 + $0x88] sm:$0xfc]
        %v1231 = vld [vmem:[#allocation2 + $0x90] sm:$0x3]
        %v1232 = vld [vmem:[#allocation2 + $0x98] sm:$0x3]
        %v1233 = vld [vmem:[#allocation2 + $0xa0] sm:$0xfc]
        %v1234 = vld [vmem:[#allocation2 + $0xa8] sm:$0xfc]
        %v1235 = vld [vmem:[#allocation2 + $0xb0] sm:$0x3]
        %v1236 = vld [vmem:[#allocation2 + $0xb8] sm:$0x3]
        %v1237 = vld [vmem:[#allocation2 + $0xc0] sm:$0xfc]
        %v1238 = vld [vmem:[#allocation2 + $0xc8] sm:$0xfc]
        %v1239 = vld [vmem:[#allocation2 + $0xd0] sm:$0x3]
        %v1240 = vld [vmem:[#allocation2 + $0xd8] sm:$0x3]
        %v1241 = vld [vmem:[#allocation2 + $0xe0] sm:$0xfc]
        %v1242 = vld [vmem:[#allocation2 + $0xe8] sm:$0xfc]
        %v1243 = vld [vmem:[#allocation2 + $0xf0] sm:$0x3]
        %v1244 = vld [vmem:[#allocation2 + $0xf8] sm:$0x3]
        %vm1277 = vcmask 1045504
        %v1278 = vrot.slane %v1213, 2
        %v1279 = vrot.slane %v1215, 2
        %v1280 = vsel %vm1277, %v1278, %v1279
        %v1281 = vrot.slane %v1214, 2
        %v1282 = vrot.slane %v1216, 2
        %v1283 = vsel %vm1277, %v1281, %v1282
        %v1284 = vrot.slane %v1217, 2
        %v1285 = vrot.slane %v1219, 2
        %v1286 = vsel %vm1277, %v1284, %v1285
        %v1287 = vrot.slane %v1218, 2
        %v1288 = vrot.slane %v1220, 2
        %v1289 = vsel %vm1277, %v1287, %v1288
        %v1290 = vrot.slane %v1221, 2
        %v1291 = vrot.slane %v1223, 2
        %v1292 = vsel %vm1277, %v1290, %v1291
        %v1293 = vrot.slane %v1222, 2
        %v1294 = vrot.slane %v1224, 2
        %v1295 = vsel %vm1277, %v1293, %v1294
        %v1296 = vrot.slane %v1225, 2
        %v1297 = vrot.slane %v1227, 2
        %v1298 = vsel %vm1277, %v1296, %v1297
        %v1299 = vrot.slane %v1226, 2
        %v1300 = vrot.slane %v1228, 2
        %v1301 = vsel %vm1277, %v1299, %v1300
        %v1302 = vrot.slane %v1229, 2
        %v1303 = vrot.slane %v1231, 2
        %v1304 = vsel %vm1277, %v1302, %v1303
        %v1305 = vrot.slane %v1230, 2
        %v1306 = vrot.slane %v1232, 2
        %v1307 = vsel %vm1277, %v1305, %v1306
        %v1308 = vrot.slane %v1233, 2
        %v1309 = vrot.slane %v1235, 2
        %v1310 = vsel %vm1277, %v1308, %v1309
        %v1311 = vrot.slane %v1234, 2
        %v1312 = vrot.slane %v1236, 2
        %v1313 = vsel %vm1277, %v1311, %v1312
        %v1314 = vrot.slane %v1237, 2
        %v1315 = vrot.slane %v1239, 2
        %v1316 = vsel %vm1277, %v1314, %v1315
        %v1317 = vrot.slane %v1238, 2
        %v1318 = vrot.slane %v1240, 2
        %v1319 = vsel %vm1277, %v1317, %v1318
        %v1320 = vrot.slane %v1241, 2
        %v1321 = vrot.slane %v1243, 2
        %v1322 = vsel %vm1277, %v1320, %v1321
        %v1323 = vrot.slane %v1242, 2
        %v1324 = vrot.slane %v1244, 2
        %v1325 = vsel %vm1277, %v1323, %v1324
        %v1342 = vpack.c.bf16 %v1286, %v1280
        %v1343 = vpack.c.bf16 %v1289, %v1283
        %v1344 = vpack.c.bf16 %v1298, %v1292
        %v1345 = vpack.c.bf16 %v1301, %v1295
        %v1346 = vpack.c.bf16 %v1310, %v1304
        %v1347 = vpack.c.bf16 %v1313, %v1307
        %v1348 = vpack.c.bf16 %v1322, %v1316
        %v1349 = vpack.c.bf16 %v1325, %v1319
        %s1350 = scalar_lea.vmem [#allocation7], 512
        %v1351 = vld [vmem:[%s1350] sm:$0xff]
        %v1352 = vld [vmem:[%s1350 + $0x8] sm:$0xff]
        %v1353 = vld [vmem:[%s1350 + $0x10] sm:$0xff]
        %v1354 = vld [vmem:[%s1350 + $0x18] sm:$0xff]
        %v1355 = vld [vmem:[%s1350 + $0x20] sm:$0xff]
        %v1356 = vld [vmem:[%s1350 + $0x28] sm:$0xff]
        %v1357 = vld [vmem:[%s1350 + $0x30] sm:$0xff]
        %v1358 = vld [vmem:[%s1350 + $0x38] sm:$0xff]
        %v1359 = vld [vmem:[%s1350 + $0x40] sm:$0xff]
        %v1360 = vld [vmem:[%s1350 + $0x48] sm:$0xff]
        %v1361 = vld [vmem:[%s1350 + $0x50] sm:$0xff]
        %v1362 = vld [vmem:[%s1350 + $0x58] sm:$0xff]
        %v1363 = vld [vmem:[%s1350 + $0x60] sm:$0xff]
        %v1364 = vld [vmem:[%s1350 + $0x68] sm:$0xff]
        %v1365 = vld [vmem:[%s1350 + $0x70] sm:$0xff]
        %v1366 = vld [vmem:[%s1350 + $0x78] sm:$0xff]
        %v1367 = vld [vmem:[%s1350 + $0x80] sm:$0xff]
        %v1368 = vld [vmem:[%s1350 + $0x88] sm:$0xff]
        %v1369 = vld [vmem:[%s1350 + $0x90] sm:$0xff]
        %v1370 = vld [vmem:[%s1350 + $0x98] sm:$0xff]
        %v1371 = vld [vmem:[%s1350 + $0xa0] sm:$0xff]
        %v1372 = vld [vmem:[%s1350 + $0xa8] sm:$0xff]
        %v1373 = vld [vmem:[%s1350 + $0xb0] sm:$0xff]
        %v1374 = vld [vmem:[%s1350 + $0xb8] sm:$0xff]
        %v1375 = vld [vmem:[%s1350 + $0xc0] sm:$0xff]
        %v1376 = vld [vmem:[%s1350 + $0xc8] sm:$0xff]
        %v1377 = vld [vmem:[%s1350 + $0xd0] sm:$0xff]
        %v1378 = vld [vmem:[%s1350 + $0xd8] sm:$0xff]
        %v1379 = vld [vmem:[%s1350 + $0xe0] sm:$0xff]
        %v1380 = vld [vmem:[%s1350 + $0xe8] sm:$0xff]
        %v1381 = vld [vmem:[%s1350 + $0xf0] sm:$0xff]
        %v1382 = vld [vmem:[%s1350 + $0xf8] sm:$0xff]
        %v1415 = vunpack.c.l.b16 %v1351
        %v1416 = vunpack.c.h.b16 %v1351
        %v1417 = vunpack.c.l.b16 %v1352
        %v1418 = vunpack.c.h.b16 %v1352
        %v1419 = vunpack.c.l.b16 %v1353
        %v1420 = vunpack.c.h.b16 %v1353
        %v1421 = vunpack.c.l.b16 %v1354
        %v1422 = vunpack.c.h.b16 %v1354
        %v1423 = vunpack.c.l.b16 %v1355
        %v1424 = vunpack.c.h.b16 %v1355
        %v1425 = vunpack.c.l.b16 %v1356
        %v1426 = vunpack.c.h.b16 %v1356
        %v1427 = vunpack.c.l.b16 %v1357
        %v1428 = vunpack.c.h.b16 %v1357
        %v1429 = vunpack.c.l.b16 %v1358
        %v1430 = vunpack.c.h.b16 %v1358
        %v1431 = vunpack.c.l.b16 %v1359
        %v1432 = vunpack.c.h.b16 %v1359
        %v1433 = vunpack.c.l.b16 %v1360
        %v1434 = vunpack.c.h.b16 %v1360
        %v1435 = vunpack.c.l.b16 %v1361
        %v1436 = vunpack.c.h.b16 %v1361
        %v1437 = vunpack.c.l.b16 %v1362
        %v1438 = vunpack.c.h.b16 %v1362
        %v1439 = vunpack.c.l.b16 %v1363
        %v1440 = vunpack.c.h.b16 %v1363
        %v1441 = vunpack.c.l.b16 %v1364
        %v1442 = vunpack.c.h.b16 %v1364
        %v1443 = vunpack.c.l.b16 %v1365
        %v1444 = vunpack.c.h.b16 %v1365
        %v1445 = vunpack.c.l.b16 %v1366
        %v1446 = vunpack.c.h.b16 %v1366
        %v1447 = vunpack.c.l.b16 %v1367
        %v1448 = vunpack.c.h.b16 %v1367
        %v1449 = vunpack.c.l.b16 %v1368
        %v1450 = vunpack.c.h.b16 %v1368
        %v1451 = vunpack.c.l.b16 %v1369
        %v1452 = vunpack.c.h.b16 %v1369
        %v1453 = vunpack.c.l.b16 %v1370
        %v1454 = vunpack.c.h.b16 %v1370
        %v1455 = vunpack.c.l.b16 %v1371
        %v1456 = vunpack.c.h.b16 %v1371
        %v1457 = vunpack.c.l.b16 %v1372
        %v1458 = vunpack.c.h.b16 %v1372
        %v1459 = vunpack.c.l.b16 %v1373
        %v1460 = vunpack.c.h.b16 %v1373
        %v1461 = vunpack.c.l.b16 %v1374
        %v1462 = vunpack.c.h.b16 %v1374
        %v1463 = vunpack.c.l.b16 %v1375
        %v1464 = vunpack.c.h.b16 %v1375
        %v1465 = vunpack.c.l.b16 %v1376
        %v1466 = vunpack.c.h.b16 %v1376
        %v1467 = vunpack.c.l.b16 %v1377
        %v1468 = vunpack.c.h.b16 %v1377
        %v1469 = vunpack.c.l.b16 %v1378
        %v1470 = vunpack.c.h.b16 %v1378
        %v1471 = vunpack.c.l.b16 %v1379
        %v1472 = vunpack.c.h.b16 %v1379
        %v1473 = vunpack.c.l.b16 %v1380
        %v1474 = vunpack.c.h.b16 %v1380
        %v1475 = vunpack.c.l.b16 %v1381
        %v1476 = vunpack.c.h.b16 %v1381
        %v1477 = vunpack.c.l.b16 %v1382
        %v1478 = vunpack.c.h.b16 %v1382
        %v1479 = vpack.c.b16 %v1417, %v1415
        %v1480 = vpack.c.b16 %v1418, %v1416
        %v1481 = vpack.c.b16 %v1421, %v1419
        %v1482 = vpack.c.b16 %v1422, %v1420
        %v1483 = vpack.c.b16 %v1425, %v1423
        %v1484 = vpack.c.b16 %v1426, %v1424
        %v1485 = vpack.c.b16 %v1429, %v1427
        %v1486 = vpack.c.b16 %v1430, %v1428
        %v1487 = vpack.c.b16 %v1433, %v1431
        %v1488 = vpack.c.b16 %v1434, %v1432
        %v1489 = vpack.c.b16 %v1437, %v1435
        %v1490 = vpack.c.b16 %v1438, %v1436
        %v1491 = vpack.c.b16 %v1441, %v1439
        %v1492 = vpack.c.b16 %v1442, %v1440
        %v1493 = vpack.c.b16 %v1445, %v1443
        %v1494 = vpack.c.b16 %v1446, %v1444
        %v1495 = vpack.c.b16 %v1449, %v1447
        %v1496 = vpack.c.b16 %v1450, %v1448
        %v1497 = vpack.c.b16 %v1453, %v1451
        %v1498 = vpack.c.b16 %v1454, %v1452
        %v1499 = vpack.c.b16 %v1457, %v1455
        %v1500 = vpack.c.b16 %v1458, %v1456
        %v1501 = vpack.c.b16 %v1461, %v1459
        %v1502 = vpack.c.b16 %v1462, %v1460
        %v1503 = vpack.c.b16 %v1465, %v1463
        %v1504 = vpack.c.b16 %v1466, %v1464
        %v1505 = vpack.c.b16 %v1469, %v1467
        %v1506 = vpack.c.b16 %v1470, %v1468
        %v1507 = vpack.c.b16 %v1473, %v1471
        %v1508 = vpack.c.b16 %v1474, %v1472
        %v1509 = vpack.c.b16 %v1477, %v1475
        %v1510 = vpack.c.b16 %v1478, %v1476
        %1543 = vmatprep.subr.bf16.mxu0 %v1480
        %1544 = vmatpush1.bf16.msra.mxu0 %v1479
        %1545 = vmatprep.subr.bf16.mxu0 %v1482
        %1546 = vmatpush1.bf16.msra.mxu0 %v1481
        %1547 = vmatprep.subr.bf16.mxu0 %v1484
        %1548 = vmatpush1.bf16.msra.mxu0 %v1483
        %1549 = vmatprep.subr.bf16.mxu0 %v1486
        %1550 = vmatpush1.bf16.msra.mxu0 %v1485
        %1551 = vmatprep.subr.bf16.mxu0 %v1488
        %1552 = vmatpush1.bf16.msra.mxu0 %v1487
        %1553 = vmatprep.subr.bf16.mxu0 %v1490
        %1554 = vmatpush1.bf16.msra.mxu0 %v1489
        %1555 = vmatprep.subr.bf16.mxu0 %v1492
        %1556 = vmatpush1.bf16.msra.mxu0 %v1491
        %1557 = vmatprep.subr.bf16.mxu0 %v1494
        %1558 = vmatpush1.bf16.msra.mxu0 %v1493
        %1559 = vmatprep.subr.bf16.mxu0 %v1496
        %1560 = vmatpush1.bf16.msra.mxu0 %v1495
        %1561 = vmatprep.subr.bf16.mxu0 %v1498
        %1562 = vmatpush1.bf16.msra.mxu0 %v1497
        %1563 = vmatprep.subr.bf16.mxu0 %v1500
        %1564 = vmatpush1.bf16.msra.mxu0 %v1499
        %1565 = vmatprep.subr.bf16.mxu0 %v1502
        %1566 = vmatpush1.bf16.msra.mxu0 %v1501
        %1567 = vmatprep.subr.bf16.mxu0 %v1504
        %1568 = vmatpush1.bf16.msra.mxu0 %v1503
        %1569 = vmatprep.subr.bf16.mxu0 %v1506
        %1570 = vmatpush1.bf16.msra.mxu0 %v1505
        %1571 = vmatprep.subr.bf16.mxu0 %v1508
        %1572 = vmatpush1.bf16.msra.mxu0 %v1507
        %1573 = vmatprep.subr.bf16.mxu0 %v1510
        %1574 = vmatpush1.bf16.msra.mxu0 %v1509
        %1575 = vmatprep.mubr.bf16.mxu0 %v1343
        %1576 = vmatmul.mubr.bf16.gmra.mrb[0].mxu0 %v1342
        %v1577 = vpop.f32.mrb[0].mxu0
        %v1578 = vadd.f32 0.0, %v1577
        %v1579 = vpop.f32.mrb[0].mxu0
        %v1580 = vadd.f32 0.0, %v1579
        %v1581 = vpop.f32.mrb[0].mxu0
        %v1582 = vadd.f32 0.0, %v1581
        %v1583 = vpop.f32.mrb[0].mxu0
        %v1584 = vadd.f32 0.0, %v1583
        %1585 = vmatprep.mubr.bf16.mxu0 %v1345
        %1586 = vmatmul.mubr.bf16.gmra.mrb[0].mxu0 %v1344
        %v1587 = vpop.f32.mrb[0].mxu0
        %v1588 = vadd.f32 0.0, %v1587
        %v1589 = vpop.f32.mrb[0].mxu0
        %v1590 = vadd.f32 0.0, %v1589
        %v1591 = vpop.f32.mrb[0].mxu0
        %v1592 = vadd.f32 0.0, %v1591
        %v1593 = vpop.f32.mrb[0].mxu0
        %v1594 = vadd.f32 0.0, %v1593
        %1595 = vmatprep.mubr.bf16.mxu0 %v1347
        %1596 = vmatmul.mubr.bf16.gmra.mrb[0].mxu0 %v1346
        %v1597 = vpop.f32.mrb[0].mxu0
        %v1598 = vadd.f32 0.0, %v1597
        %v1599 = vpop.f32.mrb[0].mxu0
        %v1600 = vadd.f32 0.0, %v1599
        %v1601 = vpop.f32.mrb[0].mxu0
        %v1602 = vadd.f32 0.0, %v1601
        %v1603 = vpop.f32.mrb[0].mxu0
        %v1604 = vadd.f32 0.0, %v1603
        %1605 = vmatprep.mubr.bf16.mxu0 %v1349
        %1606 = vmatmul.mubr.bf16.gmra.mrb[0].mxu0 %v1348
        %v1607 = vpop.f32.mrb[0].mxu0
        %v1608 = vadd.f32 0.0, %v1607
        %v1609 = vpop.f32.mrb[0].mxu0
        %v1610 = vadd.f32 0.0, %v1609
        %v1611 = vpop.f32.mrb[0].mxu0
        %v1612 = vadd.f32 0.0, %v1611
        %v1613 = vpop.f32.mrb[0].mxu0
        %v1614 = vadd.f32 0.0, %v1613
        %1615 = vdwg.mxu0
        %v1616 = vadd.f32 %v1197, %v1578
        %v1617 = vadd.f32 %v1198, %v1580
        %v1618 = vadd.f32 %v1199, %v1582
        %v1619 = vadd.f32 %v1200, %v1584
        %v1620 = vadd.f32 %v1201, %v1588
        %v1621 = vadd.f32 %v1202, %v1590
        %v1622 = vadd.f32 %v1203, %v1592
        %v1623 = vadd.f32 %v1204, %v1594
        %v1624 = vadd.f32 %v1205, %v1598
        %v1625 = vadd.f32 %v1206, %v1600
        %v1626 = vadd.f32 %v1207, %v1602
        %v1627 = vadd.f32 %v1208, %v1604
        %v1628 = vadd.f32 %v1209, %v1608
        %v1629 = vadd.f32 %v1210, %v1610
        %v1630 = vadd.f32 %v1211, %v1612
        %v1631 = vadd.f32 %v1212, %v1614
        %v1632 = vld [vmem:[%s444] sm:$0xff]
        %v1633 = vld [vmem:[%s444 + $0x8] sm:$0xff]
        %v1634 = vld [vmem:[%s444 + $0x20] sm:$0xff]
        %v1635 = vld [vmem:[%s444 + $0x28] sm:$0xff]
        %v1636 = vld [vmem:[%s444 + $0x40] sm:$0xff]
        %v1637 = vld [vmem:[%s444 + $0x48] sm:$0xff]
        %v1638 = vld [vmem:[%s444 + $0x60] sm:$0xff]
        %v1639 = vld [vmem:[%s444 + $0x68] sm:$0xff]
        %v1640 = vld [vmem:[%s444 + $0x80] sm:$0xff]
        %v1641 = vld [vmem:[%s444 + $0x88] sm:$0xff]
        %v1642 = vld [vmem:[%s444 + $0xa0] sm:$0xff]
        %v1643 = vld [vmem:[%s444 + $0xa8] sm:$0xff]
        %v1644 = vld [vmem:[%s444 + $0xc0] sm:$0xff]
        %v1645 = vld [vmem:[%s444 + $0xc8] sm:$0xff]
        %v1646 = vld [vmem:[%s444 + $0xe0] sm:$0xff]
        %v1647 = vld [vmem:[%s444 + $0xe8] sm:$0xff]
        %v1648 = vpack.c.bf16 %v1634, %v1632
        %v1649 = vpack.c.bf16 %v1635, %v1633
        %v1650 = vpack.c.bf16 %v1638, %v1636
        %v1651 = vpack.c.bf16 %v1639, %v1637
        %v1652 = vpack.c.bf16 %v1642, %v1640
        %v1653 = vpack.c.bf16 %v1643, %v1641
        %v1654 = vpack.c.bf16 %v1646, %v1644
        %v1655 = vpack.c.bf16 %v1647, %v1645
        %s1656 = scalar_lea.vmem [#allocation7], 768
        %v1657 = vld [vmem:[%s1656] sm:$0xff]
        %v1658 = vld [vmem:[%s1656 + $0x8] sm:$0xff]
        %v1659 = vld [vmem:[%s1656 + $0x10] sm:$0xff]
        %v1660 = vld [vmem:[%s1656 + $0x18] sm:$0xff]
        %v1661 = vld [vmem:[%s1656 + $0x20] sm:$0xff]
        %v1662 = vld [vmem:[%s1656 + $0x28] sm:$0xff]
        %v1663 = vld [vmem:[%s1656 + $0x30] sm:$0xff]
        %v1664 = vld [vmem:[%s1656 + $0x38] sm:$0xff]
        %v1665 = vld [vmem:[%s1656 + $0x40] sm:$0xff]
        %v1666 = vld [vmem:[%s1656 + $0x48] sm:$0xff]
        %v1667 = vld [vmem:[%s1656 + $0x50] sm:$0xff]
        %v1668 = vld [vmem:[%s1656 + $0x58] sm:$0xff]
        %v1669 = vld [vmem:[%s1656 + $0x60] sm:$0xff]
        %v1670 = vld [vmem:[%s1656 + $0x68] sm:$0xff]
        %v1671 = vld [vmem:[%s1656 + $0x70] sm:$0xff]
        %v1672 = vld [vmem:[%s1656 + $0x78] sm:$0xff]
        %v1673 = vld [vmem:[%s1656 + $0x80] sm:$0xff]
        %v1674 = vld [vmem:[%s1656 + $0x88] sm:$0xff]
        %v1675 = vld [vmem:[%s1656 + $0x90] sm:$0xff]
        %v1676 = vld [vmem:[%s1656 + $0x98] sm:$0xff]
        %v1677 = vld [vmem:[%s1656 + $0xa0] sm:$0xff]
        %v1678 = vld [vmem:[%s1656 + $0xa8] sm:$0xff]
        %v1679 = vld [vmem:[%s1656 + $0xb0] sm:$0xff]
        %v1680 = vld [vmem:[%s1656 + $0xb8] sm:$0xff]
        %v1681 = vld [vmem:[%s1656 + $0xc0] sm:$0xff]
        %v1682 = vld [vmem:[%s1656 + $0xc8] sm:$0xff]
        %v1683 = vld [vmem:[%s1656 + $0xd0] sm:$0xff]
        %v1684 = vld [vmem:[%s1656 + $0xd8] sm:$0xff]
        %v1685 = vld [vmem:[%s1656 + $0xe0] sm:$0xff]
        %v1686 = vld [vmem:[%s1656 + $0xe8] sm:$0xff]
        %v1687 = vld [vmem:[%s1656 + $0xf0] sm:$0xff]
        %v1688 = vld [vmem:[%s1656 + $0xf8] sm:$0xff]
        %v1721 = vunpack.c.l.b16 %v1657
        %v1722 = vunpack.c.h.b16 %v1657
        %v1723 = vunpack.c.l.b16 %v1658
        %v1724 = vunpack.c.h.b16 %v1658
        %v1725 = vunpack.c.l.b16 %v1659
        %v1726 = vunpack.c.h.b16 %v1659
        %v1727 = vunpack.c.l.b16 %v1660
        %v1728 = vunpack.c.h.b16 %v1660
        %v1729 = vunpack.c.l.b16 %v1661
        %v1730 = vunpack.c.h.b16 %v1661
        %v1731 = vunpack.c.l.b16 %v1662
        %v1732 = vunpack.c.h.b16 %v1662
        %v1733 = vunpack.c.l.b16 %v1663
        %v1734 = vunpack.c.h.b16 %v1663
        %v1735 = vunpack.c.l.b16 %v1664
        %v1736 = vunpack.c.h.b16 %v1664
        %v1737 = vunpack.c.l.b16 %v1665
        %v1738 = vunpack.c.h.b16 %v1665
        %v1739 = vunpack.c.l.b16 %v1666
        %v1740 = vunpack.c.h.b16 %v1666
        %v1741 = vunpack.c.l.b16 %v1667
        %v1742 = vunpack.c.h.b16 %v1667
        %v1743 = vunpack.c.l.b16 %v1668
        %v1744 = vunpack.c.h.b16 %v1668
        %v1745 = vunpack.c.l.b16 %v1669
        %v1746 = vunpack.c.h.b16 %v1669
        %v1747 = vunpack.c.l.b16 %v1670
        %v1748 = vunpack.c.h.b16 %v1670
        %v1749 = vunpack.c.l.b16 %v1671
        %v1750 = vunpack.c.h.b16 %v1671
        %v1751 = vunpack.c.l.b16 %v1672
        %v1752 = vunpack.c.h.b16 %v1672
        %v1753 = vunpack.c.l.b16 %v1673
        %v1754 = vunpack.c.h.b16 %v1673
        %v1755 = vunpack.c.l.b16 %v1674
        %v1756 = vunpack.c.h.b16 %v1674
        %v1757 = vunpack.c.l.b16 %v1675
        %v1758 = vunpack.c.h.b16 %v1675
        %v1759 = vunpack.c.l.b16 %v1676
        %v1760 = vunpack.c.h.b16 %v1676
        %v1761 = vunpack.c.l.b16 %v1677
        %v1762 = vunpack.c.h.b16 %v1677
        %v1763 = vunpack.c.l.b16 %v1678
        %v1764 = vunpack.c.h.b16 %v1678
        %v1765 = vunpack.c.l.b16 %v1679
        %v1766 = vunpack.c.h.b16 %v1679
        %v1767 = vunpack.c.l.b16 %v1680
        %v1768 = vunpack.c.h.b16 %v1680
        %v1769 = vunpack.c.l.b16 %v1681
        %v1770 = vunpack.c.h.b16 %v1681
        %v1771 = vunpack.c.l.b16 %v1682
        %v1772 = vunpack.c.h.b16 %v1682
        %v1773 = vunpack.c.l.b16 %v1683
        %v1774 = vunpack.c.h.b16 %v1683
        %v1775 = vunpack.c.l.b16 %v1684
        %v1776 = vunpack.c.h.b16 %v1684
        %v1777 = vunpack.c.l.b16 %v1685
        %v1778 = vunpack.c.h.b16 %v1685
        %v1779 = vunpack.c.l.b16 %v1686
        %v1780 = vunpack.c.h.b16 %v1686
        %v1781 = vunpack.c.l.b16 %v1687
        %v1782 = vunpack.c.h.b16 %v1687
        %v1783 = vunpack.c.l.b16 %v1688
        %v1784 = vunpack.c.h.b16 %v1688
        %v1785 = vpack.c.b16 %v1723, %v1721
        %v1786 = vpack.c.b16 %v1724, %v1722
        %v1787 = vpack.c.b16 %v1727, %v1725
        %v1788 = vpack.c.b16 %v1728, %v1726
        %v1789 = vpack.c.b16 %v1731, %v1729
        %v1790 = vpack.c.b16 %v1732, %v1730
        %v1791 = vpack.c.b16 %v1735, %v1733
        %v1792 = vpack.c.b16 %v1736, %v1734
        %v1793 = vpack.c.b16 %v1739, %v1737
        %v1794 = vpack.c.b16 %v1740, %v1738
        %v1795 = vpack.c.b16 %v1743, %v1741
        %v1796 = vpack.c.b16 %v1744, %v1742
        %v1797 = vpack.c.b16 %v1747, %v1745
        %v1798 = vpack.c.b16 %v1748, %v1746
        %v1799 = vpack.c.b16 %v1751, %v1749
        %v1800 = vpack.c.b16 %v1752, %v1750
        %v1801 = vpack.c.b16 %v1755, %v1753
        %v1802 = vpack.c.b16 %v1756, %v1754
        %v1803 = vpack.c.b16 %v1759, %v1757
        %v1804 = vpack.c.b16 %v1760, %v1758
        %v1805 = vpack.c.b16 %v1763, %v1761
        %v1806 = vpack.c.b16 %v1764, %v1762
        %v1807 = vpack.c.b16 %v1767, %v1765
        %v1808 = vpack.c.b16 %v1768, %v1766
        %v1809 = vpack.c.b16 %v1771, %v1769
        %v1810 = vpack.c.b16 %v1772, %v1770
        %v1811 = vpack.c.b16 %v1775, %v1773
        %v1812 = vpack.c.b16 %v1776, %v1774
        %v1813 = vpack.c.b16 %v1779, %v1777
        %v1814 = vpack.c.b16 %v1780, %v1778
        %v1815 = vpack.c.b16 %v1783, %v1781
        %v1816 = vpack.c.b16 %v1784, %v1782
        %1849 = vmatprep.subr.bf16.mxu0 %v1786
        %1850 = vmatpush1.bf16.msra.mxu0 %v1785
        %1851 = vmatprep.subr.bf16.mxu0 %v1788
        %1852 = vmatpush1.bf16.msra.mxu0 %v1787
        %1853 = vmatprep.subr.bf16.mxu0 %v1790
        %1854 = vmatpush1.bf16.msra.mxu0 %v1789
        %1855 = vmatprep.subr.bf16.mxu0 %v1792
        %1856 = vmatpush1.bf16.msra.mxu0 %v1791
        %1857 = vmatprep.subr.bf16.mxu0 %v1794
        %1858 = vmatpush1.bf16.msra.mxu0 %v1793
        %1859 = vmatprep.subr.bf16.mxu0 %v1796
        %1860 = vmatpush1.bf16.msra.mxu0 %v1795
        %1861 = vmatprep.subr.bf16.mxu0 %v1798
        %1862 = vmatpush1.bf16.msra.mxu0 %v1797
        %1863 = vmatprep.subr.bf16.mxu0 %v1800
        %1864 = vmatpush1.bf16.msra.mxu0 %v1799
        %1865 = vmatprep.subr.bf16.mxu0 %v1802
        %1866 = vmatpush1.bf16.msra.mxu0 %v1801
        %1867 = vmatprep.subr.bf16.mxu0 %v1804
        %1868 = vmatpush1.bf16.msra.mxu0 %v1803
        %1869 = vmatprep.subr.bf16.mxu0 %v1806
        %1870 = vmatpush1.bf16.msra.mxu0 %v1805
        %1871 = vmatprep.subr.bf16.mxu0 %v1808
        %1872 = vmatpush1.bf16.msra.mxu0 %v1807
        %1873 = vmatprep.subr.bf16.mxu0 %v1810
        %1874 = vmatpush1.bf16.msra.mxu0 %v1809
        %1875 = vmatprep.subr.bf16.mxu0 %v1812
        %1876 = vmatpush1.bf16.msra.mxu0 %v1811
        %1877 = vmatprep.subr.bf16.mxu0 %v1814
        %1878 = vmatpush1.bf16.msra.mxu0 %v1813
        %1879 = vmatprep.subr.bf16.mxu0 %v1816
        %1880 = vmatpush1.bf16.msra.mxu0 %v1815
        %1881 = vmatprep.mubr.bf16.mxu0 %v1649
        %1882 = vmatmul.mubr.bf16.gmra.mrb[0].mxu0 %v1648
        %v1883 = vpop.f32.mrb[0].mxu0
        %v1884 = vadd.f32 0.0, %v1883
        %v1885 = vpop.f32.mrb[0].mxu0
        %v1886 = vadd.f32 0.0, %v1885
        %v1887 = vpop.f32.mrb[0].mxu0
        %v1888 = vadd.f32 0.0, %v1887
        %v1889 = vpop.f32.mrb[0].mxu0
        %v1890 = vadd.f32 0.0, %v1889
        %1891 = vmatprep.mubr.bf16.mxu0 %v1651
        %1892 = vmatmul.mubr.bf16.gmra.mrb[0].mxu0 %v1650
        %v1893 = vpop.f32.mrb[0].mxu0
        %v1894 = vadd.f32 0.0, %v1893
        %v1895 = vpop.f32.mrb[0].mxu0
        %v1896 = vadd.f32 0.0, %v1895
        %v1897 = vpop.f32.mrb[0].mxu0
        %v1898 = vadd.f32 0.0, %v1897
        %v1899 = vpop.f32.mrb[0].mxu0
        %v1900 = vadd.f32 0.0, %v1899
        %1901 = vmatprep.mubr.bf16.mxu0 %v1653
        %1902 = vmatmul.mubr.bf16.gmra.mrb[0].mxu0 %v1652
        %v1903 = vpop.f32.mrb[0].mxu0
        %v1904 = vadd.f32 0.0, %v1903
        %v1905 = vpop.f32.mrb[0].mxu0
        %v1906 = vadd.f32 0.0, %v1905
        %v1907 = vpop.f32.mrb[0].mxu0
        %v1908 = vadd.f32 0.0, %v1907
        %v1909 = vpop.f32.mrb[0].mxu0
        %v1910 = vadd.f32 0.0, %v1909
        %1911 = vmatprep.mubr.bf16.mxu0 %v1655
        %1912 = vmatmul.mubr.bf16.gmra.mrb[0].mxu0 %v1654
        %v1913 = vpop.f32.mrb[0].mxu0
        %v1914 = vadd.f32 0.0, %v1913
        %v1915 = vpop.f32.mrb[0].mxu0
        %v1916 = vadd.f32 0.0, %v1915
        %v1917 = vpop.f32.mrb[0].mxu0
        %v1918 = vadd.f32 0.0, %v1917
        %v1919 = vpop.f32.mrb[0].mxu0
        %v1920 = vadd.f32 0.0, %v1919
        %1921 = vdwg.mxu0
        %v1922 = vadd.f32 %v1616, %v1884
        %v1923 = vadd.f32 %v1617, %v1886
        %v1924 = vadd.f32 %v1618, %v1888
        %v1925 = vadd.f32 %v1619, %v1890
        %v1926 = vadd.f32 %v1620, %v1894
        %v1927 = vadd.f32 %v1621, %v1896
        %v1928 = vadd.f32 %v1622, %v1898
        %v1929 = vadd.f32 %v1623, %v1900
        %v1930 = vadd.f32 %v1624, %v1904
        %v1931 = vadd.f32 %v1625, %v1906
        %v1932 = vadd.f32 %v1626, %v1908
        %v1933 = vadd.f32 %v1627, %v1910
        %v1934 = vadd.f32 %v1628, %v1914
        %v1935 = vadd.f32 %v1629, %v1916
        %v1936 = vadd.f32 %v1630, %v1918
        %v1937 = vadd.f32 %v1631, %v1920
        %v1938 = vld [vmem:[%s444] sm:$0xfe]
        %v1939 = vld [vmem:[%s444 + $0x8] sm:$0xfe]
        %v1940 = vld [vmem:[%s444 + $0x10] sm:$0x1]
        %v1941 = vld [vmem:[%s444 + $0x18] sm:$0x1]
        %v1942 = vld [vmem:[%s444 + $0x20] sm:$0xfe]
        %v1943 = vld [vmem:[%s444 + $0x28] sm:$0xfe]
        %v1944 = vld [vmem:[%s444 + $0x30] sm:$0x1]
        %v1945 = vld [vmem:[%s444 + $0x38] sm:$0x1]
        %v1946 = vld [vmem:[%s444 + $0x40] sm:$0xfe]
        %v1947 = vld [vmem:[%s444 + $0x48] sm:$0xfe]
        %v1948 = vld [vmem:[%s444 + $0x50] sm:$0x1]
        %v1949 = vld [vmem:[%s444 + $0x58] sm:$0x1]
        %v1950 = vld [vmem:[%s444 + $0x60] sm:$0xfe]
        %v1951 = vld [vmem:[%s444 + $0x68] sm:$0xfe]
        %v1952 = vld [vmem:[%s444 + $0x70] sm:$0x1]
        %v1953 = vld [vmem:[%s444 + $0x78] sm:$0x1]
        %v1954 = vld [vmem:[%s444 + $0x80] sm:$0xfe]
        %v1955 = vld [vmem:[%s444 + $0x88] sm:$0xfe]
        %v1956 = vld [vmem:[%s444 + $0x90] sm:$0x1]
        %v1957 = vld [vmem:[%s444 + $0x98] sm:$0x1]
        %v1958 = vld [vmem:[%s444 + $0xa0] sm:$0xfe]
        %v1959 = vld [vmem:[%s444 + $0xa8] sm:$0xfe]
        %v1960 = vld [vmem:[%s444 + $0xb0] sm:$0x1]
        %v1961 = vld [vmem:[%s444 + $0xb8] sm:$0x1]
        %v1962 = vld [vmem:[%s444 + $0xc0] sm:$0xfe]
        %v1963 = vld [vmem:[%s444 + $0xc8] sm:$0xfe]
        %v1964 = vld [vmem:[%s444 + $0xd0] sm:$0x1]
        %v1965 = vld [vmem:[%s444 + $0xd8] sm:$0x1]
        %v1966 = vld [vmem:[%s444 + $0xe0] sm:$0xfe]
        %v1967 = vld [vmem:[%s444 + $0xe8] sm:$0xfe]
        %v1968 = vld [vmem:[%s444 + $0xf0] sm:$0x1]
        %v1969 = vld [vmem:[%s444 + $0xf8] sm:$0x1]
        %v2002 = vrot.slane %v1938, 1
        %v2003 = vrot.slane %v1940, 1
        %v2004 = vsel %vm858, %v2002, %v2003
        %v2005 = vrot.slane %v1939, 1
        %v2006 = vrot.slane %v1941, 1
        %v2007 = vsel %vm858, %v2005, %v2006
        %v2008 = vrot.slane %v1942, 1
        %v2009 = vrot.slane %v1944, 1
        %v2010 = vsel %vm858, %v2008, %v2009
        %v2011 = vrot.slane %v1943, 1
        %v2012 = vrot.slane %v1945, 1
        %v2013 = vsel %vm858, %v2011, %v2012
        %v2014 = vrot.slane %v1946, 1
        %v2015 = vrot.slane %v1948, 1
        %v2016 = vsel %vm858, %v2014, %v2015
        %v2017 = vrot.slane %v1947, 1
        %v2018 = vrot.slane %v1949, 1
        %v2019 = vsel %vm858, %v2017, %v2018
        %v2020 = vrot.slane %v1950, 1
        %v2021 = vrot.slane %v1952, 1
        %v2022 = vsel %vm858, %v2020, %v2021
        %v2023 = vrot.slane %v1951, 1
        %v2024 = vrot.slane %v1953, 1
        %v2025 = vsel %vm858, %v2023, %v2024
        %v2026 = vrot.slane %v1954, 1
        %v2027 = vrot.slane %v1956, 1
        %v2028 = vsel %vm858, %v2026, %v2027
        %v2029 = vrot.slane %v1955, 1
        %v2030 = vrot.slane %v1957, 1
        %v2031 = vsel %vm858, %v2029, %v2030
        %v2032 = vrot.slane %v1958, 1
        %v2033 = vrot.slane %v1960, 1
        %v2034 = vsel %vm858, %v2032, %v2033
        %v2035 = vrot.slane %v1959, 1
        %v2036 = vrot.slane %v1961, 1
        %v2037 = vsel %vm858, %v2035, %v2036
        %v2038 = vrot.slane %v1962, 1
        %v2039 = vrot.slane %v1964, 1
        %v2040 = vsel %vm858, %v2038, %v2039
        %v2041 = vrot.slane %v1963, 1
        %v2042 = vrot.slane %v1965, 1
        %v2043 = vsel %vm858, %v2041, %v2042
        %v2044 = vrot.slane %v1966, 1
        %v2045 = vrot.slane %v1968, 1
        %v2046 = vsel %vm858, %v2044, %v2045
        %v2047 = vrot.slane %v1967, 1
        %v2048 = vrot.slane %v1969, 1
        %v2049 = vsel %vm858, %v2047, %v2048
        %v2066 = vpack.c.bf16 %v2010, %v2004
        %v2067 = vpack.c.bf16 %v2013, %v2007
        %v2068 = vpack.c.bf16 %v2022, %v2016
        %v2069 = vpack.c.bf16 %v2025, %v2019
        %v2070 = vpack.c.bf16 %v2034, %v2028
        %v2071 = vpack.c.bf16 %v2037, %v2031
        %v2072 = vpack.c.bf16 %v2046, %v2040
        %v2073 = vpack.c.bf16 %v2049, %v2043
        %s2074 = scalar_lea.vmem [#allocation7], 1024
        %v2075 = vld [vmem:[%s2074] sm:$0xff]
        %v2076 = vld [vmem:[%s2074 + $0x8] sm:$0xff]
        %v2077 = vld [vmem:[%s2074 + $0x10] sm:$0xff]
        %v2078 = vld [vmem:[%s2074 + $0x18] sm:$0xff]
        %v2079 = vld [vmem:[%s2074 + $0x20] sm:$0xff]
        %v2080 = vld [vmem:[%s2074 + $0x28] sm:$0xff]
        %v2081 = vld [vmem:[%s2074 + $0x30] sm:$0xff]
        %v2082 = vld [vmem:[%s2074 + $0x38] sm:$0xff]
        %v2083 = vld [vmem:[%s2074 + $0x40] sm:$0xff]
        %v2084 = vld [vmem:[%s2074 + $0x48] sm:$0xff]
        %v2085 = vld [vmem:[%s2074 + $0x50] sm:$0xff]
        %v2086 = vld [vmem:[%s2074 + $0x58] sm:$0xff]
        %v2087 = vld [vmem:[%s2074 + $0x60] sm:$0xff]
        %v2088 = vld [vmem:[%s2074 + $0x68] sm:$0xff]
        %v2089 = vld [vmem:[%s2074 + $0x70] sm:$0xff]
        %v2090 = vld [vmem:[%s2074 + $0x78] sm:$0xff]
        %v2091 = vld [vmem:[%s2074 + $0x80] sm:$0xff]
        %v2092 = vld [vmem:[%s2074 + $0x88] sm:$0xff]
        %v2093 = vld [vmem:[%s2074 + $0x90] sm:$0xff]
        %v2094 = vld [vmem:[%s2074 + $0x98] sm:$0xff]
        %v2095 = vld [vmem:[%s2074 + $0xa0] sm:$0xff]
        %v2096 = vld [vmem:[%s2074 + $0xa8] sm:$0xff]
        %v2097 = vld [vmem:[%s2074 + $0xb0] sm:$0xff]
        %v2098 = vld [vmem:[%s2074 + $0xb8] sm:$0xff]
        %v2099 = vld [vmem:[%s2074 + $0xc0] sm:$0xff]
        %v2100 = vld [vmem:[%s2074 + $0xc8] sm:$0xff]
        %v2101 = vld [vmem:[%s2074 + $0xd0] sm:$0xff]
        %v2102 = vld [vmem:[%s2074 + $0xd8] sm:$0xff]
        %v2103 = vld [vmem:[%s2074 + $0xe0] sm:$0xff]
        %v2104 = vld [vmem:[%s2074 + $0xe8] sm:$0xff]
        %v2105 = vld [vmem:[%s2074 + $0xf0] sm:$0xff]
        %v2106 = vld [vmem:[%s2074 + $0xf8] sm:$0xff]
        %v2139 = vunpack.c.l.b16 %v2075
        %v2140 = vunpack.c.h.b16 %v2075
        %v2141 = vunpack.c.l.b16 %v2076
        %v2142 = vunpack.c.h.b16 %v2076
        %v2143 = vunpack.c.l.b16 %v2077
        %v2144 = vunpack.c.h.b16 %v2077
        %v2145 = vunpack.c.l.b16 %v2078
        %v2146 = vunpack.c.h.b16 %v2078
        %v2147 = vunpack.c.l.b16 %v2079
        %v2148 = vunpack.c.h.b16 %v2079
        %v2149 = vunpack.c.l.b16 %v2080
        %v2150 = vunpack.c.h.b16 %v2080
        %v2151 = vunpack.c.l.b16 %v2081
        %v2152 = vunpack.c.h.b16 %v2081
        %v2153 = vunpack.c.l.b16 %v2082
        %v2154 = vunpack.c.h.b16 %v2082
        %v2155 = vunpack.c.l.b16 %v2083
        %v2156 = vunpack.c.h.b16 %v2083
        %v2157 = vunpack.c.l.b16 %v2084
        %v2158 = vunpack.c.h.b16 %v2084
        %v2159 = vunpack.c.l.b16 %v2085
        %v2160 = vunpack.c.h.b16 %v2085
        %v2161 = vunpack.c.l.b16 %v2086
        %v2162 = vunpack.c.h.b16 %v2086
        %v2163 = vunpack.c.l.b16 %v2087
        %v2164 = vunpack.c.h.b16 %v2087
        %v2165 = vunpack.c.l.b16 %v2088
        %v2166 = vunpack.c.h.b16 %v2088
        %v2167 = vunpack.c.l.b16 %v2089
        %v2168 = vunpack.c.h.b16 %v2089
        %v2169 = vunpack.c.l.b16 %v2090
        %v2170 = vunpack.c.h.b16 %v2090
        %v2171 = vunpack.c.l.b16 %v2091
        %v2172 = vunpack.c.h.b16 %v2091
        %v2173 = vunpack.c.l.b16 %v2092
        %v2174 = vunpack.c.h.b16 %v2092
        %v2175 = vunpack.c.l.b16 %v2093
        %v2176 = vunpack.c.h.b16 %v2093
        %v2177 = vunpack.c.l.b16 %v2094
        %v2178 = vunpack.c.h.b16 %v2094
        %v2179 = vunpack.c.l.b16 %v2095
        %v2180 = vunpack.c.h.b16 %v2095
        %v2181 = vunpack.c.l.b16 %v2096
        %v2182 = vunpack.c.h.b16 %v2096
        %v2183 = vunpack.c.l.b16 %v2097
        %v2184 = vunpack.c.h.b16 %v2097
        %v2185 = vunpack.c.l.b16 %v2098
        %v2186 = vunpack.c.h.b16 %v2098
        %v2187 = vunpack.c.l.b16 %v2099
        %v2188 = vunpack.c.h.b16 %v2099
        %v2189 = vunpack.c.l.b16 %v2100
        %v2190 = vunpack.c.h.b16 %v2100
        %v2191 = vunpack.c.l.b16 %v2101
        %v2192 = vunpack.c.h.b16 %v2101
        %v2193 = vunpack.c.l.b16 %v2102
        %v2194 = vunpack.c.h.b16 %v2102
        %v2195 = vunpack.c.l.b16 %v2103
        %v2196 = vunpack.c.h.b16 %v2103
        %v2197 = vunpack.c.l.b16 %v2104
        %v2198 = vunpack.c.h.b16 %v2104
        %v2199 = vunpack.c.l.b16 %v2105
        %v2200 = vunpack.c.h.b16 %v2105
        %v2201 = vunpack.c.l.b16 %v2106
        %v2202 = vunpack.c.h.b16 %v2106
        %v2203 = vpack.c.b16 %v2141, %v2139
        %v2204 = vpack.c.b16 %v2142, %v2140
        %v2205 = vpack.c.b16 %v2145, %v2143
        %v2206 = vpack.c.b16 %v2146, %v2144
        %v2207 = vpack.c.b16 %v2149, %v2147
        %v2208 = vpack.c.b16 %v2150, %v2148
        %v2209 = vpack.c.b16 %v2153, %v2151
        %v2210 = vpack.c.b16 %v2154, %v2152
        %v2211 = vpack.c.b16 %v2157, %v2155
        %v2212 = vpack.c.b16 %v2158, %v2156
        %v2213 = vpack.c.b16 %v2161, %v2159
        %v2214 = vpack.c.b16 %v2162, %v2160
        %v2215 = vpack.c.b16 %v2165, %v2163
        %v2216 = vpack.c.b16 %v2166, %v2164
        %v2217 = vpack.c.b16 %v2169, %v2167
        %v2218 = vpack.c.b16 %v2170, %v2168
        %v2219 = vpack.c.b16 %v2173, %v2171
        %v2220 = vpack.c.b16 %v2174, %v2172
        %v2221 = vpack.c.b16 %v2177, %v2175
        %v2222 = vpack.c.b16 %v2178, %v2176
        %v2223 = vpack.c.b16 %v2181, %v2179
        %v2224 = vpack.c.b16 %v2182, %v2180
        %v2225 = vpack.c.b16 %v2185, %v2183
        %v2226 = vpack.c.b16 %v2186, %v2184
        %v2227 = vpack.c.b16 %v2189, %v2187
        %v2228 = vpack.c.b16 %v2190, %v2188
        %v2229 = vpack.c.b16 %v2193, %v2191
        %v2230 = vpack.c.b16 %v2194, %v2192
        %v2231 = vpack.c.b16 %v2197, %v2195
        %v2232 = vpack.c.b16 %v2198, %v2196
        %v2233 = vpack.c.b16 %v2201, %v2199
        %v2234 = vpack.c.b16 %v2202, %v2200
        %2267 = vmatprep.subr.bf16.mxu0 %v2204
        %2268 = vmatpush1.bf16.msra.mxu0 %v2203
        %2269 = vmatprep.subr.bf16.mxu0 %v2206
        %2270 = vmatpush1.bf16.msra.mxu0 %v2205
        %2271 = vmatprep.subr.bf16.mxu0 %v2208
        %2272 = vmatpush1.bf16.msra.mxu0 %v2207
        %2273 = vmatprep.subr.bf16.mxu0 %v2210
        %2274 = vmatpush1.bf16.msra.mxu0 %v2209
        %2275 = vmatprep.subr.bf16.mxu0 %v2212
        %2276 = vmatpush1.bf16.msra.mxu0 %v2211
        %2277 = vmatprep.subr.bf16.mxu0 %v2214
        %2278 = vmatpush1.bf16.msra.mxu0 %v2213
        %2279 = vmatprep.subr.bf16.mxu0 %v2216
        %2280 = vmatpush1.bf16.msra.mxu0 %v2215
        %2281 = vmatprep.subr.bf16.mxu0 %v2218
        %2282 = vmatpush1.bf16.msra.mxu0 %v2217
        %2283 = vmatprep.subr.bf16.mxu0 %v2220
        %2284 = vmatpush1.bf16.msra.mxu0 %v2219
        %2285 = vmatprep.subr.bf16.mxu0 %v2222
        %2286 = vmatpush1.bf16.msra.mxu0 %v2221
        %2287 = vmatprep.subr.bf16.mxu0 %v2224
        %2288 = vmatpush1.bf16.msra.mxu0 %v2223
        %2289 = vmatprep.subr.bf16.mxu0 %v2226
        %2290 = vmatpush1.bf16.msra.mxu0 %v2225
        %2291 = vmatprep.subr.bf16.mxu0 %v2228
        %2292 = vmatpush1.bf16.msra.mxu0 %v2227
        %2293 = vmatprep.subr.bf16.mxu0 %v2230
        %2294 = vmatpush1.bf16.msra.mxu0 %v2229
        %2295 = vmatprep.subr.bf16.mxu0 %v2232
        %2296 = vmatpush1.bf16.msra.mxu0 %v2231
        %2297 = vmatprep.subr.bf16.mxu0 %v2234
        %2298 = vmatpush1.bf16.msra.mxu0 %v2233
        %2299 = vmatprep.mubr.bf16.mxu0 %v2067
        %2300 = vmatmul.mubr.bf16.gmra.mrb[0].mxu0 %v2066
        %v2301 = vpop.f32.mrb[0].mxu0
        %v2302 = vadd.f32 0.0, %v2301
        %v2303 = vpop.f32.mrb[0].mxu0
        %v2304 = vadd.f32 0.0, %v2303
        %v2305 = vpop.f32.mrb[0].mxu0
        %v2306 = vadd.f32 0.0, %v2305
        %v2307 = vpop.f32.mrb[0].mxu0
        %v2308 = vadd.f32 0.0, %v2307
        %2309 = vmatprep.mubr.bf16.mxu0 %v2069
        %2310 = vmatmul.mubr.bf16.gmra.mrb[0].mxu0 %v2068
        %v2311 = vpop.f32.mrb[0].mxu0
        %v2312 = vadd.f32 0.0, %v2311
        %v2313 = vpop.f32.mrb[0].mxu0
        %v2314 = vadd.f32 0.0, %v2313
        %v2315 = vpop.f32.mrb[0].mxu0
        %v2316 = vadd.f32 0.0, %v2315
        %v2317 = vpop.f32.mrb[0].mxu0
        %v2318 = vadd.f32 0.0, %v2317
        %2319 = vmatprep.mubr.bf16.mxu0 %v2071
        %2320 = vmatmul.mubr.bf16.gmra.mrb[0].mxu0 %v2070
        %v2321 = vpop.f32.mrb[0].mxu0
        %v2322 = vadd.f32 0.0, %v2321
        %v2323 = vpop.f32.mrb[0].mxu0
        %v2324 = vadd.f32 0.0, %v2323
        %v2325 = vpop.f32.mrb[0].mxu0
        %v2326 = vadd.f32 0.0, %v2325
        %v2327 = vpop.f32.mrb[0].mxu0
        %v2328 = vadd.f32 0.0, %v2327
        %2329 = vmatprep.mubr.bf16.mxu0 %v2073
        %2330 = vmatmul.mubr.bf16.gmra.mrb[0].mxu0 %v2072
        %v2331 = vpop.f32.mrb[0].mxu0
        %v2332 = vadd.f32 0.0, %v2331
        %v2333 = vpop.f32.mrb[0].mxu0
        %v2334 = vadd.f32 0.0, %v2333
        %v2335 = vpop.f32.mrb[0].mxu0
        %v2336 = vadd.f32 0.0, %v2335
        %v2337 = vpop.f32.mrb[0].mxu0
        %v2338 = vadd.f32 0.0, %v2337
        %2339 = vdwg.mxu0
        %v2340 = vadd.f32 %v1922, %v2302
        %v2341 = vadd.f32 %v1923, %v2304
        %v2342 = vadd.f32 %v1924, %v2306
        %v2343 = vadd.f32 %v1925, %v2308
        %v2344 = vadd.f32 %v1926, %v2312
        %v2345 = vadd.f32 %v1927, %v2314
        %v2346 = vadd.f32 %v1928, %v2316
        %v2347 = vadd.f32 %v1929, %v2318
        %v2348 = vadd.f32 %v1930, %v2322
        %v2349 = vadd.f32 %v1931, %v2324
        %v2350 = vadd.f32 %v1932, %v2326
        %v2351 = vadd.f32 %v1933, %v2328
        %v2352 = vadd.f32 %v1934, %v2332
        %v2353 = vadd.f32 %v1935, %v2334
        %v2354 = vadd.f32 %v1936, %v2336
        %v2355 = vadd.f32 %v1937, %v2338
        %v2356 = vld [vmem:[%s444] sm:$0xfc]
        %v2357 = vld [vmem:[%s444 + $0x8] sm:$0xfc]
        %v2358 = vld [vmem:[%s444 + $0x10] sm:$0x3]
        %v2359 = vld [vmem:[%s444 + $0x18] sm:$0x3]
        %v2360 = vld [vmem:[%s444 + $0x20] sm:$0xfc]
        %v2361 = vld [vmem:[%s444 + $0x28] sm:$0xfc]
        %v2362 = vld [vmem:[%s444 + $0x30] sm:$0x3]
        %v2363 = vld [vmem:[%s444 + $0x38] sm:$0x3]
        %v2364 = vld [vmem:[%s444 + $0x40] sm:$0xfc]
        %v2365 = vld [vmem:[%s444 + $0x48] sm:$0xfc]
        %v2366 = vld [vmem:[%s444 + $0x50] sm:$0x3]
        %v2367 = vld [vmem:[%s444 + $0x58] sm:$0x3]
        %v2368 = vld [vmem:[%s444 + $0x60] sm:$0xfc]
        %v2369 = vld [vmem:[%s444 + $0x68] sm:$0xfc]
        %v2370 = vld [vmem:[%s444 + $0x70] sm:$0x3]
        %v2371 = vld [vmem:[%s444 + $0x78] sm:$0x3]
        %v2372 = vld [vmem:[%s444 + $0x80] sm:$0xfc]
        %v2373 = vld [vmem:[%s444 + $0x88] sm:$0xfc]
        %v2374 = vld [vmem:[%s444 + $0x90] sm:$0x3]
        %v2375 = vld [vmem:[%s444 + $0x98] sm:$0x3]
        %v2376 = vld [vmem:[%s444 + $0xa0] sm:$0xfc]
        %v2377 = vld [vmem:[%s444 + $0xa8] sm:$0xfc]
        %v2378 = vld [vmem:[%s444 + $0xb0] sm:$0x3]
        %v2379 = vld [vmem:[%s444 + $0xb8] sm:$0x3]
        %v2380 = vld [vmem:[%s444 + $0xc0] sm:$0xfc]
        %v2381 = vld [vmem:[%s444 + $0xc8] sm:$0xfc]
        %v2382 = vld [vmem:[%s444 + $0xd0] sm:$0x3]
        %v2383 = vld [vmem:[%s444 + $0xd8] sm:$0x3]
        %v2384 = vld [vmem:[%s444 + $0xe0] sm:$0xfc]
        %v2385 = vld [vmem:[%s444 + $0xe8] sm:$0xfc]
        %v2386 = vld [vmem:[%s444 + $0xf0] sm:$0x3]
        %v2387 = vld [vmem:[%s444 + $0xf8] sm:$0x3]
        %v2420 = vrot.slane %v2356, 2
        %v2421 = vrot.slane %v2358, 2
        %v2422 = vsel %vm1277, %v2420, %v2421
        %v2423 = vrot.slane %v2357, 2
        %v2424 = vrot.slane %v2359, 2
        %v2425 = vsel %vm1277, %v2423, %v2424
        %v2426 = vrot.slane %v2360, 2
        %v2427 = vrot.slane %v2362, 2
        %v2428 = vsel %vm1277, %v2426, %v2427
        %v2429 = vrot.slane %v2361, 2
        %v2430 = vrot.slane %v2363, 2
        %v2431 = vsel %vm1277, %v2429, %v2430
        %v2432 = vrot.slane %v2364, 2
        %v2433 = vrot.slane %v2366, 2
        %v2434 = vsel %vm1277, %v2432, %v2433
        %v2435 = vrot.slane %v2365, 2
        %v2436 = vrot.slane %v2367, 2
        %v2437 = vsel %vm1277, %v2435, %v2436
        %v2438 = vrot.slane %v2368, 2
        %v2439 = vrot.slane %v2370, 2
        %v2440 = vsel %vm1277, %v2438, %v2439
        %v2441 = vrot.slane %v2369, 2
        %v2442 = vrot.slane %v2371, 2
        %v2443 = vsel %vm1277, %v2441, %v2442
        %v2444 = vrot.slane %v2372, 2
        %v2445 = vrot.slane %v2374, 2
        %v2446 = vsel %vm1277, %v2444, %v2445
        %v2447 = vrot.slane %v2373, 2
        %v2448 = vrot.slane %v2375, 2
        %v2449 = vsel %vm1277, %v2447, %v2448
        %v2450 = vrot.slane %v2376, 2
        %v2451 = vrot.slane %v2378, 2
        %v2452 = vsel %vm1277, %v2450, %v2451
        %v2453 = vrot.slane %v2377, 2
        %v2454 = vrot.slane %v2379, 2
        %v2455 = vsel %vm1277, %v2453, %v2454
        %v2456 = vrot.slane %v2380, 2
        %v2457 = vrot.slane %v2382, 2
        %v2458 = vsel %vm1277, %v2456, %v2457
        %v2459 = vrot.slane %v2381, 2
        %v2460 = vrot.slane %v2383, 2
        %v2461 = vsel %vm1277, %v2459, %v2460
        %v2462 = vrot.slane %v2384, 2
        %v2463 = vrot.slane %v2386, 2
        %v2464 = vsel %vm1277, %v2462, %v2463
        %v2465 = vrot.slane %v2385, 2
        %v2466 = vrot.slane %v2387, 2
        %v2467 = vsel %vm1277, %v2465, %v2466
        %v2484 = vpack.c.bf16 %v2428, %v2422
        %v2485 = vpack.c.bf16 %v2431, %v2425
        %v2486 = vpack.c.bf16 %v2440, %v2434
        %v2487 = vpack.c.bf16 %v2443, %v2437
        %v2488 = vpack.c.bf16 %v2452, %v2446
        %v2489 = vpack.c.bf16 %v2455, %v2449
        %v2490 = vpack.c.bf16 %v2464, %v2458
        %v2491 = vpack.c.bf16 %v2467, %v2461
        %s2492 = scalar_lea.vmem [#allocation7], 1280
        %v2493 = vld [vmem:[%s2492] sm:$0xff]
        %v2494 = vld [vmem:[%s2492 + $0x8] sm:$0xff]
        %v2495 = vld [vmem:[%s2492 + $0x10] sm:$0xff]
        %v2496 = vld [vmem:[%s2492 + $0x18] sm:$0xff]
        %v2497 = vld [vmem:[%s2492 + $0x20] sm:$0xff]
        %v2498 = vld [vmem:[%s2492 + $0x28] sm:$0xff]
        %v2499 = vld [vmem:[%s2492 + $0x30] sm:$0xff]
        %v2500 = vld [vmem:[%s2492 + $0x38] sm:$0xff]
        %v2501 = vld [vmem:[%s2492 + $0x40] sm:$0xff]
        %v2502 = vld [vmem:[%s2492 + $0x48] sm:$0xff]
        %v2503 = vld [vmem:[%s2492 + $0x50] sm:$0xff]
        %v2504 = vld [vmem:[%s2492 + $0x58] sm:$0xff]
        %v2505 = vld [vmem:[%s2492 + $0x60] sm:$0xff]
        %v2506 = vld [vmem:[%s2492 + $0x68] sm:$0xff]
        %v2507 = vld [vmem:[%s2492 + $0x70] sm:$0xff]
        %v2508 = vld [vmem:[%s2492 + $0x78] sm:$0xff]
        %v2509 = vld [vmem:[%s2492 + $0x80] sm:$0xff]
        %v2510 = vld [vmem:[%s2492 + $0x88] sm:$0xff]
        %v2511 = vld [vmem:[%s2492 + $0x90] sm:$0xff]
        %v2512 = vld [vmem:[%s2492 + $0x98] sm:$0xff]
        %v2513 = vld [vmem:[%s2492 + $0xa0] sm:$0xff]
        %v2514 = vld [vmem:[%s2492 + $0xa8] sm:$0xff]
        %v2515 = vld [vmem:[%s2492 + $0xb0] sm:$0xff]
        %v2516 = vld [vmem:[%s2492 + $0xb8] sm:$0xff]
        %v2517 = vld [vmem:[%s2492 + $0xc0] sm:$0xff]
        %v2518 = vld [vmem:[%s2492 + $0xc8] sm:$0xff]
        %v2519 = vld [vmem:[%s2492 + $0xd0] sm:$0xff]
        %v2520 = vld [vmem:[%s2492 + $0xd8] sm:$0xff]
        %v2521 = vld [vmem:[%s2492 + $0xe0] sm:$0xff]
        %v2522 = vld [vmem:[%s2492 + $0xe8] sm:$0xff]
        %v2523 = vld [vmem:[%s2492 + $0xf0] sm:$0xff]
        %v2524 = vld [vmem:[%s2492 + $0xf8] sm:$0xff]
        %v2557 = vunpack.c.l.b16 %v2493
        %v2558 = vunpack.c.h.b16 %v2493
        %v2559 = vunpack.c.l.b16 %v2494
        %v2560 = vunpack.c.h.b16 %v2494
        %v2561 = vunpack.c.l.b16 %v2495
        %v2562 = vunpack.c.h.b16 %v2495
        %v2563 = vunpack.c.l.b16 %v2496
        %v2564 = vunpack.c.h.b16 %v2496
        %v2565 = vunpack.c.l.b16 %v2497
        %v2566 = vunpack.c.h.b16 %v2497
        %v2567 = vunpack.c.l.b16 %v2498
        %v2568 = vunpack.c.h.b16 %v2498
        %v2569 = vunpack.c.l.b16 %v2499
        %v2570 = vunpack.c.h.b16 %v2499
        %v2571 = vunpack.c.l.b16 %v2500
        %v2572 = vunpack.c.h.b16 %v2500
        %v2573 = vunpack.c.l.b16 %v2501
        %v2574 = vunpack.c.h.b16 %v2501
        %v2575 = vunpack.c.l.b16 %v2502
        %v2576 = vunpack.c.h.b16 %v2502
        %v2577 = vunpack.c.l.b16 %v2503
        %v2578 = vunpack.c.h.b16 %v2503
        %v2579 = vunpack.c.l.b16 %v2504
        %v2580 = vunpack.c.h.b16 %v2504
        %v2581 = vunpack.c.l.b16 %v2505
        %v2582 = vunpack.c.h.b16 %v2505
        %v2583 = vunpack.c.l.b16 %v2506
        %v2584 = vunpack.c.h.b16 %v2506
        %v2585 = vunpack.c.l.b16 %v2507
        %v2586 = vunpack.c.h.b16 %v2507
        %v2587 = vunpack.c.l.b16 %v2508
        %v2588 = vunpack.c.h.b16 %v2508
        %v2589 = vunpack.c.l.b16 %v2509
        %v2590 = vunpack.c.h.b16 %v2509
        %v2591 = vunpack.c.l.b16 %v2510
        %v2592 = vunpack.c.h.b16 %v2510
        %v2593 = vunpack.c.l.b16 %v2511
        %v2594 = vunpack.c.h.b16 %v2511
        %v2595 = vunpack.c.l.b16 %v2512
        %v2596 = vunpack.c.h.b16 %v2512
        %v2597 = vunpack.c.l.b16 %v2513
        %v2598 = vunpack.c.h.b16 %v2513
        %v2599 = vunpack.c.l.b16 %v2514
        %v2600 = vunpack.c.h.b16 %v2514
        %v2601 = vunpack.c.l.b16 %v2515
        %v2602 = vunpack.c.h.b16 %v2515
        %v2603 = vunpack.c.l.b16 %v2516
        %v2604 = vunpack.c.h.b16 %v2516
        %v2605 = vunpack.c.l.b16 %v2517
        %v2606 = vunpack.c.h.b16 %v2517
        %v2607 = vunpack.c.l.b16 %v2518
        %v2608 = vunpack.c.h.b16 %v2518
        %v2609 = vunpack.c.l.b16 %v2519
        %v2610 = vunpack.c.h.b16 %v2519
        %v2611 = vunpack.c.l.b16 %v2520
        %v2612 = vunpack.c.h.b16 %v2520
        %v2613 = vunpack.c.l.b16 %v2521
        %v2614 = vunpack.c.h.b16 %v2521
        %v2615 = vunpack.c.l.b16 %v2522
        %v2616 = vunpack.c.h.b16 %v2522
        %v2617 = vunpack.c.l.b16 %v2523
        %v2618 = vunpack.c.h.b16 %v2523
        %v2619 = vunpack.c.l.b16 %v2524
        %v2620 = vunpack.c.h.b16 %v2524
        %v2621 = vpack.c.b16 %v2559, %v2557
        %v2622 = vpack.c.b16 %v2560, %v2558
        %v2623 = vpack.c.b16 %v2563, %v2561
        %v2624 = vpack.c.b16 %v2564, %v2562
        %v2625 = vpack.c.b16 %v2567, %v2565
        %v2626 = vpack.c.b16 %v2568, %v2566
        %v2627 = vpack.c.b16 %v2571, %v2569
        %v2628 = vpack.c.b16 %v2572, %v2570
        %v2629 = vpack.c.b16 %v2575, %v2573
        %v2630 = vpack.c.b16 %v2576, %v2574
        %v2631 = vpack.c.b16 %v2579, %v2577
        %v2632 = vpack.c.b16 %v2580, %v2578
        %v2633 = vpack.c.b16 %v2583, %v2581
        %v2634 = vpack.c.b16 %v2584, %v2582
        %v2635 = vpack.c.b16 %v2587, %v2585
        %v2636 = vpack.c.b16 %v2588, %v2586
        %v2637 = vpack.c.b16 %v2591, %v2589
        %v2638 = vpack.c.b16 %v2592, %v2590
        %v2639 = vpack.c.b16 %v2595, %v2593
        %v2640 = vpack.c.b16 %v2596, %v2594
        %v2641 = vpack.c.b16 %v2599, %v2597
        %v2642 = vpack.c.b16 %v2600, %v2598
        %v2643 = vpack.c.b16 %v2603, %v2601
        %v2644 = vpack.c.b16 %v2604, %v2602
        %v2645 = vpack.c.b16 %v2607, %v2605
        %v2646 = vpack.c.b16 %v2608, %v2606
        %v2647 = vpack.c.b16 %v2611, %v2609
        %v2648 = vpack.c.b16 %v2612, %v2610
        %v2649 = vpack.c.b16 %v2615, %v2613
        %v2650 = vpack.c.b16 %v2616, %v2614
        %v2651 = vpack.c.b16 %v2619, %v2617
        %v2652 = vpack.c.b16 %v2620, %v2618
        %2685 = vmatprep.subr.bf16.mxu0 %v2622
        %2686 = vmatpush1.bf16.msra.mxu0 %v2621
        %2687 = vmatprep.subr.bf16.mxu0 %v2624
        %2688 = vmatpush1.bf16.msra.mxu0 %v2623
        %2689 = vmatprep.subr.bf16.mxu0 %v2626
        %2690 = vmatpush1.bf16.msra.mxu0 %v2625
        %2691 = vmatprep.subr.bf16.mxu0 %v2628
        %2692 = vmatpush1.bf16.msra.mxu0 %v2627
        %2693 = vmatprep.subr.bf16.mxu0 %v2630
        %2694 = vmatpush1.bf16.msra.mxu0 %v2629
        %2695 = vmatprep.subr.bf16.mxu0 %v2632
        %2696 = vmatpush1.bf16.msra.mxu0 %v2631
        %2697 = vmatprep.subr.bf16.mxu0 %v2634
        %2698 = vmatpush1.bf16.msra.mxu0 %v2633
        %2699 = vmatprep.subr.bf16.mxu0 %v2636
        %2700 = vmatpush1.bf16.msra.mxu0 %v2635
        %2701 = vmatprep.subr.bf16.mxu0 %v2638
        %2702 = vmatpush1.bf16.msra.mxu0 %v2637
        %2703 = vmatprep.subr.bf16.mxu0 %v2640
        %2704 = vmatpush1.bf16.msra.mxu0 %v2639
        %2705 = vmatprep.subr.bf16.mxu0 %v2642
        %2706 = vmatpush1.bf16.msra.mxu0 %v2641
        %2707 = vmatprep.subr.bf16.mxu0 %v2644
        %2708 = vmatpush1.bf16.msra.mxu0 %v2643
        %2709 = vmatprep.subr.bf16.mxu0 %v2646
        %2710 = vmatpush1.bf16.msra.mxu0 %v2645
        %2711 = vmatprep.subr.bf16.mxu0 %v2648
        %2712 = vmatpush1.bf16.msra.mxu0 %v2647
        %2713 = vmatprep.subr.bf16.mxu0 %v2650
        %2714 = vmatpush1.bf16.msra.mxu0 %v2649
        %2715 = vmatprep.subr.bf16.mxu0 %v2652
        %2716 = vmatpush1.bf16.msra.mxu0 %v2651
        %2717 = vmatprep.mubr.bf16.mxu0 %v2485
        %2718 = vmatmul.mubr.bf16.gmra.mrb[0].mxu0 %v2484
        %v2719 = vpop.f32.mrb[0].mxu0
        %v2720 = vadd.f32 0.0, %v2719
        %v2721 = vpop.f32.mrb[0].mxu0
        %v2722 = vadd.f32 0.0, %v2721
        %v2723 = vpop.f32.mrb[0].mxu0
        %v2724 = vadd.f32 0.0, %v2723
        %v2725 = vpop.f32.mrb[0].mxu0
        %v2726 = vadd.f32 0.0, %v2725
        %2727 = vmatprep.mubr.bf16.mxu0 %v2487
        %2728 = vmatmul.mubr.bf16.gmra.mrb[0].mxu0 %v2486
        %v2729 = vpop.f32.mrb[0].mxu0
        %v2730 = vadd.f32 0.0, %v2729
        %v2731 = vpop.f32.mrb[0].mxu0
        %v2732 = vadd.f32 0.0, %v2731
        %v2733 = vpop.f32.mrb[0].mxu0
        %v2734 = vadd.f32 0.0, %v2733
        %v2735 = vpop.f32.mrb[0].mxu0
        %v2736 = vadd.f32 0.0, %v2735
        %2737 = vmatprep.mubr.bf16.mxu0 %v2489
        %2738 = vmatmul.mubr.bf16.gmra.mrb[0].mxu0 %v2488
        %v2739 = vpop.f32.mrb[0].mxu0
        %v2740 = vadd.f32 0.0, %v2739
        %v2741 = vpop.f32.mrb[0].mxu0
        %v2742 = vadd.f32 0.0, %v2741
        %v2743 = vpop.f32.mrb[0].mxu0
        %v2744 = vadd.f32 0.0, %v2743
        %v2745 = vpop.f32.mrb[0].mxu0
        %v2746 = vadd.f32 0.0, %v2745
        %2747 = vmatprep.mubr.bf16.mxu0 %v2491
        %2748 = vmatmul.mubr.bf16.gmra.mrb[0].mxu0 %v2490
        %v2749 = vpop.f32.mrb[0].mxu0
        %v2750 = vadd.f32 0.0, %v2749
        %v2751 = vpop.f32.mrb[0].mxu0
        %v2752 = vadd.f32 0.0, %v2751
        %v2753 = vpop.f32.mrb[0].mxu0
        %v2754 = vadd.f32 0.0, %v2753
        %v2755 = vpop.f32.mrb[0].mxu0
        %v2756 = vadd.f32 0.0, %v2755
        %2757 = vdwg.mxu0
        %v2758 = vadd.f32 %v2340, %v2720
        %v2759 = vadd.f32 %v2341, %v2722
        %v2760 = vadd.f32 %v2342, %v2724
        %v2761 = vadd.f32 %v2343, %v2726
        %v2762 = vadd.f32 %v2344, %v2730
        %v2763 = vadd.f32 %v2345, %v2732
        %v2764 = vadd.f32 %v2346, %v2734
        %v2765 = vadd.f32 %v2347, %v2736
        %v2766 = vadd.f32 %v2348, %v2740
        %v2767 = vadd.f32 %v2349, %v2742
        %v2768 = vadd.f32 %v2350, %v2744
        %v2769 = vadd.f32 %v2351, %v2746
        %v2770 = vadd.f32 %v2352, %v2750
        %v2771 = vadd.f32 %v2353, %v2752
        %v2772 = vadd.f32 %v2354, %v2754
        %v2773 = vadd.f32 %v2355, %v2756
        %s2774 = scalar_lea.vmem [#allocation2], 64
        %v2775 = vld [vmem:[%s2774] sm:$0xff]
        %v2776 = vld [vmem:[%s2774 + $0x8] sm:$0xff]
        %v2777 = vld [vmem:[%s2774 + $0x20] sm:$0xff]
        %v2778 = vld [vmem:[%s2774 + $0x28] sm:$0xff]
        %v2779 = vld [vmem:[%s2774 + $0x40] sm:$0xff]
        %v2780 = vld [vmem:[%s2774 + $0x48] sm:$0xff]
        %v2781 = vld [vmem:[%s2774 + $0x60] sm:$0xff]
        %v2782 = vld [vmem:[%s2774 + $0x68] sm:$0xff]
        %v2783 = vld [vmem:[%s2774 + $0x80] sm:$0xff]
        %v2784 = vld [vmem:[%s2774 + $0x88] sm:$0xff]
        %v2785 = vld [vmem:[%s2774 + $0xa0] sm:$0xff]
        %v2786 = vld [vmem:[%s2774 + $0xa8] sm:$0xff]
        %v2787 = vld [vmem:[%s2774 + $0xc0] sm:$0xff]
        %v2788 = vld [vmem:[%s2774 + $0xc8] sm:$0xff]
        %v2789 = vld [vmem:[%s2774 + $0xe0] sm:$0xff]
        %v2790 = vld [vmem:[%s2774 + $0xe8] sm:$0xff]
        %v2791 = vpack.c.bf16 %v2777, %v2775
        %v2792 = vpack.c.bf16 %v2778, %v2776
        %v2793 = vpack.c.bf16 %v2781, %v2779
        %v2794 = vpack.c.bf16 %v2782, %v2780
        %v2795 = vpack.c.bf16 %v2785, %v2783
        %v2796 = vpack.c.bf16 %v2786, %v2784
        %v2797 = vpack.c.bf16 %v2789, %v2787
        %v2798 = vpack.c.bf16 %v2790, %v2788
        %s2799 = scalar_lea.vmem [#allocation7], 1536
        %v2800 = vld [vmem:[%s2799] sm:$0xff]
        %v2801 = vld [vmem:[%s2799 + $0x8] sm:$0xff]
        %v2802 = vld [vmem:[%s2799 + $0x10] sm:$0xff]
        %v2803 = vld [vmem:[%s2799 + $0x18] sm:$0xff]
        %v2804 = vld [vmem:[%s2799 + $0x20] sm:$0xff]
        %v2805 = vld [vmem:[%s2799 + $0x28] sm:$0xff]
        %v2806 = vld [vmem:[%s2799 + $0x30] sm:$0xff]
        %v2807 = vld [vmem:[%s2799 + $0x38] sm:$0xff]
        %v2808 = vld [vmem:[%s2799 + $0x40] sm:$0xff]
        %v2809 = vld [vmem:[%s2799 + $0x48] sm:$0xff]
        %v2810 = vld [vmem:[%s2799 + $0x50] sm:$0xff]
        %v2811 = vld [vmem:[%s2799 + $0x58] sm:$0xff]
        %v2812 = vld [vmem:[%s2799 + $0x60] sm:$0xff]
        %v2813 = vld [vmem:[%s2799 + $0x68] sm:$0xff]
        %v2814 = vld [vmem:[%s2799 + $0x70] sm:$0xff]
        %v2815 = vld [vmem:[%s2799 + $0x78] sm:$0xff]
        %v2816 = vld [vmem:[%s2799 + $0x80] sm:$0xff]
        %v2817 = vld [vmem:[%s2799 + $0x88] sm:$0xff]
        %v2818 = vld [vmem:[%s2799 + $0x90] sm:$0xff]
        %v2819 = vld [vmem:[%s2799 + $0x98] sm:$0xff]
        %v2820 = vld [vmem:[%s2799 + $0xa0] sm:$0xff]
        %v2821 = vld [vmem:[%s2799 + $0xa8] sm:$0xff]
        %v2822 = vld [vmem:[%s2799 + $0xb0] sm:$0xff]
        %v2823 = vld [vmem:[%s2799 + $0xb8] sm:$0xff]
        %v2824 = vld [vmem:[%s2799 + $0xc0] sm:$0xff]
        %v2825 = vld [vmem:[%s2799 + $0xc8] sm:$0xff]
        %v2826 = vld [vmem:[%s2799 + $0xd0] sm:$0xff]
        %v2827 = vld [vmem:[%s2799 + $0xd8] sm:$0xff]
        %v2828 = vld [vmem:[%s2799 + $0xe0] sm:$0xff]
        %v2829 = vld [vmem:[%s2799 + $0xe8] sm:$0xff]
        %v2830 = vld [vmem:[%s2799 + $0xf0] sm:$0xff]
        %v2831 = vld [vmem:[%s2799 + $0xf8] sm:$0xff]
        %v2864 = vunpack.c.l.b16 %v2800
        %v2865 = vunpack.c.h.b16 %v2800
        %v2866 = vunpack.c.l.b16 %v2801
        %v2867 = vunpack.c.h.b16 %v2801
        %v2868 = vunpack.c.l.b16 %v2802
        %v2869 = vunpack.c.h.b16 %v2802
        %v2870 = vunpack.c.l.b16 %v2803
        %v2871 = vunpack.c.h.b16 %v2803
        %v2872 = vunpack.c.l.b16 %v2804
        %v2873 = vunpack.c.h.b16 %v2804
        %v2874 = vunpack.c.l.b16 %v2805
        %v2875 = vunpack.c.h.b16 %v2805
        %v2876 = vunpack.c.l.b16 %v2806
        %v2877 = vunpack.c.h.b16 %v2806
        %v2878 = vunpack.c.l.b16 %v2807
        %v2879 = vunpack.c.h.b16 %v2807
        %v2880 = vunpack.c.l.b16 %v2808
        %v2881 = vunpack.c.h.b16 %v2808
        %v2882 = vunpack.c.l.b16 %v2809
        %v2883 = vunpack.c.h.b16 %v2809
        %v2884 = vunpack.c.l.b16 %v2810
        %v2885 = vunpack.c.h.b16 %v2810
        %v2886 = vunpack.c.l.b16 %v2811
        %v2887 = vunpack.c.h.b16 %v2811
        %v2888 = vunpack.c.l.b16 %v2812
        %v2889 = vunpack.c.h.b16 %v2812
        %v2890 = vunpack.c.l.b16 %v2813
        %v2891 = vunpack.c.h.b16 %v2813
        %v2892 = vunpack.c.l.b16 %v2814
        %v2893 = vunpack.c.h.b16 %v2814
        %v2894 = vunpack.c.l.b16 %v2815
        %v2895 = vunpack.c.h.b16 %v2815
        %v2896 = vunpack.c.l.b16 %v2816
        %v2897 = vunpack.c.h.b16 %v2816
        %v2898 = vunpack.c.l.b16 %v2817
        %v2899 = vunpack.c.h.b16 %v2817
        %v2900 = vunpack.c.l.b16 %v2818
        %v2901 = vunpack.c.h.b16 %v2818
        %v2902 = vunpack.c.l.b16 %v2819
        %v2903 = vunpack.c.h.b16 %v2819
        %v2904 = vunpack.c.l.b16 %v2820
        %v2905 = vunpack.c.h.b16 %v2820
        %v2906 = vunpack.c.l.b16 %v2821
        %v2907 = vunpack.c.h.b16 %v2821
        %v2908 = vunpack.c.l.b16 %v2822
        %v2909 = vunpack.c.h.b16 %v2822
        %v2910 = vunpack.c.l.b16 %v2823
        %v2911 = vunpack.c.h.b16 %v2823
        %v2912 = vunpack.c.l.b16 %v2824
        %v2913 = vunpack.c.h.b16 %v2824
        %v2914 = vunpack.c.l.b16 %v2825
        %v2915 = vunpack.c.h.b16 %v2825
        %v2916 = vunpack.c.l.b16 %v2826
        %v2917 = vunpack.c.h.b16 %v2826
        %v2918 = vunpack.c.l.b16 %v2827
        %v2919 = vunpack.c.h.b16 %v2827
        %v2920 = vunpack.c.l.b16 %v2828
        %v2921 = vunpack.c.h.b16 %v2828
        %v2922 = vunpack.c.l.b16 %v2829
        %v2923 = vunpack.c.h.b16 %v2829
        %v2924 = vunpack.c.l.b16 %v2830
        %v2925 = vunpack.c.h.b16 %v2830
        %v2926 = vunpack.c.l.b16 %v2831
        %v2927 = vunpack.c.h.b16 %v2831
        %v2928 = vpack.c.b16 %v2866, %v2864
        %v2929 = vpack.c.b16 %v2867, %v2865
        %v2930 = vpack.c.b16 %v2870, %v2868
        %v2931 = vpack.c.b16 %v2871, %v2869
        %v2932 = vpack.c.b16 %v2874, %v2872
        %v2933 = vpack.c.b16 %v2875, %v2873
        %v2934 = vpack.c.b16 %v2878, %v2876
        %v2935 = vpack.c.b16 %v2879, %v2877
        %v2936 = vpack.c.b16 %v2882, %v2880
        %v2937 = vpack.c.b16 %v2883, %v2881
        %v2938 = vpack.c.b16 %v2886, %v2884
        %v2939 = vpack.c.b16 %v2887, %v2885
        %v2940 = vpack.c.b16 %v2890, %v2888
        %v2941 = vpack.c.b16 %v2891, %v2889
        %v2942 = vpack.c.b16 %v2894, %v2892
        %v2943 = vpack.c.b16 %v2895, %v2893
        %v2944 = vpack.c.b16 %v2898, %v2896
        %v2945 = vpack.c.b16 %v2899, %v2897
        %v2946 = vpack.c.b16 %v2902, %v2900
        %v2947 = vpack.c.b16 %v2903, %v2901
        %v2948 = vpack.c.b16 %v2906, %v2904
        %v2949 = vpack.c.b16 %v2907, %v2905
        %v2950 = vpack.c.b16 %v2910, %v2908
        %v2951 = vpack.c.b16 %v2911, %v2909
        %v2952 = vpack.c.b16 %v2914, %v2912
        %v2953 = vpack.c.b16 %v2915, %v2913
        %v2954 = vpack.c.b16 %v2918, %v2916
        %v2955 = vpack.c.b16 %v2919, %v2917
        %v2956 = vpack.c.b16 %v2922, %v2920
        %v2957 = vpack.c.b16 %v2923, %v2921
        %v2958 = vpack.c.b16 %v2926, %v2924
        %v2959 = vpack.c.b16 %v2927, %v2925
        %2992 = vmatprep.subr.bf16.mxu0 %v2929
        %2993 = vmatpush1.bf16.msra.mxu0 %v2928
        %2994 = vmatprep.subr.bf16.mxu0 %v2931
        %2995 = vmatpush1.bf16.msra.mxu0 %v2930
        %2996 = vmatprep.subr.bf16.mxu0 %v2933
        %2997 = vmatpush1.bf16.msra.mxu0 %v2932
        %2998 = vmatprep.subr.bf16.mxu0 %v2935
        %2999 = vmatpush1.bf16.msra.mxu0 %v2934
        %3000 = vmatprep.subr.bf16.mxu0 %v2937
        %3001 = vmatpush1.bf16.msra.mxu0 %v2936
        %3002 = vmatprep.subr.bf16.mxu0 %v2939
        %3003 = vmatpush1.bf16.msra.mxu0 %v2938
        %3004 = vmatprep.subr.bf16.mxu0 %v2941
        %3005 = vmatpush1.bf16.msra.mxu0 %v2940
        %3006 = vmatprep.subr.bf16.mxu0 %v2943
        %3007 = vmatpush1.bf16.msra.mxu0 %v2942
        %3008 = vmatprep.subr.bf16.mxu0 %v2945
        %3009 = vmatpush1.bf16.msra.mxu0 %v2944
        %3010 = vmatprep.subr.bf16.mxu0 %v2947
        %3011 = vmatpush1.bf16.msra.mxu0 %v2946
        %3012 = vmatprep.subr.bf16.mxu0 %v2949
        %3013 = vmatpush1.bf16.msra.mxu0 %v2948
        %3014 = vmatprep.subr.bf16.mxu0 %v2951
        %3015 = vmatpush1.bf16.msra.mxu0 %v2950
        %3016 = vmatprep.subr.bf16.mxu0 %v2953
        %3017 = vmatpush1.bf16.msra.mxu0 %v2952
        %3018 = vmatprep.subr.bf16.mxu0 %v2955
        %3019 = vmatpush1.bf16.msra.mxu0 %v2954
        %3020 = vmatprep.subr.bf16.mxu0 %v2957
        %3021 = vmatpush1.bf16.msra.mxu0 %v2956
        %3022 = vmatprep.subr.bf16.mxu0 %v2959
        %3023 = vmatpush1.bf16.msra.mxu0 %v2958
        %3024 = vmatprep.mubr.bf16.mxu0 %v2792
        %3025 = vmatmul.mubr.bf16.gmra.mrb[0].mxu0 %v2791
        %v3026 = vpop.f32.mrb[0].mxu0
        %v3027 = vadd.f32 0.0, %v3026
        %v3028 = vpop.f32.mrb[0].mxu0
        %v3029 = vadd.f32 0.0, %v3028
        %v3030 = vpop.f32.mrb[0].mxu0
        %v3031 = vadd.f32 0.0, %v3030
        %v3032 = vpop.f32.mrb[0].mxu0
        %v3033 = vadd.f32 0.0, %v3032
        %3034 = vmatprep.mubr.bf16.mxu0 %v2794
        %3035 = vmatmul.mubr.bf16.gmra.mrb[0].mxu0 %v2793
        %v3036 = vpop.f32.mrb[0].mxu0
        %v3037 = vadd.f32 0.0, %v3036
        %v3038 = vpop.f32.mrb[0].mxu0
        %v3039 = vadd.f32 0.0, %v3038
        %v3040 = vpop.f32.mrb[0].mxu0
        %v3041 = vadd.f32 0.0, %v3040
        %v3042 = vpop.f32.mrb[0].mxu0
        %v3043 = vadd.f32 0.0, %v3042
        %3044 = vmatprep.mubr.bf16.mxu0 %v2796
        %3045 = vmatmul.mubr.bf16.gmra.mrb[0].mxu0 %v2795
        %v3046 = vpop.f32.mrb[0].mxu0
        %v3047 = vadd.f32 0.0, %v3046
        %v3048 = vpop.f32.mrb[0].mxu0
        %v3049 = vadd.f32 0.0, %v3048
        %v3050 = vpop.f32.mrb[0].mxu0
        %v3051 = vadd.f32 0.0, %v3050
        %v3052 = vpop.f32.mrb[0].mxu0
        %v3053 = vadd.f32 0.0, %v3052
        %3054 = vmatprep.mubr.bf16.mxu0 %v2798
        %3055 = vmatmul.mubr.bf16.gmra.mrb[0].mxu0 %v2797
        %v3056 = vpop.f32.mrb[0].mxu0
        %v3057 = vadd.f32 0.0, %v3056
        %v3058 = vpop.f32.mrb[0].mxu0
        %v3059 = vadd.f32 0.0, %v3058
        %v3060 = vpop.f32.mrb[0].mxu0
        %v3061 = vadd.f32 0.0, %v3060
        %v3062 = vpop.f32.mrb[0].mxu0
        %v3063 = vadd.f32 0.0, %v3062
        %3064 = vdwg.mxu0
        %v3065 = vadd.f32 %v2758, %v3027
        %v3066 = vadd.f32 %v2759, %v3029
        %v3067 = vadd.f32 %v2760, %v3031
        %v3068 = vadd.f32 %v2761, %v3033
        %v3069 = vadd.f32 %v2762, %v3037
        %v3070 = vadd.f32 %v2763, %v3039
        %v3071 = vadd.f32 %v2764, %v3041
        %v3072 = vadd.f32 %v2765, %v3043
        %v3073 = vadd.f32 %v2766, %v3047
        %v3074 = vadd.f32 %v2767, %v3049
        %v3075 = vadd.f32 %v2768, %v3051
        %v3076 = vadd.f32 %v2769, %v3053
        %v3077 = vadd.f32 %v2770, %v3057
        %v3078 = vadd.f32 %v2771, %v3059
        %v3079 = vadd.f32 %v2772, %v3061
        %v3080 = vadd.f32 %v2773, %v3063
        %v3081 = vld [vmem:[%s2774] sm:$0xfe]
        %v3082 = vld [vmem:[%s2774 + $0x8] sm:$0xfe]
        %v3083 = vld [vmem:[%s2774 + $0x10] sm:$0x1]
        %v3084 = vld [vmem:[%s2774 + $0x18] sm:$0x1]
        %v3085 = vld [vmem:[%s2774 + $0x20] sm:$0xfe]
        %v3086 = vld [vmem:[%s2774 + $0x28] sm:$0xfe]
        %v3087 = vld [vmem:[%s2774 + $0x30] sm:$0x1]
        %v3088 = vld [vmem:[%s2774 + $0x38] sm:$0x1]
        %v3089 = vld [vmem:[%s2774 + $0x40] sm:$0xfe]
        %v3090 = vld [vmem:[%s2774 + $0x48] sm:$0xfe]
        %v3091 = vld [vmem:[%s2774 + $0x50] sm:$0x1]
        %v3092 = vld [vmem:[%s2774 + $0x58] sm:$0x1]
        %v3093 = vld [vmem:[%s2774 + $0x60] sm:$0xfe]
        %v3094 = vld [vmem:[%s2774 + $0x68] sm:$0xfe]
        %v3095 = vld [vmem:[%s2774 + $0x70] sm:$0x1]
        %v3096 = vld [vmem:[%s2774 + $0x78] sm:$0x1]
        %v3097 = vld [vmem:[%s2774 + $0x80] sm:$0xfe]
        %v3098 = vld [vmem:[%s2774 + $0x88] sm:$0xfe]
        %v3099 = vld [vmem:[%s2774 + $0x90] sm:$0x1]
        %v3100 = vld [vmem:[%s2774 + $0x98] sm:$0x1]
        %v3101 = vld [vmem:[%s2774 + $0xa0] sm:$0xfe]
        %v3102 = vld [vmem:[%s2774 + $0xa8] sm:$0xfe]
        %v3103 = vld [vmem:[%s2774 + $0xb0] sm:$0x1]
        %v3104 = vld [vmem:[%s2774 + $0xb8] sm:$0x1]
        %v3105 = vld [vmem:[%s2774 + $0xc0] sm:$0xfe]
        %v3106 = vld [vmem:[%s2774 + $0xc8] sm:$0xfe]
        %v3107 = vld [vmem:[%s2774 + $0xd0] sm:$0x1]
        %v3108 = vld [vmem:[%s2774 + $0xd8] sm:$0x1]
        %v3109 = vld [vmem:[%s2774 + $0xe0] sm:$0xfe]
        %v3110 = vld [vmem:[%s2774 + $0xe8] sm:$0xfe]
        %v3111 = vld [vmem:[%s2774 + $0xf0] sm:$0x1]
        %v3112 = vld [vmem:[%s2774 + $0xf8] sm:$0x1]
        %v3145 = vrot.slane %v3081, 1
        %v3146 = vrot.slane %v3083, 1
        %v3147 = vsel %vm858, %v3145, %v3146
        %v3148 = vrot.slane %v3082, 1
        %v3149 = vrot.slane %v3084, 1
        %v3150 = vsel %vm858, %v3148, %v3149
        %v3151 = vrot.slane %v3085, 1
        %v3152 = vrot.slane %v3087, 1
        %v3153 = vsel %vm858, %v3151, %v3152
        %v3154 = vrot.slane %v3086, 1
        %v3155 = vrot.slane %v3088, 1
        %v3156 = vsel %vm858, %v3154, %v3155
        %v3157 = vrot.slane %v3089, 1
        %v3158 = vrot.slane %v3091, 1
        %v3159 = vsel %vm858, %v3157, %v3158
        %v3160 = vrot.slane %v3090, 1
        %v3161 = vrot.slane %v3092, 1
        %v3162 = vsel %vm858, %v3160, %v3161
        %v3163 = vrot.slane %v3093, 1
        %v3164 = vrot.slane %v3095, 1
        %v3165 = vsel %vm858, %v3163, %v3164
        %v3166 = vrot.slane %v3094, 1
        %v3167 = vrot.slane %v3096, 1
        %v3168 = vsel %vm858, %v3166, %v3167
        %v3169 = vrot.slane %v3097, 1
        %v3170 = vrot.slane %v3099, 1
        %v3171 = vsel %vm858, %v3169, %v3170
        %v3172 = vrot.slane %v3098, 1
        %v3173 = vrot.slane %v3100, 1
        %v3174 = vsel %vm858, %v3172, %v3173
        %v3175 = vrot.slane %v3101, 1
        %v3176 = vrot.slane %v3103, 1
        %v3177 = vsel %vm858, %v3175, %v3176
        %v3178 = vrot.slane %v3102, 1
        %v3179 = vrot.slane %v3104, 1
        %v3180 = vsel %vm858, %v3178, %v3179
        %v3181 = vrot.slane %v3105, 1
        %v3182 = vrot.slane %v3107, 1
        %v3183 = vsel %vm858, %v3181, %v3182
        %v3184 = vrot.slane %v3106, 1
        %v3185 = vrot.slane %v3108, 1
        %v3186 = vsel %vm858, %v3184, %v3185
        %v3187 = vrot.slane %v3109, 1
        %v3188 = vrot.slane %v3111, 1
        %v3189 = vsel %vm858, %v3187, %v3188
        %v3190 = vrot.slane %v3110, 1
        %v3191 = vrot.slane %v3112, 1
        %v3192 = vsel %vm858, %v3190, %v3191
        %v3209 = vpack.c.bf16 %v3153, %v3147
        %v3210 = vpack.c.bf16 %v3156, %v3150
        %v3211 = vpack.c.bf16 %v3165, %v3159
        %v3212 = vpack.c.bf16 %v3168, %v3162
        %v3213 = vpack.c.bf16 %v3177, %v3171
        %v3214 = vpack.c.bf16 %v3180, %v3174
        %v3215 = vpack.c.bf16 %v3189, %v3183
        %v3216 = vpack.c.bf16 %v3192, %v3186
        %s3217 = scalar_lea.vmem [#allocation7], 1792
        %v3218 = vld [vmem:[%s3217] sm:$0xff]
        %v3219 = vld [vmem:[%s3217 + $0x8] sm:$0xff]
        %v3220 = vld [vmem:[%s3217 + $0x10] sm:$0xff]
        %v3221 = vld [vmem:[%s3217 + $0x18] sm:$0xff]
        %v3222 = vld [vmem:[%s3217 + $0x20] sm:$0xff]
        %v3223 = vld [vmem:[%s3217 + $0x28] sm:$0xff]
        %v3224 = vld [vmem:[%s3217 + $0x30] sm:$0xff]
        %v3225 = vld [vmem:[%s3217 + $0x38] sm:$0xff]
        %v3226 = vld [vmem:[%s3217 + $0x40] sm:$0xff]
        %v3227 = vld [vmem:[%s3217 + $0x48] sm:$0xff]
        %v3228 = vld [vmem:[%s3217 + $0x50] sm:$0xff]
        %v3229 = vld [vmem:[%s3217 + $0x58] sm:$0xff]
        %v3230 = vld [vmem:[%s3217 + $0x60] sm:$0xff]
        %v3231 = vld [vmem:[%s3217 + $0x68] sm:$0xff]
        %v3232 = vld [vmem:[%s3217 + $0x70] sm:$0xff]
        %v3233 = vld [vmem:[%s3217 + $0x78] sm:$0xff]
        %v3234 = vld [vmem:[%s3217 + $0x80] sm:$0xff]
        %v3235 = vld [vmem:[%s3217 + $0x88] sm:$0xff]
        %v3236 = vld [vmem:[%s3217 + $0x90] sm:$0xff]
        %v3237 = vld [vmem:[%s3217 + $0x98] sm:$0xff]
        %v3238 = vld [vmem:[%s3217 + $0xa0] sm:$0xff]
        %v3239 = vld [vmem:[%s3217 + $0xa8] sm:$0xff]
        %v3240 = vld [vmem:[%s3217 + $0xb0] sm:$0xff]
        %v3241 = vld [vmem:[%s3217 + $0xb8] sm:$0xff]
        %v3242 = vld [vmem:[%s3217 + $0xc0] sm:$0xff]
        %v3243 = vld [vmem:[%s3217 + $0xc8] sm:$0xff]
        %v3244 = vld [vmem:[%s3217 + $0xd0] sm:$0xff]
        %v3245 = vld [vmem:[%s3217 + $0xd8] sm:$0xff]
        %v3246 = vld [vmem:[%s3217 + $0xe0] sm:$0xff]
        %v3247 = vld [vmem:[%s3217 + $0xe8] sm:$0xff]
        %v3248 = vld [vmem:[%s3217 + $0xf0] sm:$0xff]
        %v3249 = vld [vmem:[%s3217 + $0xf8] sm:$0xff]
        %v3282 = vunpack.c.l.b16 %v3218
        %v3283 = vunpack.c.h.b16 %v3218
        %v3284 = vunpack.c.l.b16 %v3219
        %v3285 = vunpack.c.h.b16 %v3219
        %v3286 = vunpack.c.l.b16 %v3220
        %v3287 = vunpack.c.h.b16 %v3220
        %v3288 = vunpack.c.l.b16 %v3221
        %v3289 = vunpack.c.h.b16 %v3221
        %v3290 = vunpack.c.l.b16 %v3222
        %v3291 = vunpack.c.h.b16 %v3222
        %v3292 = vunpack.c.l.b16 %v3223
        %v3293 = vunpack.c.h.b16 %v3223
        %v3294 = vunpack.c.l.b16 %v3224
        %v3295 = vunpack.c.h.b16 %v3224
        %v3296 = vunpack.c.l.b16 %v3225
        %v3297 = vunpack.c.h.b16 %v3225
        %v3298 = vunpack.c.l.b16 %v3226
        %v3299 = vunpack.c.h.b16 %v3226
        %v3300 = vunpack.c.l.b16 %v3227
        %v3301 = vunpack.c.h.b16 %v3227
        %v3302 = vunpack.c.l.b16 %v3228
        %v3303 = vunpack.c.h.b16 %v3228
        %v3304 = vunpack.c.l.b16 %v3229
        %v3305 = vunpack.c.h.b16 %v3229
        %v3306 = vunpack.c.l.b16 %v3230
        %v3307 = vunpack.c.h.b16 %v3230
        %v3308 = vunpack.c.l.b16 %v3231
        %v3309 = vunpack.c.h.b16 %v3231
        %v3310 = vunpack.c.l.b16 %v3232
        %v3311 = vunpack.c.h.b16 %v3232
        %v3312 = vunpack.c.l.b16 %v3233
        %v3313 = vunpack.c.h.b16 %v3233
        %v3314 = vunpack.c.l.b16 %v3234
        %v3315 = vunpack.c.h.b16 %v3234
        %v3316 = vunpack.c.l.b16 %v3235
        %v3317 = vunpack.c.h.b16 %v3235
        %v3318 = vunpack.c.l.b16 %v3236
        %v3319 = vunpack.c.h.b16 %v3236
        %v3320 = vunpack.c.l.b16 %v3237
        %v3321 = vunpack.c.h.b16 %v3237
        %v3322 = vunpack.c.l.b16 %v3238
        %v3323 = vunpack.c.h.b16 %v3238
        %v3324 = vunpack.c.l.b16 %v3239
        %v3325 = vunpack.c.h.b16 %v3239
        %v3326 = vunpack.c.l.b16 %v3240
        %v3327 = vunpack.c.h.b16 %v3240
        %v3328 = vunpack.c.l.b16 %v3241
        %v3329 = vunpack.c.h.b16 %v3241
        %v3330 = vunpack.c.l.b16 %v3242
        %v3331 = vunpack.c.h.b16 %v3242
        %v3332 = vunpack.c.l.b16 %v3243
        %v3333 = vunpack.c.h.b16 %v3243
        %v3334 = vunpack.c.l.b16 %v3244
        %v3335 = vunpack.c.h.b16 %v3244
        %v3336 = vunpack.c.l.b16 %v3245
        %v3337 = vunpack.c.h.b16 %v3245
        %v3338 = vunpack.c.l.b16 %v3246
        %v3339 = vunpack.c.h.b16 %v3246
        %v3340 = vunpack.c.l.b16 %v3247
        %v3341 = vunpack.c.h.b16 %v3247
        %v3342 = vunpack.c.l.b16 %v3248
        %v3343 = vunpack.c.h.b16 %v3248
        %v3344 = vunpack.c.l.b16 %v3249
        %v3345 = vunpack.c.h.b16 %v3249
        %v3346 = vpack.c.b16 %v3284, %v3282
        %v3347 = vpack.c.b16 %v3285, %v3283
        %v3348 = vpack.c.b16 %v3288, %v3286
        %v3349 = vpack.c.b16 %v3289, %v3287
        %v3350 = vpack.c.b16 %v3292, %v3290
        %v3351 = vpack.c.b16 %v3293, %v3291
        %v3352 = vpack.c.b16 %v3296, %v3294
        %v3353 = vpack.c.b16 %v3297, %v3295
        %v3354 = vpack.c.b16 %v3300, %v3298
        %v3355 = vpack.c.b16 %v3301, %v3299
        %v3356 = vpack.c.b16 %v3304, %v3302
        %v3357 = vpack.c.b16 %v3305, %v3303
        %v3358 = vpack.c.b16 %v3308, %v3306
        %v3359 = vpack.c.b16 %v3309, %v3307
        %v3360 = vpack.c.b16 %v3312, %v3310
        %v3361 = vpack.c.b16 %v3313, %v3311
        %v3362 = vpack.c.b16 %v3316, %v3314
        %v3363 = vpack.c.b16 %v3317, %v3315
        %v3364 = vpack.c.b16 %v3320, %v3318
        %v3365 = vpack.c.b16 %v3321, %v3319
        %v3366 = vpack.c.b16 %v3324, %v3322
        %v3367 = vpack.c.b16 %v3325, %v3323
        %v3368 = vpack.c.b16 %v3328, %v3326
        %v3369 = vpack.c.b16 %v3329, %v3327
        %v3370 = vpack.c.b16 %v3332, %v3330
        %v3371 = vpack.c.b16 %v3333, %v3331
        %v3372 = vpack.c.b16 %v3336, %v3334
        %v3373 = vpack.c.b16 %v3337, %v3335
        %v3374 = vpack.c.b16 %v3340, %v3338
        %v3375 = vpack.c.b16 %v3341, %v3339
        %v3376 = vpack.c.b16 %v3344, %v3342
        %v3377 = vpack.c.b16 %v3345, %v3343
        %3410 = vmatprep.subr.bf16.mxu0 %v3347
        %3411 = vmatpush1.bf16.msra.mxu0 %v3346
        %3412 = vmatprep.subr.bf16.mxu0 %v3349
        %3413 = vmatpush1.bf16.msra.mxu0 %v3348
        %3414 = vmatprep.subr.bf16.mxu0 %v3351
        %3415 = vmatpush1.bf16.msra.mxu0 %v3350
        %3416 = vmatprep.subr.bf16.mxu0 %v3353
        %3417 = vmatpush1.bf16.msra.mxu0 %v3352
        %3418 = vmatprep.subr.bf16.mxu0 %v3355
        %3419 = vmatpush1.bf16.msra.mxu0 %v3354
        %3420 = vmatprep.subr.bf16.mxu0 %v3357
        %3421 = vmatpush1.bf16.msra.mxu0 %v3356
        %3422 = vmatprep.subr.bf16.mxu0 %v3359
        %3423 = vmatpush1.bf16.msra.mxu0 %v3358
        %3424 = vmatprep.subr.bf16.mxu0 %v3361
        %3425 = vmatpush1.bf16.msra.mxu0 %v3360
        %3426 = vmatprep.subr.bf16.mxu0 %v3363
        %3427 = vmatpush1.bf16.msra.mxu0 %v3362
        %3428 = vmatprep.subr.bf16.mxu0 %v3365
        %3429 = vmatpush1.bf16.msra.mxu0 %v3364
        %3430 = vmatprep.subr.bf16.mxu0 %v3367
        %3431 = vmatpush1.bf16.msra.mxu0 %v3366
        %3432 = vmatprep.subr.bf16.mxu0 %v3369
        %3433 = vmatpush1.bf16.msra.mxu0 %v3368
        %3434 = vmatprep.subr.bf16.mxu0 %v3371
        %3435 = vmatpush1.bf16.msra.mxu0 %v3370
        %3436 = vmatprep.subr.bf16.mxu0 %v3373
        %3437 = vmatpush1.bf16.msra.mxu0 %v3372
        %3438 = vmatprep.subr.bf16.mxu0 %v3375
        %3439 = vmatpush1.bf16.msra.mxu0 %v3374
        %3440 = vmatprep.subr.bf16.mxu0 %v3377
        %3441 = vmatpush1.bf16.msra.mxu0 %v3376
        %3442 = vmatprep.mubr.bf16.mxu0 %v3210
        %3443 = vmatmul.mubr.bf16.gmra.mrb[0].mxu0 %v3209
        %v3444 = vpop.f32.mrb[0].mxu0
        %v3445 = vadd.f32 0.0, %v3444
        %v3446 = vpop.f32.mrb[0].mxu0
        %v3447 = vadd.f32 0.0, %v3446
        %v3448 = vpop.f32.mrb[0].mxu0
        %v3449 = vadd.f32 0.0, %v3448
        %v3450 = vpop.f32.mrb[0].mxu0
        %v3451 = vadd.f32 0.0, %v3450
        %3452 = vmatprep.mubr.bf16.mxu0 %v3212
        %3453 = vmatmul.mubr.bf16.gmra.mrb[0].mxu0 %v3211
        %v3454 = vpop.f32.mrb[0].mxu0
        %v3455 = vadd.f32 0.0, %v3454
        %v3456 = vpop.f32.mrb[0].mxu0
        %v3457 = vadd.f32 0.0, %v3456
        %v3458 = vpop.f32.mrb[0].mxu0
        %v3459 = vadd.f32 0.0, %v3458
        %v3460 = vpop.f32.mrb[0].mxu0
        %v3461 = vadd.f32 0.0, %v3460
        %3462 = vmatprep.mubr.bf16.mxu0 %v3214
        %3463 = vmatmul.mubr.bf16.gmra.mrb[0].mxu0 %v3213
        %v3464 = vpop.f32.mrb[0].mxu0
        %v3465 = vadd.f32 0.0, %v3464
        %v3466 = vpop.f32.mrb[0].mxu0
        %v3467 = vadd.f32 0.0, %v3466
        %v3468 = vpop.f32.mrb[0].mxu0
        %v3469 = vadd.f32 0.0, %v3468
        %v3470 = vpop.f32.mrb[0].mxu0
        %v3471 = vadd.f32 0.0, %v3470
        %3472 = vmatprep.mubr.bf16.mxu0 %v3216
        %3473 = vmatmul.mubr.bf16.gmra.mrb[0].mxu0 %v3215
        %v3474 = vpop.f32.mrb[0].mxu0
        %v3475 = vadd.f32 0.0, %v3474
        %v3476 = vpop.f32.mrb[0].mxu0
        %v3477 = vadd.f32 0.0, %v3476
        %v3478 = vpop.f32.mrb[0].mxu0
        %v3479 = vadd.f32 0.0, %v3478
        %v3480 = vpop.f32.mrb[0].mxu0
        %v3481 = vadd.f32 0.0, %v3480
        %3482 = vdwg.mxu0
        %v3483 = vadd.f32 %v3065, %v3445
        %v3484 = vadd.f32 %v3066, %v3447
        %v3485 = vadd.f32 %v3067, %v3449
        %v3486 = vadd.f32 %v3068, %v3451
        %v3487 = vadd.f32 %v3069, %v3455
        %v3488 = vadd.f32 %v3070, %v3457
        %v3489 = vadd.f32 %v3071, %v3459
        %v3490 = vadd.f32 %v3072, %v3461
        %v3491 = vadd.f32 %v3073, %v3465
        %v3492 = vadd.f32 %v3074, %v3467
        %v3493 = vadd.f32 %v3075, %v3469
        %v3494 = vadd.f32 %v3076, %v3471
        %v3495 = vadd.f32 %v3077, %v3475
        %v3496 = vadd.f32 %v3078, %v3477
        %v3497 = vadd.f32 %v3079, %v3479
        %v3498 = vadd.f32 %v3080, %v3481
        %v3499 = vld [vmem:[%s2774] sm:$0xfc]
        %v3500 = vld [vmem:[%s2774 + $0x8] sm:$0xfc]
        %v3501 = vld [vmem:[%s2774 + $0x10] sm:$0x3]
        %v3502 = vld [vmem:[%s2774 + $0x18] sm:$0x3]
        %v3503 = vld [vmem:[%s2774 + $0x20] sm:$0xfc]
        %v3504 = vld [vmem:[%s2774 + $0x28] sm:$0xfc]
        %v3505 = vld [vmem:[%s2774 + $0x30] sm:$0x3]
        %v3506 = vld [vmem:[%s2774 + $0x38] sm:$0x3]
        %v3507 = vld [vmem:[%s2774 + $0x40] sm:$0xfc]
        %v3508 = vld [vmem:[%s2774 + $0x48] sm:$0xfc]
        %v3509 = vld [vmem:[%s2774 + $0x50] sm:$0x3]
        %v3510 = vld [vmem:[%s2774 + $0x58] sm:$0x3]
        %v3511 = vld [vmem:[%s2774 + $0x60] sm:$0xfc]
        %v3512 = vld [vmem:[%s2774 + $0x68] sm:$0xfc]
        %v3513 = vld [vmem:[%s2774 + $0x70] sm:$0x3]
        %v3514 = vld [vmem:[%s2774 + $0x78] sm:$0x3]
        %v3515 = vld [vmem:[%s2774 + $0x80] sm:$0xfc]
        %v3516 = vld [vmem:[%s2774 + $0x88] sm:$0xfc]
        %v3517 = vld [vmem:[%s2774 + $0x90] sm:$0x3]
        %v3518 = vld [vmem:[%s2774 + $0x98] sm:$0x3]
        %v3519 = vld [vmem:[%s2774 + $0xa0] sm:$0xfc]
        %v3520 = vld [vmem:[%s2774 + $0xa8] sm:$0xfc]
        %v3521 = vld [vmem:[%s2774 + $0xb0] sm:$0x3]
        %v3522 = vld [vmem:[%s2774 + $0xb8] sm:$0x3]
        %v3523 = vld [vmem:[%s2774 + $0xc0] sm:$0xfc]
        %v3524 = vld [vmem:[%s2774 + $0xc8] sm:$0xfc]
        %v3525 = vld [vmem:[%s2774 + $0xd0] sm:$0x3]
        %v3526 = vld [vmem:[%s2774 + $0xd8] sm:$0x3]
        %v3527 = vld [vmem:[%s2774 + $0xe0] sm:$0xfc]
        %v3528 = vld [vmem:[%s2774 + $0xe8] sm:$0xfc]
        %v3529 = vld [vmem:[%s2774 + $0xf0] sm:$0x3]
        %v3530 = vld [vmem:[%s2774 + $0xf8] sm:$0x3]
        %v3563 = vrot.slane %v3499, 2
        %v3564 = vrot.slane %v3501, 2
        %v3565 = vsel %vm1277, %v3563, %v3564
        %v3566 = vrot.slane %v3500, 2
        %v3567 = vrot.slane %v3502, 2
        %v3568 = vsel %vm1277, %v3566, %v3567
        %v3569 = vrot.slane %v3503, 2
        %v3570 = vrot.slane %v3505, 2
        %v3571 = vsel %vm1277, %v3569, %v3570
        %v3572 = vrot.slane %v3504, 2
        %v3573 = vrot.slane %v3506, 2
        %v3574 = vsel %vm1277, %v3572, %v3573
        %v3575 = vrot.slane %v3507, 2
        %v3576 = vrot.slane %v3509, 2
        %v3577 = vsel %vm1277, %v3575, %v3576
        %v3578 = vrot.slane %v3508, 2
        %v3579 = vrot.slane %v3510, 2
        %v3580 = vsel %vm1277, %v3578, %v3579
        %v3581 = vrot.slane %v3511, 2
        %v3582 = vrot.slane %v3513, 2
        %v3583 = vsel %vm1277, %v3581, %v3582
        %v3584 = vrot.slane %v3512, 2
        %v3585 = vrot.slane %v3514, 2
        %v3586 = vsel %vm1277, %v3584, %v3585
        %v3587 = vrot.slane %v3515, 2
        %v3588 = vrot.slane %v3517, 2
        %v3589 = vsel %vm1277, %v3587, %v3588
        %v3590 = vrot.slane %v3516, 2
        %v3591 = vrot.slane %v3518, 2
        %v3592 = vsel %vm1277, %v3590, %v3591
        %v3593 = vrot.slane %v3519, 2
        %v3594 = vrot.slane %v3521, 2
        %v3595 = vsel %vm1277, %v3593, %v3594
        %v3596 = vrot.slane %v3520, 2
        %v3597 = vrot.slane %v3522, 2
        %v3598 = vsel %vm1277, %v3596, %v3597
        %v3599 = vrot.slane %v3523, 2
        %v3600 = vrot.slane %v3525, 2
        %v3601 = vsel %vm1277, %v3599, %v3600
        %v3602 = vrot.slane %v3524, 2
        %v3603 = vrot.slane %v3526, 2
        %v3604 = vsel %vm1277, %v3602, %v3603
        %v3605 = vrot.slane %v3527, 2
        %v3606 = vrot.slane %v3529, 2
        %v3607 = vsel %vm1277, %v3605, %v3606
        %v3608 = vrot.slane %v3528, 2
        %v3609 = vrot.slane %v3530, 2
        %v3610 = vsel %vm1277, %v3608, %v3609
        %v3627 = vpack.c.bf16 %v3571, %v3565
        %v3628 = vpack.c.bf16 %v3574, %v3568
        %v3629 = vpack.c.bf16 %v3583, %v3577
        %v3630 = vpack.c.bf16 %v3586, %v3580
        %v3631 = vpack.c.bf16 %v3595, %v3589
        %v3632 = vpack.c.bf16 %v3598, %v3592
        %v3633 = vpack.c.bf16 %v3607, %v3601
        %v3634 = vpack.c.bf16 %v3610, %v3604
        %s3635 = scalar_lea.vmem [#allocation7], 2048
        %v3636 = vld [vmem:[%s3635] sm:$0xff]
        %v3637 = vld [vmem:[%s3635 + $0x8] sm:$0xff]
        %v3638 = vld [vmem:[%s3635 + $0x10] sm:$0xff]
        %v3639 = vld [vmem:[%s3635 + $0x18] sm:$0xff]
        %v3640 = vld [vmem:[%s3635 + $0x20] sm:$0xff]
        %v3641 = vld [vmem:[%s3635 + $0x28] sm:$0xff]
        %v3642 = vld [vmem:[%s3635 + $0x30] sm:$0xff]
        %v3643 = vld [vmem:[%s3635 + $0x38] sm:$0xff]
        %v3644 = vld [vmem:[%s3635 + $0x40] sm:$0xff]
        %v3645 = vld [vmem:[%s3635 + $0x48] sm:$0xff]
        %v3646 = vld [vmem:[%s3635 + $0x50] sm:$0xff]
        %v3647 = vld [vmem:[%s3635 + $0x58] sm:$0xff]
        %v3648 = vld [vmem:[%s3635 + $0x60] sm:$0xff]
        %v3649 = vld [vmem:[%s3635 + $0x68] sm:$0xff]
        %v3650 = vld [vmem:[%s3635 + $0x70] sm:$0xff]
        %v3651 = vld [vmem:[%s3635 + $0x78] sm:$0xff]
        %v3652 = vld [vmem:[%s3635 + $0x80] sm:$0xff]
        %v3653 = vld [vmem:[%s3635 + $0x88] sm:$0xff]
        %v3654 = vld [vmem:[%s3635 + $0x90] sm:$0xff]
        %v3655 = vld [vmem:[%s3635 + $0x98] sm:$0xff]
        %v3656 = vld [vmem:[%s3635 + $0xa0] sm:$0xff]
        %v3657 = vld [vmem:[%s3635 + $0xa8] sm:$0xff]
        %v3658 = vld [vmem:[%s3635 + $0xb0] sm:$0xff]
        %v3659 = vld [vmem:[%s3635 + $0xb8] sm:$0xff]
        %v3660 = vld [vmem:[%s3635 + $0xc0] sm:$0xff]
        %v3661 = vld [vmem:[%s3635 + $0xc8] sm:$0xff]
        %v3662 = vld [vmem:[%s3635 + $0xd0] sm:$0xff]
        %v3663 = vld [vmem:[%s3635 + $0xd8] sm:$0xff]
        %v3664 = vld [vmem:[%s3635 + $0xe0] sm:$0xff]
        %v3665 = vld [vmem:[%s3635 + $0xe8] sm:$0xff]
        %v3666 = vld [vmem:[%s3635 + $0xf0] sm:$0xff]
        %v3667 = vld [vmem:[%s3635 + $0xf8] sm:$0xff]
        %v3700 = vunpack.c.l.b16 %v3636
        %v3701 = vunpack.c.h.b16 %v3636
        %v3702 = vunpack.c.l.b16 %v3637
        %v3703 = vunpack.c.h.b16 %v3637
        %v3704 = vunpack.c.l.b16 %v3638
        %v3705 = vunpack.c.h.b16 %v3638
        %v3706 = vunpack.c.l.b16 %v3639
        %v3707 = vunpack.c.h.b16 %v3639
        %v3708 = vunpack.c.l.b16 %v3640
        %v3709 = vunpack.c.h.b16 %v3640
        %v3710 = vunpack.c.l.b16 %v3641
        %v3711 = vunpack.c.h.b16 %v3641
        %v3712 = vunpack.c.l.b16 %v3642
        %v3713 = vunpack.c.h.b16 %v3642
        %v3714 = vunpack.c.l.b16 %v3643
        %v3715 = vunpack.c.h.b16 %v3643
        %v3716 = vunpack.c.l.b16 %v3644
        %v3717 = vunpack.c.h.b16 %v3644
        %v3718 = vunpack.c.l.b16 %v3645
        %v3719 = vunpack.c.h.b16 %v3645
        %v3720 = vunpack.c.l.b16 %v3646
        %v3721 = vunpack.c.h.b16 %v3646
        %v3722 = vunpack.c.l.b16 %v3647
        %v3723 = vunpack.c.h.b16 %v3647
        %v3724 = vunpack.c.l.b16 %v3648
        %v3725 = vunpack.c.h.b16 %v3648
        %v3726 = vunpack.c.l.b16 %v3649
        %v3727 = vunpack.c.h.b16 %v3649
        %v3728 = vunpack.c.l.b16 %v3650
        %v3729 = vunpack.c.h.b16 %v3650
        %v3730 = vunpack.c.l.b16 %v3651
        %v3731 = vunpack.c.h.b16 %v3651
        %v3732 = vunpack.c.l.b16 %v3652
        %v3733 = vunpack.c.h.b16 %v3652
        %v3734 = vunpack.c.l.b16 %v3653
        %v3735 = vunpack.c.h.b16 %v3653
        %v3736 = vunpack.c.l.b16 %v3654
        %v3737 = vunpack.c.h.b16 %v3654
        %v3738 = vunpack.c.l.b16 %v3655
        %v3739 = vunpack.c.h.b16 %v3655
        %v3740 = vunpack.c.l.b16 %v3656
        %v3741 = vunpack.c.h.b16 %v3656
        %v3742 = vunpack.c.l.b16 %v3657
        %v3743 = vunpack.c.h.b16 %v3657
        %v3744 = vunpack.c.l.b16 %v3658
        %v3745 = vunpack.c.h.b16 %v3658
        %v3746 = vunpack.c.l.b16 %v3659
        %v3747 = vunpack.c.h.b16 %v3659
        %v3748 = vunpack.c.l.b16 %v3660
        %v3749 = vunpack.c.h.b16 %v3660
        %v3750 = vunpack.c.l.b16 %v3661
        %v3751 = vunpack.c.h.b16 %v3661
        %v3752 = vunpack.c.l.b16 %v3662
        %v3753 = vunpack.c.h.b16 %v3662
        %v3754 = vunpack.c.l.b16 %v3663
        %v3755 = vunpack.c.h.b16 %v3663
        %v3756 = vunpack.c.l.b16 %v3664
        %v3757 = vunpack.c.h.b16 %v3664
        %v3758 = vunpack.c.l.b16 %v3665
        %v3759 = vunpack.c.h.b16 %v3665
        %v3760 = vunpack.c.l.b16 %v3666
        %v3761 = vunpack.c.h.b16 %v3666
        %v3762 = vunpack.c.l.b16 %v3667
        %v3763 = vunpack.c.h.b16 %v3667
        %v3764 = vpack.c.b16 %v3702, %v3700
        %v3765 = vpack.c.b16 %v3703, %v3701
        %v3766 = vpack.c.b16 %v3706, %v3704
        %v3767 = vpack.c.b16 %v3707, %v3705
        %v3768 = vpack.c.b16 %v3710, %v3708
        %v3769 = vpack.c.b16 %v3711, %v3709
        %v3770 = vpack.c.b16 %v3714, %v3712
        %v3771 = vpack.c.b16 %v3715, %v3713
        %v3772 = vpack.c.b16 %v3718, %v3716
        %v3773 = vpack.c.b16 %v3719, %v3717
        %v3774 = vpack.c.b16 %v3722, %v3720
        %v3775 = vpack.c.b16 %v3723, %v3721
        %v3776 = vpack.c.b16 %v3726, %v3724
        %v3777 = vpack.c.b16 %v3727, %v3725
        %v3778 = vpack.c.b16 %v3730, %v3728
        %v3779 = vpack.c.b16 %v3731, %v3729
        %v3780 = vpack.c.b16 %v3734, %v3732
        %v3781 = vpack.c.b16 %v3735, %v3733
        %v3782 = vpack.c.b16 %v3738, %v3736
        %v3783 = vpack.c.b16 %v3739, %v3737
        %v3784 = vpack.c.b16 %v3742, %v3740
        %v3785 = vpack.c.b16 %v3743, %v3741
        %v3786 = vpack.c.b16 %v3746, %v3744
        %v3787 = vpack.c.b16 %v3747, %v3745
        %v3788 = vpack.c.b16 %v3750, %v3748
        %v3789 = vpack.c.b16 %v3751, %v3749
        %v3790 = vpack.c.b16 %v3754, %v3752
        %v3791 = vpack.c.b16 %v3755, %v3753
        %v3792 = vpack.c.b16 %v3758, %v3756
        %v3793 = vpack.c.b16 %v3759, %v3757
        %v3794 = vpack.c.b16 %v3762, %v3760
        %v3795 = vpack.c.b16 %v3763, %v3761
        %3828 = vmatprep.subr.bf16.mxu0 %v3765
        %3829 = vmatpush1.bf16.msra.mxu0 %v3764
        %3830 = vmatprep.subr.bf16.mxu0 %v3767
        %3831 = vmatpush1.bf16.msra.mxu0 %v3766
        %3832 = vmatprep.subr.bf16.mxu0 %v3769
        %3833 = vmatpush1.bf16.msra.mxu0 %v3768
        %3834 = vmatprep.subr.bf16.mxu0 %v3771
        %3835 = vmatpush1.bf16.msra.mxu0 %v3770
        %3836 = vmatprep.subr.bf16.mxu0 %v3773
        %3837 = vmatpush1.bf16.msra.mxu0 %v3772
        %3838 = vmatprep.subr.bf16.mxu0 %v3775
        %3839 = vmatpush1.bf16.msra.mxu0 %v3774
        %3840 = vmatprep.subr.bf16.mxu0 %v3777
        %3841 = vmatpush1.bf16.msra.mxu0 %v3776
        %3842 = vmatprep.subr.bf16.mxu0 %v3779
        %3843 = vmatpush1.bf16.msra.mxu0 %v3778
        %3844 = vmatprep.subr.bf16.mxu0 %v3781
        %3845 = vmatpush1.bf16.msra.mxu0 %v3780
        %3846 = vmatprep.subr.bf16.mxu0 %v3783
        %3847 = vmatpush1.bf16.msra.mxu0 %v3782
        %3848 = vmatprep.subr.bf16.mxu0 %v3785
        %3849 = vmatpush1.bf16.msra.mxu0 %v3784
        %3850 = vmatprep.subr.bf16.mxu0 %v3787
        %3851 = vmatpush1.bf16.msra.mxu0 %v3786
        %3852 = vmatprep.subr.bf16.mxu0 %v3789
        %3853 = vmatpush1.bf16.msra.mxu0 %v3788
        %3854 = vmatprep.subr.bf16.mxu0 %v3791
        %3855 = vmatpush1.bf16.msra.mxu0 %v3790
        %3856 = vmatprep.subr.bf16.mxu0 %v3793
        %3857 = vmatpush1.bf16.msra.mxu0 %v3792
        %3858 = vmatprep.subr.bf16.mxu0 %v3795
        %3859 = vmatpush1.bf16.msra.mxu0 %v3794
        %3860 = vmatprep.mubr.bf16.mxu0 %v3628
        %3861 = vmatmul.mubr.bf16.gmra.mrb[0].mxu0 %v3627
        %v3862 = vpop.f32.mrb[0].mxu0
        %v3863 = vadd.f32 0.0, %v3862
        %v3864 = vpop.f32.mrb[0].mxu0
        %v3865 = vadd.f32 0.0, %v3864
        %v3866 = vpop.f32.mrb[0].mxu0
        %v3867 = vadd.f32 0.0, %v3866
        %v3868 = vpop.f32.mrb[0].mxu0
        %v3869 = vadd.f32 0.0, %v3868
        %3870 = vmatprep.mubr.bf16.mxu0 %v3630
        %3871 = vmatmul.mubr.bf16.gmra.mrb[0].mxu0 %v3629
        %v3872 = vpop.f32.mrb[0].mxu0
        %v3873 = vadd.f32 0.0, %v3872
        %v3874 = vpop.f32.mrb[0].mxu0
        %v3875 = vadd.f32 0.0, %v3874
        %v3876 = vpop.f32.mrb[0].mxu0
        %v3877 = vadd.f32 0.0, %v3876
        %v3878 = vpop.f32.mrb[0].mxu0
        %v3879 = vadd.f32 0.0, %v3878
        %3880 = vmatprep.mubr.bf16.mxu0 %v3632
        %3881 = vmatmul.mubr.bf16.gmra.mrb[0].mxu0 %v3631
        %v3882 = vpop.f32.mrb[0].mxu0
        %v3883 = vadd.f32 0.0, %v3882
        %v3884 = vpop.f32.mrb[0].mxu0
        %v3885 = vadd.f32 0.0, %v3884
        %v3886 = vpop.f32.mrb[0].mxu0
        %v3887 = vadd.f32 0.0, %v3886
        %v3888 = vpop.f32.mrb[0].mxu0
        %v3889 = vadd.f32 0.0, %v3888
        %3890 = vmatprep.mubr.bf16.mxu0 %v3634
        %3891 = vmatmul.mubr.bf16.gmra.mrb[0].mxu0 %v3633
        %v3892 = vpop.f32.mrb[0].mxu0
        %v3893 = vadd.f32 0.0, %v3892
        %v3894 = vpop.f32.mrb[0].mxu0
        %v3895 = vadd.f32 0.0, %v3894
        %v3896 = vpop.f32.mrb[0].mxu0
        %v3897 = vadd.f32 0.0, %v3896
        %v3898 = vpop.f32.mrb[0].mxu0
        %v3899 = vadd.f32 0.0, %v3898
        %3900 = vdwg.mxu0
        %v3901 = vadd.f32 %v3483, %v3863
        %v3902 = vadd.f32 %v3484, %v3865
        %v3903 = vadd.f32 %v3485, %v3867
        %v3904 = vadd.f32 %v3486, %v3869
        %v3905 = vadd.f32 %v3487, %v3873
        %v3906 = vadd.f32 %v3488, %v3875
        %v3907 = vadd.f32 %v3489, %v3877
        %v3908 = vadd.f32 %v3490, %v3879
        %v3909 = vadd.f32 %v3491, %v3883
        %v3910 = vadd.f32 %v3492, %v3885
        %v3911 = vadd.f32 %v3493, %v3887
        %v3912 = vadd.f32 %v3494, %v3889
        %v3913 = vadd.f32 %v3495, %v3893
        %v3914 = vadd.f32 %v3496, %v3895
        %v3915 = vadd.f32 %v3497, %v3897
        %v3916 = vadd.f32 %v3498, %v3899
        %v3917 = vmax.f32 %v3901, 0.0
        %v3918 = vmax.f32 %v3902, 0.0
        %v3919 = vmax.f32 %v3903, 0.0
        %v3920 = vmax.f32 %v3904, 0.0
        %v3921 = vmax.f32 %v3905, 0.0
        %v3922 = vmax.f32 %v3906, 0.0
        %v3923 = vmax.f32 %v3907, 0.0
        %v3924 = vmax.f32 %v3908, 0.0
        %v3925 = vmax.f32 %v3909, 0.0
        %v3926 = vmax.f32 %v3910, 0.0
        %v3927 = vmax.f32 %v3911, 0.0
        %v3928 = vmax.f32 %v3912, 0.0
        %v3929 = vmax.f32 %v3913, 0.0
        %v3930 = vmax.f32 %v3914, 0.0
        %v3931 = vmax.f32 %v3915, 0.0
        %v3932 = vmax.f32 %v3916, 0.0
        %v3949 = vrot.slane %v3917, 7
        %v3950 = vrot.slane %v3918, 7
        %v3951 = vrot.slane %v3919, 7
        %v3952 = vrot.slane %v3920, 7
        %v3953 = vrot.slane %v3921, 7
        %v3954 = vrot.slane %v3922, 7
        %v3955 = vrot.slane %v3923, 7
        %v3956 = vrot.slane %v3924, 7
        %v3957 = vrot.slane %v3925, 7
        %v3958 = vrot.slane %v3926, 7
        %v3959 = vrot.slane %v3927, 7
        %v3960 = vrot.slane %v3928, 7
        %v3961 = vrot.slane %v3929, 7
        %v3962 = vrot.slane %v3930, 7
        %v3963 = vrot.slane %v3931, 7
        %v3964 = vrot.slane %v3932, 7
        %s3981 = scalar_lea.vmem [#allocation3], 32
        %3982 = vst [vmem:[%s3981] sm:$0xfe] %v3949
        %3983 = vst [vmem:[%s3981 + $0x8] sm:$0xfe] %v3950
        %3984 = vst [vmem:[%s3981 + $0x10] sm:$0x1] %v3949
        %3985 = vst [vmem:[%s3981 + $0x18] sm:$0x1] %v3950
        %3986 = vst [vmem:[%s3981 + $0x20] sm:$0xfe] %v3951
        %3987 = vst [vmem:[%s3981 + $0x28] sm:$0xfe] %v3952
        %3988 = vst [vmem:[%s3981 + $0x30] sm:$0x1] %v3951
        %3989 = vst [vmem:[%s3981 + $0x38] sm:$0x1] %v3952
        %3990 = vst [vmem:[%s3981 + $0x40] sm:$0xfe] %v3953
        %3991 = vst [vmem:[%s3981 + $0x48] sm:$0xfe] %v3954
        %3992 = vst [vmem:[%s3981 + $0x50] sm:$0x1] %v3953
        %3993 = vst [vmem:[%s3981 + $0x58] sm:$0x1] %v3954
        %3994 = vst [vmem:[%s3981 + $0x60] sm:$0xfe] %v3955
        %3995 = vst [vmem:[%s3981 + $0x68] sm:$0xfe] %v3956
        %3996 = vst [vmem:[%s3981 + $0x70] sm:$0x1] %v3955
        %3997 = vst [vmem:[%s3981 + $0x78] sm:$0x1] %v3956
        %3998 = vst [vmem:[%s3981 + $0x80] sm:$0xfe] %v3957
        %3999 = vst [vmem:[%s3981 + $0x88] sm:$0xfe] %v3958
        %4000 = vst [vmem:[%s3981 + $0x90] sm:$0x1] %v3957
        %4001 = vst [vmem:[%s3981 + $0x98] sm:$0x1] %v3958
        %4002 = vst [vmem:[%s3981 + $0xa0] sm:$0xfe] %v3959
        %4003 = vst [vmem:[%s3981 + $0xa8] sm:$0xfe] %v3960
        %4004 = vst [vmem:[%s3981 + $0xb0] sm:$0x1] %v3959
        %4005 = vst [vmem:[%s3981 + $0xb8] sm:$0x1] %v3960
        %4006 = vst [vmem:[%s3981 + $0xc0] sm:$0xfe] %v3961
        %4007 = vst [vmem:[%s3981 + $0xc8] sm:$0xfe] %v3962
        %4008 = vst [vmem:[%s3981 + $0xd0] sm:$0x1] %v3961
        %4009 = vst [vmem:[%s3981 + $0xd8] sm:$0x1] %v3962
        %4010 = vst [vmem:[%s3981 + $0xe0] sm:$0xfe] %v3963
        %4011 = vst [vmem:[%s3981 + $0xe8] sm:$0xfe] %v3964
        %4012 = vst [vmem:[%s3981 + $0xf0] sm:$0x1] %v3963
        %4013 = vst [vmem:[%s3981 + $0xf8] sm:$0x1] %v3964
        %s4014 = scalar_lea.vmem [#allocation9], 2
        %v4015 = vld [vmem:[%s4014] sm:$0x3]
        %v4017 = vlaneseq
        %v4018 = vshrl.u32 %v4017, 7
        %v4019 = vsub.s32 0, %v4018
        %v4020 = vrot.slane %v4015, %v4019
        %v4021 = vlaneseq
        %v4022 = vshrl.u32 %v4021, 7
        %v4023 = vsub.s32 1, %v4022
        %v4024 = vrot.slane %v4015, %v4023
        %v4027 = vld [vmem:[#allocation3] sm:$0xff]
        %v4028 = vld [vmem:[#allocation3 + $0x8] sm:$0xff]
        %v4029 = vld [vmem:[#allocation3 + $0x20] sm:$0xff]
        %v4030 = vld [vmem:[#allocation3 + $0x28] sm:$0xff]
        %v4031 = vld [vmem:[#allocation3 + $0x40] sm:$0xff]
        %v4032 = vld [vmem:[#allocation3 + $0x48] sm:$0xff]
        %v4033 = vld [vmem:[#allocation3 + $0x60] sm:$0xff]
        %v4034 = vld [vmem:[#allocation3 + $0x68] sm:$0xff]
        %v4035 = vld [vmem:[#allocation3 + $0x80] sm:$0xff]
        %v4036 = vld [vmem:[#allocation3 + $0x88] sm:$0xff]
        %v4037 = vld [vmem:[#allocation3 + $0xa0] sm:$0xff]
        %v4038 = vld [vmem:[#allocation3 + $0xa8] sm:$0xff]
        %v4039 = vld [vmem:[#allocation3 + $0xc0] sm:$0xff]
        %v4040 = vld [vmem:[#allocation3 + $0xc8] sm:$0xff]
        %v4041 = vld [vmem:[#allocation3 + $0xe0] sm:$0xff]
        %v4042 = vld [vmem:[#allocation3 + $0xe8] sm:$0xff]
        %v4043 = vpack.c.bf16 %v4029, %v4027
        %v4044 = vpack.c.bf16 %v4030, %v4028
        %v4045 = vpack.c.bf16 %v4033, %v4031
        %v4046 = vpack.c.bf16 %v4034, %v4032
        %v4047 = vpack.c.bf16 %v4037, %v4035
        %v4048 = vpack.c.bf16 %v4038, %v4036
        %v4049 = vpack.c.bf16 %v4041, %v4039
        %v4050 = vpack.c.bf16 %v4042, %v4040
        %s4051 = scalar_lea.vmem [#allocation7], 2304
        %v4052 = vld [vmem:[%s4051] sm:$0xff]
        %v4053 = vld [vmem:[%s4051 + $0x8] sm:$0xff]
        %v4054 = vld [vmem:[%s4051 + $0x10] sm:$0xff]
        %v4055 = vld [vmem:[%s4051 + $0x18] sm:$0xff]
        %v4056 = vld [vmem:[%s4051 + $0x20] sm:$0xff]
        %v4057 = vld [vmem:[%s4051 + $0x28] sm:$0xff]
        %v4058 = vld [vmem:[%s4051 + $0x30] sm:$0xff]
        %v4059 = vld [vmem:[%s4051 + $0x38] sm:$0xff]
        %v4060 = vld [vmem:[%s4051 + $0x40] sm:$0xff]
        %v4061 = vld [vmem:[%s4051 + $0x48] sm:$0xff]
        %v4062 = vld [vmem:[%s4051 + $0x50] sm:$0xff]
        %v4063 = vld [vmem:[%s4051 + $0x58] sm:$0xff]
        %v4064 = vld [vmem:[%s4051 + $0x60] sm:$0xff]
        %v4065 = vld [vmem:[%s4051 + $0x68] sm:$0xff]
        %v4066 = vld [vmem:[%s4051 + $0x70] sm:$0xff]
        %v4067 = vld [vmem:[%s4051 + $0x78] sm:$0xff]
        %v4068 = vld [vmem:[%s4051 + $0x80] sm:$0xff]
        %v4069 = vld [vmem:[%s4051 + $0x88] sm:$0xff]
        %v4070 = vld [vmem:[%s4051 + $0x90] sm:$0xff]
        %v4071 = vld [vmem:[%s4051 + $0x98] sm:$0xff]
        %v4072 = vld [vmem:[%s4051 + $0xa0] sm:$0xff]
        %v4073 = vld [vmem:[%s4051 + $0xa8] sm:$0xff]
        %v4074 = vld [vmem:[%s4051 + $0xb0] sm:$0xff]
        %v4075 = vld [vmem:[%s4051 + $0xb8] sm:$0xff]
        %v4076 = vld [vmem:[%s4051 + $0xc0] sm:$0xff]
        %v4077 = vld [vmem:[%s4051 + $0xc8] sm:$0xff]
        %v4078 = vld [vmem:[%s4051 + $0xd0] sm:$0xff]
        %v4079 = vld [vmem:[%s4051 + $0xd8] sm:$0xff]
        %v4080 = vld [vmem:[%s4051 + $0xe0] sm:$0xff]
        %v4081 = vld [vmem:[%s4051 + $0xe8] sm:$0xff]
        %v4082 = vld [vmem:[%s4051 + $0xf0] sm:$0xff]
        %v4083 = vld [vmem:[%s4051 + $0xf8] sm:$0xff]
        %v4116 = vunpack.c.l.b16 %v4052
        %v4117 = vunpack.c.h.b16 %v4052
        %v4118 = vunpack.c.l.b16 %v4053
        %v4119 = vunpack.c.h.b16 %v4053
        %v4120 = vunpack.c.l.b16 %v4054
        %v4121 = vunpack.c.h.b16 %v4054
        %v4122 = vunpack.c.l.b16 %v4055
        %v4123 = vunpack.c.h.b16 %v4055
        %v4124 = vunpack.c.l.b16 %v4056
        %v4125 = vunpack.c.h.b16 %v4056
        %v4126 = vunpack.c.l.b16 %v4057
        %v4127 = vunpack.c.h.b16 %v4057
        %v4128 = vunpack.c.l.b16 %v4058
        %v4129 = vunpack.c.h.b16 %v4058
        %v4130 = vunpack.c.l.b16 %v4059
        %v4131 = vunpack.c.h.b16 %v4059
        %v4132 = vunpack.c.l.b16 %v4060
        %v4133 = vunpack.c.h.b16 %v4060
        %v4134 = vunpack.c.l.b16 %v4061
        %v4135 = vunpack.c.h.b16 %v4061
        %v4136 = vunpack.c.l.b16 %v4062
        %v4137 = vunpack.c.h.b16 %v4062
        %v4138 = vunpack.c.l.b16 %v4063
        %v4139 = vunpack.c.h.b16 %v4063
        %v4140 = vunpack.c.l.b16 %v4064
        %v4141 = vunpack.c.h.b16 %v4064
        %v4142 = vunpack.c.l.b16 %v4065
        %v4143 = vunpack.c.h.b16 %v4065
        %v4144 = vunpack.c.l.b16 %v4066
        %v4145 = vunpack.c.h.b16 %v4066
        %v4146 = vunpack.c.l.b16 %v4067
        %v4147 = vunpack.c.h.b16 %v4067
        %v4148 = vunpack.c.l.b16 %v4068
        %v4149 = vunpack.c.h.b16 %v4068
        %v4150 = vunpack.c.l.b16 %v4069
        %v4151 = vunpack.c.h.b16 %v4069
        %v4152 = vunpack.c.l.b16 %v4070
        %v4153 = vunpack.c.h.b16 %v4070
        %v4154 = vunpack.c.l.b16 %v4071
        %v4155 = vunpack.c.h.b16 %v4071
        %v4156 = vunpack.c.l.b16 %v4072
        %v4157 = vunpack.c.h.b16 %v4072
        %v4158 = vunpack.c.l.b16 %v4073
        %v4159 = vunpack.c.h.b16 %v4073
        %v4160 = vunpack.c.l.b16 %v4074
        %v4161 = vunpack.c.h.b16 %v4074
        %v4162 = vunpack.c.l.b16 %v4075
        %v4163 = vunpack.c.h.b16 %v4075
        %v4164 = vunpack.c.l.b16 %v4076
        %v4165 = vunpack.c.h.b16 %v4076
        %v4166 = vunpack.c.l.b16 %v4077
        %v4167 = vunpack.c.h.b16 %v4077
        %v4168 = vunpack.c.l.b16 %v4078
        %v4169 = vunpack.c.h.b16 %v4078
        %v4170 = vunpack.c.l.b16 %v4079
        %v4171 = vunpack.c.h.b16 %v4079
        %v4172 = vunpack.c.l.b16 %v4080
        %v4173 = vunpack.c.h.b16 %v4080
        %v4174 = vunpack.c.l.b16 %v4081
        %v4175 = vunpack.c.h.b16 %v4081
        %v4176 = vunpack.c.l.b16 %v4082
        %v4177 = vunpack.c.h.b16 %v4082
        %v4178 = vunpack.c.l.b16 %v4083
        %v4179 = vunpack.c.h.b16 %v4083
        %v4180 = vpack.c.b16 %v4118, %v4116
        %v4181 = vpack.c.b16 %v4119, %v4117
        %v4182 = vpack.c.b16 %v4122, %v4120
        %v4183 = vpack.c.b16 %v4123, %v4121
        %v4184 = vpack.c.b16 %v4126, %v4124
        %v4185 = vpack.c.b16 %v4127, %v4125
        %v4186 = vpack.c.b16 %v4130, %v4128
        %v4187 = vpack.c.b16 %v4131, %v4129
        %v4188 = vpack.c.b16 %v4134, %v4132
        %v4189 = vpack.c.b16 %v4135, %v4133
        %v4190 = vpack.c.b16 %v4138, %v4136
        %v4191 = vpack.c.b16 %v4139, %v4137
        %v4192 = vpack.c.b16 %v4142, %v4140
        %v4193 = vpack.c.b16 %v4143, %v4141
        %v4194 = vpack.c.b16 %v4146, %v4144
        %v4195 = vpack.c.b16 %v4147, %v4145
        %v4196 = vpack.c.b16 %v4150, %v4148
        %v4197 = vpack.c.b16 %v4151, %v4149
        %v4198 = vpack.c.b16 %v4154, %v4152
        %v4199 = vpack.c.b16 %v4155, %v4153
        %v4200 = vpack.c.b16 %v4158, %v4156
        %v4201 = vpack.c.b16 %v4159, %v4157
        %v4202 = vpack.c.b16 %v4162, %v4160
        %v4203 = vpack.c.b16 %v4163, %v4161
        %v4204 = vpack.c.b16 %v4166, %v4164
        %v4205 = vpack.c.b16 %v4167, %v4165
        %v4206 = vpack.c.b16 %v4170, %v4168
        %v4207 = vpack.c.b16 %v4171, %v4169
        %v4208 = vpack.c.b16 %v4174, %v4172
        %v4209 = vpack.c.b16 %v4175, %v4173
        %v4210 = vpack.c.b16 %v4178, %v4176
        %v4211 = vpack.c.b16 %v4179, %v4177
        %4244 = vmatprep.subr.bf16.mxu0 %v4181
        %4245 = vmatpush1.bf16.msra.mxu0 %v4180
        %4246 = vmatprep.subr.bf16.mxu0 %v4183
        %4247 = vmatpush1.bf16.msra.mxu0 %v4182
        %4248 = vmatprep.subr.bf16.mxu0 %v4185
        %4249 = vmatpush1.bf16.msra.mxu0 %v4184
        %4250 = vmatprep.subr.bf16.mxu0 %v4187
        %4251 = vmatpush1.bf16.msra.mxu0 %v4186
        %4252 = vmatprep.subr.bf16.mxu0 %v4189
        %4253 = vmatpush1.bf16.msra.mxu0 %v4188
        %4254 = vmatprep.subr.bf16.mxu0 %v4191
        %4255 = vmatpush1.bf16.msra.mxu0 %v4190
        %4256 = vmatprep.subr.bf16.mxu0 %v4193
        %4257 = vmatpush1.bf16.msra.mxu0 %v4192
        %4258 = vmatprep.subr.bf16.mxu0 %v4195
        %4259 = vmatpush1.bf16.msra.mxu0 %v4194
        %4260 = vmatprep.subr.bf16.mxu0 %v4197
        %4261 = vmatpush1.bf16.msra.mxu0 %v4196
        %4262 = vmatprep.subr.bf16.mxu0 %v4199
        %4263 = vmatpush1.bf16.msra.mxu0 %v4198
        %4264 = vmatprep.subr.bf16.mxu0 %v4201
        %4265 = vmatpush1.bf16.msra.mxu0 %v4200
        %4266 = vmatprep.subr.bf16.mxu0 %v4203
        %4267 = vmatpush1.bf16.msra.mxu0 %v4202
        %4268 = vmatprep.subr.bf16.mxu0 %v4205
        %4269 = vmatpush1.bf16.msra.mxu0 %v4204
        %4270 = vmatprep.subr.bf16.mxu0 %v4207
        %4271 = vmatpush1.bf16.msra.mxu0 %v4206
        %4272 = vmatprep.subr.bf16.mxu0 %v4209
        %4273 = vmatpush1.bf16.msra.mxu0 %v4208
        %4274 = vmatprep.subr.bf16.mxu0 %v4211
        %4275 = vmatpush1.bf16.msra.mxu0 %v4210
        %4276 = vmatprep.mubr.bf16.mxu0 %v4044
        %4277 = vmatmul.mubr.bf16.gmra.mrb[0].mxu0 %v4043
        %v4278 = vpop.f32.mrb[0].mxu0
        %v4279 = vadd.f32 0.0, %v4278
        %v4280 = vpop.f32.mrb[0].mxu0
        %v4281 = vadd.f32 0.0, %v4280
        %v4282 = vpop.f32.mrb[0].mxu0
        %v4283 = vadd.f32 0.0, %v4282
        %v4284 = vpop.f32.mrb[0].mxu0
        %v4285 = vadd.f32 0.0, %v4284
        %4286 = vmatprep.mubr.bf16.mxu0 %v4046
        %4287 = vmatmul.mubr.bf16.gmra.mrb[0].mxu0 %v4045
        %v4288 = vpop.f32.mrb[0].mxu0
        %v4289 = vadd.f32 0.0, %v4288
        %v4290 = vpop.f32.mrb[0].mxu0
        %v4291 = vadd.f32 0.0, %v4290
        %v4292 = vpop.f32.mrb[0].mxu0
        %v4293 = vadd.f32 0.0, %v4292
        %v4294 = vpop.f32.mrb[0].mxu0
        %v4295 = vadd.f32 0.0, %v4294
        %4296 = vmatprep.mubr.bf16.mxu0 %v4048
        %4297 = vmatmul.mubr.bf16.gmra.mrb[0].mxu0 %v4047
        %v4298 = vpop.f32.mrb[0].mxu0
        %v4299 = vadd.f32 0.0, %v4298
        %v4300 = vpop.f32.mrb[0].mxu0
        %v4301 = vadd.f32 0.0, %v4300
        %v4302 = vpop.f32.mrb[0].mxu0
        %v4303 = vadd.f32 0.0, %v4302
        %v4304 = vpop.f32.mrb[0].mxu0
        %v4305 = vadd.f32 0.0, %v4304
        %4306 = vmatprep.mubr.bf16.mxu0 %v4050
        %4307 = vmatmul.mubr.bf16.gmra.mrb[0].mxu0 %v4049
        %v4308 = vpop.f32.mrb[0].mxu0
        %v4309 = vadd.f32 0.0, %v4308
        %v4310 = vpop.f32.mrb[0].mxu0
        %v4311 = vadd.f32 0.0, %v4310
        %v4312 = vpop.f32.mrb[0].mxu0
        %v4313 = vadd.f32 0.0, %v4312
        %v4314 = vpop.f32.mrb[0].mxu0
        %v4315 = vadd.f32 0.0, %v4314
        %4316 = vdwg.mxu0
        %v4317 = vadd.f32 %v4020, %v4279
        %v4318 = vadd.f32 %v4024, %v4281
        %v4319 = vadd.f32 %v4020, %v4283
        %v4320 = vadd.f32 %v4024, %v4285
        %v4321 = vadd.f32 %v4020, %v4289
        %v4322 = vadd.f32 %v4024, %v4291
        %v4323 = vadd.f32 %v4020, %v4293
        %v4324 = vadd.f32 %v4024, %v4295
        %v4325 = vadd.f32 %v4020, %v4299
        %v4326 = vadd.f32 %v4024, %v4301
        %v4327 = vadd.f32 %v4020, %v4303
        %v4328 = vadd.f32 %v4024, %v4305
        %v4329 = vadd.f32 %v4020, %v4309
        %v4330 = vadd.f32 %v4024, %v4311
        %v4331 = vadd.f32 %v4020, %v4313
        %v4332 = vadd.f32 %v4024, %v4315
        %v4333 = vld [vmem:[#allocation3] sm:$0xfe]
        %v4334 = vld [vmem:[#allocation3 + $0x8] sm:$0xfe]
        %v4335 = vld [vmem:[#allocation3 + $0x10] sm:$0x1]
        %v4336 = vld [vmem:[#allocation3 + $0x18] sm:$0x1]
        %v4337 = vld [vmem:[#allocation3 + $0x20] sm:$0xfe]
        %v4338 = vld [vmem:[#allocation3 + $0x28] sm:$0xfe]
        %v4339 = vld [vmem:[#allocation3 + $0x30] sm:$0x1]
        %v4340 = vld [vmem:[#allocation3 + $0x38] sm:$0x1]
        %v4341 = vld [vmem:[#allocation3 + $0x40] sm:$0xfe]
        %v4342 = vld [vmem:[#allocation3 + $0x48] sm:$0xfe]
        %v4343 = vld [vmem:[#allocation3 + $0x50] sm:$0x1]
        %v4344 = vld [vmem:[#allocation3 + $0x58] sm:$0x1]
        %v4345 = vld [vmem:[#allocation3 + $0x60] sm:$0xfe]
        %v4346 = vld [vmem:[#allocation3 + $0x68] sm:$0xfe]
        %v4347 = vld [vmem:[#allocation3 + $0x70] sm:$0x1]
        %v4348 = vld [vmem:[#allocation3 + $0x78] sm:$0x1]
        %v4349 = vld [vmem:[#allocation3 + $0x80] sm:$0xfe]
        %v4350 = vld [vmem:[#allocation3 + $0x88] sm:$0xfe]
        %v4351 = vld [vmem:[#allocation3 + $0x90] sm:$0x1]
        %v4352 = vld [vmem:[#allocation3 + $0x98] sm:$0x1]
        %v4353 = vld [vmem:[#allocation3 + $0xa0] sm:$0xfe]
        %v4354 = vld [vmem:[#allocation3 + $0xa8] sm:$0xfe]
        %v4355 = vld [vmem:[#allocation3 + $0xb0] sm:$0x1]
        %v4356 = vld [vmem:[#allocation3 + $0xb8] sm:$0x1]
        %v4357 = vld [vmem:[#allocation3 + $0xc0] sm:$0xfe]
        %v4358 = vld [vmem:[#allocation3 + $0xc8] sm:$0xfe]
        %v4359 = vld [vmem:[#allocation3 + $0xd0] sm:$0x1]
        %v4360 = vld [vmem:[#allocation3 + $0xd8] sm:$0x1]
        %v4361 = vld [vmem:[#allocation3 + $0xe0] sm:$0xfe]
        %v4362 = vld [vmem:[#allocation3 + $0xe8] sm:$0xfe]
        %v4363 = vld [vmem:[#allocation3 + $0xf0] sm:$0x1]
        %v4364 = vld [vmem:[#allocation3 + $0xf8] sm:$0x1]
        %v4397 = vrot.slane %v4333, 1
        %v4398 = vrot.slane %v4335, 1
        %v4399 = vsel %vm858, %v4397, %v4398
        %v4400 = vrot.slane %v4334, 1
        %v4401 = vrot.slane %v4336, 1
        %v4402 = vsel %vm858, %v4400, %v4401
        %v4403 = vrot.slane %v4337, 1
        %v4404 = vrot.slane %v4339, 1
        %v4405 = vsel %vm858, %v4403, %v4404
        %v4406 = vrot.slane %v4338, 1
        %v4407 = vrot.slane %v4340, 1
        %v4408 = vsel %vm858, %v4406, %v4407
        %v4409 = vrot.slane %v4341, 1
        %v4410 = vrot.slane %v4343, 1
        %v4411 = vsel %vm858, %v4409, %v4410
        %v4412 = vrot.slane %v4342, 1
        %v4413 = vrot.slane %v4344, 1
        %v4414 = vsel %vm858, %v4412, %v4413
        %v4415 = vrot.slane %v4345, 1
        %v4416 = vrot.slane %v4347, 1
        %v4417 = vsel %vm858, %v4415, %v4416
        %v4418 = vrot.slane %v4346, 1
        %v4419 = vrot.slane %v4348, 1
        %v4420 = vsel %vm858, %v4418, %v4419
        %v4421 = vrot.slane %v4349, 1
        %v4422 = vrot.slane %v4351, 1
        %v4423 = vsel %vm858, %v4421, %v4422
        %v4424 = vrot.slane %v4350, 1
        %v4425 = vrot.slane %v4352, 1
        %v4426 = vsel %vm858, %v4424, %v4425
        %v4427 = vrot.slane %v4353, 1
        %v4428 = vrot.slane %v4355, 1
        %v4429 = vsel %vm858, %v4427, %v4428
        %v4430 = vrot.slane %v4354, 1
        %v4431 = vrot.slane %v4356, 1
        %v4432 = vsel %vm858, %v4430, %v4431
        %v4433 = vrot.slane %v4357, 1
        %v4434 = vrot.slane %v4359, 1
        %v4435 = vsel %vm858, %v4433, %v4434
        %v4436 = vrot.slane %v4358, 1
        %v4437 = vrot.slane %v4360, 1
        %v4438 = vsel %vm858, %v4436, %v4437
        %v4439 = vrot.slane %v4361, 1
        %v4440 = vrot.slane %v4363, 1
        %v4441 = vsel %vm858, %v4439, %v4440
        %v4442 = vrot.slane %v4362, 1
        %v4443 = vrot.slane %v4364, 1
        %v4444 = vsel %vm858, %v4442, %v4443
        %v4461 = vpack.c.bf16 %v4405, %v4399
        %v4462 = vpack.c.bf16 %v4408, %v4402
        %v4463 = vpack.c.bf16 %v4417, %v4411
        %v4464 = vpack.c.bf16 %v4420, %v4414
        %v4465 = vpack.c.bf16 %v4429, %v4423
        %v4466 = vpack.c.bf16 %v4432, %v4426
        %v4467 = vpack.c.bf16 %v4441, %v4435
        %v4468 = vpack.c.bf16 %v4444, %v4438
        %s4469 = scalar_lea.vmem [#allocation7], 2560
        %v4470 = vld [vmem:[%s4469] sm:$0xff]
        %v4471 = vld [vmem:[%s4469 + $0x8] sm:$0xff]
        %v4472 = vld [vmem:[%s4469 + $0x10] sm:$0xff]
        %v4473 = vld [vmem:[%s4469 + $0x18] sm:$0xff]
        %v4474 = vld [vmem:[%s4469 + $0x20] sm:$0xff]
        %v4475 = vld [vmem:[%s4469 + $0x28] sm:$0xff]
        %v4476 = vld [vmem:[%s4469 + $0x30] sm:$0xff]
        %v4477 = vld [vmem:[%s4469 + $0x38] sm:$0xff]
        %v4478 = vld [vmem:[%s4469 + $0x40] sm:$0xff]
        %v4479 = vld [vmem:[%s4469 + $0x48] sm:$0xff]
        %v4480 = vld [vmem:[%s4469 + $0x50] sm:$0xff]
        %v4481 = vld [vmem:[%s4469 + $0x58] sm:$0xff]
        %v4482 = vld [vmem:[%s4469 + $0x60] sm:$0xff]
        %v4483 = vld [vmem:[%s4469 + $0x68] sm:$0xff]
        %v4484 = vld [vmem:[%s4469 + $0x70] sm:$0xff]
        %v4485 = vld [vmem:[%s4469 + $0x78] sm:$0xff]
        %v4486 = vld [vmem:[%s4469 + $0x80] sm:$0xff]
        %v4487 = vld [vmem:[%s4469 + $0x88] sm:$0xff]
        %v4488 = vld [vmem:[%s4469 + $0x90] sm:$0xff]
        %v4489 = vld [vmem:[%s4469 + $0x98] sm:$0xff]
        %v4490 = vld [vmem:[%s4469 + $0xa0] sm:$0xff]
        %v4491 = vld [vmem:[%s4469 + $0xa8] sm:$0xff]
        %v4492 = vld [vmem:[%s4469 + $0xb0] sm:$0xff]
        %v4493 = vld [vmem:[%s4469 + $0xb8] sm:$0xff]
        %v4494 = vld [vmem:[%s4469 + $0xc0] sm:$0xff]
        %v4495 = vld [vmem:[%s4469 + $0xc8] sm:$0xff]
        %v4496 = vld [vmem:[%s4469 + $0xd0] sm:$0xff]
        %v4497 = vld [vmem:[%s4469 + $0xd8] sm:$0xff]
        %v4498 = vld [vmem:[%s4469 + $0xe0] sm:$0xff]
        %v4499 = vld [vmem:[%s4469 + $0xe8] sm:$0xff]
        %v4500 = vld [vmem:[%s4469 + $0xf0] sm:$0xff]
        %v4501 = vld [vmem:[%s4469 + $0xf8] sm:$0xff]
        %v4534 = vunpack.c.l.b16 %v4470
        %v4535 = vunpack.c.h.b16 %v4470
        %v4536 = vunpack.c.l.b16 %v4471
        %v4537 = vunpack.c.h.b16 %v4471
        %v4538 = vunpack.c.l.b16 %v4472
        %v4539 = vunpack.c.h.b16 %v4472
        %v4540 = vunpack.c.l.b16 %v4473
        %v4541 = vunpack.c.h.b16 %v4473
        %v4542 = vunpack.c.l.b16 %v4474
        %v4543 = vunpack.c.h.b16 %v4474
        %v4544 = vunpack.c.l.b16 %v4475
        %v4545 = vunpack.c.h.b16 %v4475
        %v4546 = vunpack.c.l.b16 %v4476
        %v4547 = vunpack.c.h.b16 %v4476
        %v4548 = vunpack.c.l.b16 %v4477
        %v4549 = vunpack.c.h.b16 %v4477
        %v4550 = vunpack.c.l.b16 %v4478
        %v4551 = vunpack.c.h.b16 %v4478
        %v4552 = vunpack.c.l.b16 %v4479
        %v4553 = vunpack.c.h.b16 %v4479
        %v4554 = vunpack.c.l.b16 %v4480
        %v4555 = vunpack.c.h.b16 %v4480
        %v4556 = vunpack.c.l.b16 %v4481
        %v4557 = vunpack.c.h.b16 %v4481
        %v4558 = vunpack.c.l.b16 %v4482
        %v4559 = vunpack.c.h.b16 %v4482
        %v4560 = vunpack.c.l.b16 %v4483
        %v4561 = vunpack.c.h.b16 %v4483
        %v4562 = vunpack.c.l.b16 %v4484
        %v4563 = vunpack.c.h.b16 %v4484
        %v4564 = vunpack.c.l.b16 %v4485
        %v4565 = vunpack.c.h.b16 %v4485
        %v4566 = vunpack.c.l.b16 %v4486
        %v4567 = vunpack.c.h.b16 %v4486
        %v4568 = vunpack.c.l.b16 %v4487
        %v4569 = vunpack.c.h.b16 %v4487
        %v4570 = vunpack.c.l.b16 %v4488
        %v4571 = vunpack.c.h.b16 %v4488
        %v4572 = vunpack.c.l.b16 %v4489
        %v4573 = vunpack.c.h.b16 %v4489
        %v4574 = vunpack.c.l.b16 %v4490
        %v4575 = vunpack.c.h.b16 %v4490
        %v4576 = vunpack.c.l.b16 %v4491
        %v4577 = vunpack.c.h.b16 %v4491
        %v4578 = vunpack.c.l.b16 %v4492
        %v4579 = vunpack.c.h.b16 %v4492
        %v4580 = vunpack.c.l.b16 %v4493
        %v4581 = vunpack.c.h.b16 %v4493
        %v4582 = vunpack.c.l.b16 %v4494
        %v4583 = vunpack.c.h.b16 %v4494
        %v4584 = vunpack.c.l.b16 %v4495
        %v4585 = vunpack.c.h.b16 %v4495
        %v4586 = vunpack.c.l.b16 %v4496
        %v4587 = vunpack.c.h.b16 %v4496
        %v4588 = vunpack.c.l.b16 %v4497
        %v4589 = vunpack.c.h.b16 %v4497
        %v4590 = vunpack.c.l.b16 %v4498
        %v4591 = vunpack.c.h.b16 %v4498
        %v4592 = vunpack.c.l.b16 %v4499
        %v4593 = vunpack.c.h.b16 %v4499
        %v4594 = vunpack.c.l.b16 %v4500
        %v4595 = vunpack.c.h.b16 %v4500
        %v4596 = vunpack.c.l.b16 %v4501
        %v4597 = vunpack.c.h.b16 %v4501
        %v4598 = vpack.c.b16 %v4536, %v4534
        %v4599 = vpack.c.b16 %v4537, %v4535
        %v4600 = vpack.c.b16 %v4540, %v4538
        %v4601 = vpack.c.b16 %v4541, %v4539
        %v4602 = vpack.c.b16 %v4544, %v4542
        %v4603 = vpack.c.b16 %v4545, %v4543
        %v4604 = vpack.c.b16 %v4548, %v4546
        %v4605 = vpack.c.b16 %v4549, %v4547
        %v4606 = vpack.c.b16 %v4552, %v4550
        %v4607 = vpack.c.b16 %v4553, %v4551
        %v4608 = vpack.c.b16 %v4556, %v4554
        %v4609 = vpack.c.b16 %v4557, %v4555
        %v4610 = vpack.c.b16 %v4560, %v4558
        %v4611 = vpack.c.b16 %v4561, %v4559
        %v4612 = vpack.c.b16 %v4564, %v4562
        %v4613 = vpack.c.b16 %v4565, %v4563
        %v4614 = vpack.c.b16 %v4568, %v4566
        %v4615 = vpack.c.b16 %v4569, %v4567
        %v4616 = vpack.c.b16 %v4572, %v4570
        %v4617 = vpack.c.b16 %v4573, %v4571
        %v4618 = vpack.c.b16 %v4576, %v4574
        %v4619 = vpack.c.b16 %v4577, %v4575
        %v4620 = vpack.c.b16 %v4580, %v4578
        %v4621 = vpack.c.b16 %v4581, %v4579
        %v4622 = vpack.c.b16 %v4584, %v4582
        %v4623 = vpack.c.b16 %v4585, %v4583
        %v4624 = vpack.c.b16 %v4588, %v4586
        %v4625 = vpack.c.b16 %v4589, %v4587
        %v4626 = vpack.c.b16 %v4592, %v4590
        %v4627 = vpack.c.b16 %v4593, %v4591
        %v4628 = vpack.c.b16 %v4596, %v4594
        %v4629 = vpack.c.b16 %v4597, %v4595
        %4662 = vmatprep.subr.bf16.mxu0 %v4599
        %4663 = vmatpush1.bf16.msra.mxu0 %v4598
        %4664 = vmatprep.subr.bf16.mxu0 %v4601
        %4665 = vmatpush1.bf16.msra.mxu0 %v4600
        %4666 = vmatprep.subr.bf16.mxu0 %v4603
        %4667 = vmatpush1.bf16.msra.mxu0 %v4602
        %4668 = vmatprep.subr.bf16.mxu0 %v4605
        %4669 = vmatpush1.bf16.msra.mxu0 %v4604
        %4670 = vmatprep.subr.bf16.mxu0 %v4607
        %4671 = vmatpush1.bf16.msra.mxu0 %v4606
        %4672 = vmatprep.subr.bf16.mxu0 %v4609
        %4673 = vmatpush1.bf16.msra.mxu0 %v4608
        %4674 = vmatprep.subr.bf16.mxu0 %v4611
        %4675 = vmatpush1.bf16.msra.mxu0 %v4610
        %4676 = vmatprep.subr.bf16.mxu0 %v4613
        %4677 = vmatpush1.bf16.msra.mxu0 %v4612
        %4678 = vmatprep.subr.bf16.mxu0 %v4615
        %4679 = vmatpush1.bf16.msra.mxu0 %v4614
        %4680 = vmatprep.subr.bf16.mxu0 %v4617
        %4681 = vmatpush1.bf16.msra.mxu0 %v4616
        %4682 = vmatprep.subr.bf16.mxu0 %v4619
        %4683 = vmatpush1.bf16.msra.mxu0 %v4618
        %4684 = vmatprep.subr.bf16.mxu0 %v4621
        %4685 = vmatpush1.bf16.msra.mxu0 %v4620
        %4686 = vmatprep.subr.bf16.mxu0 %v4623
        %4687 = vmatpush1.bf16.msra.mxu0 %v4622
        %4688 = vmatprep.subr.bf16.mxu0 %v4625
        %4689 = vmatpush1.bf16.msra.mxu0 %v4624
        %4690 = vmatprep.subr.bf16.mxu0 %v4627
        %4691 = vmatpush1.bf16.msra.mxu0 %v4626
        %4692 = vmatprep.subr.bf16.mxu0 %v4629
        %4693 = vmatpush1.bf16.msra.mxu0 %v4628
        %4694 = vmatprep.mubr.bf16.mxu0 %v4462
        %4695 = vmatmul.mubr.bf16.gmra.mrb[0].mxu0 %v4461
        %v4696 = vpop.f32.mrb[0].mxu0
        %v4697 = vadd.f32 0.0, %v4696
        %v4698 = vpop.f32.mrb[0].mxu0
        %v4699 = vadd.f32 0.0, %v4698
        %v4700 = vpop.f32.mrb[0].mxu0
        %v4701 = vadd.f32 0.0, %v4700
        %v4702 = vpop.f32.mrb[0].mxu0
        %v4703 = vadd.f32 0.0, %v4702
        %4704 = vmatprep.mubr.bf16.mxu0 %v4464
        %4705 = vmatmul.mubr.bf16.gmra.mrb[0].mxu0 %v4463
        %v4706 = vpop.f32.mrb[0].mxu0
        %v4707 = vadd.f32 0.0, %v4706
        %v4708 = vpop.f32.mrb[0].mxu0
        %v4709 = vadd.f32 0.0, %v4708
        %v4710 = vpop.f32.mrb[0].mxu0
        %v4711 = vadd.f32 0.0, %v4710
        %v4712 = vpop.f32.mrb[0].mxu0
        %v4713 = vadd.f32 0.0, %v4712
        %4714 = vmatprep.mubr.bf16.mxu0 %v4466
        %4715 = vmatmul.mubr.bf16.gmra.mrb[0].mxu0 %v4465
        %v4716 = vpop.f32.mrb[0].mxu0
        %v4717 = vadd.f32 0.0, %v4716
        %v4718 = vpop.f32.mrb[0].mxu0
        %v4719 = vadd.f32 0.0, %v4718
        %v4720 = vpop.f32.mrb[0].mxu0
        %v4721 = vadd.f32 0.0, %v4720
        %v4722 = vpop.f32.mrb[0].mxu0
        %v4723 = vadd.f32 0.0, %v4722
        %4724 = vmatprep.mubr.bf16.mxu0 %v4468
        %4725 = vmatmul.mubr.bf16.gmra.mrb[0].mxu0 %v4467
        %v4726 = vpop.f32.mrb[0].mxu0
        %v4727 = vadd.f32 0.0, %v4726
        %v4728 = vpop.f32.mrb[0].mxu0
        %v4729 = vadd.f32 0.0, %v4728
        %v4730 = vpop.f32.mrb[0].mxu0
        %v4731 = vadd.f32 0.0, %v4730
        %v4732 = vpop.f32.mrb[0].mxu0
        %v4733 = vadd.f32 0.0, %v4732
        %4734 = vdwg.mxu0
        %v4735 = vadd.f32 %v4317, %v4697
        %v4736 = vadd.f32 %v4318, %v4699
        %v4737 = vadd.f32 %v4319, %v4701
        %v4738 = vadd.f32 %v4320, %v4703
        %v4739 = vadd.f32 %v4321, %v4707
        %v4740 = vadd.f32 %v4322, %v4709
        %v4741 = vadd.f32 %v4323, %v4711
        %v4742 = vadd.f32 %v4324, %v4713
        %v4743 = vadd.f32 %v4325, %v4717
        %v4744 = vadd.f32 %v4326, %v4719
        %v4745 = vadd.f32 %v4327, %v4721
        %v4746 = vadd.f32 %v4328, %v4723
        %v4747 = vadd.f32 %v4329, %v4727
        %v4748 = vadd.f32 %v4330, %v4729
        %v4749 = vadd.f32 %v4331, %v4731
        %v4750 = vadd.f32 %v4332, %v4733
        %v4751 = vld [vmem:[#allocation3] sm:$0xfc]
        %v4752 = vld [vmem:[#allocation3 + $0x8] sm:$0xfc]
        %v4753 = vld [vmem:[#allocation3 + $0x10] sm:$0x3]
        %v4754 = vld [vmem:[#allocation3 + $0x18] sm:$0x3]
        %v4755 = vld [vmem:[#allocation3 + $0x20] sm:$0xfc]
        %v4756 = vld [vmem:[#allocation3 + $0x28] sm:$0xfc]
        %v4757 = vld [vmem:[#allocation3 + $0x30] sm:$0x3]
        %v4758 = vld [vmem:[#allocation3 + $0x38] sm:$0x3]
        %v4759 = vld [vmem:[#allocation3 + $0x40] sm:$0xfc]
        %v4760 = vld [vmem:[#allocation3 + $0x48] sm:$0xfc]
        %v4761 = vld [vmem:[#allocation3 + $0x50] sm:$0x3]
        %v4762 = vld [vmem:[#allocation3 + $0x58] sm:$0x3]
        %v4763 = vld [vmem:[#allocation3 + $0x60] sm:$0xfc]
        %v4764 = vld [vmem:[#allocation3 + $0x68] sm:$0xfc]
        %v4765 = vld [vmem:[#allocation3 + $0x70] sm:$0x3]
        %v4766 = vld [vmem:[#allocation3 + $0x78] sm:$0x3]
        %v4767 = vld [vmem:[#allocation3 + $0x80] sm:$0xfc]
        %v4768 = vld [vmem:[#allocation3 + $0x88] sm:$0xfc]
        %v4769 = vld [vmem:[#allocation3 + $0x90] sm:$0x3]
        %v4770 = vld [vmem:[#allocation3 + $0x98] sm:$0x3]
        %v4771 = vld [vmem:[#allocation3 + $0xa0] sm:$0xfc]
        %v4772 = vld [vmem:[#allocation3 + $0xa8] sm:$0xfc]
        %v4773 = vld [vmem:[#allocation3 + $0xb0] sm:$0x3]
        %v4774 = vld [vmem:[#allocation3 + $0xb8] sm:$0x3]
        %v4775 = vld [vmem:[#allocation3 + $0xc0] sm:$0xfc]
        %v4776 = vld [vmem:[#allocation3 + $0xc8] sm:$0xfc]
        %v4777 = vld [vmem:[#allocation3 + $0xd0] sm:$0x3]
        %v4778 = vld [vmem:[#allocation3 + $0xd8] sm:$0x3]
        %v4779 = vld [vmem:[#allocation3 + $0xe0] sm:$0xfc]
        %v4780 = vld [vmem:[#allocation3 + $0xe8] sm:$0xfc]
        %v4781 = vld [vmem:[#allocation3 + $0xf0] sm:$0x3]
        %v4782 = vld [vmem:[#allocation3 + $0xf8] sm:$0x3]
        %v4815 = vrot.slane %v4751, 2
        %v4816 = vrot.slane %v4753, 2
        %v4817 = vsel %vm1277, %v4815, %v4816
        %v4818 = vrot.slane %v4752, 2
        %v4819 = vrot.slane %v4754, 2
        %v4820 = vsel %vm1277, %v4818, %v4819
        %v4821 = vrot.slane %v4755, 2
        %v4822 = vrot.slane %v4757, 2
        %v4823 = vsel %vm1277, %v4821, %v4822
        %v4824 = vrot.slane %v4756, 2
        %v4825 = vrot.slane %v4758, 2
        %v4826 = vsel %vm1277, %v4824, %v4825
        %v4827 = vrot.slane %v4759, 2
        %v4828 = vrot.slane %v4761, 2
        %v4829 = vsel %vm1277, %v4827, %v4828
        %v4830 = vrot.slane %v4760, 2
        %v4831 = vrot.slane %v4762, 2
        %v4832 = vsel %vm1277, %v4830, %v4831
        %v4833 = vrot.slane %v4763, 2
        %v4834 = vrot.slane %v4765, 2
        %v4835 = vsel %vm1277, %v4833, %v4834
        %v4836 = vrot.slane %v4764, 2
        %v4837 = vrot.slane %v4766, 2
        %v4838 = vsel %vm1277, %v4836, %v4837
        %v4839 = vrot.slane %v4767, 2
        %v4840 = vrot.slane %v4769, 2
        %v4841 = vsel %vm1277, %v4839, %v4840
        %v4842 = vrot.slane %v4768, 2
        %v4843 = vrot.slane %v4770, 2
        %v4844 = vsel %vm1277, %v4842, %v4843
        %v4845 = vrot.slane %v4771, 2
        %v4846 = vrot.slane %v4773, 2
        %v4847 = vsel %vm1277, %v4845, %v4846
        %v4848 = vrot.slane %v4772, 2
        %v4849 = vrot.slane %v4774, 2
        %v4850 = vsel %vm1277, %v4848, %v4849
        %v4851 = vrot.slane %v4775, 2
        %v4852 = vrot.slane %v4777, 2
        %v4853 = vsel %vm1277, %v4851, %v4852
        %v4854 = vrot.slane %v4776, 2
        %v4855 = vrot.slane %v4778, 2
        %v4856 = vsel %vm1277, %v4854, %v4855
        %v4857 = vrot.slane %v4779, 2
        %v4858 = vrot.slane %v4781, 2
        %v4859 = vsel %vm1277, %v4857, %v4858
        %v4860 = vrot.slane %v4780, 2
        %v4861 = vrot.slane %v4782, 2
        %v4862 = vsel %vm1277, %v4860, %v4861
        %v4879 = vpack.c.bf16 %v4823, %v4817
        %v4880 = vpack.c.bf16 %v4826, %v4820
        %v4881 = vpack.c.bf16 %v4835, %v4829
        %v4882 = vpack.c.bf16 %v4838, %v4832
        %v4883 = vpack.c.bf16 %v4847, %v4841
        %v4884 = vpack.c.bf16 %v4850, %v4844
        %v4885 = vpack.c.bf16 %v4859, %v4853
        %v4886 = vpack.c.bf16 %v4862, %v4856
        %s4887 = scalar_lea.vmem [#allocation7], 2816
        %v4888 = vld [vmem:[%s4887] sm:$0xff]
        %v4889 = vld [vmem:[%s4887 + $0x8] sm:$0xff]
        %v4890 = vld [vmem:[%s4887 + $0x10] sm:$0xff]
        %v4891 = vld [vmem:[%s4887 + $0x18] sm:$0xff]
        %v4892 = vld [vmem:[%s4887 + $0x20] sm:$0xff]
        %v4893 = vld [vmem:[%s4887 + $0x28] sm:$0xff]
        %v4894 = vld [vmem:[%s4887 + $0x30] sm:$0xff]
        %v4895 = vld [vmem:[%s4887 + $0x38] sm:$0xff]
        %v4896 = vld [vmem:[%s4887 + $0x40] sm:$0xff]
        %v4897 = vld [vmem:[%s4887 + $0x48] sm:$0xff]
        %v4898 = vld [vmem:[%s4887 + $0x50] sm:$0xff]
        %v4899 = vld [vmem:[%s4887 + $0x58] sm:$0xff]
        %v4900 = vld [vmem:[%s4887 + $0x60] sm:$0xff]
        %v4901 = vld [vmem:[%s4887 + $0x68] sm:$0xff]
        %v4902 = vld [vmem:[%s4887 + $0x70] sm:$0xff]
        %v4903 = vld [vmem:[%s4887 + $0x78] sm:$0xff]
        %v4904 = vld [vmem:[%s4887 + $0x80] sm:$0xff]
        %v4905 = vld [vmem:[%s4887 + $0x88] sm:$0xff]
        %v4906 = vld [vmem:[%s4887 + $0x90] sm:$0xff]
        %v4907 = vld [vmem:[%s4887 + $0x98] sm:$0xff]
        %v4908 = vld [vmem:[%s4887 + $0xa0] sm:$0xff]
        %v4909 = vld [vmem:[%s4887 + $0xa8] sm:$0xff]
        %v4910 = vld [vmem:[%s4887 + $0xb0] sm:$0xff]
        %v4911 = vld [vmem:[%s4887 + $0xb8] sm:$0xff]
        %v4912 = vld [vmem:[%s4887 + $0xc0] sm:$0xff]
        %v4913 = vld [vmem:[%s4887 + $0xc8] sm:$0xff]
        %v4914 = vld [vmem:[%s4887 + $0xd0] sm:$0xff]
        %v4915 = vld [vmem:[%s4887 + $0xd8] sm:$0xff]
        %v4916 = vld [vmem:[%s4887 + $0xe0] sm:$0xff]
        %v4917 = vld [vmem:[%s4887 + $0xe8] sm:$0xff]
        %v4918 = vld [vmem:[%s4887 + $0xf0] sm:$0xff]
        %v4919 = vld [vmem:[%s4887 + $0xf8] sm:$0xff]
        %v4952 = vunpack.c.l.b16 %v4888
        %v4953 = vunpack.c.h.b16 %v4888
        %v4954 = vunpack.c.l.b16 %v4889
        %v4955 = vunpack.c.h.b16 %v4889
        %v4956 = vunpack.c.l.b16 %v4890
        %v4957 = vunpack.c.h.b16 %v4890
        %v4958 = vunpack.c.l.b16 %v4891
        %v4959 = vunpack.c.h.b16 %v4891
        %v4960 = vunpack.c.l.b16 %v4892
        %v4961 = vunpack.c.h.b16 %v4892
        %v4962 = vunpack.c.l.b16 %v4893
        %v4963 = vunpack.c.h.b16 %v4893
        %v4964 = vunpack.c.l.b16 %v4894
        %v4965 = vunpack.c.h.b16 %v4894
        %v4966 = vunpack.c.l.b16 %v4895
        %v4967 = vunpack.c.h.b16 %v4895
        %v4968 = vunpack.c.l.b16 %v4896
        %v4969 = vunpack.c.h.b16 %v4896
        %v4970 = vunpack.c.l.b16 %v4897
        %v4971 = vunpack.c.h.b16 %v4897
        %v4972 = vunpack.c.l.b16 %v4898
        %v4973 = vunpack.c.h.b16 %v4898
        %v4974 = vunpack.c.l.b16 %v4899
        %v4975 = vunpack.c.h.b16 %v4899
        %v4976 = vunpack.c.l.b16 %v4900
        %v4977 = vunpack.c.h.b16 %v4900
        %v4978 = vunpack.c.l.b16 %v4901
        %v4979 = vunpack.c.h.b16 %v4901
        %v4980 = vunpack.c.l.b16 %v4902
        %v4981 = vunpack.c.h.b16 %v4902
        %v4982 = vunpack.c.l.b16 %v4903
        %v4983 = vunpack.c.h.b16 %v4903
        %v4984 = vunpack.c.l.b16 %v4904
        %v4985 = vunpack.c.h.b16 %v4904
        %v4986 = vunpack.c.l.b16 %v4905
        %v4987 = vunpack.c.h.b16 %v4905
        %v4988 = vunpack.c.l.b16 %v4906
        %v4989 = vunpack.c.h.b16 %v4906
        %v4990 = vunpack.c.l.b16 %v4907
        %v4991 = vunpack.c.h.b16 %v4907
        %v4992 = vunpack.c.l.b16 %v4908
        %v4993 = vunpack.c.h.b16 %v4908
        %v4994 = vunpack.c.l.b16 %v4909
        %v4995 = vunpack.c.h.b16 %v4909
        %v4996 = vunpack.c.l.b16 %v4910
        %v4997 = vunpack.c.h.b16 %v4910
        %v4998 = vunpack.c.l.b16 %v4911
        %v4999 = vunpack.c.h.b16 %v4911
        %v5000 = vunpack.c.l.b16 %v4912
        %v5001 = vunpack.c.h.b16 %v4912
        %v5002 = vunpack.c.l.b16 %v4913
        %v5003 = vunpack.c.h.b16 %v4913
        %v5004 = vunpack.c.l.b16 %v4914
        %v5005 = vunpack.c.h.b16 %v4914
        %v5006 = vunpack.c.l.b16 %v4915
        %v5007 = vunpack.c.h.b16 %v4915
        %v5008 = vunpack.c.l.b16 %v4916
        %v5009 = vunpack.c.h.b16 %v4916
        %v5010 = vunpack.c.l.b16 %v4917
        %v5011 = vunpack.c.h.b16 %v4917
        %v5012 = vunpack.c.l.b16 %v4918
        %v5013 = vunpack.c.h.b16 %v4918
        %v5014 = vunpack.c.l.b16 %v4919
        %v5015 = vunpack.c.h.b16 %v4919
        %v5016 = vpack.c.b16 %v4954, %v4952
        %v5017 = vpack.c.b16 %v4955, %v4953
        %v5018 = vpack.c.b16 %v4958, %v4956
        %v5019 = vpack.c.b16 %v4959, %v4957
        %v5020 = vpack.c.b16 %v4962, %v4960
        %v5021 = vpack.c.b16 %v4963, %v4961
        %v5022 = vpack.c.b16 %v4966, %v4964
        %v5023 = vpack.c.b16 %v4967, %v4965
        %v5024 = vpack.c.b16 %v4970, %v4968
        %v5025 = vpack.c.b16 %v4971, %v4969
        %v5026 = vpack.c.b16 %v4974, %v4972
        %v5027 = vpack.c.b16 %v4975, %v4973
        %v5028 = vpack.c.b16 %v4978, %v4976
        %v5029 = vpack.c.b16 %v4979, %v4977
        %v5030 = vpack.c.b16 %v4982, %v4980
        %v5031 = vpack.c.b16 %v4983, %v4981
        %v5032 = vpack.c.b16 %v4986, %v4984
        %v5033 = vpack.c.b16 %v4987, %v4985
        %v5034 = vpack.c.b16 %v4990, %v4988
        %v5035 = vpack.c.b16 %v4991, %v4989
        %v5036 = vpack.c.b16 %v4994, %v4992
        %v5037 = vpack.c.b16 %v4995, %v4993
        %v5038 = vpack.c.b16 %v4998, %v4996
        %v5039 = vpack.c.b16 %v4999, %v4997
        %v5040 = vpack.c.b16 %v5002, %v5000
        %v5041 = vpack.c.b16 %v5003, %v5001
        %v5042 = vpack.c.b16 %v5006, %v5004
        %v5043 = vpack.c.b16 %v5007, %v5005
        %v5044 = vpack.c.b16 %v5010, %v5008
        %v5045 = vpack.c.b16 %v5011, %v5009
        %v5046 = vpack.c.b16 %v5014, %v5012
        %v5047 = vpack.c.b16 %v5015, %v5013
        %5080 = vmatprep.subr.bf16.mxu0 %v5017
        %5081 = vmatpush1.bf16.msra.mxu0 %v5016
        %5082 = vmatprep.subr.bf16.mxu0 %v5019
        %5083 = vmatpush1.bf16.msra.mxu0 %v5018
        %5084 = vmatprep.subr.bf16.mxu0 %v5021
        %5085 = vmatpush1.bf16.msra.mxu0 %v5020
        %5086 = vmatprep.subr.bf16.mxu0 %v5023
        %5087 = vmatpush1.bf16.msra.mxu0 %v5022
        %5088 = vmatprep.subr.bf16.mxu0 %v5025
        %5089 = vmatpush1.bf16.msra.mxu0 %v5024
        %5090 = vmatprep.subr.bf16.mxu0 %v5027
        %5091 = vmatpush1.bf16.msra.mxu0 %v5026
        %5092 = vmatprep.subr.bf16.mxu0 %v5029
        %5093 = vmatpush1.bf16.msra.mxu0 %v5028
        %5094 = vmatprep.subr.bf16.mxu0 %v5031
        %5095 = vmatpush1.bf16.msra.mxu0 %v5030
        %5096 = vmatprep.subr.bf16.mxu0 %v5033
        %5097 = vmatpush1.bf16.msra.mxu0 %v5032
        %5098 = vmatprep.subr.bf16.mxu0 %v5035
        %5099 = vmatpush1.bf16.msra.mxu0 %v5034
        %5100 = vmatprep.subr.bf16.mxu0 %v5037
        %5101 = vmatpush1.bf16.msra.mxu0 %v5036
        %5102 = vmatprep.subr.bf16.mxu0 %v5039
        %5103 = vmatpush1.bf16.msra.mxu0 %v5038
        %5104 = vmatprep.subr.bf16.mxu0 %v5041
        %5105 = vmatpush1.bf16.msra.mxu0 %v5040
        %5106 = vmatprep.subr.bf16.mxu0 %v5043
        %5107 = vmatpush1.bf16.msra.mxu0 %v5042
        %5108 = vmatprep.subr.bf16.mxu0 %v5045
        %5109 = vmatpush1.bf16.msra.mxu0 %v5044
        %5110 = vmatprep.subr.bf16.mxu0 %v5047
        %5111 = vmatpush1.bf16.msra.mxu0 %v5046
        %5112 = vmatprep.mubr.bf16.mxu0 %v4880
        %5113 = vmatmul.mubr.bf16.gmra.mrb[0].mxu0 %v4879
        %v5114 = vpop.f32.mrb[0].mxu0
        %v5115 = vadd.f32 0.0, %v5114
        %v5116 = vpop.f32.mrb[0].mxu0
        %v5117 = vadd.f32 0.0, %v5116
        %v5118 = vpop.f32.mrb[0].mxu0
        %v5119 = vadd.f32 0.0, %v5118
        %v5120 = vpop.f32.mrb[0].mxu0
        %v5121 = vadd.f32 0.0, %v5120
        %5122 = vmatprep.mubr.bf16.mxu0 %v4882
        %5123 = vmatmul.mubr.bf16.gmra.mrb[0].mxu0 %v4881
        %v5124 = vpop.f32.mrb[0].mxu0
        %v5125 = vadd.f32 0.0, %v5124
        %v5126 = vpop.f32.mrb[0].mxu0
        %v5127 = vadd.f32 0.0, %v5126
        %v5128 = vpop.f32.mrb[0].mxu0
        %v5129 = vadd.f32 0.0, %v5128
        %v5130 = vpop.f32.mrb[0].mxu0
        %v5131 = vadd.f32 0.0, %v5130
        %5132 = vmatprep.mubr.bf16.mxu0 %v4884
        %5133 = vmatmul.mubr.bf16.gmra.mrb[0].mxu0 %v4883
        %v5134 = vpop.f32.mrb[0].mxu0
        %v5135 = vadd.f32 0.0, %v5134
        %v5136 = vpop.f32.mrb[0].mxu0
        %v5137 = vadd.f32 0.0, %v5136
        %v5138 = vpop.f32.mrb[0].mxu0
        %v5139 = vadd.f32 0.0, %v5138
        %v5140 = vpop.f32.mrb[0].mxu0
        %v5141 = vadd.f32 0.0, %v5140
        %5142 = vmatprep.mubr.bf16.mxu0 %v4886
        %5143 = vmatmul.mubr.bf16.gmra.mrb[0].mxu0 %v4885
        %v5144 = vpop.f32.mrb[0].mxu0
        %v5145 = vadd.f32 0.0, %v5144
        %v5146 = vpop.f32.mrb[0].mxu0
        %v5147 = vadd.f32 0.0, %v5146
        %v5148 = vpop.f32.mrb[0].mxu0
        %v5149 = vadd.f32 0.0, %v5148
        %v5150 = vpop.f32.mrb[0].mxu0
        %v5151 = vadd.f32 0.0, %v5150
        %5152 = vdwg.mxu0
        %v5153 = vadd.f32 %v4735, %v5115
        %v5154 = vadd.f32 %v4736, %v5117
        %v5155 = vadd.f32 %v4737, %v5119
        %v5156 = vadd.f32 %v4738, %v5121
        %v5157 = vadd.f32 %v4739, %v5125
        %v5158 = vadd.f32 %v4740, %v5127
        %v5159 = vadd.f32 %v4741, %v5129
        %v5160 = vadd.f32 %v4742, %v5131
        %v5161 = vadd.f32 %v4743, %v5135
        %v5162 = vadd.f32 %v4744, %v5137
        %v5163 = vadd.f32 %v4745, %v5139
        %v5164 = vadd.f32 %v4746, %v5141
        %v5165 = vadd.f32 %v4747, %v5145
        %v5166 = vadd.f32 %v4748, %v5147
        %v5167 = vadd.f32 %v4749, %v5149
        %v5168 = vadd.f32 %v4750, %v5151
        %v5169 = vld [vmem:[%s3981] sm:$0xff]
        %v5170 = vld [vmem:[%s3981 + $0x8] sm:$0xff]
        %v5171 = vld [vmem:[%s3981 + $0x20] sm:$0xff]
        %v5172 = vld [vmem:[%s3981 + $0x28] sm:$0xff]
        %v5173 = vld [vmem:[%s3981 + $0x40] sm:$0xff]
        %v5174 = vld [vmem:[%s3981 + $0x48] sm:$0xff]
        %v5175 = vld [vmem:[%s3981 + $0x60] sm:$0xff]
        %v5176 = vld [vmem:[%s3981 + $0x68] sm:$0xff]
        %v5177 = vld [vmem:[%s3981 + $0x80] sm:$0xff]
        %v5178 = vld [vmem:[%s3981 + $0x88] sm:$0xff]
        %v5179 = vld [vmem:[%s3981 + $0xa0] sm:$0xff]
        %v5180 = vld [vmem:[%s3981 + $0xa8] sm:$0xff]
        %v5181 = vld [vmem:[%s3981 + $0xc0] sm:$0xff]
        %v5182 = vld [vmem:[%s3981 + $0xc8] sm:$0xff]
        %v5183 = vld [vmem:[%s3981 + $0xe0] sm:$0xff]
        %v5184 = vld [vmem:[%s3981 + $0xe8] sm:$0xff]
        %v5185 = vpack.c.bf16 %v5171, %v5169
        %v5186 = vpack.c.bf16 %v5172, %v5170
        %v5187 = vpack.c.bf16 %v5175, %v5173
        %v5188 = vpack.c.bf16 %v5176, %v5174
        %v5189 = vpack.c.bf16 %v5179, %v5177
        %v5190 = vpack.c.bf16 %v5180, %v5178
        %v5191 = vpack.c.bf16 %v5183, %v5181
        %v5192 = vpack.c.bf16 %v5184, %v5182
        %s5193 = scalar_lea.vmem [#allocation7], 3072
        %v5194 = vld [vmem:[%s5193] sm:$0xff]
        %v5195 = vld [vmem:[%s5193 + $0x8] sm:$0xff]
        %v5196 = vld [vmem:[%s5193 + $0x10] sm:$0xff]
        %v5197 = vld [vmem:[%s5193 + $0x18] sm:$0xff]
        %v5198 = vld [vmem:[%s5193 + $0x20] sm:$0xff]
        %v5199 = vld [vmem:[%s5193 + $0x28] sm:$0xff]
        %v5200 = vld [vmem:[%s5193 + $0x30] sm:$0xff]
        %v5201 = vld [vmem:[%s5193 + $0x38] sm:$0xff]
        %v5202 = vld [vmem:[%s5193 + $0x40] sm:$0xff]
        %v5203 = vld [vmem:[%s5193 + $0x48] sm:$0xff]
        %v5204 = vld [vmem:[%s5193 + $0x50] sm:$0xff]
        %v5205 = vld [vmem:[%s5193 + $0x58] sm:$0xff]
        %v5206 = vld [vmem:[%s5193 + $0x60] sm:$0xff]
        %v5207 = vld [vmem:[%s5193 + $0x68] sm:$0xff]
        %v5208 = vld [vmem:[%s5193 + $0x70] sm:$0xff]
        %v5209 = vld [vmem:[%s5193 + $0x78] sm:$0xff]
        %v5210 = vld [vmem:[%s5193 + $0x80] sm:$0xff]
        %v5211 = vld [vmem:[%s5193 + $0x88] sm:$0xff]
        %v5212 = vld [vmem:[%s5193 + $0x90] sm:$0xff]
        %v5213 = vld [vmem:[%s5193 + $0x98] sm:$0xff]
        %v5214 = vld [vmem:[%s5193 + $0xa0] sm:$0xff]
        %v5215 = vld [vmem:[%s5193 + $0xa8] sm:$0xff]
        %v5216 = vld [vmem:[%s5193 + $0xb0] sm:$0xff]
        %v5217 = vld [vmem:[%s5193 + $0xb8] sm:$0xff]
        %v5218 = vld [vmem:[%s5193 + $0xc0] sm:$0xff]
        %v5219 = vld [vmem:[%s5193 + $0xc8] sm:$0xff]
        %v5220 = vld [vmem:[%s5193 + $0xd0] sm:$0xff]
        %v5221 = vld [vmem:[%s5193 + $0xd8] sm:$0xff]
        %v5222 = vld [vmem:[%s5193 + $0xe0] sm:$0xff]
        %v5223 = vld [vmem:[%s5193 + $0xe8] sm:$0xff]
        %v5224 = vld [vmem:[%s5193 + $0xf0] sm:$0xff]
        %v5225 = vld [vmem:[%s5193 + $0xf8] sm:$0xff]
        %v5258 = vunpack.c.l.b16 %v5194
        %v5259 = vunpack.c.h.b16 %v5194
        %v5260 = vunpack.c.l.b16 %v5195
        %v5261 = vunpack.c.h.b16 %v5195
        %v5262 = vunpack.c.l.b16 %v5196
        %v5263 = vunpack.c.h.b16 %v5196
        %v5264 = vunpack.c.l.b16 %v5197
        %v5265 = vunpack.c.h.b16 %v5197
        %v5266 = vunpack.c.l.b16 %v5198
        %v5267 = vunpack.c.h.b16 %v5198
        %v5268 = vunpack.c.l.b16 %v5199
        %v5269 = vunpack.c.h.b16 %v5199
        %v5270 = vunpack.c.l.b16 %v5200
        %v5271 = vunpack.c.h.b16 %v5200
        %v5272 = vunpack.c.l.b16 %v5201
        %v5273 = vunpack.c.h.b16 %v5201
        %v5274 = vunpack.c.l.b16 %v5202
        %v5275 = vunpack.c.h.b16 %v5202
        %v5276 = vunpack.c.l.b16 %v5203
        %v5277 = vunpack.c.h.b16 %v5203
        %v5278 = vunpack.c.l.b16 %v5204
        %v5279 = vunpack.c.h.b16 %v5204
        %v5280 = vunpack.c.l.b16 %v5205
        %v5281 = vunpack.c.h.b16 %v5205
        %v5282 = vunpack.c.l.b16 %v5206
        %v5283 = vunpack.c.h.b16 %v5206
        %v5284 = vunpack.c.l.b16 %v5207
        %v5285 = vunpack.c.h.b16 %v5207
        %v5286 = vunpack.c.l.b16 %v5208
        %v5287 = vunpack.c.h.b16 %v5208
        %v5288 = vunpack.c.l.b16 %v5209
        %v5289 = vunpack.c.h.b16 %v5209
        %v5290 = vunpack.c.l.b16 %v5210
        %v5291 = vunpack.c.h.b16 %v5210
        %v5292 = vunpack.c.l.b16 %v5211
        %v5293 = vunpack.c.h.b16 %v5211
        %v5294 = vunpack.c.l.b16 %v5212
        %v5295 = vunpack.c.h.b16 %v5212
        %v5296 = vunpack.c.l.b16 %v5213
        %v5297 = vunpack.c.h.b16 %v5213
        %v5298 = vunpack.c.l.b16 %v5214
        %v5299 = vunpack.c.h.b16 %v5214
        %v5300 = vunpack.c.l.b16 %v5215
        %v5301 = vunpack.c.h.b16 %v5215
        %v5302 = vunpack.c.l.b16 %v5216
        %v5303 = vunpack.c.h.b16 %v5216
        %v5304 = vunpack.c.l.b16 %v5217
        %v5305 = vunpack.c.h.b16 %v5217
        %v5306 = vunpack.c.l.b16 %v5218
        %v5307 = vunpack.c.h.b16 %v5218
        %v5308 = vunpack.c.l.b16 %v5219
        %v5309 = vunpack.c.h.b16 %v5219
        %v5310 = vunpack.c.l.b16 %v5220
        %v5311 = vunpack.c.h.b16 %v5220
        %v5312 = vunpack.c.l.b16 %v5221
        %v5313 = vunpack.c.h.b16 %v5221
        %v5314 = vunpack.c.l.b16 %v5222
        %v5315 = vunpack.c.h.b16 %v5222
        %v5316 = vunpack.c.l.b16 %v5223
        %v5317 = vunpack.c.h.b16 %v5223
        %v5318 = vunpack.c.l.b16 %v5224
        %v5319 = vunpack.c.h.b16 %v5224
        %v5320 = vunpack.c.l.b16 %v5225
        %v5321 = vunpack.c.h.b16 %v5225
        %v5322 = vpack.c.b16 %v5260, %v5258
        %v5323 = vpack.c.b16 %v5261, %v5259
        %v5324 = vpack.c.b16 %v5264, %v5262
        %v5325 = vpack.c.b16 %v5265, %v5263
        %v5326 = vpack.c.b16 %v5268, %v5266
        %v5327 = vpack.c.b16 %v5269, %v5267
        %v5328 = vpack.c.b16 %v5272, %v5270
        %v5329 = vpack.c.b16 %v5273, %v5271
        %v5330 = vpack.c.b16 %v5276, %v5274
        %v5331 = vpack.c.b16 %v5277, %v5275
        %v5332 = vpack.c.b16 %v5280, %v5278
        %v5333 = vpack.c.b16 %v5281, %v5279
        %v5334 = vpack.c.b16 %v5284, %v5282
        %v5335 = vpack.c.b16 %v5285, %v5283
        %v5336 = vpack.c.b16 %v5288, %v5286
        %v5337 = vpack.c.b16 %v5289, %v5287
        %v5338 = vpack.c.b16 %v5292, %v5290
        %v5339 = vpack.c.b16 %v5293, %v5291
        %v5340 = vpack.c.b16 %v5296, %v5294
        %v5341 = vpack.c.b16 %v5297, %v5295
        %v5342 = vpack.c.b16 %v5300, %v5298
        %v5343 = vpack.c.b16 %v5301, %v5299
        %v5344 = vpack.c.b16 %v5304, %v5302
        %v5345 = vpack.c.b16 %v5305, %v5303
        %v5346 = vpack.c.b16 %v5308, %v5306
        %v5347 = vpack.c.b16 %v5309, %v5307
        %v5348 = vpack.c.b16 %v5312, %v5310
        %v5349 = vpack.c.b16 %v5313, %v5311
        %v5350 = vpack.c.b16 %v5316, %v5314
        %v5351 = vpack.c.b16 %v5317, %v5315
        %v5352 = vpack.c.b16 %v5320, %v5318
        %v5353 = vpack.c.b16 %v5321, %v5319
        %5386 = vmatprep.subr.bf16.mxu0 %v5323
        %5387 = vmatpush1.bf16.msra.mxu0 %v5322
        %5388 = vmatprep.subr.bf16.mxu0 %v5325
        %5389 = vmatpush1.bf16.msra.mxu0 %v5324
        %5390 = vmatprep.subr.bf16.mxu0 %v5327
        %5391 = vmatpush1.bf16.msra.mxu0 %v5326
        %5392 = vmatprep.subr.bf16.mxu0 %v5329
        %5393 = vmatpush1.bf16.msra.mxu0 %v5328
        %5394 = vmatprep.subr.bf16.mxu0 %v5331
        %5395 = vmatpush1.bf16.msra.mxu0 %v5330
        %5396 = vmatprep.subr.bf16.mxu0 %v5333
        %5397 = vmatpush1.bf16.msra.mxu0 %v5332
        %5398 = vmatprep.subr.bf16.mxu0 %v5335
        %5399 = vmatpush1.bf16.msra.mxu0 %v5334
        %5400 = vmatprep.subr.bf16.mxu0 %v5337
        %5401 = vmatpush1.bf16.msra.mxu0 %v5336
        %5402 = vmatprep.subr.bf16.mxu0 %v5339
        %5403 = vmatpush1.bf16.msra.mxu0 %v5338
        %5404 = vmatprep.subr.bf16.mxu0 %v5341
        %5405 = vmatpush1.bf16.msra.mxu0 %v5340
        %5406 = vmatprep.subr.bf16.mxu0 %v5343
        %5407 = vmatpush1.bf16.msra.mxu0 %v5342
        %5408 = vmatprep.subr.bf16.mxu0 %v5345
        %5409 = vmatpush1.bf16.msra.mxu0 %v5344
        %5410 = vmatprep.subr.bf16.mxu0 %v5347
        %5411 = vmatpush1.bf16.msra.mxu0 %v5346
        %5412 = vmatprep.subr.bf16.mxu0 %v5349
        %5413 = vmatpush1.bf16.msra.mxu0 %v5348
        %5414 = vmatprep.subr.bf16.mxu0 %v5351
        %5415 = vmatpush1.bf16.msra.mxu0 %v5350
        %5416 = vmatprep.subr.bf16.mxu0 %v5353
        %5417 = vmatpush1.bf16.msra.mxu0 %v5352
        %5418 = vmatprep.mubr.bf16.mxu0 %v5186
        %5419 = vmatmul.mubr.bf16.gmra.mrb[0].mxu0 %v5185
        %v5420 = vpop.f32.mrb[0].mxu0
        %v5421 = vadd.f32 0.0, %v5420
        %v5422 = vpop.f32.mrb[0].mxu0
        %v5423 = vadd.f32 0.0, %v5422
        %v5424 = vpop.f32.mrb[0].mxu0
        %v5425 = vadd.f32 0.0, %v5424
        %v5426 = vpop.f32.mrb[0].mxu0
        %v5427 = vadd.f32 0.0, %v5426
        %5428 = vmatprep.mubr.bf16.mxu0 %v5188
        %5429 = vmatmul.mubr.bf16.gmra.mrb[0].mxu0 %v5187
        %v5430 = vpop.f32.mrb[0].mxu0
        %v5431 = vadd.f32 0.0, %v5430
        %v5432 = vpop.f32.mrb[0].mxu0
        %v5433 = vadd.f32 0.0, %v5432
        %v5434 = vpop.f32.mrb[0].mxu0
        %v5435 = vadd.f32 0.0, %v5434
        %v5436 = vpop.f32.mrb[0].mxu0
        %v5437 = vadd.f32 0.0, %v5436
        %5438 = vmatprep.mubr.bf16.mxu0 %v5190
        %5439 = vmatmul.mubr.bf16.gmra.mrb[0].mxu0 %v5189
        %v5440 = vpop.f32.mrb[0].mxu0
        %v5441 = vadd.f32 0.0, %v5440
        %v5442 = vpop.f32.mrb[0].mxu0
        %v5443 = vadd.f32 0.0, %v5442
        %v5444 = vpop.f32.mrb[0].mxu0
        %v5445 = vadd.f32 0.0, %v5444
        %v5446 = vpop.f32.mrb[0].mxu0
        %v5447 = vadd.f32 0.0, %v5446
        %5448 = vmatprep.mubr.bf16.mxu0 %v5192
        %5449 = vmatmul.mubr.bf16.gmra.mrb[0].mxu0 %v5191
        %v5450 = vpop.f32.mrb[0].mxu0
        %v5451 = vadd.f32 0.0, %v5450
        %v5452 = vpop.f32.mrb[0].mxu0
        %v5453 = vadd.f32 0.0, %v5452
        %v5454 = vpop.f32.mrb[0].mxu0
        %v5455 = vadd.f32 0.0, %v5454
        %v5456 = vpop.f32.mrb[0].mxu0
        %v5457 = vadd.f32 0.0, %v5456
        %5458 = vdwg.mxu0
        %v5459 = vadd.f32 %v5153, %v5421
        %v5460 = vadd.f32 %v5154, %v5423
        %v5461 = vadd.f32 %v5155, %v5425
        %v5462 = vadd.f32 %v5156, %v5427
        %v5463 = vadd.f32 %v5157, %v5431
        %v5464 = vadd.f32 %v5158, %v5433
        %v5465 = vadd.f32 %v5159, %v5435
        %v5466 = vadd.f32 %v5160, %v5437
        %v5467 = vadd.f32 %v5161, %v5441
        %v5468 = vadd.f32 %v5162, %v5443
        %v5469 = vadd.f32 %v5163, %v5445
        %v5470 = vadd.f32 %v5164, %v5447
        %v5471 = vadd.f32 %v5165, %v5451
        %v5472 = vadd.f32 %v5166, %v5453
        %v5473 = vadd.f32 %v5167, %v5455
        %v5474 = vadd.f32 %v5168, %v5457
        %v5475 = vld [vmem:[%s3981] sm:$0xfe]
        %v5476 = vld [vmem:[%s3981 + $0x8] sm:$0xfe]
        %v5477 = vld [vmem:[%s3981 + $0x10] sm:$0x1]
        %v5478 = vld [vmem:[%s3981 + $0x18] sm:$0x1]
        %v5479 = vld [vmem:[%s3981 + $0x20] sm:$0xfe]
        %v5480 = vld [vmem:[%s3981 + $0x28] sm:$0xfe]
        %v5481 = vld [vmem:[%s3981 + $0x30] sm:$0x1]
        %v5482 = vld [vmem:[%s3981 + $0x38] sm:$0x1]
        %v5483 = vld [vmem:[%s3981 + $0x40] sm:$0xfe]
        %v5484 = vld [vmem:[%s3981 + $0x48] sm:$0xfe]
        %v5485 = vld [vmem:[%s3981 + $0x50] sm:$0x1]
        %v5486 = vld [vmem:[%s3981 + $0x58] sm:$0x1]
        %v5487 = vld [vmem:[%s3981 + $0x60] sm:$0xfe]
        %v5488 = vld [vmem:[%s3981 + $0x68] sm:$0xfe]
        %v5489 = vld [vmem:[%s3981 + $0x70] sm:$0x1]
        %v5490 = vld [vmem:[%s3981 + $0x78] sm:$0x1]
        %v5491 = vld [vmem:[%s3981 + $0x80] sm:$0xfe]
        %v5492 = vld [vmem:[%s3981 + $0x88] sm:$0xfe]
        %v5493 = vld [vmem:[%s3981 + $0x90] sm:$0x1]
        %v5494 = vld [vmem:[%s3981 + $0x98] sm:$0x1]
        %v5495 = vld [vmem:[%s3981 + $0xa0] sm:$0xfe]
        %v5496 = vld [vmem:[%s3981 + $0xa8] sm:$0xfe]
        %v5497 = vld [vmem:[%s3981 + $0xb0] sm:$0x1]
        %v5498 = vld [vmem:[%s3981 + $0xb8] sm:$0x1]
        %v5499 = vld [vmem:[%s3981 + $0xc0] sm:$0xfe]
        %v5500 = vld [vmem:[%s3981 + $0xc8] sm:$0xfe]
        %v5501 = vld [vmem:[%s3981 + $0xd0] sm:$0x1]
        %v5502 = vld [vmem:[%s3981 + $0xd8] sm:$0x1]
        %v5503 = vld [vmem:[%s3981 + $0xe0] sm:$0xfe]
        %v5504 = vld [vmem:[%s3981 + $0xe8] sm:$0xfe]
        %v5505 = vld [vmem:[%s3981 + $0xf0] sm:$0x1]
        %v5506 = vld [vmem:[%s3981 + $0xf8] sm:$0x1]
        %v5539 = vrot.slane %v5475, 1
        %v5540 = vrot.slane %v5477, 1
        %v5541 = vsel %vm858, %v5539, %v5540
        %v5542 = vrot.slane %v5476, 1
        %v5543 = vrot.slane %v5478, 1
        %v5544 = vsel %vm858, %v5542, %v5543
        %v5545 = vrot.slane %v5479, 1
        %v5546 = vrot.slane %v5481, 1
        %v5547 = vsel %vm858, %v5545, %v5546
        %v5548 = vrot.slane %v5480, 1
        %v5549 = vrot.slane %v5482, 1
        %v5550 = vsel %vm858, %v5548, %v5549
        %v5551 = vrot.slane %v5483, 1
        %v5552 = vrot.slane %v5485, 1
        %v5553 = vsel %vm858, %v5551, %v5552
        %v5554 = vrot.slane %v5484, 1
        %v5555 = vrot.slane %v5486, 1
        %v5556 = vsel %vm858, %v5554, %v5555
        %v5557 = vrot.slane %v5487, 1
        %v5558 = vrot.slane %v5489, 1
        %v5559 = vsel %vm858, %v5557, %v5558
        %v5560 = vrot.slane %v5488, 1
        %v5561 = vrot.slane %v5490, 1
        %v5562 = vsel %vm858, %v5560, %v5561
        %v5563 = vrot.slane %v5491, 1
        %v5564 = vrot.slane %v5493, 1
        %v5565 = vsel %vm858, %v5563, %v5564
        %v5566 = vrot.slane %v5492, 1
        %v5567 = vrot.slane %v5494, 1
        %v5568 = vsel %vm858, %v5566, %v5567
        %v5569 = vrot.slane %v5495, 1
        %v5570 = vrot.slane %v5497, 1
        %v5571 = vsel %vm858, %v5569, %v5570
        %v5572 = vrot.slane %v5496, 1
        %v5573 = vrot.slane %v5498, 1
        %v5574 = vsel %vm858, %v5572, %v5573
        %v5575 = vrot.slane %v5499, 1
        %v5576 = vrot.slane %v5501, 1
        %v5577 = vsel %vm858, %v5575, %v5576
        %v5578 = vrot.slane %v5500, 1
        %v5579 = vrot.slane %v5502, 1
        %v5580 = vsel %vm858, %v5578, %v5579
        %v5581 = vrot.slane %v5503, 1
        %v5582 = vrot.slane %v5505, 1
        %v5583 = vsel %vm858, %v5581, %v5582
        %v5584 = vrot.slane %v5504, 1
        %v5585 = vrot.slane %v5506, 1
        %v5586 = vsel %vm858, %v5584, %v5585
        %v5603 = vpack.c.bf16 %v5547, %v5541
        %v5604 = vpack.c.bf16 %v5550, %v5544
        %v5605 = vpack.c.bf16 %v5559, %v5553
        %v5606 = vpack.c.bf16 %v5562, %v5556
        %v5607 = vpack.c.bf16 %v5571, %v5565
        %v5608 = vpack.c.bf16 %v5574, %v5568
        %v5609 = vpack.c.bf16 %v5583, %v5577
        %v5610 = vpack.c.bf16 %v5586, %v5580
        %s5611 = scalar_lea.vmem [#allocation7], 3328
        %v5612 = vld [vmem:[%s5611] sm:$0xff]
        %v5613 = vld [vmem:[%s5611 + $0x8] sm:$0xff]
        %v5614 = vld [vmem:[%s5611 + $0x10] sm:$0xff]
        %v5615 = vld [vmem:[%s5611 + $0x18] sm:$0xff]
        %v5616 = vld [vmem:[%s5611 + $0x20] sm:$0xff]
        %v5617 = vld [vmem:[%s5611 + $0x28] sm:$0xff]
        %v5618 = vld [vmem:[%s5611 + $0x30] sm:$0xff]
        %v5619 = vld [vmem:[%s5611 + $0x38] sm:$0xff]
        %v5620 = vld [vmem:[%s5611 + $0x40] sm:$0xff]
        %v5621 = vld [vmem:[%s5611 + $0x48] sm:$0xff]
        %v5622 = vld [vmem:[%s5611 + $0x50] sm:$0xff]
        %v5623 = vld [vmem:[%s5611 + $0x58] sm:$0xff]
        %v5624 = vld [vmem:[%s5611 + $0x60] sm:$0xff]
        %v5625 = vld [vmem:[%s5611 + $0x68] sm:$0xff]
        %v5626 = vld [vmem:[%s5611 + $0x70] sm:$0xff]
        %v5627 = vld [vmem:[%s5611 + $0x78] sm:$0xff]
        %v5628 = vld [vmem:[%s5611 + $0x80] sm:$0xff]
        %v5629 = vld [vmem:[%s5611 + $0x88] sm:$0xff]
        %v5630 = vld [vmem:[%s5611 + $0x90] sm:$0xff]
        %v5631 = vld [vmem:[%s5611 + $0x98] sm:$0xff]
        %v5632 = vld [vmem:[%s5611 + $0xa0] sm:$0xff]
        %v5633 = vld [vmem:[%s5611 + $0xa8] sm:$0xff]
        %v5634 = vld [vmem:[%s5611 + $0xb0] sm:$0xff]
        %v5635 = vld [vmem:[%s5611 + $0xb8] sm:$0xff]
        %v5636 = vld [vmem:[%s5611 + $0xc0] sm:$0xff]
        %v5637 = vld [vmem:[%s5611 + $0xc8] sm:$0xff]
        %v5638 = vld [vmem:[%s5611 + $0xd0] sm:$0xff]
        %v5639 = vld [vmem:[%s5611 + $0xd8] sm:$0xff]
        %v5640 = vld [vmem:[%s5611 + $0xe0] sm:$0xff]
        %v5641 = vld [vmem:[%s5611 + $0xe8] sm:$0xff]
        %v5642 = vld [vmem:[%s5611 + $0xf0] sm:$0xff]
        %v5643 = vld [vmem:[%s5611 + $0xf8] sm:$0xff]
        %v5676 = vunpack.c.l.b16 %v5612
        %v5677 = vunpack.c.h.b16 %v5612
        %v5678 = vunpack.c.l.b16 %v5613
        %v5679 = vunpack.c.h.b16 %v5613
        %v5680 = vunpack.c.l.b16 %v5614
        %v5681 = vunpack.c.h.b16 %v5614
        %v5682 = vunpack.c.l.b16 %v5615
        %v5683 = vunpack.c.h.b16 %v5615
        %v5684 = vunpack.c.l.b16 %v5616
        %v5685 = vunpack.c.h.b16 %v5616
        %v5686 = vunpack.c.l.b16 %v5617
        %v5687 = vunpack.c.h.b16 %v5617
        %v5688 = vunpack.c.l.b16 %v5618
        %v5689 = vunpack.c.h.b16 %v5618
        %v5690 = vunpack.c.l.b16 %v5619
        %v5691 = vunpack.c.h.b16 %v5619
        %v5692 = vunpack.c.l.b16 %v5620
        %v5693 = vunpack.c.h.b16 %v5620
        %v5694 = vunpack.c.l.b16 %v5621
        %v5695 = vunpack.c.h.b16 %v5621
        %v5696 = vunpack.c.l.b16 %v5622
        %v5697 = vunpack.c.h.b16 %v5622
        %v5698 = vunpack.c.l.b16 %v5623
        %v5699 = vunpack.c.h.b16 %v5623
        %v5700 = vunpack.c.l.b16 %v5624
        %v5701 = vunpack.c.h.b16 %v5624
        %v5702 = vunpack.c.l.b16 %v5625
        %v5703 = vunpack.c.h.b16 %v5625
        %v5704 = vunpack.c.l.b16 %v5626
        %v5705 = vunpack.c.h.b16 %v5626
        %v5706 = vunpack.c.l.b16 %v5627
        %v5707 = vunpack.c.h.b16 %v5627
        %v5708 = vunpack.c.l.b16 %v5628
        %v5709 = vunpack.c.h.b16 %v5628
        %v5710 = vunpack.c.l.b16 %v5629
        %v5711 = vunpack.c.h.b16 %v5629
        %v5712 = vunpack.c.l.b16 %v5630
        %v5713 = vunpack.c.h.b16 %v5630
        %v5714 = vunpack.c.l.b16 %v5631
        %v5715 = vunpack.c.h.b16 %v5631
        %v5716 = vunpack.c.l.b16 %v5632
        %v5717 = vunpack.c.h.b16 %v5632
        %v5718 = vunpack.c.l.b16 %v5633
        %v5719 = vunpack.c.h.b16 %v5633
        %v5720 = vunpack.c.l.b16 %v5634
        %v5721 = vunpack.c.h.b16 %v5634
        %v5722 = vunpack.c.l.b16 %v5635
        %v5723 = vunpack.c.h.b16 %v5635
        %v5724 = vunpack.c.l.b16 %v5636
        %v5725 = vunpack.c.h.b16 %v5636
        %v5726 = vunpack.c.l.b16 %v5637
        %v5727 = vunpack.c.h.b16 %v5637
        %v5728 = vunpack.c.l.b16 %v5638
        %v5729 = vunpack.c.h.b16 %v5638
        %v5730 = vunpack.c.l.b16 %v5639
        %v5731 = vunpack.c.h.b16 %v5639
        %v5732 = vunpack.c.l.b16 %v5640
        %v5733 = vunpack.c.h.b16 %v5640
        %v5734 = vunpack.c.l.b16 %v5641
        %v5735 = vunpack.c.h.b16 %v5641
        %v5736 = vunpack.c.l.b16 %v5642
        %v5737 = vunpack.c.h.b16 %v5642
        %v5738 = vunpack.c.l.b16 %v5643
        %v5739 = vunpack.c.h.b16 %v5643
        %v5740 = vpack.c.b16 %v5678, %v5676
        %v5741 = vpack.c.b16 %v5679, %v5677
        %v5742 = vpack.c.b16 %v5682, %v5680
        %v5743 = vpack.c.b16 %v5683, %v5681
        %v5744 = vpack.c.b16 %v5686, %v5684
        %v5745 = vpack.c.b16 %v5687, %v5685
        %v5746 = vpack.c.b16 %v5690, %v5688
        %v5747 = vpack.c.b16 %v5691, %v5689
        %v5748 = vpack.c.b16 %v5694, %v5692
        %v5749 = vpack.c.b16 %v5695, %v5693
        %v5750 = vpack.c.b16 %v5698, %v5696
        %v5751 = vpack.c.b16 %v5699, %v5697
        %v5752 = vpack.c.b16 %v5702, %v5700
        %v5753 = vpack.c.b16 %v5703, %v5701
        %v5754 = vpack.c.b16 %v5706, %v5704
        %v5755 = vpack.c.b16 %v5707, %v5705
        %v5756 = vpack.c.b16 %v5710, %v5708
        %v5757 = vpack.c.b16 %v5711, %v5709
        %v5758 = vpack.c.b16 %v5714, %v5712
        %v5759 = vpack.c.b16 %v5715, %v5713
        %v5760 = vpack.c.b16 %v5718, %v5716
        %v5761 = vpack.c.b16 %v5719, %v5717
        %v5762 = vpack.c.b16 %v5722, %v5720
        %v5763 = vpack.c.b16 %v5723, %v5721
        %v5764 = vpack.c.b16 %v5726, %v5724
        %v5765 = vpack.c.b16 %v5727, %v5725
        %v5766 = vpack.c.b16 %v5730, %v5728
        %v5767 = vpack.c.b16 %v5731, %v5729
        %v5768 = vpack.c.b16 %v5734, %v5732
        %v5769 = vpack.c.b16 %v5735, %v5733
        %v5770 = vpack.c.b16 %v5738, %v5736
        %v5771 = vpack.c.b16 %v5739, %v5737
        %5804 = vmatprep.subr.bf16.mxu0 %v5741
        %5805 = vmatpush1.bf16.msra.mxu0 %v5740
        %5806 = vmatprep.subr.bf16.mxu0 %v5743
        %5807 = vmatpush1.bf16.msra.mxu0 %v5742
        %5808 = vmatprep.subr.bf16.mxu0 %v5745
        %5809 = vmatpush1.bf16.msra.mxu0 %v5744
        %5810 = vmatprep.subr.bf16.mxu0 %v5747
        %5811 = vmatpush1.bf16.msra.mxu0 %v5746
        %5812 = vmatprep.subr.bf16.mxu0 %v5749
        %5813 = vmatpush1.bf16.msra.mxu0 %v5748
        %5814 = vmatprep.subr.bf16.mxu0 %v5751
        %5815 = vmatpush1.bf16.msra.mxu0 %v5750
        %5816 = vmatprep.subr.bf16.mxu0 %v5753
        %5817 = vmatpush1.bf16.msra.mxu0 %v5752
        %5818 = vmatprep.subr.bf16.mxu0 %v5755
        %5819 = vmatpush1.bf16.msra.mxu0 %v5754
        %5820 = vmatprep.subr.bf16.mxu0 %v5757
        %5821 = vmatpush1.bf16.msra.mxu0 %v5756
        %5822 = vmatprep.subr.bf16.mxu0 %v5759
        %5823 = vmatpush1.bf16.msra.mxu0 %v5758
        %5824 = vmatprep.subr.bf16.mxu0 %v5761
        %5825 = vmatpush1.bf16.msra.mxu0 %v5760
        %5826 = vmatprep.subr.bf16.mxu0 %v5763
        %5827 = vmatpush1.bf16.msra.mxu0 %v5762
        %5828 = vmatprep.subr.bf16.mxu0 %v5765
        %5829 = vmatpush1.bf16.msra.mxu0 %v5764
        %5830 = vmatprep.subr.bf16.mxu0 %v5767
        %5831 = vmatpush1.bf16.msra.mxu0 %v5766
        %5832 = vmatprep.subr.bf16.mxu0 %v5769
        %5833 = vmatpush1.bf16.msra.mxu0 %v5768
        %5834 = vmatprep.subr.bf16.mxu0 %v5771
        %5835 = vmatpush1.bf16.msra.mxu0 %v5770
        %5836 = vmatprep.mubr.bf16.mxu0 %v5604
        %5837 = vmatmul.mubr.bf16.gmra.mrb[0].mxu0 %v5603
        %v5838 = vpop.f32.mrb[0].mxu0
        %v5839 = vadd.f32 0.0, %v5838
        %v5840 = vpop.f32.mrb[0].mxu0
        %v5841 = vadd.f32 0.0, %v5840
        %v5842 = vpop.f32.mrb[0].mxu0
        %v5843 = vadd.f32 0.0, %v5842
        %v5844 = vpop.f32.mrb[0].mxu0
        %v5845 = vadd.f32 0.0, %v5844
        %5846 = vmatprep.mubr.bf16.mxu0 %v5606
        %5847 = vmatmul.mubr.bf16.gmra.mrb[0].mxu0 %v5605
        %v5848 = vpop.f32.mrb[0].mxu0
        %v5849 = vadd.f32 0.0, %v5848
        %v5850 = vpop.f32.mrb[0].mxu0
        %v5851 = vadd.f32 0.0, %v5850
        %v5852 = vpop.f32.mrb[0].mxu0
        %v5853 = vadd.f32 0.0, %v5852
        %v5854 = vpop.f32.mrb[0].mxu0
        %v5855 = vadd.f32 0.0, %v5854
        %5856 = vmatprep.mubr.bf16.mxu0 %v5608
        %5857 = vmatmul.mubr.bf16.gmra.mrb[0].mxu0 %v5607
        %v5858 = vpop.f32.mrb[0].mxu0
        %v5859 = vadd.f32 0.0, %v5858
        %v5860 = vpop.f32.mrb[0].mxu0
        %v5861 = vadd.f32 0.0, %v5860
        %v5862 = vpop.f32.mrb[0].mxu0
        %v5863 = vadd.f32 0.0, %v5862
        %v5864 = vpop.f32.mrb[0].mxu0
        %v5865 = vadd.f32 0.0, %v5864
        %5866 = vmatprep.mubr.bf16.mxu0 %v5610
        %5867 = vmatmul.mubr.bf16.gmra.mrb[0].mxu0 %v5609
        %v5868 = vpop.f32.mrb[0].mxu0
        %v5869 = vadd.f32 0.0, %v5868
        %v5870 = vpop.f32.mrb[0].mxu0
        %v5871 = vadd.f32 0.0, %v5870
        %v5872 = vpop.f32.mrb[0].mxu0
        %v5873 = vadd.f32 0.0, %v5872
        %v5874 = vpop.f32.mrb[0].mxu0
        %v5875 = vadd.f32 0.0, %v5874
        %5876 = vdwg.mxu0
        %v5877 = vadd.f32 %v5459, %v5839
        %v5878 = vadd.f32 %v5460, %v5841
        %v5879 = vadd.f32 %v5461, %v5843
        %v5880 = vadd.f32 %v5462, %v5845
        %v5881 = vadd.f32 %v5463, %v5849
        %v5882 = vadd.f32 %v5464, %v5851
        %v5883 = vadd.f32 %v5465, %v5853
        %v5884 = vadd.f32 %v5466, %v5855
        %v5885 = vadd.f32 %v5467, %v5859
        %v5886 = vadd.f32 %v5468, %v5861
        %v5887 = vadd.f32 %v5469, %v5863
        %v5888 = vadd.f32 %v5470, %v5865
        %v5889 = vadd.f32 %v5471, %v5869
        %v5890 = vadd.f32 %v5472, %v5871
        %v5891 = vadd.f32 %v5473, %v5873
        %v5892 = vadd.f32 %v5474, %v5875
        %v5893 = vld [vmem:[%s3981] sm:$0xfc]
        %v5894 = vld [vmem:[%s3981 + $0x8] sm:$0xfc]
        %v5895 = vld [vmem:[%s3981 + $0x10] sm:$0x3]
        %v5896 = vld [vmem:[%s3981 + $0x18] sm:$0x3]
        %v5897 = vld [vmem:[%s3981 + $0x20] sm:$0xfc]
        %v5898 = vld [vmem:[%s3981 + $0x28] sm:$0xfc]
        %v5899 = vld [vmem:[%s3981 + $0x30] sm:$0x3]
        %v5900 = vld [vmem:[%s3981 + $0x38] sm:$0x3]
        %v5901 = vld [vmem:[%s3981 + $0x40] sm:$0xfc]
        %v5902 = vld [vmem:[%s3981 + $0x48] sm:$0xfc]
        %v5903 = vld [vmem:[%s3981 + $0x50] sm:$0x3]
        %v5904 = vld [vmem:[%s3981 + $0x58] sm:$0x3]
        %v5905 = vld [vmem:[%s3981 + $0x60] sm:$0xfc]
        %v5906 = vld [vmem:[%s3981 + $0x68] sm:$0xfc]
        %v5907 = vld [vmem:[%s3981 + $0x70] sm:$0x3]
        %v5908 = vld [vmem:[%s3981 + $0x78] sm:$0x3]
        %v5909 = vld [vmem:[%s3981 + $0x80] sm:$0xfc]
        %v5910 = vld [vmem:[%s3981 + $0x88] sm:$0xfc]
        %v5911 = vld [vmem:[%s3981 + $0x90] sm:$0x3]
        %v5912 = vld [vmem:[%s3981 + $0x98] sm:$0x3]
        %v5913 = vld [vmem:[%s3981 + $0xa0] sm:$0xfc]
        %v5914 = vld [vmem:[%s3981 + $0xa8] sm:$0xfc]
        %v5915 = vld [vmem:[%s3981 + $0xb0] sm:$0x3]
        %v5916 = vld [vmem:[%s3981 + $0xb8] sm:$0x3]
        %v5917 = vld [vmem:[%s3981 + $0xc0] sm:$0xfc]
        %v5918 = vld [vmem:[%s3981 + $0xc8] sm:$0xfc]
        %v5919 = vld [vmem:[%s3981 + $0xd0] sm:$0x3]
        %v5920 = vld [vmem:[%s3981 + $0xd8] sm:$0x3]
        %v5921 = vld [vmem:[%s3981 + $0xe0] sm:$0xfc]
        %v5922 = vld [vmem:[%s3981 + $0xe8] sm:$0xfc]
        %v5923 = vld [vmem:[%s3981 + $0xf0] sm:$0x3]
        %v5924 = vld [vmem:[%s3981 + $0xf8] sm:$0x3]
        %v5957 = vrot.slane %v5893, 2
        %v5958 = vrot.slane %v5895, 2
        %v5959 = vsel %vm1277, %v5957, %v5958
        %v5960 = vrot.slane %v5894, 2
        %v5961 = vrot.slane %v5896, 2
        %v5962 = vsel %vm1277, %v5960, %v5961
        %v5963 = vrot.slane %v5897, 2
        %v5964 = vrot.slane %v5899, 2
        %v5965 = vsel %vm1277, %v5963, %v5964
        %v5966 = vrot.slane %v5898, 2
        %v5967 = vrot.slane %v5900, 2
        %v5968 = vsel %vm1277, %v5966, %v5967
        %v5969 = vrot.slane %v5901, 2
        %v5970 = vrot.slane %v5903, 2
        %v5971 = vsel %vm1277, %v5969, %v5970
        %v5972 = vrot.slane %v5902, 2
        %v5973 = vrot.slane %v5904, 2
        %v5974 = vsel %vm1277, %v5972, %v5973
        %v5975 = vrot.slane %v5905, 2
        %v5976 = vrot.slane %v5907, 2
        %v5977 = vsel %vm1277, %v5975, %v5976
        %v5978 = vrot.slane %v5906, 2
        %v5979 = vrot.slane %v5908, 2
        %v5980 = vsel %vm1277, %v5978, %v5979
        %v5981 = vrot.slane %v5909, 2
        %v5982 = vrot.slane %v5911, 2
        %v5983 = vsel %vm1277, %v5981, %v5982
        %v5984 = vrot.slane %v5910, 2
        %v5985 = vrot.slane %v5912, 2
        %v5986 = vsel %vm1277, %v5984, %v5985
        %v5987 = vrot.slane %v5913, 2
        %v5988 = vrot.slane %v5915, 2
        %v5989 = vsel %vm1277, %v5987, %v5988
        %v5990 = vrot.slane %v5914, 2
        %v5991 = vrot.slane %v5916, 2
        %v5992 = vsel %vm1277, %v5990, %v5991
        %v5993 = vrot.slane %v5917, 2
        %v5994 = vrot.slane %v5919, 2
        %v5995 = vsel %vm1277, %v5993, %v5994
        %v5996 = vrot.slane %v5918, 2
        %v5997 = vrot.slane %v5920, 2
        %v5998 = vsel %vm1277, %v5996, %v5997
        %v5999 = vrot.slane %v5921, 2
        %v6000 = vrot.slane %v5923, 2
        %v6001 = vsel %vm1277, %v5999, %v6000
        %v6002 = vrot.slane %v5922, 2
        %v6003 = vrot.slane %v5924, 2
        %v6004 = vsel %vm1277, %v6002, %v6003
        %v6021 = vpack.c.bf16 %v5965, %v5959
        %v6022 = vpack.c.bf16 %v5968, %v5962
        %v6023 = vpack.c.bf16 %v5977, %v5971
        %v6024 = vpack.c.bf16 %v5980, %v5974
        %v6025 = vpack.c.bf16 %v5989, %v5983
        %v6026 = vpack.c.bf16 %v5992, %v5986
        %v6027 = vpack.c.bf16 %v6001, %v5995
        %v6028 = vpack.c.bf16 %v6004, %v5998
        %s6029 = scalar_lea.vmem [#allocation7], 3584
        %v6030 = vld [vmem:[%s6029] sm:$0xff]
        %v6031 = vld [vmem:[%s6029 + $0x8] sm:$0xff]
        %v6032 = vld [vmem:[%s6029 + $0x10] sm:$0xff]
        %v6033 = vld [vmem:[%s6029 + $0x18] sm:$0xff]
        %v6034 = vld [vmem:[%s6029 + $0x20] sm:$0xff]
        %v6035 = vld [vmem:[%s6029 + $0x28] sm:$0xff]
        %v6036 = vld [vmem:[%s6029 + $0x30] sm:$0xff]
        %v6037 = vld [vmem:[%s6029 + $0x38] sm:$0xff]
        %v6038 = vld [vmem:[%s6029 + $0x40] sm:$0xff]
        %v6039 = vld [vmem:[%s6029 + $0x48] sm:$0xff]
        %v6040 = vld [vmem:[%s6029 + $0x50] sm:$0xff]
        %v6041 = vld [vmem:[%s6029 + $0x58] sm:$0xff]
        %v6042 = vld [vmem:[%s6029 + $0x60] sm:$0xff]
        %v6043 = vld [vmem:[%s6029 + $0x68] sm:$0xff]
        %v6044 = vld [vmem:[%s6029 + $0x70] sm:$0xff]
        %v6045 = vld [vmem:[%s6029 + $0x78] sm:$0xff]
        %v6046 = vld [vmem:[%s6029 + $0x80] sm:$0xff]
        %v6047 = vld [vmem:[%s6029 + $0x88] sm:$0xff]
        %v6048 = vld [vmem:[%s6029 + $0x90] sm:$0xff]
        %v6049 = vld [vmem:[%s6029 + $0x98] sm:$0xff]
        %v6050 = vld [vmem:[%s6029 + $0xa0] sm:$0xff]
        %v6051 = vld [vmem:[%s6029 + $0xa8] sm:$0xff]
        %v6052 = vld [vmem:[%s6029 + $0xb0] sm:$0xff]
        %v6053 = vld [vmem:[%s6029 + $0xb8] sm:$0xff]
        %v6054 = vld [vmem:[%s6029 + $0xc0] sm:$0xff]
        %v6055 = vld [vmem:[%s6029 + $0xc8] sm:$0xff]
        %v6056 = vld [vmem:[%s6029 + $0xd0] sm:$0xff]
        %v6057 = vld [vmem:[%s6029 + $0xd8] sm:$0xff]
        %v6058 = vld [vmem:[%s6029 + $0xe0] sm:$0xff]
        %v6059 = vld [vmem:[%s6029 + $0xe8] sm:$0xff]
        %v6060 = vld [vmem:[%s6029 + $0xf0] sm:$0xff]
        %v6061 = vld [vmem:[%s6029 + $0xf8] sm:$0xff]
        %v6094 = vunpack.c.l.b16 %v6030
        %v6095 = vunpack.c.h.b16 %v6030
        %v6096 = vunpack.c.l.b16 %v6031
        %v6097 = vunpack.c.h.b16 %v6031
        %v6098 = vunpack.c.l.b16 %v6032
        %v6099 = vunpack.c.h.b16 %v6032
        %v6100 = vunpack.c.l.b16 %v6033
        %v6101 = vunpack.c.h.b16 %v6033
        %v6102 = vunpack.c.l.b16 %v6034
        %v6103 = vunpack.c.h.b16 %v6034
        %v6104 = vunpack.c.l.b16 %v6035
        %v6105 = vunpack.c.h.b16 %v6035
        %v6106 = vunpack.c.l.b16 %v6036
        %v6107 = vunpack.c.h.b16 %v6036
        %v6108 = vunpack.c.l.b16 %v6037
        %v6109 = vunpack.c.h.b16 %v6037
        %v6110 = vunpack.c.l.b16 %v6038
        %v6111 = vunpack.c.h.b16 %v6038
        %v6112 = vunpack.c.l.b16 %v6039
        %v6113 = vunpack.c.h.b16 %v6039
        %v6114 = vunpack.c.l.b16 %v6040
        %v6115 = vunpack.c.h.b16 %v6040
        %v6116 = vunpack.c.l.b16 %v6041
        %v6117 = vunpack.c.h.b16 %v6041
        %v6118 = vunpack.c.l.b16 %v6042
        %v6119 = vunpack.c.h.b16 %v6042
        %v6120 = vunpack.c.l.b16 %v6043
        %v6121 = vunpack.c.h.b16 %v6043
        %v6122 = vunpack.c.l.b16 %v6044
        %v6123 = vunpack.c.h.b16 %v6044
        %v6124 = vunpack.c.l.b16 %v6045
        %v6125 = vunpack.c.h.b16 %v6045
        %v6126 = vunpack.c.l.b16 %v6046
        %v6127 = vunpack.c.h.b16 %v6046
        %v6128 = vunpack.c.l.b16 %v6047
        %v6129 = vunpack.c.h.b16 %v6047
        %v6130 = vunpack.c.l.b16 %v6048
        %v6131 = vunpack.c.h.b16 %v6048
        %v6132 = vunpack.c.l.b16 %v6049
        %v6133 = vunpack.c.h.b16 %v6049
        %v6134 = vunpack.c.l.b16 %v6050
        %v6135 = vunpack.c.h.b16 %v6050
        %v6136 = vunpack.c.l.b16 %v6051
        %v6137 = vunpack.c.h.b16 %v6051
        %v6138 = vunpack.c.l.b16 %v6052
        %v6139 = vunpack.c.h.b16 %v6052
        %v6140 = vunpack.c.l.b16 %v6053
        %v6141 = vunpack.c.h.b16 %v6053
        %v6142 = vunpack.c.l.b16 %v6054
        %v6143 = vunpack.c.h.b16 %v6054
        %v6144 = vunpack.c.l.b16 %v6055
        %v6145 = vunpack.c.h.b16 %v6055
        %v6146 = vunpack.c.l.b16 %v6056
        %v6147 = vunpack.c.h.b16 %v6056
        %v6148 = vunpack.c.l.b16 %v6057
        %v6149 = vunpack.c.h.b16 %v6057
        %v6150 = vunpack.c.l.b16 %v6058
        %v6151 = vunpack.c.h.b16 %v6058
        %v6152 = vunpack.c.l.b16 %v6059
        %v6153 = vunpack.c.h.b16 %v6059
        %v6154 = vunpack.c.l.b16 %v6060
        %v6155 = vunpack.c.h.b16 %v6060
        %v6156 = vunpack.c.l.b16 %v6061
        %v6157 = vunpack.c.h.b16 %v6061
        %v6158 = vpack.c.b16 %v6096, %v6094
        %v6159 = vpack.c.b16 %v6097, %v6095
        %v6160 = vpack.c.b16 %v6100, %v6098
        %v6161 = vpack.c.b16 %v6101, %v6099
        %v6162 = vpack.c.b16 %v6104, %v6102
        %v6163 = vpack.c.b16 %v6105, %v6103
        %v6164 = vpack.c.b16 %v6108, %v6106
        %v6165 = vpack.c.b16 %v6109, %v6107
        %v6166 = vpack.c.b16 %v6112, %v6110
        %v6167 = vpack.c.b16 %v6113, %v6111
        %v6168 = vpack.c.b16 %v6116, %v6114
        %v6169 = vpack.c.b16 %v6117, %v6115
        %v6170 = vpack.c.b16 %v6120, %v6118
        %v6171 = vpack.c.b16 %v6121, %v6119
        %v6172 = vpack.c.b16 %v6124, %v6122
        %v6173 = vpack.c.b16 %v6125, %v6123
        %v6174 = vpack.c.b16 %v6128, %v6126
        %v6175 = vpack.c.b16 %v6129, %v6127
        %v6176 = vpack.c.b16 %v6132, %v6130
        %v6177 = vpack.c.b16 %v6133, %v6131
        %v6178 = vpack.c.b16 %v6136, %v6134
        %v6179 = vpack.c.b16 %v6137, %v6135
        %v6180 = vpack.c.b16 %v6140, %v6138
        %v6181 = vpack.c.b16 %v6141, %v6139
        %v6182 = vpack.c.b16 %v6144, %v6142
        %v6183 = vpack.c.b16 %v6145, %v6143
        %v6184 = vpack.c.b16 %v6148, %v6146
        %v6185 = vpack.c.b16 %v6149, %v6147
        %v6186 = vpack.c.b16 %v6152, %v6150
        %v6187 = vpack.c.b16 %v6153, %v6151
        %v6188 = vpack.c.b16 %v6156, %v6154
        %v6189 = vpack.c.b16 %v6157, %v6155
        %6222 = vmatprep.subr.bf16.mxu0 %v6159
        %6223 = vmatpush1.bf16.msra.mxu0 %v6158
        %6224 = vmatprep.subr.bf16.mxu0 %v6161
        %6225 = vmatpush1.bf16.msra.mxu0 %v6160
        %6226 = vmatprep.subr.bf16.mxu0 %v6163
        %6227 = vmatpush1.bf16.msra.mxu0 %v6162
        %6228 = vmatprep.subr.bf16.mxu0 %v6165
        %6229 = vmatpush1.bf16.msra.mxu0 %v6164
        %6230 = vmatprep.subr.bf16.mxu0 %v6167
        %6231 = vmatpush1.bf16.msra.mxu0 %v6166
        %6232 = vmatprep.subr.bf16.mxu0 %v6169
        %6233 = vmatpush1.bf16.msra.mxu0 %v6168
        %6234 = vmatprep.subr.bf16.mxu0 %v6171
        %6235 = vmatpush1.bf16.msra.mxu0 %v6170
        %6236 = vmatprep.subr.bf16.mxu0 %v6173
        %6237 = vmatpush1.bf16.msra.mxu0 %v6172
        %6238 = vmatprep.subr.bf16.mxu0 %v6175
        %6239 = vmatpush1.bf16.msra.mxu0 %v6174
        %6240 = vmatprep.subr.bf16.mxu0 %v6177
        %6241 = vmatpush1.bf16.msra.mxu0 %v6176
        %6242 = vmatprep.subr.bf16.mxu0 %v6179
        %6243 = vmatpush1.bf16.msra.mxu0 %v6178
        %6244 = vmatprep.subr.bf16.mxu0 %v6181
        %6245 = vmatpush1.bf16.msra.mxu0 %v6180
        %6246 = vmatprep.subr.bf16.mxu0 %v6183
        %6247 = vmatpush1.bf16.msra.mxu0 %v6182
        %6248 = vmatprep.subr.bf16.mxu0 %v6185
        %6249 = vmatpush1.bf16.msra.mxu0 %v6184
        %6250 = vmatprep.subr.bf16.mxu0 %v6187
        %6251 = vmatpush1.bf16.msra.mxu0 %v6186
        %6252 = vmatprep.subr.bf16.mxu0 %v6189
        %6253 = vmatpush1.bf16.msra.mxu0 %v6188
        %6254 = vmatprep.mubr.bf16.mxu0 %v6022
        %6255 = vmatmul.mubr.bf16.gmra.mrb[0].mxu0 %v6021
        %v6256 = vpop.f32.mrb[0].mxu0
        %v6257 = vadd.f32 0.0, %v6256
        %v6258 = vpop.f32.mrb[0].mxu0
        %v6259 = vadd.f32 0.0, %v6258
        %v6260 = vpop.f32.mrb[0].mxu0
        %v6261 = vadd.f32 0.0, %v6260
        %v6262 = vpop.f32.mrb[0].mxu0
        %v6263 = vadd.f32 0.0, %v6262
        %6264 = vmatprep.mubr.bf16.mxu0 %v6024
        %6265 = vmatmul.mubr.bf16.gmra.mrb[0].mxu0 %v6023
        %v6266 = vpop.f32.mrb[0].mxu0
        %v6267 = vadd.f32 0.0, %v6266
        %v6268 = vpop.f32.mrb[0].mxu0
        %v6269 = vadd.f32 0.0, %v6268
        %v6270 = vpop.f32.mrb[0].mxu0
        %v6271 = vadd.f32 0.0, %v6270
        %v6272 = vpop.f32.mrb[0].mxu0
        %v6273 = vadd.f32 0.0, %v6272
        %6274 = vmatprep.mubr.bf16.mxu0 %v6026
        %6275 = vmatmul.mubr.bf16.gmra.mrb[0].mxu0 %v6025
        %v6276 = vpop.f32.mrb[0].mxu0
        %v6277 = vadd.f32 0.0, %v6276
        %v6278 = vpop.f32.mrb[0].mxu0
        %v6279 = vadd.f32 0.0, %v6278
        %v6280 = vpop.f32.mrb[0].mxu0
        %v6281 = vadd.f32 0.0, %v6280
        %v6282 = vpop.f32.mrb[0].mxu0
        %v6283 = vadd.f32 0.0, %v6282
        %6284 = vmatprep.mubr.bf16.mxu0 %v6028
        %6285 = vmatmul.mubr.bf16.gmra.mrb[0].mxu0 %v6027
        %v6286 = vpop.f32.mrb[0].mxu0
        %v6287 = vadd.f32 0.0, %v6286
        %v6288 = vpop.f32.mrb[0].mxu0
        %v6289 = vadd.f32 0.0, %v6288
        %v6290 = vpop.f32.mrb[0].mxu0
        %v6291 = vadd.f32 0.0, %v6290
        %v6292 = vpop.f32.mrb[0].mxu0
        %v6293 = vadd.f32 0.0, %v6292
        %6294 = vdwg.mxu0
        %v6295 = vadd.f32 %v5877, %v6257
        %v6296 = vadd.f32 %v5878, %v6259
        %v6297 = vadd.f32 %v5879, %v6261
        %v6298 = vadd.f32 %v5880, %v6263
        %v6299 = vadd.f32 %v5881, %v6267
        %v6300 = vadd.f32 %v5882, %v6269
        %v6301 = vadd.f32 %v5883, %v6271
        %v6302 = vadd.f32 %v5884, %v6273
        %v6303 = vadd.f32 %v5885, %v6277
        %v6304 = vadd.f32 %v5886, %v6279
        %v6305 = vadd.f32 %v5887, %v6281
        %v6306 = vadd.f32 %v5888, %v6283
        %v6307 = vadd.f32 %v5889, %v6287
        %v6308 = vadd.f32 %v5890, %v6289
        %v6309 = vadd.f32 %v5891, %v6291
        %v6310 = vadd.f32 %v5892, %v6293
        %s6311 = scalar_lea.vmem [#allocation3], 64
        %v6312 = vld [vmem:[%s6311] sm:$0xff]
        %v6313 = vld [vmem:[%s6311 + $0x8] sm:$0xff]
        %v6314 = vld [vmem:[%s6311 + $0x20] sm:$0xff]
        %v6315 = vld [vmem:[%s6311 + $0x28] sm:$0xff]
        %v6316 = vld [vmem:[%s6311 + $0x40] sm:$0xff]
        %v6317 = vld [vmem:[%s6311 + $0x48] sm:$0xff]
        %v6318 = vld [vmem:[%s6311 + $0x60] sm:$0xff]
        %v6319 = vld [vmem:[%s6311 + $0x68] sm:$0xff]
        %v6320 = vld [vmem:[%s6311 + $0x80] sm:$0xff]
        %v6321 = vld [vmem:[%s6311 + $0x88] sm:$0xff]
        %v6322 = vld [vmem:[%s6311 + $0xa0] sm:$0xff]
        %v6323 = vld [vmem:[%s6311 + $0xa8] sm:$0xff]
        %v6324 = vld [vmem:[%s6311 + $0xc0] sm:$0xff]
        %v6325 = vld [vmem:[%s6311 + $0xc8] sm:$0xff]
        %v6326 = vld [vmem:[%s6311 + $0xe0] sm:$0xff]
        %v6327 = vld [vmem:[%s6311 + $0xe8] sm:$0xff]
        %v6328 = vpack.c.bf16 %v6314, %v6312
        %v6329 = vpack.c.bf16 %v6315, %v6313
        %v6330 = vpack.c.bf16 %v6318, %v6316
        %v6331 = vpack.c.bf16 %v6319, %v6317
        %v6332 = vpack.c.bf16 %v6322, %v6320
        %v6333 = vpack.c.bf16 %v6323, %v6321
        %v6334 = vpack.c.bf16 %v6326, %v6324
        %v6335 = vpack.c.bf16 %v6327, %v6325
        %s6336 = scalar_lea.vmem [#allocation7], 3840
        %v6337 = vld [vmem:[%s6336] sm:$0xff]
        %v6338 = vld [vmem:[%s6336 + $0x8] sm:$0xff]
        %v6339 = vld [vmem:[%s6336 + $0x10] sm:$0xff]
        %v6340 = vld [vmem:[%s6336 + $0x18] sm:$0xff]
        %v6341 = vld [vmem:[%s6336 + $0x20] sm:$0xff]
        %v6342 = vld [vmem:[%s6336 + $0x28] sm:$0xff]
        %v6343 = vld [vmem:[%s6336 + $0x30] sm:$0xff]
        %v6344 = vld [vmem:[%s6336 + $0x38] sm:$0xff]
        %v6345 = vld [vmem:[%s6336 + $0x40] sm:$0xff]
        %v6346 = vld [vmem:[%s6336 + $0x48] sm:$0xff]
        %v6347 = vld [vmem:[%s6336 + $0x50] sm:$0xff]
        %v6348 = vld [vmem:[%s6336 + $0x58] sm:$0xff]
        %v6349 = vld [vmem:[%s6336 + $0x60] sm:$0xff]
        %v6350 = vld [vmem:[%s6336 + $0x68] sm:$0xff]
        %v6351 = vld [vmem:[%s6336 + $0x70] sm:$0xff]
        %v6352 = vld [vmem:[%s6336 + $0x78] sm:$0xff]
        %v6353 = vld [vmem:[%s6336 + $0x80] sm:$0xff]
        %v6354 = vld [vmem:[%s6336 + $0x88] sm:$0xff]
        %v6355 = vld [vmem:[%s6336 + $0x90] sm:$0xff]
        %v6356 = vld [vmem:[%s6336 + $0x98] sm:$0xff]
        %v6357 = vld [vmem:[%s6336 + $0xa0] sm:$0xff]
        %v6358 = vld [vmem:[%s6336 + $0xa8] sm:$0xff]
        %v6359 = vld [vmem:[%s6336 + $0xb0] sm:$0xff]
        %v6360 = vld [vmem:[%s6336 + $0xb8] sm:$0xff]
        %v6361 = vld [vmem:[%s6336 + $0xc0] sm:$0xff]
        %v6362 = vld [vmem:[%s6336 + $0xc8] sm:$0xff]
        %v6363 = vld [vmem:[%s6336 + $0xd0] sm:$0xff]
        %v6364 = vld [vmem:[%s6336 + $0xd8] sm:$0xff]
        %v6365 = vld [vmem:[%s6336 + $0xe0] sm:$0xff]
        %v6366 = vld [vmem:[%s6336 + $0xe8] sm:$0xff]
        %v6367 = vld [vmem:[%s6336 + $0xf0] sm:$0xff]
        %v6368 = vld [vmem:[%s6336 + $0xf8] sm:$0xff]
        %v6401 = vunpack.c.l.b16 %v6337
        %v6402 = vunpack.c.h.b16 %v6337
        %v6403 = vunpack.c.l.b16 %v6338
        %v6404 = vunpack.c.h.b16 %v6338
        %v6405 = vunpack.c.l.b16 %v6339
        %v6406 = vunpack.c.h.b16 %v6339
        %v6407 = vunpack.c.l.b16 %v6340
        %v6408 = vunpack.c.h.b16 %v6340
        %v6409 = vunpack.c.l.b16 %v6341
        %v6410 = vunpack.c.h.b16 %v6341
        %v6411 = vunpack.c.l.b16 %v6342
        %v6412 = vunpack.c.h.b16 %v6342
        %v6413 = vunpack.c.l.b16 %v6343
        %v6414 = vunpack.c.h.b16 %v6343
        %v6415 = vunpack.c.l.b16 %v6344
        %v6416 = vunpack.c.h.b16 %v6344
        %v6417 = vunpack.c.l.b16 %v6345
        %v6418 = vunpack.c.h.b16 %v6345
        %v6419 = vunpack.c.l.b16 %v6346
        %v6420 = vunpack.c.h.b16 %v6346
        %v6421 = vunpack.c.l.b16 %v6347
        %v6422 = vunpack.c.h.b16 %v6347
        %v6423 = vunpack.c.l.b16 %v6348
        %v6424 = vunpack.c.h.b16 %v6348
        %v6425 = vunpack.c.l.b16 %v6349
        %v6426 = vunpack.c.h.b16 %v6349
        %v6427 = vunpack.c.l.b16 %v6350
        %v6428 = vunpack.c.h.b16 %v6350
        %v6429 = vunpack.c.l.b16 %v6351
        %v6430 = vunpack.c.h.b16 %v6351
        %v6431 = vunpack.c.l.b16 %v6352
        %v6432 = vunpack.c.h.b16 %v6352
        %v6433 = vunpack.c.l.b16 %v6353
        %v6434 = vunpack.c.h.b16 %v6353
        %v6435 = vunpack.c.l.b16 %v6354
        %v6436 = vunpack.c.h.b16 %v6354
        %v6437 = vunpack.c.l.b16 %v6355
        %v6438 = vunpack.c.h.b16 %v6355
        %v6439 = vunpack.c.l.b16 %v6356
        %v6440 = vunpack.c.h.b16 %v6356
        %v6441 = vunpack.c.l.b16 %v6357
        %v6442 = vunpack.c.h.b16 %v6357
        %v6443 = vunpack.c.l.b16 %v6358
        %v6444 = vunpack.c.h.b16 %v6358
        %v6445 = vunpack.c.l.b16 %v6359
        %v6446 = vunpack.c.h.b16 %v6359
        %v6447 = vunpack.c.l.b16 %v6360
        %v6448 = vunpack.c.h.b16 %v6360
        %v6449 = vunpack.c.l.b16 %v6361
        %v6450 = vunpack.c.h.b16 %v6361
        %v6451 = vunpack.c.l.b16 %v6362
        %v6452 = vunpack.c.h.b16 %v6362
        %v6453 = vunpack.c.l.b16 %v6363
        %v6454 = vunpack.c.h.b16 %v6363
        %v6455 = vunpack.c.l.b16 %v6364
        %v6456 = vunpack.c.h.b16 %v6364
        %v6457 = vunpack.c.l.b16 %v6365
        %v6458 = vunpack.c.h.b16 %v6365
        %v6459 = vunpack.c.l.b16 %v6366
        %v6460 = vunpack.c.h.b16 %v6366
        %v6461 = vunpack.c.l.b16 %v6367
        %v6462 = vunpack.c.h.b16 %v6367
        %v6463 = vunpack.c.l.b16 %v6368
        %v6464 = vunpack.c.h.b16 %v6368
        %v6465 = vpack.c.b16 %v6403, %v6401
        %v6466 = vpack.c.b16 %v6404, %v6402
        %v6467 = vpack.c.b16 %v6407, %v6405
        %v6468 = vpack.c.b16 %v6408, %v6406
        %v6469 = vpack.c.b16 %v6411, %v6409
        %v6470 = vpack.c.b16 %v6412, %v6410
        %v6471 = vpack.c.b16 %v6415, %v6413
        %v6472 = vpack.c.b16 %v6416, %v6414
        %v6473 = vpack.c.b16 %v6419, %v6417
        %v6474 = vpack.c.b16 %v6420, %v6418
        %v6475 = vpack.c.b16 %v6423, %v6421
        %v6476 = vpack.c.b16 %v6424, %v6422
        %v6477 = vpack.c.b16 %v6427, %v6425
        %v6478 = vpack.c.b16 %v6428, %v6426
        %v6479 = vpack.c.b16 %v6431, %v6429
        %v6480 = vpack.c.b16 %v6432, %v6430
        %v6481 = vpack.c.b16 %v6435, %v6433
        %v6482 = vpack.c.b16 %v6436, %v6434
        %v6483 = vpack.c.b16 %v6439, %v6437
        %v6484 = vpack.c.b16 %v6440, %v6438
        %v6485 = vpack.c.b16 %v6443, %v6441
        %v6486 = vpack.c.b16 %v6444, %v6442
        %v6487 = vpack.c.b16 %v6447, %v6445
        %v6488 = vpack.c.b16 %v6448, %v6446
        %v6489 = vpack.c.b16 %v6451, %v6449
        %v6490 = vpack.c.b16 %v6452, %v6450
        %v6491 = vpack.c.b16 %v6455, %v6453
        %v6492 = vpack.c.b16 %v6456, %v6454
        %v6493 = vpack.c.b16 %v6459, %v6457
        %v6494 = vpack.c.b16 %v6460, %v6458
        %v6495 = vpack.c.b16 %v6463, %v6461
        %v6496 = vpack.c.b16 %v6464, %v6462
        %6529 = vmatprep.subr.bf16.mxu0 %v6466
        %6530 = vmatpush1.bf16.msra.mxu0 %v6465
        %6531 = vmatprep.subr.bf16.mxu0 %v6468
        %6532 = vmatpush1.bf16.msra.mxu0 %v6467
        %6533 = vmatprep.subr.bf16.mxu0 %v6470
        %6534 = vmatpush1.bf16.msra.mxu0 %v6469
        %6535 = vmatprep.subr.bf16.mxu0 %v6472
        %6536 = vmatpush1.bf16.msra.mxu0 %v6471
        %6537 = vmatprep.subr.bf16.mxu0 %v6474
        %6538 = vmatpush1.bf16.msra.mxu0 %v6473
        %6539 = vmatprep.subr.bf16.mxu0 %v6476
        %6540 = vmatpush1.bf16.msra.mxu0 %v6475
        %6541 = vmatprep.subr.bf16.mxu0 %v6478
        %6542 = vmatpush1.bf16.msra.mxu0 %v6477
        %6543 = vmatprep.subr.bf16.mxu0 %v6480
        %6544 = vmatpush1.bf16.msra.mxu0 %v6479
        %6545 = vmatprep.subr.bf16.mxu0 %v6482
        %6546 = vmatpush1.bf16.msra.mxu0 %v6481
        %6547 = vmatprep.subr.bf16.mxu0 %v6484
        %6548 = vmatpush1.bf16.msra.mxu0 %v6483
        %6549 = vmatprep.subr.bf16.mxu0 %v6486
        %6550 = vmatpush1.bf16.msra.mxu0 %v6485
        %6551 = vmatprep.subr.bf16.mxu0 %v6488
        %6552 = vmatpush1.bf16.msra.mxu0 %v6487
        %6553 = vmatprep.subr.bf16.mxu0 %v6490
        %6554 = vmatpush1.bf16.msra.mxu0 %v6489
        %6555 = vmatprep.subr.bf16.mxu0 %v6492
        %6556 = vmatpush1.bf16.msra.mxu0 %v6491
        %6557 = vmatprep.subr.bf16.mxu0 %v6494
        %6558 = vmatpush1.bf16.msra.mxu0 %v6493
        %6559 = vmatprep.subr.bf16.mxu0 %v6496
        %6560 = vmatpush1.bf16.msra.mxu0 %v6495
        %6561 = vmatprep.mubr.bf16.mxu0 %v6329
        %6562 = vmatmul.mubr.bf16.gmra.mrb[0].mxu0 %v6328
        %v6563 = vpop.f32.mrb[0].mxu0
        %v6564 = vadd.f32 0.0, %v6563
        %v6565 = vpop.f32.mrb[0].mxu0
        %v6566 = vadd.f32 0.0, %v6565
        %v6567 = vpop.f32.mrb[0].mxu0
        %v6568 = vadd.f32 0.0, %v6567
        %v6569 = vpop.f32.mrb[0].mxu0
        %v6570 = vadd.f32 0.0, %v6569
        %6571 = vmatprep.mubr.bf16.mxu0 %v6331
        %6572 = vmatmul.mubr.bf16.gmra.mrb[0].mxu0 %v6330
        %v6573 = vpop.f32.mrb[0].mxu0
        %v6574 = vadd.f32 0.0, %v6573
        %v6575 = vpop.f32.mrb[0].mxu0
        %v6576 = vadd.f32 0.0, %v6575
        %v6577 = vpop.f32.mrb[0].mxu0
        %v6578 = vadd.f32 0.0, %v6577
        %v6579 = vpop.f32.mrb[0].mxu0
        %v6580 = vadd.f32 0.0, %v6579
        %6581 = vmatprep.mubr.bf16.mxu0 %v6333
        %6582 = vmatmul.mubr.bf16.gmra.mrb[0].mxu0 %v6332
        %v6583 = vpop.f32.mrb[0].mxu0
        %v6584 = vadd.f32 0.0, %v6583
        %v6585 = vpop.f32.mrb[0].mxu0
        %v6586 = vadd.f32 0.0, %v6585
        %v6587 = vpop.f32.mrb[0].mxu0
        %v6588 = vadd.f32 0.0, %v6587
        %v6589 = vpop.f32.mrb[0].mxu0
        %v6590 = vadd.f32 0.0, %v6589
        %6591 = vmatprep.mubr.bf16.mxu0 %v6335
        %6592 = vmatmul.mubr.bf16.gmra.mrb[0].mxu0 %v6334
        %v6593 = vpop.f32.mrb[0].mxu0
        %v6594 = vadd.f32 0.0, %v6593
        %v6595 = vpop.f32.mrb[0].mxu0
        %v6596 = vadd.f32 0.0, %v6595
        %v6597 = vpop.f32.mrb[0].mxu0
        %v6598 = vadd.f32 0.0, %v6597
        %v6599 = vpop.f32.mrb[0].mxu0
        %v6600 = vadd.f32 0.0, %v6599
        %6601 = vdwg.mxu0
        %v6602 = vadd.f32 %v6295, %v6564
        %v6603 = vadd.f32 %v6296, %v6566
        %v6604 = vadd.f32 %v6297, %v6568
        %v6605 = vadd.f32 %v6298, %v6570
        %v6606 = vadd.f32 %v6299, %v6574
        %v6607 = vadd.f32 %v6300, %v6576
        %v6608 = vadd.f32 %v6301, %v6578
        %v6609 = vadd.f32 %v6302, %v6580
        %v6610 = vadd.f32 %v6303, %v6584
        %v6611 = vadd.f32 %v6304, %v6586
        %v6612 = vadd.f32 %v6305, %v6588
        %v6613 = vadd.f32 %v6306, %v6590
        %v6614 = vadd.f32 %v6307, %v6594
        %v6615 = vadd.f32 %v6308, %v6596
        %v6616 = vadd.f32 %v6309, %v6598
        %v6617 = vadd.f32 %v6310, %v6600
        %v6618 = vld [vmem:[%s6311] sm:$0xfe]
        %v6619 = vld [vmem:[%s6311 + $0x8] sm:$0xfe]
        %v6620 = vld [vmem:[%s6311 + $0x10] sm:$0x1]
        %v6621 = vld [vmem:[%s6311 + $0x18] sm:$0x1]
        %v6622 = vld [vmem:[%s6311 + $0x20] sm:$0xfe]
        %v6623 = vld [vmem:[%s6311 + $0x28] sm:$0xfe]
        %v6624 = vld [vmem:[%s6311 + $0x30] sm:$0x1]
        %v6625 = vld [vmem:[%s6311 + $0x38] sm:$0x1]
        %v6626 = vld [vmem:[%s6311 + $0x40] sm:$0xfe]
        %v6627 = vld [vmem:[%s6311 + $0x48] sm:$0xfe]
        %v6628 = vld [vmem:[%s6311 + $0x50] sm:$0x1]
        %v6629 = vld [vmem:[%s6311 + $0x58] sm:$0x1]
        %v6630 = vld [vmem:[%s6311 + $0x60] sm:$0xfe]
        %v6631 = vld [vmem:[%s6311 + $0x68] sm:$0xfe]
        %v6632 = vld [vmem:[%s6311 + $0x70] sm:$0x1]
        %v6633 = vld [vmem:[%s6311 + $0x78] sm:$0x1]
        %v6634 = vld [vmem:[%s6311 + $0x80] sm:$0xfe]
        %v6635 = vld [vmem:[%s6311 + $0x88] sm:$0xfe]
        %v6636 = vld [vmem:[%s6311 + $0x90] sm:$0x1]
        %v6637 = vld [vmem:[%s6311 + $0x98] sm:$0x1]
        %v6638 = vld [vmem:[%s6311 + $0xa0] sm:$0xfe]
        %v6639 = vld [vmem:[%s6311 + $0xa8] sm:$0xfe]
        %v6640 = vld [vmem:[%s6311 + $0xb0] sm:$0x1]
        %v6641 = vld [vmem:[%s6311 + $0xb8] sm:$0x1]
        %v6642 = vld [vmem:[%s6311 + $0xc0] sm:$0xfe]
        %v6643 = vld [vmem:[%s6311 + $0xc8] sm:$0xfe]
        %v6644 = vld [vmem:[%s6311 + $0xd0] sm:$0x1]
        %v6645 = vld [vmem:[%s6311 + $0xd8] sm:$0x1]
        %v6646 = vld [vmem:[%s6311 + $0xe0] sm:$0xfe]
        %v6647 = vld [vmem:[%s6311 + $0xe8] sm:$0xfe]
        %v6648 = vld [vmem:[%s6311 + $0xf0] sm:$0x1]
        %v6649 = vld [vmem:[%s6311 + $0xf8] sm:$0x1]
        %v6682 = vrot.slane %v6618, 1
        %v6683 = vrot.slane %v6620, 1
        %v6684 = vsel %vm858, %v6682, %v6683
        %v6685 = vrot.slane %v6619, 1
        %v6686 = vrot.slane %v6621, 1
        %v6687 = vsel %vm858, %v6685, %v6686
        %v6688 = vrot.slane %v6622, 1
        %v6689 = vrot.slane %v6624, 1
        %v6690 = vsel %vm858, %v6688, %v6689
        %v6691 = vrot.slane %v6623, 1
        %v6692 = vrot.slane %v6625, 1
        %v6693 = vsel %vm858, %v6691, %v6692
        %v6694 = vrot.slane %v6626, 1
        %v6695 = vrot.slane %v6628, 1
        %v6696 = vsel %vm858, %v6694, %v6695
        %v6697 = vrot.slane %v6627, 1
        %v6698 = vrot.slane %v6629, 1
        %v6699 = vsel %vm858, %v6697, %v6698
        %v6700 = vrot.slane %v6630, 1
        %v6701 = vrot.slane %v6632, 1
        %v6702 = vsel %vm858, %v6700, %v6701
        %v6703 = vrot.slane %v6631, 1
        %v6704 = vrot.slane %v6633, 1
        %v6705 = vsel %vm858, %v6703, %v6704
        %v6706 = vrot.slane %v6634, 1
        %v6707 = vrot.slane %v6636, 1
        %v6708 = vsel %vm858, %v6706, %v6707
        %v6709 = vrot.slane %v6635, 1
        %v6710 = vrot.slane %v6637, 1
        %v6711 = vsel %vm858, %v6709, %v6710
        %v6712 = vrot.slane %v6638, 1
        %v6713 = vrot.slane %v6640, 1
        %v6714 = vsel %vm858, %v6712, %v6713
        %v6715 = vrot.slane %v6639, 1
        %v6716 = vrot.slane %v6641, 1
        %v6717 = vsel %vm858, %v6715, %v6716
        %v6718 = vrot.slane %v6642, 1
        %v6719 = vrot.slane %v6644, 1
        %v6720 = vsel %vm858, %v6718, %v6719
        %v6721 = vrot.slane %v6643, 1
        %v6722 = vrot.slane %v6645, 1
        %v6723 = vsel %vm858, %v6721, %v6722
        %v6724 = vrot.slane %v6646, 1
        %v6725 = vrot.slane %v6648, 1
        %v6726 = vsel %vm858, %v6724, %v6725
        %v6727 = vrot.slane %v6647, 1
        %v6728 = vrot.slane %v6649, 1
        %v6729 = vsel %vm858, %v6727, %v6728
        %v6746 = vpack.c.bf16 %v6690, %v6684
        %v6747 = vpack.c.bf16 %v6693, %v6687
        %v6748 = vpack.c.bf16 %v6702, %v6696
        %v6749 = vpack.c.bf16 %v6705, %v6699
        %v6750 = vpack.c.bf16 %v6714, %v6708
        %v6751 = vpack.c.bf16 %v6717, %v6711
        %v6752 = vpack.c.bf16 %v6726, %v6720
        %v6753 = vpack.c.bf16 %v6729, %v6723
        %s6754 = scalar_lea.vmem [#allocation7], 4096
        %v6755 = vld [vmem:[%s6754] sm:$0xff]
        %v6756 = vld [vmem:[%s6754 + $0x8] sm:$0xff]
        %v6757 = vld [vmem:[%s6754 + $0x10] sm:$0xff]
        %v6758 = vld [vmem:[%s6754 + $0x18] sm:$0xff]
        %v6759 = vld [vmem:[%s6754 + $0x20] sm:$0xff]
        %v6760 = vld [vmem:[%s6754 + $0x28] sm:$0xff]
        %v6761 = vld [vmem:[%s6754 + $0x30] sm:$0xff]
        %v6762 = vld [vmem:[%s6754 + $0x38] sm:$0xff]
        %v6763 = vld [vmem:[%s6754 + $0x40] sm:$0xff]
        %v6764 = vld [vmem:[%s6754 + $0x48] sm:$0xff]
        %v6765 = vld [vmem:[%s6754 + $0x50] sm:$0xff]
        %v6766 = vld [vmem:[%s6754 + $0x58] sm:$0xff]
        %v6767 = vld [vmem:[%s6754 + $0x60] sm:$0xff]
        %v6768 = vld [vmem:[%s6754 + $0x68] sm:$0xff]
        %v6769 = vld [vmem:[%s6754 + $0x70] sm:$0xff]
        %v6770 = vld [vmem:[%s6754 + $0x78] sm:$0xff]
        %v6771 = vld [vmem:[%s6754 + $0x80] sm:$0xff]
        %v6772 = vld [vmem:[%s6754 + $0x88] sm:$0xff]
        %v6773 = vld [vmem:[%s6754 + $0x90] sm:$0xff]
        %v6774 = vld [vmem:[%s6754 + $0x98] sm:$0xff]
        %v6775 = vld [vmem:[%s6754 + $0xa0] sm:$0xff]
        %v6776 = vld [vmem:[%s6754 + $0xa8] sm:$0xff]
        %v6777 = vld [vmem:[%s6754 + $0xb0] sm:$0xff]
        %v6778 = vld [vmem:[%s6754 + $0xb8] sm:$0xff]
        %v6779 = vld [vmem:[%s6754 + $0xc0] sm:$0xff]
        %v6780 = vld [vmem:[%s6754 + $0xc8] sm:$0xff]
        %v6781 = vld [vmem:[%s6754 + $0xd0] sm:$0xff]
        %v6782 = vld [vmem:[%s6754 + $0xd8] sm:$0xff]
        %v6783 = vld [vmem:[%s6754 + $0xe0] sm:$0xff]
        %v6784 = vld [vmem:[%s6754 + $0xe8] sm:$0xff]
        %v6785 = vld [vmem:[%s6754 + $0xf0] sm:$0xff]
        %v6786 = vld [vmem:[%s6754 + $0xf8] sm:$0xff]
        %v6819 = vunpack.c.l.b16 %v6755
        %v6820 = vunpack.c.h.b16 %v6755
        %v6821 = vunpack.c.l.b16 %v6756
        %v6822 = vunpack.c.h.b16 %v6756
        %v6823 = vunpack.c.l.b16 %v6757
        %v6824 = vunpack.c.h.b16 %v6757
        %v6825 = vunpack.c.l.b16 %v6758
        %v6826 = vunpack.c.h.b16 %v6758
        %v6827 = vunpack.c.l.b16 %v6759
        %v6828 = vunpack.c.h.b16 %v6759
        %v6829 = vunpack.c.l.b16 %v6760
        %v6830 = vunpack.c.h.b16 %v6760
        %v6831 = vunpack.c.l.b16 %v6761
        %v6832 = vunpack.c.h.b16 %v6761
        %v6833 = vunpack.c.l.b16 %v6762
        %v6834 = vunpack.c.h.b16 %v6762
        %v6835 = vunpack.c.l.b16 %v6763
        %v6836 = vunpack.c.h.b16 %v6763
        %v6837 = vunpack.c.l.b16 %v6764
        %v6838 = vunpack.c.h.b16 %v6764
        %v6839 = vunpack.c.l.b16 %v6765
        %v6840 = vunpack.c.h.b16 %v6765
        %v6841 = vunpack.c.l.b16 %v6766
        %v6842 = vunpack.c.h.b16 %v6766
        %v6843 = vunpack.c.l.b16 %v6767
        %v6844 = vunpack.c.h.b16 %v6767
        %v6845 = vunpack.c.l.b16 %v6768
        %v6846 = vunpack.c.h.b16 %v6768
        %v6847 = vunpack.c.l.b16 %v6769
        %v6848 = vunpack.c.h.b16 %v6769
        %v6849 = vunpack.c.l.b16 %v6770
        %v6850 = vunpack.c.h.b16 %v6770
        %v6851 = vunpack.c.l.b16 %v6771
        %v6852 = vunpack.c.h.b16 %v6771
        %v6853 = vunpack.c.l.b16 %v6772
        %v6854 = vunpack.c.h.b16 %v6772
        %v6855 = vunpack.c.l.b16 %v6773
        %v6856 = vunpack.c.h.b16 %v6773
        %v6857 = vunpack.c.l.b16 %v6774
        %v6858 = vunpack.c.h.b16 %v6774
        %v6859 = vunpack.c.l.b16 %v6775
        %v6860 = vunpack.c.h.b16 %v6775
        %v6861 = vunpack.c.l.b16 %v6776
        %v6862 = vunpack.c.h.b16 %v6776
        %v6863 = vunpack.c.l.b16 %v6777
        %v6864 = vunpack.c.h.b16 %v6777
        %v6865 = vunpack.c.l.b16 %v6778
        %v6866 = vunpack.c.h.b16 %v6778
        %v6867 = vunpack.c.l.b16 %v6779
        %v6868 = vunpack.c.h.b16 %v6779
        %v6869 = vunpack.c.l.b16 %v6780
        %v6870 = vunpack.c.h.b16 %v6780
        %v6871 = vunpack.c.l.b16 %v6781
        %v6872 = vunpack.c.h.b16 %v6781
        %v6873 = vunpack.c.l.b16 %v6782
        %v6874 = vunpack.c.h.b16 %v6782
        %v6875 = vunpack.c.l.b16 %v6783
        %v6876 = vunpack.c.h.b16 %v6783
        %v6877 = vunpack.c.l.b16 %v6784
        %v6878 = vunpack.c.h.b16 %v6784
        %v6879 = vunpack.c.l.b16 %v6785
        %v6880 = vunpack.c.h.b16 %v6785
        %v6881 = vunpack.c.l.b16 %v6786
        %v6882 = vunpack.c.h.b16 %v6786
        %v6883 = vpack.c.b16 %v6821, %v6819
        %v6884 = vpack.c.b16 %v6822, %v6820
        %v6885 = vpack.c.b16 %v6825, %v6823
        %v6886 = vpack.c.b16 %v6826, %v6824
        %v6887 = vpack.c.b16 %v6829, %v6827
        %v6888 = vpack.c.b16 %v6830, %v6828
        %v6889 = vpack.c.b16 %v6833, %v6831
        %v6890 = vpack.c.b16 %v6834, %v6832
        %v6891 = vpack.c.b16 %v6837, %v6835
        %v6892 = vpack.c.b16 %v6838, %v6836
        %v6893 = vpack.c.b16 %v6841, %v6839
        %v6894 = vpack.c.b16 %v6842, %v6840
        %v6895 = vpack.c.b16 %v6845, %v6843
        %v6896 = vpack.c.b16 %v6846, %v6844
        %v6897 = vpack.c.b16 %v6849, %v6847
        %v6898 = vpack.c.b16 %v6850, %v6848
        %v6899 = vpack.c.b16 %v6853, %v6851
        %v6900 = vpack.c.b16 %v6854, %v6852
        %v6901 = vpack.c.b16 %v6857, %v6855
        %v6902 = vpack.c.b16 %v6858, %v6856
        %v6903 = vpack.c.b16 %v6861, %v6859
        %v6904 = vpack.c.b16 %v6862, %v6860
        %v6905 = vpack.c.b16 %v6865, %v6863
        %v6906 = vpack.c.b16 %v6866, %v6864
        %v6907 = vpack.c.b16 %v6869, %v6867
        %v6908 = vpack.c.b16 %v6870, %v6868
        %v6909 = vpack.c.b16 %v6873, %v6871
        %v6910 = vpack.c.b16 %v6874, %v6872
        %v6911 = vpack.c.b16 %v6877, %v6875
        %v6912 = vpack.c.b16 %v6878, %v6876
        %v6913 = vpack.c.b16 %v6881, %v6879
        %v6914 = vpack.c.b16 %v6882, %v6880
        %6947 = vmatprep.subr.bf16.mxu0 %v6884
        %6948 = vmatpush1.bf16.msra.mxu0 %v6883
        %6949 = vmatprep.subr.bf16.mxu0 %v6886
        %6950 = vmatpush1.bf16.msra.mxu0 %v6885
        %6951 = vmatprep.subr.bf16.mxu0 %v6888
        %6952 = vmatpush1.bf16.msra.mxu0 %v6887
        %6953 = vmatprep.subr.bf16.mxu0 %v6890
        %6954 = vmatpush1.bf16.msra.mxu0 %v6889
        %6955 = vmatprep.subr.bf16.mxu0 %v6892
        %6956 = vmatpush1.bf16.msra.mxu0 %v6891
        %6957 = vmatprep.subr.bf16.mxu0 %v6894
        %6958 = vmatpush1.bf16.msra.mxu0 %v6893
        %6959 = vmatprep.subr.bf16.mxu0 %v6896
        %6960 = vmatpush1.bf16.msra.mxu0 %v6895
        %6961 = vmatprep.subr.bf16.mxu0 %v6898
        %6962 = vmatpush1.bf16.msra.mxu0 %v6897
        %6963 = vmatprep.subr.bf16.mxu0 %v6900
        %6964 = vmatpush1.bf16.msra.mxu0 %v6899
        %6965 = vmatprep.subr.bf16.mxu0 %v6902
        %6966 = vmatpush1.bf16.msra.mxu0 %v6901
        %6967 = vmatprep.subr.bf16.mxu0 %v6904
        %6968 = vmatpush1.bf16.msra.mxu0 %v6903
        %6969 = vmatprep.subr.bf16.mxu0 %v6906
        %6970 = vmatpush1.bf16.msra.mxu0 %v6905
        %6971 = vmatprep.subr.bf16.mxu0 %v6908
        %6972 = vmatpush1.bf16.msra.mxu0 %v6907
        %6973 = vmatprep.subr.bf16.mxu0 %v6910
        %6974 = vmatpush1.bf16.msra.mxu0 %v6909
        %6975 = vmatprep.subr.bf16.mxu0 %v6912
        %6976 = vmatpush1.bf16.msra.mxu0 %v6911
        %6977 = vmatprep.subr.bf16.mxu0 %v6914
        %6978 = vmatpush1.bf16.msra.mxu0 %v6913
        %6979 = vmatprep.mubr.bf16.mxu0 %v6747
        %6980 = vmatmul.mubr.bf16.gmra.mrb[0].mxu0 %v6746
        %v6981 = vpop.f32.mrb[0].mxu0
        %v6982 = vadd.f32 0.0, %v6981
        %v6983 = vpop.f32.mrb[0].mxu0
        %v6984 = vadd.f32 0.0, %v6983
        %v6985 = vpop.f32.mrb[0].mxu0
        %v6986 = vadd.f32 0.0, %v6985
        %v6987 = vpop.f32.mrb[0].mxu0
        %v6988 = vadd.f32 0.0, %v6987
        %6989 = vmatprep.mubr.bf16.mxu0 %v6749
        %6990 = vmatmul.mubr.bf16.gmra.mrb[0].mxu0 %v6748
        %v6991 = vpop.f32.mrb[0].mxu0
        %v6992 = vadd.f32 0.0, %v6991
        %v6993 = vpop.f32.mrb[0].mxu0
        %v6994 = vadd.f32 0.0, %v6993
        %v6995 = vpop.f32.mrb[0].mxu0
        %v6996 = vadd.f32 0.0, %v6995
        %v6997 = vpop.f32.mrb[0].mxu0
        %v6998 = vadd.f32 0.0, %v6997
        %6999 = vmatprep.mubr.bf16.mxu0 %v6751
        %7000 = vmatmul.mubr.bf16.gmra.mrb[0].mxu0 %v6750
        %v7001 = vpop.f32.mrb[0].mxu0
        %v7002 = vadd.f32 0.0, %v7001
        %v7003 = vpop.f32.mrb[0].mxu0
        %v7004 = vadd.f32 0.0, %v7003
        %v7005 = vpop.f32.mrb[0].mxu0
        %v7006 = vadd.f32 0.0, %v7005
        %v7007 = vpop.f32.mrb[0].mxu0
        %v7008 = vadd.f32 0.0, %v7007
        %7009 = vmatprep.mubr.bf16.mxu0 %v6753
        %7010 = vmatmul.mubr.bf16.gmra.mrb[0].mxu0 %v6752
        %v7011 = vpop.f32.mrb[0].mxu0
        %v7012 = vadd.f32 0.0, %v7011
        %v7013 = vpop.f32.mrb[0].mxu0
        %v7014 = vadd.f32 0.0, %v7013
        %v7015 = vpop.f32.mrb[0].mxu0
        %v7016 = vadd.f32 0.0, %v7015
        %v7017 = vpop.f32.mrb[0].mxu0
        %v7018 = vadd.f32 0.0, %v7017
        %7019 = vdwg.mxu0
        %v7020 = vadd.f32 %v6602, %v6982
        %v7021 = vadd.f32 %v6603, %v6984
        %v7022 = vadd.f32 %v6604, %v6986
        %v7023 = vadd.f32 %v6605, %v6988
        %v7024 = vadd.f32 %v6606, %v6992
        %v7025 = vadd.f32 %v6607, %v6994
        %v7026 = vadd.f32 %v6608, %v6996
        %v7027 = vadd.f32 %v6609, %v6998
        %v7028 = vadd.f32 %v6610, %v7002
        %v7029 = vadd.f32 %v6611, %v7004
        %v7030 = vadd.f32 %v6612, %v7006
        %v7031 = vadd.f32 %v6613, %v7008
        %v7032 = vadd.f32 %v6614, %v7012
        %v7033 = vadd.f32 %v6615, %v7014
        %v7034 = vadd.f32 %v6616, %v7016
        %v7035 = vadd.f32 %v6617, %v7018
        %v7036 = vld [vmem:[%s6311] sm:$0xfc]
        %v7037 = vld [vmem:[%s6311 + $0x8] sm:$0xfc]
        %v7038 = vld [vmem:[%s6311 + $0x10] sm:$0x3]
        %v7039 = vld [vmem:[%s6311 + $0x18] sm:$0x3]
        %v7040 = vld [vmem:[%s6311 + $0x20] sm:$0xfc]
        %v7041 = vld [vmem:[%s6311 + $0x28] sm:$0xfc]
        %v7042 = vld [vmem:[%s6311 + $0x30] sm:$0x3]
        %v7043 = vld [vmem:[%s6311 + $0x38] sm:$0x3]
        %v7044 = vld [vmem:[%s6311 + $0x40] sm:$0xfc]
        %v7045 = vld [vmem:[%s6311 + $0x48] sm:$0xfc]
        %v7046 = vld [vmem:[%s6311 + $0x50] sm:$0x3]
        %v7047 = vld [vmem:[%s6311 + $0x58] sm:$0x3]
        %v7048 = vld [vmem:[%s6311 + $0x60] sm:$0xfc]
        %v7049 = vld [vmem:[%s6311 + $0x68] sm:$0xfc]
        %v7050 = vld [vmem:[%s6311 + $0x70] sm:$0x3]
        %v7051 = vld [vmem:[%s6311 + $0x78] sm:$0x3]
        %v7052 = vld [vmem:[%s6311 + $0x80] sm:$0xfc]
        %v7053 = vld [vmem:[%s6311 + $0x88] sm:$0xfc]
        %v7054 = vld [vmem:[%s6311 + $0x90] sm:$0x3]
        %v7055 = vld [vmem:[%s6311 + $0x98] sm:$0x3]
        %v7056 = vld [vmem:[%s6311 + $0xa0] sm:$0xfc]
        %v7057 = vld [vmem:[%s6311 + $0xa8] sm:$0xfc]
        %v7058 = vld [vmem:[%s6311 + $0xb0] sm:$0x3]
        %v7059 = vld [vmem:[%s6311 + $0xb8] sm:$0x3]
        %v7060 = vld [vmem:[%s6311 + $0xc0] sm:$0xfc]
        %v7061 = vld [vmem:[%s6311 + $0xc8] sm:$0xfc]
        %v7062 = vld [vmem:[%s6311 + $0xd0] sm:$0x3]
        %v7063 = vld [vmem:[%s6311 + $0xd8] sm:$0x3]
        %v7064 = vld [vmem:[%s6311 + $0xe0] sm:$0xfc]
        %v7065 = vld [vmem:[%s6311 + $0xe8] sm:$0xfc]
        %v7066 = vld [vmem:[%s6311 + $0xf0] sm:$0x3]
        %v7067 = vld [vmem:[%s6311 + $0xf8] sm:$0x3]
        %v7100 = vrot.slane %v7036, 2
        %v7101 = vrot.slane %v7038, 2
        %v7102 = vsel %vm1277, %v7100, %v7101
        %v7103 = vrot.slane %v7037, 2
        %v7104 = vrot.slane %v7039, 2
        %v7105 = vsel %vm1277, %v7103, %v7104
        %v7106 = vrot.slane %v7040, 2
        %v7107 = vrot.slane %v7042, 2
        %v7108 = vsel %vm1277, %v7106, %v7107
        %v7109 = vrot.slane %v7041, 2
        %v7110 = vrot.slane %v7043, 2
        %v7111 = vsel %vm1277, %v7109, %v7110
        %v7112 = vrot.slane %v7044, 2
        %v7113 = vrot.slane %v7046, 2
        %v7114 = vsel %vm1277, %v7112, %v7113
        %v7115 = vrot.slane %v7045, 2
        %v7116 = vrot.slane %v7047, 2
        %v7117 = vsel %vm1277, %v7115, %v7116
        %v7118 = vrot.slane %v7048, 2
        %v7119 = vrot.slane %v7050, 2
        %v7120 = vsel %vm1277, %v7118, %v7119
        %v7121 = vrot.slane %v7049, 2
        %v7122 = vrot.slane %v7051, 2
        %v7123 = vsel %vm1277, %v7121, %v7122
        %v7124 = vrot.slane %v7052, 2
        %v7125 = vrot.slane %v7054, 2
        %v7126 = vsel %vm1277, %v7124, %v7125
        %v7127 = vrot.slane %v7053, 2
        %v7128 = vrot.slane %v7055, 2
        %v7129 = vsel %vm1277, %v7127, %v7128
        %v7130 = vrot.slane %v7056, 2
        %v7131 = vrot.slane %v7058, 2
        %v7132 = vsel %vm1277, %v7130, %v7131
        %v7133 = vrot.slane %v7057, 2
        %v7134 = vrot.slane %v7059, 2
        %v7135 = vsel %vm1277, %v7133, %v7134
        %v7136 = vrot.slane %v7060, 2
        %v7137 = vrot.slane %v7062, 2
        %v7138 = vsel %vm1277, %v7136, %v7137
        %v7139 = vrot.slane %v7061, 2
        %v7140 = vrot.slane %v7063, 2
        %v7141 = vsel %vm1277, %v7139, %v7140
        %v7142 = vrot.slane %v7064, 2
        %v7143 = vrot.slane %v7066, 2
        %v7144 = vsel %vm1277, %v7142, %v7143
        %v7145 = vrot.slane %v7065, 2
        %v7146 = vrot.slane %v7067, 2
        %v7147 = vsel %vm1277, %v7145, %v7146
        %v7164 = vpack.c.bf16 %v7108, %v7102
        %v7165 = vpack.c.bf16 %v7111, %v7105
        %v7166 = vpack.c.bf16 %v7120, %v7114
        %v7167 = vpack.c.bf16 %v7123, %v7117
        %v7168 = vpack.c.bf16 %v7132, %v7126
        %v7169 = vpack.c.bf16 %v7135, %v7129
        %v7170 = vpack.c.bf16 %v7144, %v7138
        %v7171 = vpack.c.bf16 %v7147, %v7141
        %s7172 = scalar_lea.vmem [#allocation7], 4352
        %v7173 = vld [vmem:[%s7172] sm:$0xff]
        %v7174 = vld [vmem:[%s7172 + $0x8] sm:$0xff]
        %v7175 = vld [vmem:[%s7172 + $0x10] sm:$0xff]
        %v7176 = vld [vmem:[%s7172 + $0x18] sm:$0xff]
        %v7177 = vld [vmem:[%s7172 + $0x20] sm:$0xff]
        %v7178 = vld [vmem:[%s7172 + $0x28] sm:$0xff]
        %v7179 = vld [vmem:[%s7172 + $0x30] sm:$0xff]
        %v7180 = vld [vmem:[%s7172 + $0x38] sm:$0xff]
        %v7181 = vld [vmem:[%s7172 + $0x40] sm:$0xff]
        %v7182 = vld [vmem:[%s7172 + $0x48] sm:$0xff]
        %v7183 = vld [vmem:[%s7172 + $0x50] sm:$0xff]
        %v7184 = vld [vmem:[%s7172 + $0x58] sm:$0xff]
        %v7185 = vld [vmem:[%s7172 + $0x60] sm:$0xff]
        %v7186 = vld [vmem:[%s7172 + $0x68] sm:$0xff]
        %v7187 = vld [vmem:[%s7172 + $0x70] sm:$0xff]
        %v7188 = vld [vmem:[%s7172 + $0x78] sm:$0xff]
        %v7189 = vld [vmem:[%s7172 + $0x80] sm:$0xff]
        %v7190 = vld [vmem:[%s7172 + $0x88] sm:$0xff]
        %v7191 = vld [vmem:[%s7172 + $0x90] sm:$0xff]
        %v7192 = vld [vmem:[%s7172 + $0x98] sm:$0xff]
        %v7193 = vld [vmem:[%s7172 + $0xa0] sm:$0xff]
        %v7194 = vld [vmem:[%s7172 + $0xa8] sm:$0xff]
        %v7195 = vld [vmem:[%s7172 + $0xb0] sm:$0xff]
        %v7196 = vld [vmem:[%s7172 + $0xb8] sm:$0xff]
        %v7197 = vld [vmem:[%s7172 + $0xc0] sm:$0xff]
        %v7198 = vld [vmem:[%s7172 + $0xc8] sm:$0xff]
        %v7199 = vld [vmem:[%s7172 + $0xd0] sm:$0xff]
        %v7200 = vld [vmem:[%s7172 + $0xd8] sm:$0xff]
        %v7201 = vld [vmem:[%s7172 + $0xe0] sm:$0xff]
        %v7202 = vld [vmem:[%s7172 + $0xe8] sm:$0xff]
        %v7203 = vld [vmem:[%s7172 + $0xf0] sm:$0xff]
        %v7204 = vld [vmem:[%s7172 + $0xf8] sm:$0xff]
        %v7237 = vunpack.c.l.b16 %v7173
        %v7238 = vunpack.c.h.b16 %v7173
        %v7239 = vunpack.c.l.b16 %v7174
        %v7240 = vunpack.c.h.b16 %v7174
        %v7241 = vunpack.c.l.b16 %v7175
        %v7242 = vunpack.c.h.b16 %v7175
        %v7243 = vunpack.c.l.b16 %v7176
        %v7244 = vunpack.c.h.b16 %v7176
        %v7245 = vunpack.c.l.b16 %v7177
        %v7246 = vunpack.c.h.b16 %v7177
        %v7247 = vunpack.c.l.b16 %v7178
        %v7248 = vunpack.c.h.b16 %v7178
        %v7249 = vunpack.c.l.b16 %v7179
        %v7250 = vunpack.c.h.b16 %v7179
        %v7251 = vunpack.c.l.b16 %v7180
        %v7252 = vunpack.c.h.b16 %v7180
        %v7253 = vunpack.c.l.b16 %v7181
        %v7254 = vunpack.c.h.b16 %v7181
        %v7255 = vunpack.c.l.b16 %v7182
        %v7256 = vunpack.c.h.b16 %v7182
        %v7257 = vunpack.c.l.b16 %v7183
        %v7258 = vunpack.c.h.b16 %v7183
        %v7259 = vunpack.c.l.b16 %v7184
        %v7260 = vunpack.c.h.b16 %v7184
        %v7261 = vunpack.c.l.b16 %v7185
        %v7262 = vunpack.c.h.b16 %v7185
        %v7263 = vunpack.c.l.b16 %v7186
        %v7264 = vunpack.c.h.b16 %v7186
        %v7265 = vunpack.c.l.b16 %v7187
        %v7266 = vunpack.c.h.b16 %v7187
        %v7267 = vunpack.c.l.b16 %v7188
        %v7268 = vunpack.c.h.b16 %v7188
        %v7269 = vunpack.c.l.b16 %v7189
        %v7270 = vunpack.c.h.b16 %v7189
        %v7271 = vunpack.c.l.b16 %v7190
        %v7272 = vunpack.c.h.b16 %v7190
        %v7273 = vunpack.c.l.b16 %v7191
        %v7274 = vunpack.c.h.b16 %v7191
        %v7275 = vunpack.c.l.b16 %v7192
        %v7276 = vunpack.c.h.b16 %v7192
        %v7277 = vunpack.c.l.b16 %v7193
        %v7278 = vunpack.c.h.b16 %v7193
        %v7279 = vunpack.c.l.b16 %v7194
        %v7280 = vunpack.c.h.b16 %v7194
        %v7281 = vunpack.c.l.b16 %v7195
        %v7282 = vunpack.c.h.b16 %v7195
        %v7283 = vunpack.c.l.b16 %v7196
        %v7284 = vunpack.c.h.b16 %v7196
        %v7285 = vunpack.c.l.b16 %v7197
        %v7286 = vunpack.c.h.b16 %v7197
        %v7287 = vunpack.c.l.b16 %v7198
        %v7288 = vunpack.c.h.b16 %v7198
        %v7289 = vunpack.c.l.b16 %v7199
        %v7290 = vunpack.c.h.b16 %v7199
        %v7291 = vunpack.c.l.b16 %v7200
        %v7292 = vunpack.c.h.b16 %v7200
        %v7293 = vunpack.c.l.b16 %v7201
        %v7294 = vunpack.c.h.b16 %v7201
        %v7295 = vunpack.c.l.b16 %v7202
        %v7296 = vunpack.c.h.b16 %v7202
        %v7297 = vunpack.c.l.b16 %v7203
        %v7298 = vunpack.c.h.b16 %v7203
        %v7299 = vunpack.c.l.b16 %v7204
        %v7300 = vunpack.c.h.b16 %v7204
        %v7301 = vpack.c.b16 %v7239, %v7237
        %v7302 = vpack.c.b16 %v7240, %v7238
        %v7303 = vpack.c.b16 %v7243, %v7241
        %v7304 = vpack.c.b16 %v7244, %v7242
        %v7305 = vpack.c.b16 %v7247, %v7245
        %v7306 = vpack.c.b16 %v7248, %v7246
        %v7307 = vpack.c.b16 %v7251, %v7249
        %v7308 = vpack.c.b16 %v7252, %v7250
        %v7309 = vpack.c.b16 %v7255, %v7253
        %v7310 = vpack.c.b16 %v7256, %v7254
        %v7311 = vpack.c.b16 %v7259, %v7257
        %v7312 = vpack.c.b16 %v7260, %v7258
        %v7313 = vpack.c.b16 %v7263, %v7261
        %v7314 = vpack.c.b16 %v7264, %v7262
        %v7315 = vpack.c.b16 %v7267, %v7265
        %v7316 = vpack.c.b16 %v7268, %v7266
        %v7317 = vpack.c.b16 %v7271, %v7269
        %v7318 = vpack.c.b16 %v7272, %v7270
        %v7319 = vpack.c.b16 %v7275, %v7273
        %v7320 = vpack.c.b16 %v7276, %v7274
        %v7321 = vpack.c.b16 %v7279, %v7277
        %v7322 = vpack.c.b16 %v7280, %v7278
        %v7323 = vpack.c.b16 %v7283, %v7281
        %v7324 = vpack.c.b16 %v7284, %v7282
        %v7325 = vpack.c.b16 %v7287, %v7285
        %v7326 = vpack.c.b16 %v7288, %v7286
        %v7327 = vpack.c.b16 %v7291, %v7289
        %v7328 = vpack.c.b16 %v7292, %v7290
        %v7329 = vpack.c.b16 %v7295, %v7293
        %v7330 = vpack.c.b16 %v7296, %v7294
        %v7331 = vpack.c.b16 %v7299, %v7297
        %v7332 = vpack.c.b16 %v7300, %v7298
        %7365 = vmatprep.subr.bf16.mxu0 %v7302
        %7366 = vmatpush1.bf16.msra.mxu0 %v7301
        %7367 = vmatprep.subr.bf16.mxu0 %v7304
        %7368 = vmatpush1.bf16.msra.mxu0 %v7303
        %7369 = vmatprep.subr.bf16.mxu0 %v7306
        %7370 = vmatpush1.bf16.msra.mxu0 %v7305
        %7371 = vmatprep.subr.bf16.mxu0 %v7308
        %7372 = vmatpush1.bf16.msra.mxu0 %v7307
        %7373 = vmatprep.subr.bf16.mxu0 %v7310
        %7374 = vmatpush1.bf16.msra.mxu0 %v7309
        %7375 = vmatprep.subr.bf16.mxu0 %v7312
        %7376 = vmatpush1.bf16.msra.mxu0 %v7311
        %7377 = vmatprep.subr.bf16.mxu0 %v7314
        %7378 = vmatpush1.bf16.msra.mxu0 %v7313
        %7379 = vmatprep.subr.bf16.mxu0 %v7316
        %7380 = vmatpush1.bf16.msra.mxu0 %v7315
        %7381 = vmatprep.subr.bf16.mxu0 %v7318
        %7382 = vmatpush1.bf16.msra.mxu0 %v7317
        %7383 = vmatprep.subr.bf16.mxu0 %v7320
        %7384 = vmatpush1.bf16.msra.mxu0 %v7319
        %7385 = vmatprep.subr.bf16.mxu0 %v7322
        %7386 = vmatpush1.bf16.msra.mxu0 %v7321
        %7387 = vmatprep.subr.bf16.mxu0 %v7324
        %7388 = vmatpush1.bf16.msra.mxu0 %v7323
        %7389 = vmatprep.subr.bf16.mxu0 %v7326
        %7390 = vmatpush1.bf16.msra.mxu0 %v7325
        %7391 = vmatprep.subr.bf16.mxu0 %v7328
        %7392 = vmatpush1.bf16.msra.mxu0 %v7327
        %7393 = vmatprep.subr.bf16.mxu0 %v7330
        %7394 = vmatpush1.bf16.msra.mxu0 %v7329
        %7395 = vmatprep.subr.bf16.mxu0 %v7332
        %7396 = vmatpush1.bf16.msra.mxu0 %v7331
        %7397 = vmatprep.mubr.bf16.mxu0 %v7165
        %7398 = vmatmul.mubr.bf16.gmra.mrb[0].mxu0 %v7164
        %v7399 = vpop.f32.mrb[0].mxu0
        %v7400 = vadd.f32 0.0, %v7399
        %v7401 = vpop.f32.mrb[0].mxu0
        %v7402 = vadd.f32 0.0, %v7401
        %v7403 = vpop.f32.mrb[0].mxu0
        %v7404 = vadd.f32 0.0, %v7403
        %v7405 = vpop.f32.mrb[0].mxu0
        %v7406 = vadd.f32 0.0, %v7405
        %7407 = vmatprep.mubr.bf16.mxu0 %v7167
        %7408 = vmatmul.mubr.bf16.gmra.mrb[0].mxu0 %v7166
        %v7409 = vpop.f32.mrb[0].mxu0
        %v7410 = vadd.f32 0.0, %v7409
        %v7411 = vpop.f32.mrb[0].mxu0
        %v7412 = vadd.f32 0.0, %v7411
        %v7413 = vpop.f32.mrb[0].mxu0
        %v7414 = vadd.f32 0.0, %v7413
        %v7415 = vpop.f32.mrb[0].mxu0
        %v7416 = vadd.f32 0.0, %v7415
        %7417 = vmatprep.mubr.bf16.mxu0 %v7169
        %7418 = vmatmul.mubr.bf16.gmra.mrb[0].mxu0 %v7168
        %v7419 = vpop.f32.mrb[0].mxu0
        %v7420 = vadd.f32 0.0, %v7419
        %v7421 = vpop.f32.mrb[0].mxu0
        %v7422 = vadd.f32 0.0, %v7421
        %v7423 = vpop.f32.mrb[0].mxu0
        %v7424 = vadd.f32 0.0, %v7423
        %v7425 = vpop.f32.mrb[0].mxu0
        %v7426 = vadd.f32 0.0, %v7425
        %7427 = vmatprep.mubr.bf16.mxu0 %v7171
        %7428 = vmatmul.mubr.bf16.gmra.mrb[0].mxu0 %v7170
        %v7429 = vpop.f32.mrb[0].mxu0
        %v7430 = vadd.f32 0.0, %v7429
        %v7431 = vpop.f32.mrb[0].mxu0
        %v7432 = vadd.f32 0.0, %v7431
        %v7433 = vpop.f32.mrb[0].mxu0
        %v7434 = vadd.f32 0.0, %v7433
        %v7435 = vpop.f32.mrb[0].mxu0
        %v7436 = vadd.f32 0.0, %v7435
        %7437 = vdwg.mxu0
        %v7438 = vadd.f32 %v7020, %v7400
        %v7439 = vadd.f32 %v7021, %v7402
        %v7440 = vadd.f32 %v7022, %v7404
        %v7441 = vadd.f32 %v7023, %v7406
        %v7442 = vadd.f32 %v7024, %v7410
        %v7443 = vadd.f32 %v7025, %v7412
        %v7444 = vadd.f32 %v7026, %v7414
        %v7445 = vadd.f32 %v7027, %v7416
        %v7446 = vadd.f32 %v7028, %v7420
        %v7447 = vadd.f32 %v7029, %v7422
        %v7448 = vadd.f32 %v7030, %v7424
        %v7449 = vadd.f32 %v7031, %v7426
        %v7450 = vadd.f32 %v7032, %v7430
        %v7451 = vadd.f32 %v7033, %v7432
        %v7452 = vadd.f32 %v7034, %v7434
        %v7453 = vadd.f32 %v7035, %v7436
        %v7454 = vmax.f32 %v7438, 0.0
        %v7455 = vmax.f32 %v7439, 0.0
        %v7456 = vmax.f32 %v7440, 0.0
        %v7457 = vmax.f32 %v7441, 0.0
        %v7458 = vmax.f32 %v7442, 0.0
        %v7459 = vmax.f32 %v7443, 0.0
        %v7460 = vmax.f32 %v7444, 0.0
        %v7461 = vmax.f32 %v7445, 0.0
        %v7462 = vmax.f32 %v7446, 0.0
        %v7463 = vmax.f32 %v7447, 0.0
        %v7464 = vmax.f32 %v7448, 0.0
        %v7465 = vmax.f32 %v7449, 0.0
        %v7466 = vmax.f32 %v7450, 0.0
        %v7467 = vmax.f32 %v7451, 0.0
        %v7468 = vmax.f32 %v7452, 0.0
        %v7469 = vmax.f32 %v7453, 0.0
        %v7486 = vrot.slane %v7454, 7
        %v7487 = vrot.slane %v7455, 7
        %v7488 = vrot.slane %v7456, 7
        %v7489 = vrot.slane %v7457, 7
        %v7490 = vrot.slane %v7458, 7
        %v7491 = vrot.slane %v7459, 7
        %v7492 = vrot.slane %v7460, 7
        %v7493 = vrot.slane %v7461, 7
        %v7494 = vrot.slane %v7462, 7
        %v7495 = vrot.slane %v7463, 7
        %v7496 = vrot.slane %v7464, 7
        %v7497 = vrot.slane %v7465, 7
        %v7498 = vrot.slane %v7466, 7
        %v7499 = vrot.slane %v7467, 7
        %v7500 = vrot.slane %v7468, 7
        %v7501 = vrot.slane %v7469, 7
        %7518 = vst [vmem:[%s444] sm:$0xfe] %v7486
        %7519 = vst [vmem:[%s444 + $0x8] sm:$0xfe] %v7487
        %7520 = vst [vmem:[%s444 + $0x10] sm:$0x1] %v7486
        %7521 = vst [vmem:[%s444 + $0x18] sm:$0x1] %v7487
        %7522 = vst [vmem:[%s444 + $0x20] sm:$0xfe] %v7488
        %7523 = vst [vmem:[%s444 + $0x28] sm:$0xfe] %v7489
        %7524 = vst [vmem:[%s444 + $0x30] sm:$0x1] %v7488
        %7525 = vst [vmem:[%s444 + $0x38] sm:$0x1] %v7489
        %7526 = vst [vmem:[%s444 + $0x40] sm:$0xfe] %v7490
        %7527 = vst [vmem:[%s444 + $0x48] sm:$0xfe] %v7491
        %7528 = vst [vmem:[%s444 + $0x50] sm:$0x1] %v7490
        %7529 = vst [vmem:[%s444 + $0x58] sm:$0x1] %v7491
        %7530 = vst [vmem:[%s444 + $0x60] sm:$0xfe] %v7492
        %7531 = vst [vmem:[%s444 + $0x68] sm:$0xfe] %v7493
        %7532 = vst [vmem:[%s444 + $0x70] sm:$0x1] %v7492
        %7533 = vst [vmem:[%s444 + $0x78] sm:$0x1] %v7493
        %7534 = vst [vmem:[%s444 + $0x80] sm:$0xfe] %v7494
        %7535 = vst [vmem:[%s444 + $0x88] sm:$0xfe] %v7495
        %7536 = vst [vmem:[%s444 + $0x90] sm:$0x1] %v7494
        %7537 = vst [vmem:[%s444 + $0x98] sm:$0x1] %v7495
        %7538 = vst [vmem:[%s444 + $0xa0] sm:$0xfe] %v7496
        %7539 = vst [vmem:[%s444 + $0xa8] sm:$0xfe] %v7497
        %7540 = vst [vmem:[%s444 + $0xb0] sm:$0x1] %v7496
        %7541 = vst [vmem:[%s444 + $0xb8] sm:$0x1] %v7497
        %7542 = vst [vmem:[%s444 + $0xc0] sm:$0xfe] %v7498
        %7543 = vst [vmem:[%s444 + $0xc8] sm:$0xfe] %v7499
        %7544 = vst [vmem:[%s444 + $0xd0] sm:$0x1] %v7498
        %7545 = vst [vmem:[%s444 + $0xd8] sm:$0x1] %v7499
        %7546 = vst [vmem:[%s444 + $0xe0] sm:$0xfe] %v7500
        %7547 = vst [vmem:[%s444 + $0xe8] sm:$0xfe] %v7501
        %7548 = vst [vmem:[%s444 + $0xf0] sm:$0x1] %v7500
        %7549 = vst [vmem:[%s444 + $0xf8] sm:$0x1] %v7501
        %v7550 = vld [vmem:[#allocation12] sm:$0x1]
        %v7552 = vlaneseq
        %v7553 = vshrl.u32 %v7552, 7
        %v7554 = vsub.s32 0, %v7553
        %v7555 = vrot.slane %v7550, %v7554
        %v7557 = vld [vmem:[#allocation2] sm:$0xff]
        %v7558 = vld [vmem:[#allocation2 + $0x8] sm:$0xff]
        %v7559 = vld [vmem:[#allocation2 + $0x20] sm:$0xff]
        %v7560 = vld [vmem:[#allocation2 + $0x28] sm:$0xff]
        %v7561 = vld [vmem:[#allocation2 + $0x40] sm:$0xff]
        %v7562 = vld [vmem:[#allocation2 + $0x48] sm:$0xff]
        %v7563 = vld [vmem:[#allocation2 + $0x60] sm:$0xff]
        %v7564 = vld [vmem:[#allocation2 + $0x68] sm:$0xff]
        %v7565 = vld [vmem:[#allocation2 + $0x80] sm:$0xff]
        %v7566 = vld [vmem:[#allocation2 + $0x88] sm:$0xff]
        %v7567 = vld [vmem:[#allocation2 + $0xa0] sm:$0xff]
        %v7568 = vld [vmem:[#allocation2 + $0xa8] sm:$0xff]
        %v7569 = vld [vmem:[#allocation2 + $0xc0] sm:$0xff]
        %v7570 = vld [vmem:[#allocation2 + $0xc8] sm:$0xff]
        %v7571 = vld [vmem:[#allocation2 + $0xe0] sm:$0xff]
        %v7572 = vld [vmem:[#allocation2 + $0xe8] sm:$0xff]
        %v7573 = vpack.c.bf16 %v7559, %v7557
        %v7574 = vpack.c.bf16 %v7560, %v7558
        %v7575 = vpack.c.bf16 %v7563, %v7561
        %v7576 = vpack.c.bf16 %v7564, %v7562
        %v7577 = vpack.c.bf16 %v7567, %v7565
        %v7578 = vpack.c.bf16 %v7568, %v7566
        %v7579 = vpack.c.bf16 %v7571, %v7569
        %v7580 = vpack.c.bf16 %v7572, %v7570
        %v7581 = vld [vmem:[#allocation10] sm:$0xf]
        %v7582 = vld [vmem:[#allocation10 + $0x4] sm:$0xf]
        %v7583 = vld [vmem:[#allocation10 + $0x8] sm:$0xf]
        %v7584 = vld [vmem:[#allocation10 + $0xc] sm:$0xf]
        %v7585 = vld [vmem:[#allocation10 + $0x10] sm:$0xf]
        %v7586 = vld [vmem:[#allocation10 + $0x14] sm:$0xf]
        %v7587 = vld [vmem:[#allocation10 + $0x18] sm:$0xf]
        %v7588 = vld [vmem:[#allocation10 + $0x1c] sm:$0xf]
        %v7589 = vld [vmem:[#allocation10 + $0x20] sm:$0xf]
        %v7590 = vld [vmem:[#allocation10 + $0x24] sm:$0xf]
        %v7591 = vld [vmem:[#allocation10 + $0x28] sm:$0xf]
        %v7592 = vld [vmem:[#allocation10 + $0x2c] sm:$0xf]
        %v7593 = vld [vmem:[#allocation10 + $0x30] sm:$0xf]
        %v7594 = vld [vmem:[#allocation10 + $0x34] sm:$0xf]
        %v7595 = vld [vmem:[#allocation10 + $0x38] sm:$0xf]
        %v7596 = vld [vmem:[#allocation10 + $0x3c] sm:$0xf]
        %v7597 = vld [vmem:[#allocation10 + $0x40] sm:$0xf]
        %v7598 = vld [vmem:[#allocation10 + $0x44] sm:$0xf]
        %v7599 = vld [vmem:[#allocation10 + $0x48] sm:$0xf]
        %v7600 = vld [vmem:[#allocation10 + $0x4c] sm:$0xf]
        %v7601 = vld [vmem:[#allocation10 + $0x50] sm:$0xf]
        %v7602 = vld [vmem:[#allocation10 + $0x54] sm:$0xf]
        %v7603 = vld [vmem:[#allocation10 + $0x58] sm:$0xf]
        %v7604 = vld [vmem:[#allocation10 + $0x5c] sm:$0xf]
        %v7605 = vld [vmem:[#allocation10 + $0x60] sm:$0xf]
        %v7606 = vld [vmem:[#allocation10 + $0x64] sm:$0xf]
        %v7607 = vld [vmem:[#allocation10 + $0x68] sm:$0xf]
        %v7608 = vld [vmem:[#allocation10 + $0x6c] sm:$0xf]
        %v7609 = vld [vmem:[#allocation10 + $0x70] sm:$0xf]
        %v7610 = vld [vmem:[#allocation10 + $0x74] sm:$0xf]
        %v7611 = vld [vmem:[#allocation10 + $0x78] sm:$0xf]
        %v7612 = vld [vmem:[#allocation10 + $0x7c] sm:$0xf]
        %v7645 = vunpack.c.l.b16 %v7581
        %v7646 = vunpack.c.l.b16 %v7582
        %v7647 = vunpack.c.l.b16 %v7583
        %v7648 = vunpack.c.l.b16 %v7584
        %v7649 = vunpack.c.l.b16 %v7585
        %v7650 = vunpack.c.l.b16 %v7586
        %v7651 = vunpack.c.l.b16 %v7587
        %v7652 = vunpack.c.l.b16 %v7588
        %v7653 = vunpack.c.l.b16 %v7589
        %v7654 = vunpack.c.l.b16 %v7590
        %v7655 = vunpack.c.l.b16 %v7591
        %v7656 = vunpack.c.l.b16 %v7592
        %v7657 = vunpack.c.l.b16 %v7593
        %v7658 = vunpack.c.l.b16 %v7594
        %v7659 = vunpack.c.l.b16 %v7595
        %v7660 = vunpack.c.l.b16 %v7596
        %v7661 = vunpack.c.l.b16 %v7597
        %v7662 = vunpack.c.l.b16 %v7598
        %v7663 = vunpack.c.l.b16 %v7599
        %v7664 = vunpack.c.l.b16 %v7600
        %v7665 = vunpack.c.l.b16 %v7601
        %v7666 = vunpack.c.l.b16 %v7602
        %v7667 = vunpack.c.l.b16 %v7603
        %v7668 = vunpack.c.l.b16 %v7604
        %v7669 = vunpack.c.l.b16 %v7605
        %v7670 = vunpack.c.l.b16 %v7606
        %v7671 = vunpack.c.l.b16 %v7607
        %v7672 = vunpack.c.l.b16 %v7608
        %v7673 = vunpack.c.l.b16 %v7609
        %v7674 = vunpack.c.l.b16 %v7610
        %v7675 = vunpack.c.l.b16 %v7611
        %v7676 = vunpack.c.l.b16 %v7612
        %v7677 = vpack.c.b16 %v7646, %v7645
        %v7678 = vpack.c.b16 %v7648, %v7647
        %v7679 = vpack.c.b16 %v7650, %v7649
        %v7680 = vpack.c.b16 %v7652, %v7651
        %v7681 = vpack.c.b16 %v7654, %v7653
        %v7682 = vpack.c.b16 %v7656, %v7655
        %v7683 = vpack.c.b16 %v7658, %v7657
        %v7684 = vpack.c.b16 %v7660, %v7659
        %v7685 = vpack.c.b16 %v7662, %v7661
        %v7686 = vpack.c.b16 %v7664, %v7663
        %v7687 = vpack.c.b16 %v7666, %v7665
        %v7688 = vpack.c.b16 %v7668, %v7667
        %v7689 = vpack.c.b16 %v7670, %v7669
        %v7690 = vpack.c.b16 %v7672, %v7671
        %v7691 = vpack.c.b16 %v7674, %v7673
        %v7692 = vpack.c.b16 %v7676, %v7675
        %7709 = vmatprep.subr.bf16.mxu0 0
        %7710 = vmatpush1.bf16.msra.mxu0 %v7677
        %7711 = vmatprep.subr.bf16.mxu0 0
        %7712 = vmatpush1.bf16.msra.mxu0 %v7678
        %7713 = vmatprep.subr.bf16.mxu0 0
        %7714 = vmatpush1.bf16.msra.mxu0 %v7679
        %7715 = vmatprep.subr.bf16.mxu0 0
        %7716 = vmatpush1.bf16.msra.mxu0 %v7680
        %7717 = vmatprep.subr.bf16.mxu0 0
        %7718 = vmatpush1.bf16.msra.mxu0 %v7681
        %7719 = vmatprep.subr.bf16.mxu0 0
        %7720 = vmatpush1.bf16.msra.mxu0 %v7682
        %7721 = vmatprep.subr.bf16.mxu0 0
        %7722 = vmatpush1.bf16.msra.mxu0 %v7683
        %7723 = vmatprep.subr.bf16.mxu0 0
        %7724 = vmatpush1.bf16.msra.mxu0 %v7684
        %7725 = vmatprep.subr.bf16.mxu0 0
        %7726 = vmatpush1.bf16.msra.mxu0 %v7685
        %7727 = vmatprep.subr.bf16.mxu0 0
        %7728 = vmatpush1.bf16.msra.mxu0 %v7686
        %7729 = vmatprep.subr.bf16.mxu0 0
        %7730 = vmatpush1.bf16.msra.mxu0 %v7687
        %7731 = vmatprep.subr.bf16.mxu0 0
        %7732 = vmatpush1.bf16.msra.mxu0 %v7688
        %7733 = vmatprep.subr.bf16.mxu0 0
        %7734 = vmatpush1.bf16.msra.mxu0 %v7689
        %7735 = vmatprep.subr.bf16.mxu0 0
        %7736 = vmatpush1.bf16.msra.mxu0 %v7690
        %7737 = vmatprep.subr.bf16.mxu0 0
        %7738 = vmatpush1.bf16.msra.mxu0 %v7691
        %7739 = vmatprep.subr.bf16.mxu0 0
        %7740 = vmatpush1.bf16.msra.mxu0 %v7692
        %7741 = vmatprep.mubr.bf16.mxu0 %v7574
        %7742 = vmatmul.mubr.bf16.gmra.mrb[0].mxu0 %v7573
        %v7743 = vpop.f32.mrb[0].mxu0
        %v7744 = vadd.f32 0.0, %v7743
        %v7745 = vpop.f32.mrb[0].mxu0
        %v7746 = vpop.f32.mrb[0].mxu0
        %v7747 = vadd.f32 0.0, %v7746
        %v7748 = vpop.f32.mrb[0].mxu0
        %7749 = vmatprep.mubr.bf16.mxu0 %v7576
        %7750 = vmatmul.mubr.bf16.gmra.mrb[0].mxu0 %v7575
        %v7751 = vpop.f32.mrb[0].mxu0
        %v7752 = vadd.f32 0.0, %v7751
        %v7753 = vpop.f32.mrb[0].mxu0
        %v7754 = vpop.f32.mrb[0].mxu0
        %v7755 = vadd.f32 0.0, %v7754
        %v7756 = vpop.f32.mrb[0].mxu0
        %7757 = vmatprep.mubr.bf16.mxu0 %v7578
        %7758 = vmatmul.mubr.bf16.gmra.mrb[0].mxu0 %v7577
        %v7759 = vpop.f32.mrb[0].mxu0
        %v7760 = vadd.f32 0.0, %v7759
        %v7761 = vpop.f32.mrb[0].mxu0
        %v7762 = vpop.f32.mrb[0].mxu0
        %v7763 = vadd.f32 0.0, %v7762
        %v7764 = vpop.f32.mrb[0].mxu0
        %7765 = vmatprep.mubr.bf16.mxu0 %v7580
        %7766 = vmatmul.mubr.bf16.gmra.mrb[0].mxu0 %v7579
        %v7767 = vpop.f32.mrb[0].mxu0
        %v7768 = vadd.f32 0.0, %v7767
        %v7769 = vpop.f32.mrb[0].mxu0
        %v7770 = vpop.f32.mrb[0].mxu0
        %v7771 = vadd.f32 0.0, %v7770
        %v7772 = vpop.f32.mrb[0].mxu0
        %7773 = vdwg.mxu0
        %v7774 = vadd.f32 %v7555, %v7744
        %v7775 = vadd.f32 %v7555, %v7747
        %v7776 = vadd.f32 %v7555, %v7752
        %v7777 = vadd.f32 %v7555, %v7755
        %v7778 = vadd.f32 %v7555, %v7760
        %v7779 = vadd.f32 %v7555, %v7763
        %v7780 = vadd.f32 %v7555, %v7768
        %v7781 = vadd.f32 %v7555, %v7771
        %v7782 = vld [vmem:[#allocation2] sm:$0xfe]
        %v7783 = vld [vmem:[#allocation2 + $0x8] sm:$0xfe]
        %v7784 = vld [vmem:[#allocation2 + $0x10] sm:$0x1]
        %v7785 = vld [vmem:[#allocation2 + $0x18] sm:$0x1]
        %v7786 = vld [vmem:[#allocation2 + $0x20] sm:$0xfe]
        %v7787 = vld [vmem:[#allocation2 + $0x28] sm:$0xfe]
        %v7788 = vld [vmem:[#allocation2 + $0x30] sm:$0x1]
        %v7789 = vld [vmem:[#allocation2 + $0x38] sm:$0x1]
        %v7790 = vld [vmem:[#allocation2 + $0x40] sm:$0xfe]
        %v7791 = vld [vmem:[#allocation2 + $0x48] sm:$0xfe]
        %v7792 = vld [vmem:[#allocation2 + $0x50] sm:$0x1]
        %v7793 = vld [vmem:[#allocation2 + $0x58] sm:$0x1]
        %v7794 = vld [vmem:[#allocation2 + $0x60] sm:$0xfe]
        %v7795 = vld [vmem:[#allocation2 + $0x68] sm:$0xfe]
        %v7796 = vld [vmem:[#allocation2 + $0x70] sm:$0x1]
        %v7797 = vld [vmem:[#allocation2 + $0x78] sm:$0x1]
        %v7798 = vld [vmem:[#allocation2 + $0x80] sm:$0xfe]
        %v7799 = vld [vmem:[#allocation2 + $0x88] sm:$0xfe]
        %v7800 = vld [vmem:[#allocation2 + $0x90] sm:$0x1]
        %v7801 = vld [vmem:[#allocation2 + $0x98] sm:$0x1]
        %v7802 = vld [vmem:[#allocation2 + $0xa0] sm:$0xfe]
        %v7803 = vld [vmem:[#allocation2 + $0xa8] sm:$0xfe]
        %v7804 = vld [vmem:[#allocation2 + $0xb0] sm:$0x1]
        %v7805 = vld [vmem:[#allocation2 + $0xb8] sm:$0x1]
        %v7806 = vld [vmem:[#allocation2 + $0xc0] sm:$0xfe]
        %v7807 = vld [vmem:[#allocation2 + $0xc8] sm:$0xfe]
        %v7808 = vld [vmem:[#allocation2 + $0xd0] sm:$0x1]
        %v7809 = vld [vmem:[#allocation2 + $0xd8] sm:$0x1]
        %v7810 = vld [vmem:[#allocation2 + $0xe0] sm:$0xfe]
        %v7811 = vld [vmem:[#allocation2 + $0xe8] sm:$0xfe]
        %v7812 = vld [vmem:[#allocation2 + $0xf0] sm:$0x1]
        %v7813 = vld [vmem:[#allocation2 + $0xf8] sm:$0x1]
        %v7846 = vrot.slane %v7782, 1
        %v7847 = vrot.slane %v7784, 1
        %v7848 = vsel %vm858, %v7846, %v7847
        %v7849 = vrot.slane %v7783, 1
        %v7850 = vrot.slane %v7785, 1
        %v7851 = vsel %vm858, %v7849, %v7850
        %v7852 = vrot.slane %v7786, 1
        %v7853 = vrot.slane %v7788, 1
        %v7854 = vsel %vm858, %v7852, %v7853
        %v7855 = vrot.slane %v7787, 1
        %v7856 = vrot.slane %v7789, 1
        %v7857 = vsel %vm858, %v7855, %v7856
        %v7858 = vrot.slane %v7790, 1
        %v7859 = vrot.slane %v7792, 1
        %v7860 = vsel %vm858, %v7858, %v7859
        %v7861 = vrot.slane %v7791, 1
        %v7862 = vrot.slane %v7793, 1
        %v7863 = vsel %vm858, %v7861, %v7862
        %v7864 = vrot.slane %v7794, 1
        %v7865 = vrot.slane %v7796, 1
        %v7866 = vsel %vm858, %v7864, %v7865
        %v7867 = vrot.slane %v7795, 1
        %v7868 = vrot.slane %v7797, 1
        %v7869 = vsel %vm858, %v7867, %v7868
        %v7870 = vrot.slane %v7798, 1
        %v7871 = vrot.slane %v7800, 1
        %v7872 = vsel %vm858, %v7870, %v7871
        %v7873 = vrot.slane %v7799, 1
        %v7874 = vrot.slane %v7801, 1
        %v7875 = vsel %vm858, %v7873, %v7874
        %v7876 = vrot.slane %v7802, 1
        %v7877 = vrot.slane %v7804, 1
        %v7878 = vsel %vm858, %v7876, %v7877
        %v7879 = vrot.slane %v7803, 1
        %v7880 = vrot.slane %v7805, 1
        %v7881 = vsel %vm858, %v7879, %v7880
        %v7882 = vrot.slane %v7806, 1
        %v7883 = vrot.slane %v7808, 1
        %v7884 = vsel %vm858, %v7882, %v7883
        %v7885 = vrot.slane %v7807, 1
        %v7886 = vrot.slane %v7809, 1
        %v7887 = vsel %vm858, %v7885, %v7886
        %v7888 = vrot.slane %v7810, 1
        %v7889 = vrot.slane %v7812, 1
        %v7890 = vsel %vm858, %v7888, %v7889
        %v7891 = vrot.slane %v7811, 1
        %v7892 = vrot.slane %v7813, 1
        %v7893 = vsel %vm858, %v7891, %v7892
        %v7910 = vpack.c.bf16 %v7854, %v7848
        %v7911 = vpack.c.bf16 %v7857, %v7851
        %v7912 = vpack.c.bf16 %v7866, %v7860
        %v7913 = vpack.c.bf16 %v7869, %v7863
        %v7914 = vpack.c.bf16 %v7878, %v7872
        %v7915 = vpack.c.bf16 %v7881, %v7875
        %v7916 = vpack.c.bf16 %v7890, %v7884
        %v7917 = vpack.c.bf16 %v7893, %v7887
        %s7918 = scalar_lea.vmem [#allocation10], 128
        %v7919 = vld [vmem:[%s7918] sm:$0xf]
        %v7920 = vld [vmem:[%s7918 + $0x4] sm:$0xf]
        %v7921 = vld [vmem:[%s7918 + $0x8] sm:$0xf]
        %v7922 = vld [vmem:[%s7918 + $0xc] sm:$0xf]
        %v7923 = vld [vmem:[%s7918 + $0x10] sm:$0xf]
        %v7924 = vld [vmem:[%s7918 + $0x14] sm:$0xf]
        %v7925 = vld [vmem:[%s7918 + $0x18] sm:$0xf]
        %v7926 = vld [vmem:[%s7918 + $0x1c] sm:$0xf]
        %v7927 = vld [vmem:[%s7918 + $0x20] sm:$0xf]
        %v7928 = vld [vmem:[%s7918 + $0x24] sm:$0xf]
        %v7929 = vld [vmem:[%s7918 + $0x28] sm:$0xf]
        %v7930 = vld [vmem:[%s7918 + $0x2c] sm:$0xf]
        %v7931 = vld [vmem:[%s7918 + $0x30] sm:$0xf]
        %v7932 = vld [vmem:[%s7918 + $0x34] sm:$0xf]
        %v7933 = vld [vmem:[%s7918 + $0x38] sm:$0xf]
        %v7934 = vld [vmem:[%s7918 + $0x3c] sm:$0xf]
        %v7935 = vld [vmem:[%s7918 + $0x40] sm:$0xf]
        %v7936 = vld [vmem:[%s7918 + $0x44] sm:$0xf]
        %v7937 = vld [vmem:[%s7918 + $0x48] sm:$0xf]
        %v7938 = vld [vmem:[%s7918 + $0x4c] sm:$0xf]
        %v7939 = vld [vmem:[%s7918 + $0x50] sm:$0xf]
        %v7940 = vld [vmem:[%s7918 + $0x54] sm:$0xf]
        %v7941 = vld [vmem:[%s7918 + $0x58] sm:$0xf]
        %v7942 = vld [vmem:[%s7918 + $0x5c] sm:$0xf]
        %v7943 = vld [vmem:[%s7918 + $0x60] sm:$0xf]
        %v7944 = vld [vmem:[%s7918 + $0x64] sm:$0xf]
        %v7945 = vld [vmem:[%s7918 + $0x68] sm:$0xf]
        %v7946 = vld [vmem:[%s7918 + $0x6c] sm:$0xf]
        %v7947 = vld [vmem:[%s7918 + $0x70] sm:$0xf]
        %v7948 = vld [vmem:[%s7918 + $0x74] sm:$0xf]
        %v7949 = vld [vmem:[%s7918 + $0x78] sm:$0xf]
        %v7950 = vld [vmem:[%s7918 + $0x7c] sm:$0xf]
        %v7983 = vunpack.c.l.b16 %v7919
        %v7984 = vunpack.c.l.b16 %v7920
        %v7985 = vunpack.c.l.b16 %v7921
        %v7986 = vunpack.c.l.b16 %v7922
        %v7987 = vunpack.c.l.b16 %v7923
        %v7988 = vunpack.c.l.b16 %v7924
        %v7989 = vunpack.c.l.b16 %v7925
        %v7990 = vunpack.c.l.b16 %v7926
        %v7991 = vunpack.c.l.b16 %v7927
        %v7992 = vunpack.c.l.b16 %v7928
        %v7993 = vunpack.c.l.b16 %v7929
        %v7994 = vunpack.c.l.b16 %v7930
        %v7995 = vunpack.c.l.b16 %v7931
        %v7996 = vunpack.c.l.b16 %v7932
        %v7997 = vunpack.c.l.b16 %v7933
        %v7998 = vunpack.c.l.b16 %v7934
        %v7999 = vunpack.c.l.b16 %v7935
        %v8000 = vunpack.c.l.b16 %v7936
        %v8001 = vunpack.c.l.b16 %v7937
        %v8002 = vunpack.c.l.b16 %v7938
        %v8003 = vunpack.c.l.b16 %v7939
        %v8004 = vunpack.c.l.b16 %v7940
        %v8005 = vunpack.c.l.b16 %v7941
        %v8006 = vunpack.c.l.b16 %v7942
        %v8007 = vunpack.c.l.b16 %v7943
        %v8008 = vunpack.c.l.b16 %v7944
        %v8009 = vunpack.c.l.b16 %v7945
        %v8010 = vunpack.c.l.b16 %v7946
        %v8011 = vunpack.c.l.b16 %v7947
        %v8012 = vunpack.c.l.b16 %v7948
        %v8013 = vunpack.c.l.b16 %v7949
        %v8014 = vunpack.c.l.b16 %v7950
        %v8015 = vpack.c.b16 %v7984, %v7983
        %v8016 = vpack.c.b16 %v7986, %v7985
        %v8017 = vpack.c.b16 %v7988, %v7987
        %v8018 = vpack.c.b16 %v7990, %v7989
        %v8019 = vpack.c.b16 %v7992, %v7991
        %v8020 = vpack.c.b16 %v7994, %v7993
        %v8021 = vpack.c.b16 %v7996, %v7995
        %v8022 = vpack.c.b16 %v7998, %v7997
        %v8023 = vpack.c.b16 %v8000, %v7999
        %v8024 = vpack.c.b16 %v8002, %v8001
        %v8025 = vpack.c.b16 %v8004, %v8003
        %v8026 = vpack.c.b16 %v8006, %v8005
        %v8027 = vpack.c.b16 %v8008, %v8007
        %v8028 = vpack.c.b16 %v8010, %v8009
        %v8029 = vpack.c.b16 %v8012, %v8011
        %v8030 = vpack.c.b16 %v8014, %v8013
        %8047 = vmatprep.subr.bf16.mxu0 0
        %8048 = vmatpush1.bf16.msra.mxu0 %v8015
        %8049 = vmatprep.subr.bf16.mxu0 0
        %8050 = vmatpush1.bf16.msra.mxu0 %v8016
        %8051 = vmatprep.subr.bf16.mxu0 0
        %8052 = vmatpush1.bf16.msra.mxu0 %v8017
        %8053 = vmatprep.subr.bf16.mxu0 0
        %8054 = vmatpush1.bf16.msra.mxu0 %v8018
        %8055 = vmatprep.subr.bf16.mxu0 0
        %8056 = vmatpush1.bf16.msra.mxu0 %v8019
        %8057 = vmatprep.subr.bf16.mxu0 0
        %8058 = vmatpush1.bf16.msra.mxu0 %v8020
        %8059 = vmatprep.subr.bf16.mxu0 0
        %8060 = vmatpush1.bf16.msra.mxu0 %v8021
        %8061 = vmatprep.subr.bf16.mxu0 0
        %8062 = vmatpush1.bf16.msra.mxu0 %v8022
        %8063 = vmatprep.subr.bf16.mxu0 0
        %8064 = vmatpush1.bf16.msra.mxu0 %v8023
        %8065 = vmatprep.subr.bf16.mxu0 0
        %8066 = vmatpush1.bf16.msra.mxu0 %v8024
        %8067 = vmatprep.subr.bf16.mxu0 0
        %8068 = vmatpush1.bf16.msra.mxu0 %v8025
        %8069 = vmatprep.subr.bf16.mxu0 0
        %8070 = vmatpush1.bf16.msra.mxu0 %v8026
        %8071 = vmatprep.subr.bf16.mxu0 0
        %8072 = vmatpush1.bf16.msra.mxu0 %v8027
        %8073 = vmatprep.subr.bf16.mxu0 0
        %8074 = vmatpush1.bf16.msra.mxu0 %v8028
        %8075 = vmatprep.subr.bf16.mxu0 0
        %8076 = vmatpush1.bf16.msra.mxu0 %v8029
        %8077 = vmatprep.subr.bf16.mxu0 0
        %8078 = vmatpush1.bf16.msra.mxu0 %v8030
        %8079 = vmatprep.mubr.bf16.mxu0 %v7911
        %8080 = vmatmul.mubr.bf16.gmra.mrb[0].mxu0 %v7910
        %v8081 = vpop.f32.mrb[0].mxu0
        %v8082 = vadd.f32 0.0, %v8081
        %v8083 = vpop.f32.mrb[0].mxu0
        %v8084 = vpop.f32.mrb[0].mxu0
        %v8085 = vadd.f32 0.0, %v8084
        %v8086 = vpop.f32.mrb[0].mxu0
        %8087 = vmatprep.mubr.bf16.mxu0 %v7913
        %8088 = vmatmul.mubr.bf16.gmra.mrb[0].mxu0 %v7912
        %v8089 = vpop.f32.mrb[0].mxu0
        %v8090 = vadd.f32 0.0, %v8089
        %v8091 = vpop.f32.mrb[0].mxu0
        %v8092 = vpop.f32.mrb[0].mxu0
        %v8093 = vadd.f32 0.0, %v8092
        %v8094 = vpop.f32.mrb[0].mxu0
        %8095 = vmatprep.mubr.bf16.mxu0 %v7915
        %8096 = vmatmul.mubr.bf16.gmra.mrb[0].mxu0 %v7914
        %v8097 = vpop.f32.mrb[0].mxu0
        %v8098 = vadd.f32 0.0, %v8097
        %v8099 = vpop.f32.mrb[0].mxu0
        %v8100 = vpop.f32.mrb[0].mxu0
        %v8101 = vadd.f32 0.0, %v8100
        %v8102 = vpop.f32.mrb[0].mxu0
        %8103 = vmatprep.mubr.bf16.mxu0 %v7917
        %8104 = vmatmul.mubr.bf16.gmra.mrb[0].mxu0 %v7916
        %v8105 = vpop.f32.mrb[0].mxu0
        %v8106 = vadd.f32 0.0, %v8105
        %v8107 = vpop.f32.mrb[0].mxu0
        %v8108 = vpop.f32.mrb[0].mxu0
        %v8109 = vadd.f32 0.0, %v8108
        %v8110 = vpop.f32.mrb[0].mxu0
        %8111 = vdwg.mxu0
        %v8112 = vadd.f32 %v7774, %v8082
        %v8113 = vadd.f32 %v7775, %v8085
        %v8114 = vadd.f32 %v7776, %v8090
        %v8115 = vadd.f32 %v7777, %v8093
        %v8116 = vadd.f32 %v7778, %v8098
        %v8117 = vadd.f32 %v7779, %v8101
        %v8118 = vadd.f32 %v7780, %v8106
        %v8119 = vadd.f32 %v7781, %v8109
        %v8120 = vld [vmem:[#allocation2] sm:$0xfc]
        %v8121 = vld [vmem:[#allocation2 + $0x8] sm:$0xfc]
        %v8122 = vld [vmem:[#allocation2 + $0x10] sm:$0x3]
        %v8123 = vld [vmem:[#allocation2 + $0x18] sm:$0x3]
        %v8124 = vld [vmem:[#allocation2 + $0x20] sm:$0xfc]
        %v8125 = vld [vmem:[#allocation2 + $0x28] sm:$0xfc]
        %v8126 = vld [vmem:[#allocation2 + $0x30] sm:$0x3]
        %v8127 = vld [vmem:[#allocation2 + $0x38] sm:$0x3]
        %v8128 = vld [vmem:[#allocation2 + $0x40] sm:$0xfc]
        %v8129 = vld [vmem:[#allocation2 + $0x48] sm:$0xfc]
        %v8130 = vld [vmem:[#allocation2 + $0x50] sm:$0x3]
        %v8131 = vld [vmem:[#allocation2 + $0x58] sm:$0x3]
        %v8132 = vld [vmem:[#allocation2 + $0x60] sm:$0xfc]
        %v8133 = vld [vmem:[#allocation2 + $0x68] sm:$0xfc]
        %v8134 = vld [vmem:[#allocation2 + $0x70] sm:$0x3]
        %v8135 = vld [vmem:[#allocation2 + $0x78] sm:$0x3]
        %v8136 = vld [vmem:[#allocation2 + $0x80] sm:$0xfc]
        %v8137 = vld [vmem:[#allocation2 + $0x88] sm:$0xfc]
        %v8138 = vld [vmem:[#allocation2 + $0x90] sm:$0x3]
        %v8139 = vld [vmem:[#allocation2 + $0x98] sm:$0x3]
        %v8140 = vld [vmem:[#allocation2 + $0xa0] sm:$0xfc]
        %v8141 = vld [vmem:[#allocation2 + $0xa8] sm:$0xfc]
        %v8142 = vld [vmem:[#allocation2 + $0xb0] sm:$0x3]
        %v8143 = vld [vmem:[#allocation2 + $0xb8] sm:$0x3]
        %v8144 = vld [vmem:[#allocation2 + $0xc0] sm:$0xfc]
        %v8145 = vld [vmem:[#allocation2 + $0xc8] sm:$0xfc]
        %v8146 = vld [vmem:[#allocation2 + $0xd0] sm:$0x3]
        %v8147 = vld [vmem:[#allocation2 + $0xd8] sm:$0x3]
        %v8148 = vld [vmem:[#allocation2 + $0xe0] sm:$0xfc]
        %v8149 = vld [vmem:[#allocation2 + $0xe8] sm:$0xfc]
        %v8150 = vld [vmem:[#allocation2 + $0xf0] sm:$0x3]
        %v8151 = vld [vmem:[#allocation2 + $0xf8] sm:$0x3]
        %v8184 = vrot.slane %v8120, 2
        %v8185 = vrot.slane %v8122, 2
        %v8186 = vsel %vm1277, %v8184, %v8185
        %v8187 = vrot.slane %v8121, 2
        %v8188 = vrot.slane %v8123, 2
        %v8189 = vsel %vm1277, %v8187, %v8188
        %v8190 = vrot.slane %v8124, 2
        %v8191 = vrot.slane %v8126, 2
        %v8192 = vsel %vm1277, %v8190, %v8191
        %v8193 = vrot.slane %v8125, 2
        %v8194 = vrot.slane %v8127, 2
        %v8195 = vsel %vm1277, %v8193, %v8194
        %v8196 = vrot.slane %v8128, 2
        %v8197 = vrot.slane %v8130, 2
        %v8198 = vsel %vm1277, %v8196, %v8197
        %v8199 = vrot.slane %v8129, 2
        %v8200 = vrot.slane %v8131, 2
        %v8201 = vsel %vm1277, %v8199, %v8200
        %v8202 = vrot.slane %v8132, 2
        %v8203 = vrot.slane %v8134, 2
        %v8204 = vsel %vm1277, %v8202, %v8203
        %v8205 = vrot.slane %v8133, 2
        %v8206 = vrot.slane %v8135, 2
        %v8207 = vsel %vm1277, %v8205, %v8206
        %v8208 = vrot.slane %v8136, 2
        %v8209 = vrot.slane %v8138, 2
        %v8210 = vsel %vm1277, %v8208, %v8209
        %v8211 = vrot.slane %v8137, 2
        %v8212 = vrot.slane %v8139, 2
        %v8213 = vsel %vm1277, %v8211, %v8212
        %v8214 = vrot.slane %v8140, 2
        %v8215 = vrot.slane %v8142, 2
        %v8216 = vsel %vm1277, %v8214, %v8215
        %v8217 = vrot.slane %v8141, 2
        %v8218 = vrot.slane %v8143, 2
        %v8219 = vsel %vm1277, %v8217, %v8218
        %v8220 = vrot.slane %v8144, 2
        %v8221 = vrot.slane %v8146, 2
        %v8222 = vsel %vm1277, %v8220, %v8221
        %v8223 = vrot.slane %v8145, 2
        %v8224 = vrot.slane %v8147, 2
        %v8225 = vsel %vm1277, %v8223, %v8224
        %v8226 = vrot.slane %v8148, 2
        %v8227 = vrot.slane %v8150, 2
        %v8228 = vsel %vm1277, %v8226, %v8227
        %v8229 = vrot.slane %v8149, 2
        %v8230 = vrot.slane %v8151, 2
        %v8231 = vsel %vm1277, %v8229, %v8230
        %v8248 = vpack.c.bf16 %v8192, %v8186
        %v8249 = vpack.c.bf16 %v8195, %v8189
        %v8250 = vpack.c.bf16 %v8204, %v8198
        %v8251 = vpack.c.bf16 %v8207, %v8201
        %v8252 = vpack.c.bf16 %v8216, %v8210
        %v8253 = vpack.c.bf16 %v8219, %v8213
        %v8254 = vpack.c.bf16 %v8228, %v8222
        %v8255 = vpack.c.bf16 %v8231, %v8225
        %s8256 = scalar_lea.vmem [#allocation10], 256
        %v8257 = vld [vmem:[%s8256] sm:$0xf]
        %v8258 = vld [vmem:[%s8256 + $0x4] sm:$0xf]
        %v8259 = vld [vmem:[%s8256 + $0x8] sm:$0xf]
        %v8260 = vld [vmem:[%s8256 + $0xc] sm:$0xf]
        %v8261 = vld [vmem:[%s8256 + $0x10] sm:$0xf]
        %v8262 = vld [vmem:[%s8256 + $0x14] sm:$0xf]
        %v8263 = vld [vmem:[%s8256 + $0x18] sm:$0xf]
        %v8264 = vld [vmem:[%s8256 + $0x1c] sm:$0xf]
        %v8265 = vld [vmem:[%s8256 + $0x20] sm:$0xf]
        %v8266 = vld [vmem:[%s8256 + $0x24] sm:$0xf]
        %v8267 = vld [vmem:[%s8256 + $0x28] sm:$0xf]
        %v8268 = vld [vmem:[%s8256 + $0x2c] sm:$0xf]
        %v8269 = vld [vmem:[%s8256 + $0x30] sm:$0xf]
        %v8270 = vld [vmem:[%s8256 + $0x34] sm:$0xf]
        %v8271 = vld [vmem:[%s8256 + $0x38] sm:$0xf]
        %v8272 = vld [vmem:[%s8256 + $0x3c] sm:$0xf]
        %v8273 = vld [vmem:[%s8256 + $0x40] sm:$0xf]
        %v8274 = vld [vmem:[%s8256 + $0x44] sm:$0xf]
        %v8275 = vld [vmem:[%s8256 + $0x48] sm:$0xf]
        %v8276 = vld [vmem:[%s8256 + $0x4c] sm:$0xf]
        %v8277 = vld [vmem:[%s8256 + $0x50] sm:$0xf]
        %v8278 = vld [vmem:[%s8256 + $0x54] sm:$0xf]
        %v8279 = vld [vmem:[%s8256 + $0x58] sm:$0xf]
        %v8280 = vld [vmem:[%s8256 + $0x5c] sm:$0xf]
        %v8281 = vld [vmem:[%s8256 + $0x60] sm:$0xf]
        %v8282 = vld [vmem:[%s8256 + $0x64] sm:$0xf]
        %v8283 = vld [vmem:[%s8256 + $0x68] sm:$0xf]
        %v8284 = vld [vmem:[%s8256 + $0x6c] sm:$0xf]
        %v8285 = vld [vmem:[%s8256 + $0x70] sm:$0xf]
        %v8286 = vld [vmem:[%s8256 + $0x74] sm:$0xf]
        %v8287 = vld [vmem:[%s8256 + $0x78] sm:$0xf]
        %v8288 = vld [vmem:[%s8256 + $0x7c] sm:$0xf]
        %v8321 = vunpack.c.l.b16 %v8257
        %v8322 = vunpack.c.l.b16 %v8258
        %v8323 = vunpack.c.l.b16 %v8259
        %v8324 = vunpack.c.l.b16 %v8260
        %v8325 = vunpack.c.l.b16 %v8261
        %v8326 = vunpack.c.l.b16 %v8262
        %v8327 = vunpack.c.l.b16 %v8263
        %v8328 = vunpack.c.l.b16 %v8264
        %v8329 = vunpack.c.l.b16 %v8265
        %v8330 = vunpack.c.l.b16 %v8266
        %v8331 = vunpack.c.l.b16 %v8267
        %v8332 = vunpack.c.l.b16 %v8268
        %v8333 = vunpack.c.l.b16 %v8269
        %v8334 = vunpack.c.l.b16 %v8270
        %v8335 = vunpack.c.l.b16 %v8271
        %v8336 = vunpack.c.l.b16 %v8272
        %v8337 = vunpack.c.l.b16 %v8273
        %v8338 = vunpack.c.l.b16 %v8274
        %v8339 = vunpack.c.l.b16 %v8275
        %v8340 = vunpack.c.l.b16 %v8276
        %v8341 = vunpack.c.l.b16 %v8277
        %v8342 = vunpack.c.l.b16 %v8278
        %v8343 = vunpack.c.l.b16 %v8279
        %v8344 = vunpack.c.l.b16 %v8280
        %v8345 = vunpack.c.l.b16 %v8281
        %v8346 = vunpack.c.l.b16 %v8282
        %v8347 = vunpack.c.l.b16 %v8283
        %v8348 = vunpack.c.l.b16 %v8284
        %v8349 = vunpack.c.l.b16 %v8285
        %v8350 = vunpack.c.l.b16 %v8286
        %v8351 = vunpack.c.l.b16 %v8287
        %v8352 = vunpack.c.l.b16 %v8288
        %v8353 = vpack.c.b16 %v8322, %v8321
        %v8354 = vpack.c.b16 %v8324, %v8323
        %v8355 = vpack.c.b16 %v8326, %v8325
        %v8356 = vpack.c.b16 %v8328, %v8327
        %v8357 = vpack.c.b16 %v8330, %v8329
        %v8358 = vpack.c.b16 %v8332, %v8331
        %v8359 = vpack.c.b16 %v8334, %v8333
        %v8360 = vpack.c.b16 %v8336, %v8335
        %v8361 = vpack.c.b16 %v8338, %v8337
        %v8362 = vpack.c.b16 %v8340, %v8339
        %v8363 = vpack.c.b16 %v8342, %v8341
        %v8364 = vpack.c.b16 %v8344, %v8343
        %v8365 = vpack.c.b16 %v8346, %v8345
        %v8366 = vpack.c.b16 %v8348, %v8347
        %v8367 = vpack.c.b16 %v8350, %v8349
        %v8368 = vpack.c.b16 %v8352, %v8351
        %8385 = vmatprep.subr.bf16.mxu0 0
        %8386 = vmatpush1.bf16.msra.mxu0 %v8353
        %8387 = vmatprep.subr.bf16.mxu0 0
        %8388 = vmatpush1.bf16.msra.mxu0 %v8354
        %8389 = vmatprep.subr.bf16.mxu0 0
        %8390 = vmatpush1.bf16.msra.mxu0 %v8355
        %8391 = vmatprep.subr.bf16.mxu0 0
        %8392 = vmatpush1.bf16.msra.mxu0 %v8356
        %8393 = vmatprep.subr.bf16.mxu0 0
        %8394 = vmatpush1.bf16.msra.mxu0 %v8357
        %8395 = vmatprep.subr.bf16.mxu0 0
        %8396 = vmatpush1.bf16.msra.mxu0 %v8358
        %8397 = vmatprep.subr.bf16.mxu0 0
        %8398 = vmatpush1.bf16.msra.mxu0 %v8359
        %8399 = vmatprep.subr.bf16.mxu0 0
        %8400 = vmatpush1.bf16.msra.mxu0 %v8360
        %8401 = vmatprep.subr.bf16.mxu0 0
        %8402 = vmatpush1.bf16.msra.mxu0 %v8361
        %8403 = vmatprep.subr.bf16.mxu0 0
        %8404 = vmatpush1.bf16.msra.mxu0 %v8362
        %8405 = vmatprep.subr.bf16.mxu0 0
        %8406 = vmatpush1.bf16.msra.mxu0 %v8363
        %8407 = vmatprep.subr.bf16.mxu0 0
        %8408 = vmatpush1.bf16.msra.mxu0 %v8364
        %8409 = vmatprep.subr.bf16.mxu0 0
        %8410 = vmatpush1.bf16.msra.mxu0 %v8365
        %8411 = vmatprep.subr.bf16.mxu0 0
        %8412 = vmatpush1.bf16.msra.mxu0 %v8366
        %8413 = vmatprep.subr.bf16.mxu0 0
        %8414 = vmatpush1.bf16.msra.mxu0 %v8367
        %8415 = vmatprep.subr.bf16.mxu0 0
        %8416 = vmatpush1.bf16.msra.mxu0 %v8368
        %8417 = vmatprep.mubr.bf16.mxu0 %v8249
        %8418 = vmatmul.mubr.bf16.gmra.mrb[0].mxu0 %v8248
        %v8419 = vpop.f32.mrb[0].mxu0
        %v8420 = vadd.f32 0.0, %v8419
        %v8421 = vpop.f32.mrb[0].mxu0
        %v8422 = vpop.f32.mrb[0].mxu0
        %v8423 = vadd.f32 0.0, %v8422
        %v8424 = vpop.f32.mrb[0].mxu0
        %8425 = vmatprep.mubr.bf16.mxu0 %v8251
        %8426 = vmatmul.mubr.bf16.gmra.mrb[0].mxu0 %v8250
        %v8427 = vpop.f32.mrb[0].mxu0
        %v8428 = vadd.f32 0.0, %v8427
        %v8429 = vpop.f32.mrb[0].mxu0
        %v8430 = vpop.f32.mrb[0].mxu0
        %v8431 = vadd.f32 0.0, %v8430
        %v8432 = vpop.f32.mrb[0].mxu0
        %8433 = vmatprep.mubr.bf16.mxu0 %v8253
        %8434 = vmatmul.mubr.bf16.gmra.mrb[0].mxu0 %v8252
        %v8435 = vpop.f32.mrb[0].mxu0
        %v8436 = vadd.f32 0.0, %v8435
        %v8437 = vpop.f32.mrb[0].mxu0
        %v8438 = vpop.f32.mrb[0].mxu0
        %v8439 = vadd.f32 0.0, %v8438
        %v8440 = vpop.f32.mrb[0].mxu0
        %8441 = vmatprep.mubr.bf16.mxu0 %v8255
        %8442 = vmatmul.mubr.bf16.gmra.mrb[0].mxu0 %v8254
        %v8443 = vpop.f32.mrb[0].mxu0
        %v8444 = vadd.f32 0.0, %v8443
        %v8445 = vpop.f32.mrb[0].mxu0
        %v8446 = vpop.f32.mrb[0].mxu0
        %v8447 = vadd.f32 0.0, %v8446
        %v8448 = vpop.f32.mrb[0].mxu0
        %8449 = vdwg.mxu0
        %v8450 = vadd.f32 %v8112, %v8420
        %v8451 = vadd.f32 %v8113, %v8423
        %v8452 = vadd.f32 %v8114, %v8428
        %v8453 = vadd.f32 %v8115, %v8431
        %v8454 = vadd.f32 %v8116, %v8436
        %v8455 = vadd.f32 %v8117, %v8439
        %v8456 = vadd.f32 %v8118, %v8444
        %v8457 = vadd.f32 %v8119, %v8447
        %v8458 = vld [vmem:[%s444] sm:$0xff]
        %v8459 = vld [vmem:[%s444 + $0x8] sm:$0xff]
        %v8460 = vld [vmem:[%s444 + $0x20] sm:$0xff]
        %v8461 = vld [vmem:[%s444 + $0x28] sm:$0xff]
        %v8462 = vld [vmem:[%s444 + $0x40] sm:$0xff]
        %v8463 = vld [vmem:[%s444 + $0x48] sm:$0xff]
        %v8464 = vld [vmem:[%s444 + $0x60] sm:$0xff]
        %v8465 = vld [vmem:[%s444 + $0x68] sm:$0xff]
        %v8466 = vld [vmem:[%s444 + $0x80] sm:$0xff]
        %v8467 = vld [vmem:[%s444 + $0x88] sm:$0xff]
        %v8468 = vld [vmem:[%s444 + $0xa0] sm:$0xff]
        %v8469 = vld [vmem:[%s444 + $0xa8] sm:$0xff]
        %v8470 = vld [vmem:[%s444 + $0xc0] sm:$0xff]
        %v8471 = vld [vmem:[%s444 + $0xc8] sm:$0xff]
        %v8472 = vld [vmem:[%s444 + $0xe0] sm:$0xff]
        %v8473 = vld [vmem:[%s444 + $0xe8] sm:$0xff]
        %v8474 = vpack.c.bf16 %v8460, %v8458
        %v8475 = vpack.c.bf16 %v8461, %v8459
        %v8476 = vpack.c.bf16 %v8464, %v8462
        %v8477 = vpack.c.bf16 %v8465, %v8463
        %v8478 = vpack.c.bf16 %v8468, %v8466
        %v8479 = vpack.c.bf16 %v8469, %v8467
        %v8480 = vpack.c.bf16 %v8472, %v8470
        %v8481 = vpack.c.bf16 %v8473, %v8471
        %s8482 = scalar_lea.vmem [#allocation10], 384
        %v8483 = vld [vmem:[%s8482] sm:$0xf]
        %v8484 = vld [vmem:[%s8482 + $0x4] sm:$0xf]
        %v8485 = vld [vmem:[%s8482 + $0x8] sm:$0xf]
        %v8486 = vld [vmem:[%s8482 + $0xc] sm:$0xf]
        %v8487 = vld [vmem:[%s8482 + $0x10] sm:$0xf]
        %v8488 = vld [vmem:[%s8482 + $0x14] sm:$0xf]
        %v8489 = vld [vmem:[%s8482 + $0x18] sm:$0xf]
        %v8490 = vld [vmem:[%s8482 + $0x1c] sm:$0xf]
        %v8491 = vld [vmem:[%s8482 + $0x20] sm:$0xf]
        %v8492 = vld [vmem:[%s8482 + $0x24] sm:$0xf]
        %v8493 = vld [vmem:[%s8482 + $0x28] sm:$0xf]
        %v8494 = vld [vmem:[%s8482 + $0x2c] sm:$0xf]
        %v8495 = vld [vmem:[%s8482 + $0x30] sm:$0xf]
        %v8496 = vld [vmem:[%s8482 + $0x34] sm:$0xf]
        %v8497 = vld [vmem:[%s8482 + $0x38] sm:$0xf]
        %v8498 = vld [vmem:[%s8482 + $0x3c] sm:$0xf]
        %v8499 = vld [vmem:[%s8482 + $0x40] sm:$0xf]
        %v8500 = vld [vmem:[%s8482 + $0x44] sm:$0xf]
        %v8501 = vld [vmem:[%s8482 + $0x48] sm:$0xf]
        %v8502 = vld [vmem:[%s8482 + $0x4c] sm:$0xf]
        %v8503 = vld [vmem:[%s8482 + $0x50] sm:$0xf]
        %v8504 = vld [vmem:[%s8482 + $0x54] sm:$0xf]
        %v8505 = vld [vmem:[%s8482 + $0x58] sm:$0xf]
        %v8506 = vld [vmem:[%s8482 + $0x5c] sm:$0xf]
        %v8507 = vld [vmem:[%s8482 + $0x60] sm:$0xf]
        %v8508 = vld [vmem:[%s8482 + $0x64] sm:$0xf]
        %v8509 = vld [vmem:[%s8482 + $0x68] sm:$0xf]
        %v8510 = vld [vmem:[%s8482 + $0x6c] sm:$0xf]
        %v8511 = vld [vmem:[%s8482 + $0x70] sm:$0xf]
        %v8512 = vld [vmem:[%s8482 + $0x74] sm:$0xf]
        %v8513 = vld [vmem:[%s8482 + $0x78] sm:$0xf]
        %v8514 = vld [vmem:[%s8482 + $0x7c] sm:$0xf]
        %v8547 = vunpack.c.l.b16 %v8483
        %v8548 = vunpack.c.l.b16 %v8484
        %v8549 = vunpack.c.l.b16 %v8485
        %v8550 = vunpack.c.l.b16 %v8486
        %v8551 = vunpack.c.l.b16 %v8487
        %v8552 = vunpack.c.l.b16 %v8488
        %v8553 = vunpack.c.l.b16 %v8489
        %v8554 = vunpack.c.l.b16 %v8490
        %v8555 = vunpack.c.l.b16 %v8491
        %v8556 = vunpack.c.l.b16 %v8492
        %v8557 = vunpack.c.l.b16 %v8493
        %v8558 = vunpack.c.l.b16 %v8494
        %v8559 = vunpack.c.l.b16 %v8495
        %v8560 = vunpack.c.l.b16 %v8496
        %v8561 = vunpack.c.l.b16 %v8497
        %v8562 = vunpack.c.l.b16 %v8498
        %v8563 = vunpack.c.l.b16 %v8499
        %v8564 = vunpack.c.l.b16 %v8500
        %v8565 = vunpack.c.l.b16 %v8501
        %v8566 = vunpack.c.l.b16 %v8502
        %v8567 = vunpack.c.l.b16 %v8503
        %v8568 = vunpack.c.l.b16 %v8504
        %v8569 = vunpack.c.l.b16 %v8505
        %v8570 = vunpack.c.l.b16 %v8506
        %v8571 = vunpack.c.l.b16 %v8507
        %v8572 = vunpack.c.l.b16 %v8508
        %v8573 = vunpack.c.l.b16 %v8509
        %v8574 = vunpack.c.l.b16 %v8510
        %v8575 = vunpack.c.l.b16 %v8511
        %v8576 = vunpack.c.l.b16 %v8512
        %v8577 = vunpack.c.l.b16 %v8513
        %v8578 = vunpack.c.l.b16 %v8514
        %v8579 = vpack.c.b16 %v8548, %v8547
        %v8580 = vpack.c.b16 %v8550, %v8549
        %v8581 = vpack.c.b16 %v8552, %v8551
        %v8582 = vpack.c.b16 %v8554, %v8553
        %v8583 = vpack.c.b16 %v8556, %v8555
        %v8584 = vpack.c.b16 %v8558, %v8557
        %v8585 = vpack.c.b16 %v8560, %v8559
        %v8586 = vpack.c.b16 %v8562, %v8561
        %v8587 = vpack.c.b16 %v8564, %v8563
        %v8588 = vpack.c.b16 %v8566, %v8565
        %v8589 = vpack.c.b16 %v8568, %v8567
        %v8590 = vpack.c.b16 %v8570, %v8569
        %v8591 = vpack.c.b16 %v8572, %v8571
        %v8592 = vpack.c.b16 %v8574, %v8573
        %v8593 = vpack.c.b16 %v8576, %v8575
        %v8594 = vpack.c.b16 %v8578, %v8577
        %8611 = vmatprep.subr.bf16.mxu0 0
        %8612 = vmatpush1.bf16.msra.mxu0 %v8579
        %8613 = vmatprep.subr.bf16.mxu0 0
        %8614 = vmatpush1.bf16.msra.mxu0 %v8580
        %8615 = vmatprep.subr.bf16.mxu0 0
        %8616 = vmatpush1.bf16.msra.mxu0 %v8581
        %8617 = vmatprep.subr.bf16.mxu0 0
        %8618 = vmatpush1.bf16.msra.mxu0 %v8582
        %8619 = vmatprep.subr.bf16.mxu0 0
        %8620 = vmatpush1.bf16.msra.mxu0 %v8583
        %8621 = vmatprep.subr.bf16.mxu0 0
        %8622 = vmatpush1.bf16.msra.mxu0 %v8584
        %8623 = vmatprep.subr.bf16.mxu0 0
        %8624 = vmatpush1.bf16.msra.mxu0 %v8585
        %8625 = vmatprep.subr.bf16.mxu0 0
        %8626 = vmatpush1.bf16.msra.mxu0 %v8586
        %8627 = vmatprep.subr.bf16.mxu0 0
        %8628 = vmatpush1.bf16.msra.mxu0 %v8587
        %8629 = vmatprep.subr.bf16.mxu0 0
        %8630 = vmatpush1.bf16.msra.mxu0 %v8588
        %8631 = vmatprep.subr.bf16.mxu0 0
        %8632 = vmatpush1.bf16.msra.mxu0 %v8589
        %8633 = vmatprep.subr.bf16.mxu0 0
        %8634 = vmatpush1.bf16.msra.mxu0 %v8590
        %8635 = vmatprep.subr.bf16.mxu0 0
        %8636 = vmatpush1.bf16.msra.mxu0 %v8591
        %8637 = vmatprep.subr.bf16.mxu0 0
        %8638 = vmatpush1.bf16.msra.mxu0 %v8592
        %8639 = vmatprep.subr.bf16.mxu0 0
        %8640 = vmatpush1.bf16.msra.mxu0 %v8593
        %8641 = vmatprep.subr.bf16.mxu0 0
        %8642 = vmatpush1.bf16.msra.mxu0 %v8594
        %8643 = vmatprep.mubr.bf16.mxu0 %v8475
        %8644 = vmatmul.mubr.bf16.gmra.mrb[0].mxu0 %v8474
        %v8645 = vpop.f32.mrb[0].mxu0
        %v8646 = vadd.f32 0.0, %v8645
        %v8647 = vpop.f32.mrb[0].mxu0
        %v8648 = vpop.f32.mrb[0].mxu0
        %v8649 = vadd.f32 0.0, %v8648
        %v8650 = vpop.f32.mrb[0].mxu0
        %8651 = vmatprep.mubr.bf16.mxu0 %v8477
        %8652 = vmatmul.mubr.bf16.gmra.mrb[0].mxu0 %v8476
        %v8653 = vpop.f32.mrb[0].mxu0
        %v8654 = vadd.f32 0.0, %v8653
        %v8655 = vpop.f32.mrb[0].mxu0
        %v8656 = vpop.f32.mrb[0].mxu0
        %v8657 = vadd.f32 0.0, %v8656
        %v8658 = vpop.f32.mrb[0].mxu0
        %8659 = vmatprep.mubr.bf16.mxu0 %v8479
        %8660 = vmatmul.mubr.bf16.gmra.mrb[0].mxu0 %v8478
        %v8661 = vpop.f32.mrb[0].mxu0
        %v8662 = vadd.f32 0.0, %v8661
        %v8663 = vpop.f32.mrb[0].mxu0
        %v8664 = vpop.f32.mrb[0].mxu0
        %v8665 = vadd.f32 0.0, %v8664
        %v8666 = vpop.f32.mrb[0].mxu0
        %8667 = vmatprep.mubr.bf16.mxu0 %v8481
        %8668 = vmatmul.mubr.bf16.gmra.mrb[0].mxu0 %v8480
        %v8669 = vpop.f32.mrb[0].mxu0
        %v8670 = vadd.f32 0.0, %v8669
        %v8671 = vpop.f32.mrb[0].mxu0
        %v8672 = vpop.f32.mrb[0].mxu0
        %v8673 = vadd.f32 0.0, %v8672
        %v8674 = vpop.f32.mrb[0].mxu0
        %8675 = vdwg.mxu0
        %v8676 = vadd.f32 %v8450, %v8646
        %v8677 = vadd.f32 %v8451, %v8649
        %v8678 = vadd.f32 %v8452, %v8654
        %v8679 = vadd.f32 %v8453, %v8657
        %v8680 = vadd.f32 %v8454, %v8662
        %v8681 = vadd.f32 %v8455, %v8665
        %v8682 = vadd.f32 %v8456, %v8670
        %v8683 = vadd.f32 %v8457, %v8673
        %v8684 = vld [vmem:[%s444] sm:$0xfe]
        %v8685 = vld [vmem:[%s444 + $0x8] sm:$0xfe]
        %v8686 = vld [vmem:[%s444 + $0x10] sm:$0x1]
        %v8687 = vld [vmem:[%s444 + $0x18] sm:$0x1]
        %v8688 = vld [vmem:[%s444 + $0x20] sm:$0xfe]
        %v8689 = vld [vmem:[%s444 + $0x28] sm:$0xfe]
        %v8690 = vld [vmem:[%s444 + $0x30] sm:$0x1]
        %v8691 = vld [vmem:[%s444 + $0x38] sm:$0x1]
        %v8692 = vld [vmem:[%s444 + $0x40] sm:$0xfe]
        %v8693 = vld [vmem:[%s444 + $0x48] sm:$0xfe]
        %v8694 = vld [vmem:[%s444 + $0x50] sm:$0x1]
        %v8695 = vld [vmem:[%s444 + $0x58] sm:$0x1]
        %v8696 = vld [vmem:[%s444 + $0x60] sm:$0xfe]
        %v8697 = vld [vmem:[%s444 + $0x68] sm:$0xfe]
        %v8698 = vld [vmem:[%s444 + $0x70] sm:$0x1]
        %v8699 = vld [vmem:[%s444 + $0x78] sm:$0x1]
        %v8700 = vld [vmem:[%s444 + $0x80] sm:$0xfe]
        %v8701 = vld [vmem:[%s444 + $0x88] sm:$0xfe]
        %v8702 = vld [vmem:[%s444 + $0x90] sm:$0x1]
        %v8703 = vld [vmem:[%s444 + $0x98] sm:$0x1]
        %v8704 = vld [vmem:[%s444 + $0xa0] sm:$0xfe]
        %v8705 = vld [vmem:[%s444 + $0xa8] sm:$0xfe]
        %v8706 = vld [vmem:[%s444 + $0xb0] sm:$0x1]
        %v8707 = vld [vmem:[%s444 + $0xb8] sm:$0x1]
        %v8708 = vld [vmem:[%s444 + $0xc0] sm:$0xfe]
        %v8709 = vld [vmem:[%s444 + $0xc8] sm:$0xfe]
        %v8710 = vld [vmem:[%s444 + $0xd0] sm:$0x1]
        %v8711 = vld [vmem:[%s444 + $0xd8] sm:$0x1]
        %v8712 = vld [vmem:[%s444 + $0xe0] sm:$0xfe]
        %v8713 = vld [vmem:[%s444 + $0xe8] sm:$0xfe]
        %v8714 = vld [vmem:[%s444 + $0xf0] sm:$0x1]
        %v8715 = vld [vmem:[%s444 + $0xf8] sm:$0x1]
        %v8748 = vrot.slane %v8684, 1
        %v8749 = vrot.slane %v8686, 1
        %v8750 = vsel %vm858, %v8748, %v8749
        %v8751 = vrot.slane %v8685, 1
        %v8752 = vrot.slane %v8687, 1
        %v8753 = vsel %vm858, %v8751, %v8752
        %v8754 = vrot.slane %v8688, 1
        %v8755 = vrot.slane %v8690, 1
        %v8756 = vsel %vm858, %v8754, %v8755
        %v8757 = vrot.slane %v8689, 1
        %v8758 = vrot.slane %v8691, 1
        %v8759 = vsel %vm858, %v8757, %v8758
        %v8760 = vrot.slane %v8692, 1
        %v8761 = vrot.slane %v8694, 1
        %v8762 = vsel %vm858, %v8760, %v8761
        %v8763 = vrot.slane %v8693, 1
        %v8764 = vrot.slane %v8695, 1
        %v8765 = vsel %vm858, %v8763, %v8764
        %v8766 = vrot.slane %v8696, 1
        %v8767 = vrot.slane %v8698, 1
        %v8768 = vsel %vm858, %v8766, %v8767
        %v8769 = vrot.slane %v8697, 1
        %v8770 = vrot.slane %v8699, 1
        %v8771 = vsel %vm858, %v8769, %v8770
        %v8772 = vrot.slane %v8700, 1
        %v8773 = vrot.slane %v8702, 1
        %v8774 = vsel %vm858, %v8772, %v8773
        %v8775 = vrot.slane %v8701, 1
        %v8776 = vrot.slane %v8703, 1
        %v8777 = vsel %vm858, %v8775, %v8776
        %v8778 = vrot.slane %v8704, 1
        %v8779 = vrot.slane %v8706, 1
        %v8780 = vsel %vm858, %v8778, %v8779
        %v8781 = vrot.slane %v8705, 1
        %v8782 = vrot.slane %v8707, 1
        %v8783 = vsel %vm858, %v8781, %v8782
        %v8784 = vrot.slane %v8708, 1
        %v8785 = vrot.slane %v8710, 1
        %v8786 = vsel %vm858, %v8784, %v8785
        %v8787 = vrot.slane %v8709, 1
        %v8788 = vrot.slane %v8711, 1
        %v8789 = vsel %vm858, %v8787, %v8788
        %v8790 = vrot.slane %v8712, 1
        %v8791 = vrot.slane %v8714, 1
        %v8792 = vsel %vm858, %v8790, %v8791
        %v8793 = vrot.slane %v8713, 1
        %v8794 = vrot.slane %v8715, 1
        %v8795 = vsel %vm858, %v8793, %v8794
        %v8812 = vpack.c.bf16 %v8756, %v8750
        %v8813 = vpack.c.bf16 %v8759, %v8753
        %v8814 = vpack.c.bf16 %v8768, %v8762
        %v8815 = vpack.c.bf16 %v8771, %v8765
        %v8816 = vpack.c.bf16 %v8780, %v8774
        %v8817 = vpack.c.bf16 %v8783, %v8777
        %v8818 = vpack.c.bf16 %v8792, %v8786
        %v8819 = vpack.c.bf16 %v8795, %v8789
        %s8820 = scalar_lea.vmem [#allocation10], 512
        %v8821 = vld [vmem:[%s8820] sm:$0xf]
        %v8822 = vld [vmem:[%s8820 + $0x4] sm:$0xf]
        %v8823 = vld [vmem:[%s8820 + $0x8] sm:$0xf]
        %v8824 = vld [vmem:[%s8820 + $0xc] sm:$0xf]
        %v8825 = vld [vmem:[%s8820 + $0x10] sm:$0xf]
        %v8826 = vld [vmem:[%s8820 + $0x14] sm:$0xf]
        %v8827 = vld [vmem:[%s8820 + $0x18] sm:$0xf]
        %v8828 = vld [vmem:[%s8820 + $0x1c] sm:$0xf]
        %v8829 = vld [vmem:[%s8820 + $0x20] sm:$0xf]
        %v8830 = vld [vmem:[%s8820 + $0x24] sm:$0xf]
        %v8831 = vld [vmem:[%s8820 + $0x28] sm:$0xf]
        %v8832 = vld [vmem:[%s8820 + $0x2c] sm:$0xf]
        %v8833 = vld [vmem:[%s8820 + $0x30] sm:$0xf]
        %v8834 = vld [vmem:[%s8820 + $0x34] sm:$0xf]
        %v8835 = vld [vmem:[%s8820 + $0x38] sm:$0xf]
        %v8836 = vld [vmem:[%s8820 + $0x3c] sm:$0xf]
        %v8837 = vld [vmem:[%s8820 + $0x40] sm:$0xf]
        %v8838 = vld [vmem:[%s8820 + $0x44] sm:$0xf]
        %v8839 = vld [vmem:[%s8820 + $0x48] sm:$0xf]
        %v8840 = vld [vmem:[%s8820 + $0x4c] sm:$0xf]
        %v8841 = vld [vmem:[%s8820 + $0x50] sm:$0xf]
        %v8842 = vld [vmem:[%s8820 + $0x54] sm:$0xf]
        %v8843 = vld [vmem:[%s8820 + $0x58] sm:$0xf]
        %v8844 = vld [vmem:[%s8820 + $0x5c] sm:$0xf]
        %v8845 = vld [vmem:[%s8820 + $0x60] sm:$0xf]
        %v8846 = vld [vmem:[%s8820 + $0x64] sm:$0xf]
        %v8847 = vld [vmem:[%s8820 + $0x68] sm:$0xf]
        %v8848 = vld [vmem:[%s8820 + $0x6c] sm:$0xf]
        %v8849 = vld [vmem:[%s8820 + $0x70] sm:$0xf]
        %v8850 = vld [vmem:[%s8820 + $0x74] sm:$0xf]
        %v8851 = vld [vmem:[%s8820 + $0x78] sm:$0xf]
        %v8852 = vld [vmem:[%s8820 + $0x7c] sm:$0xf]
        %v8885 = vunpack.c.l.b16 %v8821
        %v8886 = vunpack.c.l.b16 %v8822
        %v8887 = vunpack.c.l.b16 %v8823
        %v8888 = vunpack.c.l.b16 %v8824
        %v8889 = vunpack.c.l.b16 %v8825
        %v8890 = vunpack.c.l.b16 %v8826
        %v8891 = vunpack.c.l.b16 %v8827
        %v8892 = vunpack.c.l.b16 %v8828
        %v8893 = vunpack.c.l.b16 %v8829
        %v8894 = vunpack.c.l.b16 %v8830
        %v8895 = vunpack.c.l.b16 %v8831
        %v8896 = vunpack.c.l.b16 %v8832
        %v8897 = vunpack.c.l.b16 %v8833
        %v8898 = vunpack.c.l.b16 %v8834
        %v8899 = vunpack.c.l.b16 %v8835
        %v8900 = vunpack.c.l.b16 %v8836
        %v8901 = vunpack.c.l.b16 %v8837
        %v8902 = vunpack.c.l.b16 %v8838
        %v8903 = vunpack.c.l.b16 %v8839
        %v8904 = vunpack.c.l.b16 %v8840
        %v8905 = vunpack.c.l.b16 %v8841
        %v8906 = vunpack.c.l.b16 %v8842
        %v8907 = vunpack.c.l.b16 %v8843
        %v8908 = vunpack.c.l.b16 %v8844
        %v8909 = vunpack.c.l.b16 %v8845
        %v8910 = vunpack.c.l.b16 %v8846
        %v8911 = vunpack.c.l.b16 %v8847
        %v8912 = vunpack.c.l.b16 %v8848
        %v8913 = vunpack.c.l.b16 %v8849
        %v8914 = vunpack.c.l.b16 %v8850
        %v8915 = vunpack.c.l.b16 %v8851
        %v8916 = vunpack.c.l.b16 %v8852
        %v8917 = vpack.c.b16 %v8886, %v8885
        %v8918 = vpack.c.b16 %v8888, %v8887
        %v8919 = vpack.c.b16 %v8890, %v8889
        %v8920 = vpack.c.b16 %v8892, %v8891
        %v8921 = vpack.c.b16 %v8894, %v8893
        %v8922 = vpack.c.b16 %v8896, %v8895
        %v8923 = vpack.c.b16 %v8898, %v8897
        %v8924 = vpack.c.b16 %v8900, %v8899
        %v8925 = vpack.c.b16 %v8902, %v8901
        %v8926 = vpack.c.b16 %v8904, %v8903
        %v8927 = vpack.c.b16 %v8906, %v8905
        %v8928 = vpack.c.b16 %v8908, %v8907
        %v8929 = vpack.c.b16 %v8910, %v8909
        %v8930 = vpack.c.b16 %v8912, %v8911
        %v8931 = vpack.c.b16 %v8914, %v8913
        %v8932 = vpack.c.b16 %v8916, %v8915
        %8949 = vmatprep.subr.bf16.mxu0 0
        %8950 = vmatpush1.bf16.msra.mxu0 %v8917
        %8951 = vmatprep.subr.bf16.mxu0 0
        %8952 = vmatpush1.bf16.msra.mxu0 %v8918
        %8953 = vmatprep.subr.bf16.mxu0 0
        %8954 = vmatpush1.bf16.msra.mxu0 %v8919
        %8955 = vmatprep.subr.bf16.mxu0 0
        %8956 = vmatpush1.bf16.msra.mxu0 %v8920
        %8957 = vmatprep.subr.bf16.mxu0 0
        %8958 = vmatpush1.bf16.msra.mxu0 %v8921
        %8959 = vmatprep.subr.bf16.mxu0 0
        %8960 = vmatpush1.bf16.msra.mxu0 %v8922
        %8961 = vmatprep.subr.bf16.mxu0 0
        %8962 = vmatpush1.bf16.msra.mxu0 %v8923
        %8963 = vmatprep.subr.bf16.mxu0 0
        %8964 = vmatpush1.bf16.msra.mxu0 %v8924
        %8965 = vmatprep.subr.bf16.mxu0 0
        %8966 = vmatpush1.bf16.msra.mxu0 %v8925
        %8967 = vmatprep.subr.bf16.mxu0 0
        %8968 = vmatpush1.bf16.msra.mxu0 %v8926
        %8969 = vmatprep.subr.bf16.mxu0 0
        %8970 = vmatpush1.bf16.msra.mxu0 %v8927
        %8971 = vmatprep.subr.bf16.mxu0 0
        %8972 = vmatpush1.bf16.msra.mxu0 %v8928
        %8973 = vmatprep.subr.bf16.mxu0 0
        %8974 = vmatpush1.bf16.msra.mxu0 %v8929
        %8975 = vmatprep.subr.bf16.mxu0 0
        %8976 = vmatpush1.bf16.msra.mxu0 %v8930
        %8977 = vmatprep.subr.bf16.mxu0 0
        %8978 = vmatpush1.bf16.msra.mxu0 %v8931
        %8979 = vmatprep.subr.bf16.mxu0 0
        %8980 = vmatpush1.bf16.msra.mxu0 %v8932
        %8981 = vmatprep.mubr.bf16.mxu0 %v8813
        %8982 = vmatmul.mubr.bf16.gmra.mrb[0].mxu0 %v8812
        %v8983 = vpop.f32.mrb[0].mxu0
        %v8984 = vadd.f32 0.0, %v8983
        %v8985 = vpop.f32.mrb[0].mxu0
        %v8986 = vpop.f32.mrb[0].mxu0
        %v8987 = vadd.f32 0.0, %v8986
        %v8988 = vpop.f32.mrb[0].mxu0
        %8989 = vmatprep.mubr.bf16.mxu0 %v8815
        %8990 = vmatmul.mubr.bf16.gmra.mrb[0].mxu0 %v8814
        %v8991 = vpop.f32.mrb[0].mxu0
        %v8992 = vadd.f32 0.0, %v8991
        %v8993 = vpop.f32.mrb[0].mxu0
        %v8994 = vpop.f32.mrb[0].mxu0
        %v8995 = vadd.f32 0.0, %v8994
        %v8996 = vpop.f32.mrb[0].mxu0
        %8997 = vmatprep.mubr.bf16.mxu0 %v8817
        %8998 = vmatmul.mubr.bf16.gmra.mrb[0].mxu0 %v8816
        %v8999 = vpop.f32.mrb[0].mxu0
        %v9000 = vadd.f32 0.0, %v8999
        %v9001 = vpop.f32.mrb[0].mxu0
        %v9002 = vpop.f32.mrb[0].mxu0
        %v9003 = vadd.f32 0.0, %v9002
        %v9004 = vpop.f32.mrb[0].mxu0
        %9005 = vmatprep.mubr.bf16.mxu0 %v8819
        %9006 = vmatmul.mubr.bf16.gmra.mrb[0].mxu0 %v8818
        %v9007 = vpop.f32.mrb[0].mxu0
        %v9008 = vadd.f32 0.0, %v9007
        %v9009 = vpop.f32.mrb[0].mxu0
        %v9010 = vpop.f32.mrb[0].mxu0
        %v9011 = vadd.f32 0.0, %v9010
        %v9012 = vpop.f32.mrb[0].mxu0
        %9013 = vdwg.mxu0
        %v9014 = vadd.f32 %v8676, %v8984
        %v9015 = vadd.f32 %v8677, %v8987
        %v9016 = vadd.f32 %v8678, %v8992
        %v9017 = vadd.f32 %v8679, %v8995
        %v9018 = vadd.f32 %v8680, %v9000
        %v9019 = vadd.f32 %v8681, %v9003
        %v9020 = vadd.f32 %v8682, %v9008
        %v9021 = vadd.f32 %v8683, %v9011
        %v9022 = vld [vmem:[%s444] sm:$0xfc]
        %v9023 = vld [vmem:[%s444 + $0x8] sm:$0xfc]
        %v9024 = vld [vmem:[%s444 + $0x10] sm:$0x3]
        %v9025 = vld [vmem:[%s444 + $0x18] sm:$0x3]
        %v9026 = vld [vmem:[%s444 + $0x20] sm:$0xfc]
        %v9027 = vld [vmem:[%s444 + $0x28] sm:$0xfc]
        %v9028 = vld [vmem:[%s444 + $0x30] sm:$0x3]
        %v9029 = vld [vmem:[%s444 + $0x38] sm:$0x3]
        %v9030 = vld [vmem:[%s444 + $0x40] sm:$0xfc]
        %v9031 = vld [vmem:[%s444 + $0x48] sm:$0xfc]
        %v9032 = vld [vmem:[%s444 + $0x50] sm:$0x3]
        %v9033 = vld [vmem:[%s444 + $0x58] sm:$0x3]
        %v9034 = vld [vmem:[%s444 + $0x60] sm:$0xfc]
        %v9035 = vld [vmem:[%s444 + $0x68] sm:$0xfc]
        %v9036 = vld [vmem:[%s444 + $0x70] sm:$0x3]
        %v9037 = vld [vmem:[%s444 + $0x78] sm:$0x3]
        %v9038 = vld [vmem:[%s444 + $0x80] sm:$0xfc]
        %v9039 = vld [vmem:[%s444 + $0x88] sm:$0xfc]
        %v9040 = vld [vmem:[%s444 + $0x90] sm:$0x3]
        %v9041 = vld [vmem:[%s444 + $0x98] sm:$0x3]
        %v9042 = vld [vmem:[%s444 + $0xa0] sm:$0xfc]
        %v9043 = vld [vmem:[%s444 + $0xa8] sm:$0xfc]
        %v9044 = vld [vmem:[%s444 + $0xb0] sm:$0x3]
        %v9045 = vld [vmem:[%s444 + $0xb8] sm:$0x3]
        %v9046 = vld [vmem:[%s444 + $0xc0] sm:$0xfc]
        %v9047 = vld [vmem:[%s444 + $0xc8] sm:$0xfc]
        %v9048 = vld [vmem:[%s444 + $0xd0] sm:$0x3]
        %v9049 = vld [vmem:[%s444 + $0xd8] sm:$0x3]
        %v9050 = vld [vmem:[%s444 + $0xe0] sm:$0xfc]
        %v9051 = vld [vmem:[%s444 + $0xe8] sm:$0xfc]
        %v9052 = vld [vmem:[%s444 + $0xf0] sm:$0x3]
        %v9053 = vld [vmem:[%s444 + $0xf8] sm:$0x3]
        %v9086 = vrot.slane %v9022, 2
        %v9087 = vrot.slane %v9024, 2
        %v9088 = vsel %vm1277, %v9086, %v9087
        %v9089 = vrot.slane %v9023, 2
        %v9090 = vrot.slane %v9025, 2
        %v9091 = vsel %vm1277, %v9089, %v9090
        %v9092 = vrot.slane %v9026, 2
        %v9093 = vrot.slane %v9028, 2
        %v9094 = vsel %vm1277, %v9092, %v9093
        %v9095 = vrot.slane %v9027, 2
        %v9096 = vrot.slane %v9029, 2
        %v9097 = vsel %vm1277, %v9095, %v9096
        %v9098 = vrot.slane %v9030, 2
        %v9099 = vrot.slane %v9032, 2
        %v9100 = vsel %vm1277, %v9098, %v9099
        %v9101 = vrot.slane %v9031, 2
        %v9102 = vrot.slane %v9033, 2
        %v9103 = vsel %vm1277, %v9101, %v9102
        %v9104 = vrot.slane %v9034, 2
        %v9105 = vrot.slane %v9036, 2
        %v9106 = vsel %vm1277, %v9104, %v9105
        %v9107 = vrot.slane %v9035, 2
        %v9108 = vrot.slane %v9037, 2
        %v9109 = vsel %vm1277, %v9107, %v9108
        %v9110 = vrot.slane %v9038, 2
        %v9111 = vrot.slane %v9040, 2
        %v9112 = vsel %vm1277, %v9110, %v9111
        %v9113 = vrot.slane %v9039, 2
        %v9114 = vrot.slane %v9041, 2
        %v9115 = vsel %vm1277, %v9113, %v9114
        %v9116 = vrot.slane %v9042, 2
        %v9117 = vrot.slane %v9044, 2
        %v9118 = vsel %vm1277, %v9116, %v9117
        %v9119 = vrot.slane %v9043, 2
        %v9120 = vrot.slane %v9045, 2
        %v9121 = vsel %vm1277, %v9119, %v9120
        %v9122 = vrot.slane %v9046, 2
        %v9123 = vrot.slane %v9048, 2
        %v9124 = vsel %vm1277, %v9122, %v9123
        %v9125 = vrot.slane %v9047, 2
        %v9126 = vrot.slane %v9049, 2
        %v9127 = vsel %vm1277, %v9125, %v9126
        %v9128 = vrot.slane %v9050, 2
        %v9129 = vrot.slane %v9052, 2
        %v9130 = vsel %vm1277, %v9128, %v9129
        %v9131 = vrot.slane %v9051, 2
        %v9132 = vrot.slane %v9053, 2
        %v9133 = vsel %vm1277, %v9131, %v9132
        %v9150 = vpack.c.bf16 %v9094, %v9088
        %v9151 = vpack.c.bf16 %v9097, %v9091
        %v9152 = vpack.c.bf16 %v9106, %v9100
        %v9153 = vpack.c.bf16 %v9109, %v9103
        %v9154 = vpack.c.bf16 %v9118, %v9112
        %v9155 = vpack.c.bf16 %v9121, %v9115
        %v9156 = vpack.c.bf16 %v9130, %v9124
        %v9157 = vpack.c.bf16 %v9133, %v9127
        %s9158 = scalar_lea.vmem [#allocation10], 640
        %v9159 = vld [vmem:[%s9158] sm:$0xf]
        %v9160 = vld [vmem:[%s9158 + $0x4] sm:$0xf]
        %v9161 = vld [vmem:[%s9158 + $0x8] sm:$0xf]
        %v9162 = vld [vmem:[%s9158 + $0xc] sm:$0xf]
        %v9163 = vld [vmem:[%s9158 + $0x10] sm:$0xf]
        %v9164 = vld [vmem:[%s9158 + $0x14] sm:$0xf]
        %v9165 = vld [vmem:[%s9158 + $0x18] sm:$0xf]
        %v9166 = vld [vmem:[%s9158 + $0x1c] sm:$0xf]
        %v9167 = vld [vmem:[%s9158 + $0x20] sm:$0xf]
        %v9168 = vld [vmem:[%s9158 + $0x24] sm:$0xf]
        %v9169 = vld [vmem:[%s9158 + $0x28] sm:$0xf]
        %v9170 = vld [vmem:[%s9158 + $0x2c] sm:$0xf]
        %v9171 = vld [vmem:[%s9158 + $0x30] sm:$0xf]
        %v9172 = vld [vmem:[%s9158 + $0x34] sm:$0xf]
        %v9173 = vld [vmem:[%s9158 + $0x38] sm:$0xf]
        %v9174 = vld [vmem:[%s9158 + $0x3c] sm:$0xf]
        %v9175 = vld [vmem:[%s9158 + $0x40] sm:$0xf]
        %v9176 = vld [vmem:[%s9158 + $0x44] sm:$0xf]
        %v9177 = vld [vmem:[%s9158 + $0x48] sm:$0xf]
        %v9178 = vld [vmem:[%s9158 + $0x4c] sm:$0xf]
        %v9179 = vld [vmem:[%s9158 + $0x50] sm:$0xf]
        %v9180 = vld [vmem:[%s9158 + $0x54] sm:$0xf]
        %v9181 = vld [vmem:[%s9158 + $0x58] sm:$0xf]
        %v9182 = vld [vmem:[%s9158 + $0x5c] sm:$0xf]
        %v9183 = vld [vmem:[%s9158 + $0x60] sm:$0xf]
        %v9184 = vld [vmem:[%s9158 + $0x64] sm:$0xf]
        %v9185 = vld [vmem:[%s9158 + $0x68] sm:$0xf]
        %v9186 = vld [vmem:[%s9158 + $0x6c] sm:$0xf]
        %v9187 = vld [vmem:[%s9158 + $0x70] sm:$0xf]
        %v9188 = vld [vmem:[%s9158 + $0x74] sm:$0xf]
        %v9189 = vld [vmem:[%s9158 + $0x78] sm:$0xf]
        %v9190 = vld [vmem:[%s9158 + $0x7c] sm:$0xf]
        %v9223 = vunpack.c.l.b16 %v9159
        %v9224 = vunpack.c.l.b16 %v9160
        %v9225 = vunpack.c.l.b16 %v9161
        %v9226 = vunpack.c.l.b16 %v9162
        %v9227 = vunpack.c.l.b16 %v9163
        %v9228 = vunpack.c.l.b16 %v9164
        %v9229 = vunpack.c.l.b16 %v9165
        %v9230 = vunpack.c.l.b16 %v9166
        %v9231 = vunpack.c.l.b16 %v9167
        %v9232 = vunpack.c.l.b16 %v9168
        %v9233 = vunpack.c.l.b16 %v9169
        %v9234 = vunpack.c.l.b16 %v9170
        %v9235 = vunpack.c.l.b16 %v9171
        %v9236 = vunpack.c.l.b16 %v9172
        %v9237 = vunpack.c.l.b16 %v9173
        %v9238 = vunpack.c.l.b16 %v9174
        %v9239 = vunpack.c.l.b16 %v9175
        %v9240 = vunpack.c.l.b16 %v9176
        %v9241 = vunpack.c.l.b16 %v9177
        %v9242 = vunpack.c.l.b16 %v9178
        %v9243 = vunpack.c.l.b16 %v9179
        %v9244 = vunpack.c.l.b16 %v9180
        %v9245 = vunpack.c.l.b16 %v9181
        %v9246 = vunpack.c.l.b16 %v9182
        %v9247 = vunpack.c.l.b16 %v9183
        %v9248 = vunpack.c.l.b16 %v9184
        %v9249 = vunpack.c.l.b16 %v9185
        %v9250 = vunpack.c.l.b16 %v9186
        %v9251 = vunpack.c.l.b16 %v9187
        %v9252 = vunpack.c.l.b16 %v9188
        %v9253 = vunpack.c.l.b16 %v9189
        %v9254 = vunpack.c.l.b16 %v9190
        %v9255 = vpack.c.b16 %v9224, %v9223
        %v9256 = vpack.c.b16 %v9226, %v9225
        %v9257 = vpack.c.b16 %v9228, %v9227
        %v9258 = vpack.c.b16 %v9230, %v9229
        %v9259 = vpack.c.b16 %v9232, %v9231
        %v9260 = vpack.c.b16 %v9234, %v9233
        %v9261 = vpack.c.b16 %v9236, %v9235
        %v9262 = vpack.c.b16 %v9238, %v9237
        %v9263 = vpack.c.b16 %v9240, %v9239
        %v9264 = vpack.c.b16 %v9242, %v9241
        %v9265 = vpack.c.b16 %v9244, %v9243
        %v9266 = vpack.c.b16 %v9246, %v9245
        %v9267 = vpack.c.b16 %v9248, %v9247
        %v9268 = vpack.c.b16 %v9250, %v9249
        %v9269 = vpack.c.b16 %v9252, %v9251
        %v9270 = vpack.c.b16 %v9254, %v9253
        %9287 = vmatprep.subr.bf16.mxu0 0
        %9288 = vmatpush1.bf16.msra.mxu0 %v9255
        %9289 = vmatprep.subr.bf16.mxu0 0
        %9290 = vmatpush1.bf16.msra.mxu0 %v9256
        %9291 = vmatprep.subr.bf16.mxu0 0
        %9292 = vmatpush1.bf16.msra.mxu0 %v9257
        %9293 = vmatprep.subr.bf16.mxu0 0
        %9294 = vmatpush1.bf16.msra.mxu0 %v9258
        %9295 = vmatprep.subr.bf16.mxu0 0
        %9296 = vmatpush1.bf16.msra.mxu0 %v9259
        %9297 = vmatprep.subr.bf16.mxu0 0
        %9298 = vmatpush1.bf16.msra.mxu0 %v9260
        %9299 = vmatprep.subr.bf16.mxu0 0
        %9300 = vmatpush1.bf16.msra.mxu0 %v9261
        %9301 = vmatprep.subr.bf16.mxu0 0
        %9302 = vmatpush1.bf16.msra.mxu0 %v9262
        %9303 = vmatprep.subr.bf16.mxu0 0
        %9304 = vmatpush1.bf16.msra.mxu0 %v9263
        %9305 = vmatprep.subr.bf16.mxu0 0
        %9306 = vmatpush1.bf16.msra.mxu0 %v9264
        %9307 = vmatprep.subr.bf16.mxu0 0
        %9308 = vmatpush1.bf16.msra.mxu0 %v9265
        %9309 = vmatprep.subr.bf16.mxu0 0
        %9310 = vmatpush1.bf16.msra.mxu0 %v9266
        %9311 = vmatprep.subr.bf16.mxu0 0
        %9312 = vmatpush1.bf16.msra.mxu0 %v9267
        %9313 = vmatprep.subr.bf16.mxu0 0
        %9314 = vmatpush1.bf16.msra.mxu0 %v9268
        %9315 = vmatprep.subr.bf16.mxu0 0
        %9316 = vmatpush1.bf16.msra.mxu0 %v9269
        %9317 = vmatprep.subr.bf16.mxu0 0
        %9318 = vmatpush1.bf16.msra.mxu0 %v9270
        %9319 = vmatprep.mubr.bf16.mxu0 %v9151
        %9320 = vmatmul.mubr.bf16.gmra.mrb[0].mxu0 %v9150
        %v9321 = vpop.f32.mrb[0].mxu0
        %v9322 = vadd.f32 0.0, %v9321
        %v9323 = vpop.f32.mrb[0].mxu0
        %v9324 = vpop.f32.mrb[0].mxu0
        %v9325 = vadd.f32 0.0, %v9324
        %v9326 = vpop.f32.mrb[0].mxu0
        %9327 = vmatprep.mubr.bf16.mxu0 %v9153
        %9328 = vmatmul.mubr.bf16.gmra.mrb[0].mxu0 %v9152
        %v9329 = vpop.f32.mrb[0].mxu0
        %v9330 = vadd.f32 0.0, %v9329
        %v9331 = vpop.f32.mrb[0].mxu0
        %v9332 = vpop.f32.mrb[0].mxu0
        %v9333 = vadd.f32 0.0, %v9332
        %v9334 = vpop.f32.mrb[0].mxu0
        %9335 = vmatprep.mubr.bf16.mxu0 %v9155
        %9336 = vmatmul.mubr.bf16.gmra.mrb[0].mxu0 %v9154
        %v9337 = vpop.f32.mrb[0].mxu0
        %v9338 = vadd.f32 0.0, %v9337
        %v9339 = vpop.f32.mrb[0].mxu0
        %v9340 = vpop.f32.mrb[0].mxu0
        %v9341 = vadd.f32 0.0, %v9340
        %v9342 = vpop.f32.mrb[0].mxu0
        %9343 = vmatprep.mubr.bf16.mxu0 %v9157
        %9344 = vmatmul.mubr.bf16.gmra.mrb[0].mxu0 %v9156
        %v9345 = vpop.f32.mrb[0].mxu0
        %v9346 = vadd.f32 0.0, %v9345
        %v9347 = vpop.f32.mrb[0].mxu0
        %v9348 = vpop.f32.mrb[0].mxu0
        %v9349 = vadd.f32 0.0, %v9348
        %v9350 = vpop.f32.mrb[0].mxu0
        %9351 = vdwg.mxu0
        %v9352 = vadd.f32 %v9014, %v9322
        %v9353 = vadd.f32 %v9015, %v9325
        %v9354 = vadd.f32 %v9016, %v9330
        %v9355 = vadd.f32 %v9017, %v9333
        %v9356 = vadd.f32 %v9018, %v9338
        %v9357 = vadd.f32 %v9019, %v9341
        %v9358 = vadd.f32 %v9020, %v9346
        %v9359 = vadd.f32 %v9021, %v9349
        %v9360 = vld [vmem:[%s2774] sm:$0xff]
        %v9361 = vld [vmem:[%s2774 + $0x8] sm:$0xff]
        %v9362 = vld [vmem:[%s2774 + $0x20] sm:$0xff]
        %v9363 = vld [vmem:[%s2774 + $0x28] sm:$0xff]
        %v9364 = vld [vmem:[%s2774 + $0x40] sm:$0xff]
        %v9365 = vld [vmem:[%s2774 + $0x48] sm:$0xff]
        %v9366 = vld [vmem:[%s2774 + $0x60] sm:$0xff]
        %v9367 = vld [vmem:[%s2774 + $0x68] sm:$0xff]
        %v9368 = vld [vmem:[%s2774 + $0x80] sm:$0xff]
        %v9369 = vld [vmem:[%s2774 + $0x88] sm:$0xff]
        %v9370 = vld [vmem:[%s2774 + $0xa0] sm:$0xff]
        %v9371 = vld [vmem:[%s2774 + $0xa8] sm:$0xff]
        %v9372 = vld [vmem:[%s2774 + $0xc0] sm:$0xff]
        %v9373 = vld [vmem:[%s2774 + $0xc8] sm:$0xff]
        %v9374 = vld [vmem:[%s2774 + $0xe0] sm:$0xff]
        %v9375 = vld [vmem:[%s2774 + $0xe8] sm:$0xff]
        %v9376 = vpack.c.bf16 %v9362, %v9360
        %v9377 = vpack.c.bf16 %v9363, %v9361
        %v9378 = vpack.c.bf16 %v9366, %v9364
        %v9379 = vpack.c.bf16 %v9367, %v9365
        %v9380 = vpack.c.bf16 %v9370, %v9368
        %v9381 = vpack.c.bf16 %v9371, %v9369
        %v9382 = vpack.c.bf16 %v9374, %v9372
        %v9383 = vpack.c.bf16 %v9375, %v9373
        %s9384 = scalar_lea.vmem [#allocation10], 768
        %v9385 = vld [vmem:[%s9384] sm:$0xf]
        %v9386 = vld [vmem:[%s9384 + $0x4] sm:$0xf]
        %v9387 = vld [vmem:[%s9384 + $0x8] sm:$0xf]
        %v9388 = vld [vmem:[%s9384 + $0xc] sm:$0xf]
        %v9389 = vld [vmem:[%s9384 + $0x10] sm:$0xf]
        %v9390 = vld [vmem:[%s9384 + $0x14] sm:$0xf]
        %v9391 = vld [vmem:[%s9384 + $0x18] sm:$0xf]
        %v9392 = vld [vmem:[%s9384 + $0x1c] sm:$0xf]
        %v9393 = vld [vmem:[%s9384 + $0x20] sm:$0xf]
        %v9394 = vld [vmem:[%s9384 + $0x24] sm:$0xf]
        %v9395 = vld [vmem:[%s9384 + $0x28] sm:$0xf]
        %v9396 = vld [vmem:[%s9384 + $0x2c] sm:$0xf]
        %v9397 = vld [vmem:[%s9384 + $0x30] sm:$0xf]
        %v9398 = vld [vmem:[%s9384 + $0x34] sm:$0xf]
        %v9399 = vld [vmem:[%s9384 + $0x38] sm:$0xf]
        %v9400 = vld [vmem:[%s9384 + $0x3c] sm:$0xf]
        %v9401 = vld [vmem:[%s9384 + $0x40] sm:$0xf]
        %v9402 = vld [vmem:[%s9384 + $0x44] sm:$0xf]
        %v9403 = vld [vmem:[%s9384 + $0x48] sm:$0xf]
        %v9404 = vld [vmem:[%s9384 + $0x4c] sm:$0xf]
        %v9405 = vld [vmem:[%s9384 + $0x50] sm:$0xf]
        %v9406 = vld [vmem:[%s9384 + $0x54] sm:$0xf]
        %v9407 = vld [vmem:[%s9384 + $0x58] sm:$0xf]
        %v9408 = vld [vmem:[%s9384 + $0x5c] sm:$0xf]
        %v9409 = vld [vmem:[%s9384 + $0x60] sm:$0xf]
        %v9410 = vld [vmem:[%s9384 + $0x64] sm:$0xf]
        %v9411 = vld [vmem:[%s9384 + $0x68] sm:$0xf]
        %v9412 = vld [vmem:[%s9384 + $0x6c] sm:$0xf]
        %v9413 = vld [vmem:[%s9384 + $0x70] sm:$0xf]
        %v9414 = vld [vmem:[%s9384 + $0x74] sm:$0xf]
        %v9415 = vld [vmem:[%s9384 + $0x78] sm:$0xf]
        %v9416 = vld [vmem:[%s9384 + $0x7c] sm:$0xf]
        %v9449 = vunpack.c.l.b16 %v9385
        %v9450 = vunpack.c.l.b16 %v9386
        %v9451 = vunpack.c.l.b16 %v9387
        %v9452 = vunpack.c.l.b16 %v9388
        %v9453 = vunpack.c.l.b16 %v9389
        %v9454 = vunpack.c.l.b16 %v9390
        %v9455 = vunpack.c.l.b16 %v9391
        %v9456 = vunpack.c.l.b16 %v9392
        %v9457 = vunpack.c.l.b16 %v9393
        %v9458 = vunpack.c.l.b16 %v9394
        %v9459 = vunpack.c.l.b16 %v9395
        %v9460 = vunpack.c.l.b16 %v9396
        %v9461 = vunpack.c.l.b16 %v9397
        %v9462 = vunpack.c.l.b16 %v9398
        %v9463 = vunpack.c.l.b16 %v9399
        %v9464 = vunpack.c.l.b16 %v9400
        %v9465 = vunpack.c.l.b16 %v9401
        %v9466 = vunpack.c.l.b16 %v9402
        %v9467 = vunpack.c.l.b16 %v9403
        %v9468 = vunpack.c.l.b16 %v9404
        %v9469 = vunpack.c.l.b16 %v9405
        %v9470 = vunpack.c.l.b16 %v9406
        %v9471 = vunpack.c.l.b16 %v9407
        %v9472 = vunpack.c.l.b16 %v9408
        %v9473 = vunpack.c.l.b16 %v9409
        %v9474 = vunpack.c.l.b16 %v9410
        %v9475 = vunpack.c.l.b16 %v9411
        %v9476 = vunpack.c.l.b16 %v9412
        %v9477 = vunpack.c.l.b16 %v9413
        %v9478 = vunpack.c.l.b16 %v9414
        %v9479 = vunpack.c.l.b16 %v9415
        %v9480 = vunpack.c.l.b16 %v9416
        %v9481 = vpack.c.b16 %v9450, %v9449
        %v9482 = vpack.c.b16 %v9452, %v9451
        %v9483 = vpack.c.b16 %v9454, %v9453
        %v9484 = vpack.c.b16 %v9456, %v9455
        %v9485 = vpack.c.b16 %v9458, %v9457
        %v9486 = vpack.c.b16 %v9460, %v9459
        %v9487 = vpack.c.b16 %v9462, %v9461
        %v9488 = vpack.c.b16 %v9464, %v9463
        %v9489 = vpack.c.b16 %v9466, %v9465
        %v9490 = vpack.c.b16 %v9468, %v9467
        %v9491 = vpack.c.b16 %v9470, %v9469
        %v9492 = vpack.c.b16 %v9472, %v9471
        %v9493 = vpack.c.b16 %v9474, %v9473
        %v9494 = vpack.c.b16 %v9476, %v9475
        %v9495 = vpack.c.b16 %v9478, %v9477
        %v9496 = vpack.c.b16 %v9480, %v9479
        %9513 = vmatprep.subr.bf16.mxu0 0
        %9514 = vmatpush1.bf16.msra.mxu0 %v9481
        %9515 = vmatprep.subr.bf16.mxu0 0
        %9516 = vmatpush1.bf16.msra.mxu0 %v9482
        %9517 = vmatprep.subr.bf16.mxu0 0
        %9518 = vmatpush1.bf16.msra.mxu0 %v9483
        %9519 = vmatprep.subr.bf16.mxu0 0
        %9520 = vmatpush1.bf16.msra.mxu0 %v9484
        %9521 = vmatprep.subr.bf16.mxu0 0
        %9522 = vmatpush1.bf16.msra.mxu0 %v9485
        %9523 = vmatprep.subr.bf16.mxu0 0
        %9524 = vmatpush1.bf16.msra.mxu0 %v9486
        %9525 = vmatprep.subr.bf16.mxu0 0
        %9526 = vmatpush1.bf16.msra.mxu0 %v9487
        %9527 = vmatprep.subr.bf16.mxu0 0
        %9528 = vmatpush1.bf16.msra.mxu0 %v9488
        %9529 = vmatprep.subr.bf16.mxu0 0
        %9530 = vmatpush1.bf16.msra.mxu0 %v9489
        %9531 = vmatprep.subr.bf16.mxu0 0
        %9532 = vmatpush1.bf16.msra.mxu0 %v9490
        %9533 = vmatprep.subr.bf16.mxu0 0
        %9534 = vmatpush1.bf16.msra.mxu0 %v9491
        %9535 = vmatprep.subr.bf16.mxu0 0
        %9536 = vmatpush1.bf16.msra.mxu0 %v9492
        %9537 = vmatprep.subr.bf16.mxu0 0
        %9538 = vmatpush1.bf16.msra.mxu0 %v9493
        %9539 = vmatprep.subr.bf16.mxu0 0
        %9540 = vmatpush1.bf16.msra.mxu0 %v9494
        %9541 = vmatprep.subr.bf16.mxu0 0
        %9542 = vmatpush1.bf16.msra.mxu0 %v9495
        %9543 = vmatprep.subr.bf16.mxu0 0
        %9544 = vmatpush1.bf16.msra.mxu0 %v9496
        %9545 = vmatprep.mubr.bf16.mxu0 %v9377
        %9546 = vmatmul.mubr.bf16.gmra.mrb[0].mxu0 %v9376
        %v9547 = vpop.f32.mrb[0].mxu0
        %v9548 = vadd.f32 0.0, %v9547
        %v9549 = vpop.f32.mrb[0].mxu0
        %v9550 = vpop.f32.mrb[0].mxu0
        %v9551 = vadd.f32 0.0, %v9550
        %v9552 = vpop.f32.mrb[0].mxu0
        %9553 = vmatprep.mubr.bf16.mxu0 %v9379
        %9554 = vmatmul.mubr.bf16.gmra.mrb[0].mxu0 %v9378
        %v9555 = vpop.f32.mrb[0].mxu0
        %v9556 = vadd.f32 0.0, %v9555
        %v9557 = vpop.f32.mrb[0].mxu0
        %v9558 = vpop.f32.mrb[0].mxu0
        %v9559 = vadd.f32 0.0, %v9558
        %v9560 = vpop.f32.mrb[0].mxu0
        %9561 = vmatprep.mubr.bf16.mxu0 %v9381
        %9562 = vmatmul.mubr.bf16.gmra.mrb[0].mxu0 %v9380
        %v9563 = vpop.f32.mrb[0].mxu0
        %v9564 = vadd.f32 0.0, %v9563
        %v9565 = vpop.f32.mrb[0].mxu0
        %v9566 = vpop.f32.mrb[0].mxu0
        %v9567 = vadd.f32 0.0, %v9566
        %v9568 = vpop.f32.mrb[0].mxu0
        %9569 = vmatprep.mubr.bf16.mxu0 %v9383
        %9570 = vmatmul.mubr.bf16.gmra.mrb[0].mxu0 %v9382
        %v9571 = vpop.f32.mrb[0].mxu0
        %v9572 = vadd.f32 0.0, %v9571
        %v9573 = vpop.f32.mrb[0].mxu0
        %v9574 = vpop.f32.mrb[0].mxu0
        %v9575 = vadd.f32 0.0, %v9574
        %v9576 = vpop.f32.mrb[0].mxu0
        %9577 = vdwg.mxu0
        %v9578 = vadd.f32 %v9352, %v9548
        %v9579 = vadd.f32 %v9353, %v9551
        %v9580 = vadd.f32 %v9354, %v9556
        %v9581 = vadd.f32 %v9355, %v9559
        %v9582 = vadd.f32 %v9356, %v9564
        %v9583 = vadd.f32 %v9357, %v9567
        %v9584 = vadd.f32 %v9358, %v9572
        %v9585 = vadd.f32 %v9359, %v9575
        %v9586 = vld [vmem:[%s2774] sm:$0xfe]
        %v9587 = vld [vmem:[%s2774 + $0x8] sm:$0xfe]
        %v9588 = vld [vmem:[%s2774 + $0x10] sm:$0x1]
        %v9589 = vld [vmem:[%s2774 + $0x18] sm:$0x1]
        %v9590 = vld [vmem:[%s2774 + $0x20] sm:$0xfe]
        %v9591 = vld [vmem:[%s2774 + $0x28] sm:$0xfe]
        %v9592 = vld [vmem:[%s2774 + $0x30] sm:$0x1]
        %v9593 = vld [vmem:[%s2774 + $0x38] sm:$0x1]
        %v9594 = vld [vmem:[%s2774 + $0x40] sm:$0xfe]
        %v9595 = vld [vmem:[%s2774 + $0x48] sm:$0xfe]
        %v9596 = vld [vmem:[%s2774 + $0x50] sm:$0x1]
        %v9597 = vld [vmem:[%s2774 + $0x58] sm:$0x1]
        %v9598 = vld [vmem:[%s2774 + $0x60] sm:$0xfe]
        %v9599 = vld [vmem:[%s2774 + $0x68] sm:$0xfe]
        %v9600 = vld [vmem:[%s2774 + $0x70] sm:$0x1]
        %v9601 = vld [vmem:[%s2774 + $0x78] sm:$0x1]
        %v9602 = vld [vmem:[%s2774 + $0x80] sm:$0xfe]
        %v9603 = vld [vmem:[%s2774 + $0x88] sm:$0xfe]
        %v9604 = vld [vmem:[%s2774 + $0x90] sm:$0x1]
        %v9605 = vld [vmem:[%s2774 + $0x98] sm:$0x1]
        %v9606 = vld [vmem:[%s2774 + $0xa0] sm:$0xfe]
        %v9607 = vld [vmem:[%s2774 + $0xa8] sm:$0xfe]
        %v9608 = vld [vmem:[%s2774 + $0xb0] sm:$0x1]
        %v9609 = vld [vmem:[%s2774 + $0xb8] sm:$0x1]
        %v9610 = vld [vmem:[%s2774 + $0xc0] sm:$0xfe]
        %v9611 = vld [vmem:[%s2774 + $0xc8] sm:$0xfe]
        %v9612 = vld [vmem:[%s2774 + $0xd0] sm:$0x1]
        %v9613 = vld [vmem:[%s2774 + $0xd8] sm:$0x1]
        %v9614 = vld [vmem:[%s2774 + $0xe0] sm:$0xfe]
        %v9615 = vld [vmem:[%s2774 + $0xe8] sm:$0xfe]
        %v9616 = vld [vmem:[%s2774 + $0xf0] sm:$0x1]
        %v9617 = vld [vmem:[%s2774 + $0xf8] sm:$0x1]
        %v9650 = vrot.slane %v9586, 1
        %v9651 = vrot.slane %v9588, 1
        %v9652 = vsel %vm858, %v9650, %v9651
        %v9653 = vrot.slane %v9587, 1
        %v9654 = vrot.slane %v9589, 1
        %v9655 = vsel %vm858, %v9653, %v9654
        %v9656 = vrot.slane %v9590, 1
        %v9657 = vrot.slane %v9592, 1
        %v9658 = vsel %vm858, %v9656, %v9657
        %v9659 = vrot.slane %v9591, 1
        %v9660 = vrot.slane %v9593, 1
        %v9661 = vsel %vm858, %v9659, %v9660
        %v9662 = vrot.slane %v9594, 1
        %v9663 = vrot.slane %v9596, 1
        %v9664 = vsel %vm858, %v9662, %v9663
        %v9665 = vrot.slane %v9595, 1
        %v9666 = vrot.slane %v9597, 1
        %v9667 = vsel %vm858, %v9665, %v9666
        %v9668 = vrot.slane %v9598, 1
        %v9669 = vrot.slane %v9600, 1
        %v9670 = vsel %vm858, %v9668, %v9669
        %v9671 = vrot.slane %v9599, 1
        %v9672 = vrot.slane %v9601, 1
        %v9673 = vsel %vm858, %v9671, %v9672
        %v9674 = vrot.slane %v9602, 1
        %v9675 = vrot.slane %v9604, 1
        %v9676 = vsel %vm858, %v9674, %v9675
        %v9677 = vrot.slane %v9603, 1
        %v9678 = vrot.slane %v9605, 1
        %v9679 = vsel %vm858, %v9677, %v9678
        %v9680 = vrot.slane %v9606, 1
        %v9681 = vrot.slane %v9608, 1
        %v9682 = vsel %vm858, %v9680, %v9681
        %v9683 = vrot.slane %v9607, 1
        %v9684 = vrot.slane %v9609, 1
        %v9685 = vsel %vm858, %v9683, %v9684
        %v9686 = vrot.slane %v9610, 1
        %v9687 = vrot.slane %v9612, 1
        %v9688 = vsel %vm858, %v9686, %v9687
        %v9689 = vrot.slane %v9611, 1
        %v9690 = vrot.slane %v9613, 1
        %v9691 = vsel %vm858, %v9689, %v9690
        %v9692 = vrot.slane %v9614, 1
        %v9693 = vrot.slane %v9616, 1
        %v9694 = vsel %vm858, %v9692, %v9693
        %v9695 = vrot.slane %v9615, 1
        %v9696 = vrot.slane %v9617, 1
        %v9697 = vsel %vm858, %v9695, %v9696
        %v9714 = vpack.c.bf16 %v9658, %v9652
        %v9715 = vpack.c.bf16 %v9661, %v9655
        %v9716 = vpack.c.bf16 %v9670, %v9664
        %v9717 = vpack.c.bf16 %v9673, %v9667
        %v9718 = vpack.c.bf16 %v9682, %v9676
        %v9719 = vpack.c.bf16 %v9685, %v9679
        %v9720 = vpack.c.bf16 %v9694, %v9688
        %v9721 = vpack.c.bf16 %v9697, %v9691
        %s9722 = scalar_lea.vmem [#allocation10], 896
        %v9723 = vld [vmem:[%s9722] sm:$0xf]
        %v9724 = vld [vmem:[%s9722 + $0x4] sm:$0xf]
        %v9725 = vld [vmem:[%s9722 + $0x8] sm:$0xf]
        %v9726 = vld [vmem:[%s9722 + $0xc] sm:$0xf]
        %v9727 = vld [vmem:[%s9722 + $0x10] sm:$0xf]
        %v9728 = vld [vmem:[%s9722 + $0x14] sm:$0xf]
        %v9729 = vld [vmem:[%s9722 + $0x18] sm:$0xf]
        %v9730 = vld [vmem:[%s9722 + $0x1c] sm:$0xf]
        %v9731 = vld [vmem:[%s9722 + $0x20] sm:$0xf]
        %v9732 = vld [vmem:[%s9722 + $0x24] sm:$0xf]
        %v9733 = vld [vmem:[%s9722 + $0x28] sm:$0xf]
        %v9734 = vld [vmem:[%s9722 + $0x2c] sm:$0xf]
        %v9735 = vld [vmem:[%s9722 + $0x30] sm:$0xf]
        %v9736 = vld [vmem:[%s9722 + $0x34] sm:$0xf]
        %v9737 = vld [vmem:[%s9722 + $0x38] sm:$0xf]
        %v9738 = vld [vmem:[%s9722 + $0x3c] sm:$0xf]
        %v9739 = vld [vmem:[%s9722 + $0x40] sm:$0xf]
        %v9740 = vld [vmem:[%s9722 + $0x44] sm:$0xf]
        %v9741 = vld [vmem:[%s9722 + $0x48] sm:$0xf]
        %v9742 = vld [vmem:[%s9722 + $0x4c] sm:$0xf]
        %v9743 = vld [vmem:[%s9722 + $0x50] sm:$0xf]
        %v9744 = vld [vmem:[%s9722 + $0x54] sm:$0xf]
        %v9745 = vld [vmem:[%s9722 + $0x58] sm:$0xf]
        %v9746 = vld [vmem:[%s9722 + $0x5c] sm:$0xf]
        %v9747 = vld [vmem:[%s9722 + $0x60] sm:$0xf]
        %v9748 = vld [vmem:[%s9722 + $0x64] sm:$0xf]
        %v9749 = vld [vmem:[%s9722 + $0x68] sm:$0xf]
        %v9750 = vld [vmem:[%s9722 + $0x6c] sm:$0xf]
        %v9751 = vld [vmem:[%s9722 + $0x70] sm:$0xf]
        %v9752 = vld [vmem:[%s9722 + $0x74] sm:$0xf]
        %v9753 = vld [vmem:[%s9722 + $0x78] sm:$0xf]
        %v9754 = vld [vmem:[%s9722 + $0x7c] sm:$0xf]
        %v9787 = vunpack.c.l.b16 %v9723
        %v9788 = vunpack.c.l.b16 %v9724
        %v9789 = vunpack.c.l.b16 %v9725
        %v9790 = vunpack.c.l.b16 %v9726
        %v9791 = vunpack.c.l.b16 %v9727
        %v9792 = vunpack.c.l.b16 %v9728
        %v9793 = vunpack.c.l.b16 %v9729
        %v9794 = vunpack.c.l.b16 %v9730
        %v9795 = vunpack.c.l.b16 %v9731
        %v9796 = vunpack.c.l.b16 %v9732
        %v9797 = vunpack.c.l.b16 %v9733
        %v9798 = vunpack.c.l.b16 %v9734
        %v9799 = vunpack.c.l.b16 %v9735
        %v9800 = vunpack.c.l.b16 %v9736
        %v9801 = vunpack.c.l.b16 %v9737
        %v9802 = vunpack.c.l.b16 %v9738
        %v9803 = vunpack.c.l.b16 %v9739
        %v9804 = vunpack.c.l.b16 %v9740
        %v9805 = vunpack.c.l.b16 %v9741
        %v9806 = vunpack.c.l.b16 %v9742
        %v9807 = vunpack.c.l.b16 %v9743
        %v9808 = vunpack.c.l.b16 %v9744
        %v9809 = vunpack.c.l.b16 %v9745
        %v9810 = vunpack.c.l.b16 %v9746
        %v9811 = vunpack.c.l.b16 %v9747
        %v9812 = vunpack.c.l.b16 %v9748
        %v9813 = vunpack.c.l.b16 %v9749
        %v9814 = vunpack.c.l.b16 %v9750
        %v9815 = vunpack.c.l.b16 %v9751
        %v9816 = vunpack.c.l.b16 %v9752
        %v9817 = vunpack.c.l.b16 %v9753
        %v9818 = vunpack.c.l.b16 %v9754
        %v9819 = vpack.c.b16 %v9788, %v9787
        %v9820 = vpack.c.b16 %v9790, %v9789
        %v9821 = vpack.c.b16 %v9792, %v9791
        %v9822 = vpack.c.b16 %v9794, %v9793
        %v9823 = vpack.c.b16 %v9796, %v9795
        %v9824 = vpack.c.b16 %v9798, %v9797
        %v9825 = vpack.c.b16 %v9800, %v9799
        %v9826 = vpack.c.b16 %v9802, %v9801
        %v9827 = vpack.c.b16 %v9804, %v9803
        %v9828 = vpack.c.b16 %v9806, %v9805
        %v9829 = vpack.c.b16 %v9808, %v9807
        %v9830 = vpack.c.b16 %v9810, %v9809
        %v9831 = vpack.c.b16 %v9812, %v9811
        %v9832 = vpack.c.b16 %v9814, %v9813
        %v9833 = vpack.c.b16 %v9816, %v9815
        %v9834 = vpack.c.b16 %v9818, %v9817
        %9851 = vmatprep.subr.bf16.mxu0 0
        %9852 = vmatpush1.bf16.msra.mxu0 %v9819
        %9853 = vmatprep.subr.bf16.mxu0 0
        %9854 = vmatpush1.bf16.msra.mxu0 %v9820
        %9855 = vmatprep.subr.bf16.mxu0 0
        %9856 = vmatpush1.bf16.msra.mxu0 %v9821
        %9857 = vmatprep.subr.bf16.mxu0 0
        %9858 = vmatpush1.bf16.msra.mxu0 %v9822
        %9859 = vmatprep.subr.bf16.mxu0 0
        %9860 = vmatpush1.bf16.msra.mxu0 %v9823
        %9861 = vmatprep.subr.bf16.mxu0 0
        %9862 = vmatpush1.bf16.msra.mxu0 %v9824
        %9863 = vmatprep.subr.bf16.mxu0 0
        %9864 = vmatpush1.bf16.msra.mxu0 %v9825
        %9865 = vmatprep.subr.bf16.mxu0 0
        %9866 = vmatpush1.bf16.msra.mxu0 %v9826
        %9867 = vmatprep.subr.bf16.mxu0 0
        %9868 = vmatpush1.bf16.msra.mxu0 %v9827
        %9869 = vmatprep.subr.bf16.mxu0 0
        %9870 = vmatpush1.bf16.msra.mxu0 %v9828
        %9871 = vmatprep.subr.bf16.mxu0 0
        %9872 = vmatpush1.bf16.msra.mxu0 %v9829
        %9873 = vmatprep.subr.bf16.mxu0 0
        %9874 = vmatpush1.bf16.msra.mxu0 %v9830
        %9875 = vmatprep.subr.bf16.mxu0 0
        %9876 = vmatpush1.bf16.msra.mxu0 %v9831
        %9877 = vmatprep.subr.bf16.mxu0 0
        %9878 = vmatpush1.bf16.msra.mxu0 %v9832
        %9879 = vmatprep.subr.bf16.mxu0 0
        %9880 = vmatpush1.bf16.msra.mxu0 %v9833
        %9881 = vmatprep.subr.bf16.mxu0 0
        %9882 = vmatpush1.bf16.msra.mxu0 %v9834
        %9883 = vmatprep.mubr.bf16.mxu0 %v9715
        %9884 = vmatmul.mubr.bf16.gmra.mrb[0].mxu0 %v9714
        %v9885 = vpop.f32.mrb[0].mxu0
        %v9886 = vadd.f32 0.0, %v9885
        %v9887 = vpop.f32.mrb[0].mxu0
        %v9888 = vpop.f32.mrb[0].mxu0
        %v9889 = vadd.f32 0.0, %v9888
        %v9890 = vpop.f32.mrb[0].mxu0
        %9891 = vmatprep.mubr.bf16.mxu0 %v9717
        %9892 = vmatmul.mubr.bf16.gmra.mrb[0].mxu0 %v9716
        %v9893 = vpop.f32.mrb[0].mxu0
        %v9894 = vadd.f32 0.0, %v9893
        %v9895 = vpop.f32.mrb[0].mxu0
        %v9896 = vpop.f32.mrb[0].mxu0
        %v9897 = vadd.f32 0.0, %v9896
        %v9898 = vpop.f32.mrb[0].mxu0
        %9899 = vmatprep.mubr.bf16.mxu0 %v9719
        %9900 = vmatmul.mubr.bf16.gmra.mrb[0].mxu0 %v9718
        %v9901 = vpop.f32.mrb[0].mxu0
        %v9902 = vadd.f32 0.0, %v9901
        %v9903 = vpop.f32.mrb[0].mxu0
        %v9904 = vpop.f32.mrb[0].mxu0
        %v9905 = vadd.f32 0.0, %v9904
        %v9906 = vpop.f32.mrb[0].mxu0
        %9907 = vmatprep.mubr.bf16.mxu0 %v9721
        %9908 = vmatmul.mubr.bf16.gmra.mrb[0].mxu0 %v9720
        %v9909 = vpop.f32.mrb[0].mxu0
        %v9910 = vadd.f32 0.0, %v9909
        %v9911 = vpop.f32.mrb[0].mxu0
        %v9912 = vpop.f32.mrb[0].mxu0
        %v9913 = vadd.f32 0.0, %v9912
        %v9914 = vpop.f32.mrb[0].mxu0
        %9915 = vdwg.mxu0
        %v9916 = vadd.f32 %v9578, %v9886
        %v9917 = vadd.f32 %v9579, %v9889
        %v9918 = vadd.f32 %v9580, %v9894
        %v9919 = vadd.f32 %v9581, %v9897
        %v9920 = vadd.f32 %v9582, %v9902
        %v9921 = vadd.f32 %v9583, %v9905
        %v9922 = vadd.f32 %v9584, %v9910
        %v9923 = vadd.f32 %v9585, %v9913
        %v9924 = vld [vmem:[%s2774] sm:$0xfc]
        %v9925 = vld [vmem:[%s2774 + $0x8] sm:$0xfc]
        %v9926 = vld [vmem:[%s2774 + $0x10] sm:$0x3]
        %v9927 = vld [vmem:[%s2774 + $0x18] sm:$0x3]
        %v9928 = vld [vmem:[%s2774 + $0x20] sm:$0xfc]
        %v9929 = vld [vmem:[%s2774 + $0x28] sm:$0xfc]
        %v9930 = vld [vmem:[%s2774 + $0x30] sm:$0x3]
        %v9931 = vld [vmem:[%s2774 + $0x38] sm:$0x3]
        %v9932 = vld [vmem:[%s2774 + $0x40] sm:$0xfc]
        %v9933 = vld [vmem:[%s2774 + $0x48] sm:$0xfc]
        %v9934 = vld [vmem:[%s2774 + $0x50] sm:$0x3]
        %v9935 = vld [vmem:[%s2774 + $0x58] sm:$0x3]
        %v9936 = vld [vmem:[%s2774 + $0x60] sm:$0xfc]
        %v9937 = vld [vmem:[%s2774 + $0x68] sm:$0xfc]
        %v9938 = vld [vmem:[%s2774 + $0x70] sm:$0x3]
        %v9939 = vld [vmem:[%s2774 + $0x78] sm:$0x3]
        %v9940 = vld [vmem:[%s2774 + $0x80] sm:$0xfc]
        %v9941 = vld [vmem:[%s2774 + $0x88] sm:$0xfc]
        %v9942 = vld [vmem:[%s2774 + $0x90] sm:$0x3]
        %v9943 = vld [vmem:[%s2774 + $0x98] sm:$0x3]
        %v9944 = vld [vmem:[%s2774 + $0xa0] sm:$0xfc]
        %v9945 = vld [vmem:[%s2774 + $0xa8] sm:$0xfc]
        %v9946 = vld [vmem:[%s2774 + $0xb0] sm:$0x3]
        %v9947 = vld [vmem:[%s2774 + $0xb8] sm:$0x3]
        %v9948 = vld [vmem:[%s2774 + $0xc0] sm:$0xfc]
        %v9949 = vld [vmem:[%s2774 + $0xc8] sm:$0xfc]
        %v9950 = vld [vmem:[%s2774 + $0xd0] sm:$0x3]
        %v9951 = vld [vmem:[%s2774 + $0xd8] sm:$0x3]
        %v9952 = vld [vmem:[%s2774 + $0xe0] sm:$0xfc]
        %v9953 = vld [vmem:[%s2774 + $0xe8] sm:$0xfc]
        %v9954 = vld [vmem:[%s2774 + $0xf0] sm:$0x3]
        %v9955 = vld [vmem:[%s2774 + $0xf8] sm:$0x3]
        %v9988 = vrot.slane %v9924, 2
        %v9989 = vrot.slane %v9926, 2
        %v9990 = vsel %vm1277, %v9988, %v9989
        %v9991 = vrot.slane %v9925, 2
        %v9992 = vrot.slane %v9927, 2
        %v9993 = vsel %vm1277, %v9991, %v9992
        %v9994 = vrot.slane %v9928, 2
        %v9995 = vrot.slane %v9930, 2
        %v9996 = vsel %vm1277, %v9994, %v9995
        %v9997 = vrot.slane %v9929, 2
        %v9998 = vrot.slane %v9931, 2
        %v9999 = vsel %vm1277, %v9997, %v9998
        %v10000 = vrot.slane %v9932, 2
        %v10001 = vrot.slane %v9934, 2
        %v10002 = vsel %vm1277, %v10000, %v10001
        %v10003 = vrot.slane %v9933, 2
        %v10004 = vrot.slane %v9935, 2
        %v10005 = vsel %vm1277, %v10003, %v10004
        %v10006 = vrot.slane %v9936, 2
        %v10007 = vrot.slane %v9938, 2
        %v10008 = vsel %vm1277, %v10006, %v10007
        %v10009 = vrot.slane %v9937, 2
        %v10010 = vrot.slane %v9939, 2
        %v10011 = vsel %vm1277, %v10009, %v10010
        %v10012 = vrot.slane %v9940, 2
        %v10013 = vrot.slane %v9942, 2
        %v10014 = vsel %vm1277, %v10012, %v10013
        %v10015 = vrot.slane %v9941, 2
        %v10016 = vrot.slane %v9943, 2
        %v10017 = vsel %vm1277, %v10015, %v10016
        %v10018 = vrot.slane %v9944, 2
        %v10019 = vrot.slane %v9946, 2
        %v10020 = vsel %vm1277, %v10018, %v10019
        %v10021 = vrot.slane %v9945, 2
        %v10022 = vrot.slane %v9947, 2
        %v10023 = vsel %vm1277, %v10021, %v10022
        %v10024 = vrot.slane %v9948, 2
        %v10025 = vrot.slane %v9950, 2
        %v10026 = vsel %vm1277, %v10024, %v10025
        %v10027 = vrot.slane %v9949, 2
        %v10028 = vrot.slane %v9951, 2
        %v10029 = vsel %vm1277, %v10027, %v10028
        %v10030 = vrot.slane %v9952, 2
        %v10031 = vrot.slane %v9954, 2
        %v10032 = vsel %vm1277, %v10030, %v10031
        %v10033 = vrot.slane %v9953, 2
        %v10034 = vrot.slane %v9955, 2
        %v10035 = vsel %vm1277, %v10033, %v10034
        %v10052 = vpack.c.bf16 %v9996, %v9990
        %v10053 = vpack.c.bf16 %v9999, %v9993
        %v10054 = vpack.c.bf16 %v10008, %v10002
        %v10055 = vpack.c.bf16 %v10011, %v10005
        %v10056 = vpack.c.bf16 %v10020, %v10014
        %v10057 = vpack.c.bf16 %v10023, %v10017
        %v10058 = vpack.c.bf16 %v10032, %v10026
        %v10059 = vpack.c.bf16 %v10035, %v10029
        %s10060 = scalar_lea.vmem [#allocation10], 1024
        %v10061 = vld [vmem:[%s10060] sm:$0xf]
        %v10062 = vld [vmem:[%s10060 + $0x4] sm:$0xf]
        %v10063 = vld [vmem:[%s10060 + $0x8] sm:$0xf]
        %v10064 = vld [vmem:[%s10060 + $0xc] sm:$0xf]
        %v10065 = vld [vmem:[%s10060 + $0x10] sm:$0xf]
        %v10066 = vld [vmem:[%s10060 + $0x14] sm:$0xf]
        %v10067 = vld [vmem:[%s10060 + $0x18] sm:$0xf]
        %v10068 = vld [vmem:[%s10060 + $0x1c] sm:$0xf]
        %v10069 = vld [vmem:[%s10060 + $0x20] sm:$0xf]
        %v10070 = vld [vmem:[%s10060 + $0x24] sm:$0xf]
        %v10071 = vld [vmem:[%s10060 + $0x28] sm:$0xf]
        %v10072 = vld [vmem:[%s10060 + $0x2c] sm:$0xf]
        %v10073 = vld [vmem:[%s10060 + $0x30] sm:$0xf]
        %v10074 = vld [vmem:[%s10060 + $0x34] sm:$0xf]
        %v10075 = vld [vmem:[%s10060 + $0x38] sm:$0xf]
        %v10076 = vld [vmem:[%s10060 + $0x3c] sm:$0xf]
        %v10077 = vld [vmem:[%s10060 + $0x40] sm:$0xf]
        %v10078 = vld [vmem:[%s10060 + $0x44] sm:$0xf]
        %v10079 = vld [vmem:[%s10060 + $0x48] sm:$0xf]
        %v10080 = vld [vmem:[%s10060 + $0x4c] sm:$0xf]
        %v10081 = vld [vmem:[%s10060 + $0x50] sm:$0xf]
        %v10082 = vld [vmem:[%s10060 + $0x54] sm:$0xf]
        %v10083 = vld [vmem:[%s10060 + $0x58] sm:$0xf]
        %v10084 = vld [vmem:[%s10060 + $0x5c] sm:$0xf]
        %v10085 = vld [vmem:[%s10060 + $0x60] sm:$0xf]
        %v10086 = vld [vmem:[%s10060 + $0x64] sm:$0xf]
        %v10087 = vld [vmem:[%s10060 + $0x68] sm:$0xf]
        %v10088 = vld [vmem:[%s10060 + $0x6c] sm:$0xf]
        %v10089 = vld [vmem:[%s10060 + $0x70] sm:$0xf]
        %v10090 = vld [vmem:[%s10060 + $0x74] sm:$0xf]
        %v10091 = vld [vmem:[%s10060 + $0x78] sm:$0xf]
        %v10092 = vld [vmem:[%s10060 + $0x7c] sm:$0xf]
        %v10125 = vunpack.c.l.b16 %v10061
        %v10126 = vunpack.c.l.b16 %v10062
        %v10127 = vunpack.c.l.b16 %v10063
        %v10128 = vunpack.c.l.b16 %v10064
        %v10129 = vunpack.c.l.b16 %v10065
        %v10130 = vunpack.c.l.b16 %v10066
        %v10131 = vunpack.c.l.b16 %v10067
        %v10132 = vunpack.c.l.b16 %v10068
        %v10133 = vunpack.c.l.b16 %v10069
        %v10134 = vunpack.c.l.b16 %v10070
        %v10135 = vunpack.c.l.b16 %v10071
        %v10136 = vunpack.c.l.b16 %v10072
        %v10137 = vunpack.c.l.b16 %v10073
        %v10138 = vunpack.c.l.b16 %v10074
        %v10139 = vunpack.c.l.b16 %v10075
        %v10140 = vunpack.c.l.b16 %v10076
        %v10141 = vunpack.c.l.b16 %v10077
        %v10142 = vunpack.c.l.b16 %v10078
        %v10143 = vunpack.c.l.b16 %v10079
        %v10144 = vunpack.c.l.b16 %v10080
        %v10145 = vunpack.c.l.b16 %v10081
        %v10146 = vunpack.c.l.b16 %v10082
        %v10147 = vunpack.c.l.b16 %v10083
        %v10148 = vunpack.c.l.b16 %v10084
        %v10149 = vunpack.c.l.b16 %v10085
        %v10150 = vunpack.c.l.b16 %v10086
        %v10151 = vunpack.c.l.b16 %v10087
        %v10152 = vunpack.c.l.b16 %v10088
        %v10153 = vunpack.c.l.b16 %v10089
        %v10154 = vunpack.c.l.b16 %v10090
        %v10155 = vunpack.c.l.b16 %v10091
        %v10156 = vunpack.c.l.b16 %v10092
        %v10157 = vpack.c.b16 %v10126, %v10125
        %v10158 = vpack.c.b16 %v10128, %v10127
        %v10159 = vpack.c.b16 %v10130, %v10129
        %v10160 = vpack.c.b16 %v10132, %v10131
        %v10161 = vpack.c.b16 %v10134, %v10133
        %v10162 = vpack.c.b16 %v10136, %v10135
        %v10163 = vpack.c.b16 %v10138, %v10137
        %v10164 = vpack.c.b16 %v10140, %v10139
        %v10165 = vpack.c.b16 %v10142, %v10141
        %v10166 = vpack.c.b16 %v10144, %v10143
        %v10167 = vpack.c.b16 %v10146, %v10145
        %v10168 = vpack.c.b16 %v10148, %v10147
        %v10169 = vpack.c.b16 %v10150, %v10149
        %v10170 = vpack.c.b16 %v10152, %v10151
        %v10171 = vpack.c.b16 %v10154, %v10153
        %v10172 = vpack.c.b16 %v10156, %v10155
        %10189 = vmatprep.subr.bf16.mxu0 0
        %10190 = vmatpush1.bf16.msra.mxu0 %v10157
        %10191 = vmatprep.subr.bf16.mxu0 0
        %10192 = vmatpush1.bf16.msra.mxu0 %v10158
        %10193 = vmatprep.subr.bf16.mxu0 0
        %10194 = vmatpush1.bf16.msra.mxu0 %v10159
        %10195 = vmatprep.subr.bf16.mxu0 0
        %10196 = vmatpush1.bf16.msra.mxu0 %v10160
        %10197 = vmatprep.subr.bf16.mxu0 0
        %10198 = vmatpush1.bf16.msra.mxu0 %v10161
        %10199 = vmatprep.subr.bf16.mxu0 0
        %10200 = vmatpush1.bf16.msra.mxu0 %v10162
        %10201 = vmatprep.subr.bf16.mxu0 0
        %10202 = vmatpush1.bf16.msra.mxu0 %v10163
        %10203 = vmatprep.subr.bf16.mxu0 0
        %10204 = vmatpush1.bf16.msra.mxu0 %v10164
        %10205 = vmatprep.subr.bf16.mxu0 0
        %10206 = vmatpush1.bf16.msra.mxu0 %v10165
        %10207 = vmatprep.subr.bf16.mxu0 0
        %10208 = vmatpush1.bf16.msra.mxu0 %v10166
        %10209 = vmatprep.subr.bf16.mxu0 0
        %10210 = vmatpush1.bf16.msra.mxu0 %v10167
        %10211 = vmatprep.subr.bf16.mxu0 0
        %10212 = vmatpush1.bf16.msra.mxu0 %v10168
        %10213 = vmatprep.subr.bf16.mxu0 0
        %10214 = vmatpush1.bf16.msra.mxu0 %v10169
        %10215 = vmatprep.subr.bf16.mxu0 0
        %10216 = vmatpush1.bf16.msra.mxu0 %v10170
        %10217 = vmatprep.subr.bf16.mxu0 0
        %10218 = vmatpush1.bf16.msra.mxu0 %v10171
        %10219 = vmatprep.subr.bf16.mxu0 0
        %10220 = vmatpush1.bf16.msra.mxu0 %v10172
        %10221 = vmatprep.mubr.bf16.mxu0 %v10053
        %10222 = vmatmul.mubr.bf16.gmra.mrb[0].mxu0 %v10052
        %v10223 = vpop.f32.mrb[0].mxu0
        %v10224 = vadd.f32 0.0, %v10223
        %v10225 = vpop.f32.mrb[0].mxu0
        %v10226 = vpop.f32.mrb[0].mxu0
        %v10227 = vadd.f32 0.0, %v10226
        %v10228 = vpop.f32.mrb[0].mxu0
        %10229 = vmatprep.mubr.bf16.mxu0 %v10055
        %10230 = vmatmul.mubr.bf16.gmra.mrb[0].mxu0 %v10054
        %v10231 = vpop.f32.mrb[0].mxu0
        %v10232 = vadd.f32 0.0, %v10231
        %v10233 = vpop.f32.mrb[0].mxu0
        %v10234 = vpop.f32.mrb[0].mxu0
        %v10235 = vadd.f32 0.0, %v10234
        %v10236 = vpop.f32.mrb[0].mxu0
        %10237 = vmatprep.mubr.bf16.mxu0 %v10057
        %10238 = vmatmul.mubr.bf16.gmra.mrb[0].mxu0 %v10056
        %v10239 = vpop.f32.mrb[0].mxu0
        %v10240 = vadd.f32 0.0, %v10239
        %v10241 = vpop.f32.mrb[0].mxu0
        %v10242 = vpop.f32.mrb[0].mxu0
        %v10243 = vadd.f32 0.0, %v10242
        %v10244 = vpop.f32.mrb[0].mxu0
        %10245 = vmatprep.mubr.bf16.mxu0 %v10059
        %10246 = vmatmul.mubr.bf16.gmra.mrb[0].mxu0 %v10058
        %v10247 = vpop.f32.mrb[0].mxu0
        %v10248 = vadd.f32 0.0, %v10247
        %v10249 = vpop.f32.mrb[0].mxu0
        %v10250 = vpop.f32.mrb[0].mxu0
        %v10251 = vadd.f32 0.0, %v10250
        %v10252 = vpop.f32.mrb[0].mxu0
        %10253 = vdwg.mxu0
        %v10254 = vadd.f32 %v9916, %v10224
        %v10255 = vadd.f32 %v9917, %v10227
        %v10256 = vadd.f32 %v9918, %v10232
        %v10257 = vadd.f32 %v9919, %v10235
        %v10258 = vadd.f32 %v9920, %v10240
        %v10259 = vadd.f32 %v9921, %v10243
        %v10260 = vadd.f32 %v9922, %v10248
        %v10261 = vadd.f32 %v9923, %v10251
        %10262 = vst [vmem:[%s298] sm:$0xff] %v10254
        %10263 = vst [vmem:[%s298 + $0x8] sm:$0xff] %v10255
        %10264 = vst [vmem:[%s298 + $0x10] sm:$0xff] %v10256
        %10265 = vst [vmem:[%s298 + $0x18] sm:$0xff] %v10257
        %10266 = vst [vmem:[%s298 + $0x20] sm:$0xff] %v10258
        %10267 = vst [vmem:[%s298 + $0x28] sm:$0xff] %v10259
        %10268 = vst [vmem:[%s298 + $0x30] sm:$0xff] %v10260
        %10269 = vst [vmem:[%s298 + $0x38] sm:$0xff] %v10261
        %s10270 = sand.u32 %s142, 1
        %s10271 = scalar_lea.sflag [#allocation6], %s10270
        %s10272 = sand.u32 %s142, 1
        %s10273 = smul.addr %s10272, 64
        %s10274 = scalar_lea.vmem [#allocation13], %s10273
        // Predicated region
        $region61: #{tpu_custom_call.1} parent=39 // pred_check
          %p10275 = pneg %p152
        $region62: #{tpu_custom_call.1} parent=39 // pred_check_branch
          %10277 = sbr.rel (%p10275) target = $region64
        $region63: #{tpu_custom_call.1} parent=39 // pred_region
          %s10279 = ssub.s32 1024, 1024
          %10280 = vsyncadd %s10271, %s10279
          %s10281 = smul.addr %s24, 8
          %s10282 = smul.addr %s10281, 128
          %s10283 = scalar_lea.hbm %s5, %s10282
          %s10284 = sshll.u32 %s10274, 4
          %s10285 = int_to_ptr.vmem [resolvable:$true] %s10284
          %10290 = dma.vmem_to_hbm [thread:$0]  %s10285, 1024, %s10283, %s10271, 128, 128, 8
        $region64: #{tpu_custom_call.1} parent=39 // pred_fallthru
          _
      $region40: #{tpu_custom_call.1} parent=5 // pred_fallthru
        _
      %p10291 = scmp.le.s32.totalorder 2, %s19
      // Predicated region
      $region65: #{tpu_custom_call.1} parent=5 // pred_check
        %p10292 = pneg %p10291
      $region66: #{tpu_custom_call.1} parent=5 // pred_check_branch
        %10294 = sbr.rel (%p10292) target = $region68
      $region67: #{tpu_custom_call.1} parent=5 // pred_region
        %s10295 = ssub.s32 %s19, 2
        // Predicated region
        $region69: #{tpu_custom_call.1} parent=67 // pred_check
          %p10296 = pneg %p158
        $region70: #{tpu_custom_call.1} parent=67 // pred_check_branch
          %10298 = sbr.rel (%p10296) target = $region72
        $region71: #{tpu_custom_call.1} parent=67 // pred_region
          %s10299 = sand.u32 %s143, 1
          %s10300 = scalar_lea.sflag [#allocation6], %s10299
          %s10301 = sand.u32 %s143, 1
          %s10302 = smul.addr %s10301, 64
          %s10303 = scalar_lea.vmem [#allocation13], %s10302
          %10304 = dma.done %s10300, 1024
        $region72: #{tpu_custom_call.1} parent=67 // pred_fallthru
          _
      $region68: #{tpu_custom_call.1} parent=5 // pred_fallthru
        _
    $region6: #{tpu_custom_call.1} parent=1 // loop_footer
      %s23 = sadd.s32 1, %s19
    $region7: #{tpu_custom_call.1} parent=1 // loop_footer_branch
      %18 = sbr.rel target = $region3
    $region8: #{tpu_custom_call.1} parent=1 // loop_exit
      _
    %10305 = vsyncpa [#allocation5], 1
    %s10306 = scalar_lea.sflag [#allocation5], 1
    %10307 = vsyncpa %s10306, 1
    %10308 = vsyncpa [#allocation8], 1
    %10309 = vsyncpa [#allocation11], 1
    %10310 = vsyncpa [#allocation6], 1
    %s10311 = scalar_lea.sflag [#allocation6], 1
    %10312 = vsyncpa %s10311, 1

</llo_original>
